<compile_context>
chip_gen: v5e
topology: v5e:2x2
jax: 0.10.0
libtpu: 0.0.40
codegen_flags: <defaults>
</compile_context>

<pallas_src>
import functools
import math

import jax
import jax.numpy as jnp
from jax import lax
from jax.experimental import pallas as pl
from jax.experimental.pallas import tpu as pltpu


def _round_up(x, m):
    return ((x + m - 1) // m) * m


def _vmem_budget_bytes():
    """~3/4 of this chip's VMEM (fallback: v7x's 64 MiB per-TC VMEM)."""
    try:
        cap = int(pltpu.get_tpu_info().vmem_capacity_bytes)
    except Exception:
        cap = 64 << 20
    return (cap * 3) // 4


def _vmem_bytes(Tt, Bp, Hp, Vin_p, Vp, L, w_itemsize, single_buffer_weights):
    """Rough resident-VMEM estimate for one grid step (used to bound Tt)."""
    f32 = 4
    wbuf = 1 if single_buffer_weights else 2
    x_io = 2 * Tt * Bp * Vin_p * w_itemsize                       # x chunk (pipelined)
    out_io = 2 * Tt * Bp * Vp * f32                               # logits chunk (pipelined)
    weights = (Vin_p * 4 * Hp + max(L - 1, 1) * Hp * 4 * Hp
               + L * Hp * 4 * Hp + Hp * Vp) * w_itemsize * wbuf
    biases = (L * 4 * Hp + Vp) * f32 * wbuf
    states_io = 2 * L * Bp * Hp * f32 * (wbuf + 2)                # h0/c0 in + hN/cN out
    scratch = (2 * Tt * Bp * Hp + Tt * Bp * 4 * Hp + 2 * L * Bp * Hp) * f32
    return x_io + out_io + weights + biases + states_io + scratch


# --------------------------------------------------------------------------
# Fused Pallas kernel: all LSTM layers + final Linear, grid over time chunks
# --------------------------------------------------------------------------
def fused_rnn_kernel(x_ref, w_ih0_ref, w_ihr_ref, w_hh_ref, b_ref, h0_ref,
                     c0_ref, w_fc_ref, b_fc_ref,
                     out_ref, hN_ref, cN_ref,
                     act0_ref, act1_ref, gx_ref, h_ref, c_ref,
                     *, seq_len, unroll, batch_major_out):
    """One time-chunk of the stacked-LSTM + Linear forward.

    x_ref    : (Tt*Bp, Vin_p)  time-major rows (t, b) of the padded input chunk
    w_ih0_ref: (Vin_p, 4Hp)    layer-0 input->gates weights (pre-transposed)
    w_ihr_ref: (max(L-1,1), Hp, 4Hp)  input->gates for layers >= 1
    w_hh_ref : (L, Hp, 4Hp)    hidden->gates weights (pre-transposed)
    b_ref    : (L, 1, 4Hp)     combined bias (b_ih + b_hh), f32
    h0/c0    : (L, Bp, Hp)     initial states (read only at grid step 0)
    w_fc_ref : (Hp, Vp)        final Linear weight (pre-transposed)
    b_fc_ref : (1, Vp)         final Linear bias, f32
    out_ref  : (Bp, Tt, Vp)    batch-major logits chunk   (batch_major_out)
               (Tt*Bp, Vp)     time-major logits chunk    (otherwise)
    hN/cN    : (L, Bp, Hp)     final states (valid after last grid step)
    act0/1   : (Tt*Bp, Hp)     VMEM ping/pong inter-layer activations (f32)
    gx_ref   : (Tt*Bp, 4Hp)    hoisted input projection scratch (f32)
    h_ref/c_ref: (L, Bp, Hp)   recurrence carry across grid steps (f32)
    Gate order follows PyTorch: [i, f, g, o].
    """
    Bp = h0_ref.shape[1]
    L, _, Hp = h0_ref.shape
    Tt = x_ref.shape[0] // Bp
    Vp = w_fc_ref.shape[1]
    cdt = w_hh_ref.dtype                        # matmul-operand compute dtype
    needs_mask = (seq_len % Tt) != 0
    t0 = pl.program_id(0) * Tt

    @pl.when(pl.program_id(0) == 0)
    def _init():
        h_ref[...] = h0_ref[...]
        c_ref[...] = c0_ref[...]

    buffers = (act0_ref, act1_ref)

    for l in range(L):
        # Hoisted input projection + bias: ONE well-shaped MXU matmul for the
        # whole chunk, written to VMEM scratch so the serial loop only keeps
        # (h, c) and one gate slab live in vregs.
        if l == 0:
            inp = x_ref[...]                                   # bf16/f32 rows
            w_ih = w_ih0_ref[...]
        else:
            inp = buffers[(l - 1) % 2][...].astype(cdt)
            w_ih = w_ihr_ref[l - 1]
        gx_ref[...] = (jnp.dot(inp, w_ih, preferred_element_type=jnp.float32)
                       + b_ref[l])
        # TODO(synk): inter-layer nn.Dropout omitted (eval-mode identity).

        dst = buffers[l % 2]
        w_hh = w_hh_ref[l]                                     # (Hp, 4Hp)

        def step(t, carry):
            h, c = carry
            row = pl.multiple_of(t * Bp, Bp)
            gates = gx_ref[pl.ds(row, Bp), :] + jnp.dot(
                h.astype(cdt), w_hh, preferred_element_type=jnp.float32)
            i_g = jax.nn.sigmoid(gates[:, 0 * Hp:1 * Hp])
            f_g = jax.nn.sigmoid(gates[:, 1 * Hp:2 * Hp])
            g_g = jnp.tanh(gates[:, 2 * Hp:3 * Hp])
            o_g = jax.nn.sigmoid(gates[:, 3 * Hp:4 * Hp])
            c_new = f_g * c + i_g * g_g
            h_new = o_g * jnp.tanh(c_new)
            if needs_mask:
                valid = (t0 + t) < seq_len       # freeze state on padded steps
                h_new = jnp.where(valid, h_new, h)
                c_new = jnp.where(valid, c_new, c)
            dst[pl.ds(row, Bp), :] = h_new       # lane-dense aligned store
            return (h_new, c_new)

        # Modest-unroll fori_loop: LLO visibility across adjacent timesteps
        # with bounded vreg pressure.
        h, c = lax.fori_loop(0, Tt, step, (h_ref[l], c_ref[l]), unroll=unroll)
        h_ref[l] = h
        c_ref[l] = c
        # TODO(synk): layer/time wavefront interleave (more independent h@W_hh
        #             in flight at small batch) not implemented.

    # Fused final Linear on the whole chunk: (Tt*Bp, Hp) @ (Hp, Vp) + bias.
    y = buffers[(L - 1) % 2][...].astype(cdt)
    logits = (jnp.dot(y, w_fc_ref[...], preferred_element_type=jnp.float32)
              + b_fc_ref[...])

    if batch_major_out:
        # (t, b) rows -> (b, t, :) in-kernel, so the wrapper needs no XLA
        # transpose of the logits (rides XLU/vst slots with slack).
        out_ref[...] = pltpu.einshape(
            "tbv->btv", logits.reshape(Tt, Bp, Vp)).astype(out_ref.dtype)
    else:
        out_ref[...] = logits.astype(out_ref.dtype)

    # Constant output block index -> VMEM-resident across the grid.
    hN_ref[...] = h_ref[...].astype(hN_ref.dtype)
    cN_ref[...] = c_ref[...].astype(cN_ref.dtype)


# --------------------------------------------------------------------------
# Parameter init (deterministic, mimics PyTorch LSTM/Linear uniform init)
# --------------------------------------------------------------------------
def init_params(key, vocab_size, num_hidden, num_layers):
    k = 1.0 / math.sqrt(num_hidden)
    params = {"lstm": []}
    for layer in range(num_layers):
        in_size = vocab_size if layer == 0 else num_hidden
        key, k1, k2, k3, k4 = jax.random.split(key, 5)
        params["lstm"].append({
            "w_ih": jax.random.uniform(k1, (4 * num_hidden, in_size),
                                       jnp.float32, -k, k),
            "w_hh": jax.random.uniform(k2, (4 * num_hidden, num_hidden),
                                       jnp.float32, -k, k),
            "b_ih": jax.random.uniform(k3, (4 * num_hidden,), jnp.float32, -k, k),
            "b_hh": jax.random.uniform(k4, (4 * num_hidden,), jnp.float32, -k, k),
        })
    key, k5, k6 = jax.random.split(key, 3)
    params["fc_w"] = jax.random.uniform(k5, (vocab_size, num_hidden),
                                        jnp.float32, -k, k)
    params["fc_b"] = jax.random.uniform(k6, (vocab_size,), jnp.float32, -k, k)
    return params


# --------------------------------------------------------------------------
# Full RNN.forward equivalent
# --------------------------------------------------------------------------
@functools.partial(jax.jit,
                   static_argnames=("time_chunk", "compute_dtype", "conservative"))
def rnn_forward(params, x, h0, c0, time_chunk=None,
                compute_dtype=jnp.bfloat16, conservative=False):
    """x: (B, T, V) batch_first; h0/c0: (L, B, H). Returns (final_out, (hN,cN))."""
    B, T, V = x.shape
    L, _, H = h0.shape

    Bp = _round_up(B, 8)            # sublane-dense batch
    Hp = _round_up(H, 128)          # lane-dense hidden (layers >= 1 + fc input)
    Vp = _round_up(V, 128)          # lane-dense vocab (fc output)
    Vin_p = _round_up(V, 128)       # layer-0 input width (decoupled from Hp)
    itemsize = jnp.dtype(compute_dtype).itemsize

    # ---- time chunk: multiple of 8 (output sublane tile), VMEM-bounded.
    if time_chunk is not None:
        Tt = _round_up(max(int(time_chunk), 1), 8)
    else:
        Tt = min(_round_up(T, 8), 64)
    budget = _vmem_budget_bytes()
    while Tt > 8 and _vmem_bytes(Tt, Bp, Hp, Vin_p, Vp, L, itemsize,
                                 not conservative) > budget:
        Tt -= 8
    T_pad = _round_up(T, Tt)
    n_chunks = T_pad // Tt
    unroll = min(8, Tt)

    def pad_to(a, shape):
        return jnp.pad(a, [(0, s - d) for d, s in zip(a.shape, shape)])

    # ---- pack + zero-pad parameters. Each gate block of the 4H axis is padded
    # separately (H -> Hp) so in-kernel [i,f,g,o] slices stay 128-lane aligned.
    lstm = params["lstm"]
    w_ih0 = (pad_to(lstm[0]["w_ih"].reshape(4, H, V), (4, Hp, Vin_p))
             .reshape(4 * Hp, Vin_p).T.astype(compute_dtype))       # (Vin_p, 4Hp)
    w_ihr_l = []
    for p in lstm[1:]:
        w4 = pad_to(p["w_ih"].reshape(4, H, H), (4, Hp, Hp))
        w_ihr_l.append(w4.reshape(4 * Hp, Hp).T)
    if w_ihr_l:
        w_ihr = jnp.stack(w_ihr_l).astype(compute_dtype)             # (L-1, Hp, 4Hp)
    else:  # single-layer edge case: dummy block, never read by the kernel
        w_ihr = jnp.zeros((1, Hp, 4 * Hp), compute_dtype)
    w_hh_l, b_l = [], []
    for p in lstm:
        w4 = pad_to(p["w_hh"].reshape(4, H, H), (4, Hp, Hp))
        w_hh_l.append(w4.reshape(4 * Hp, Hp).T)
        b_l.append(pad_to((p["b_ih"] + p["b_hh"]).reshape(4, H),
                          (4, Hp)).reshape(1, 4 * Hp))
    w_hh_all = jnp.stack(w_hh_l).astype(compute_dtype)                # (L, Hp, 4Hp)
    b_all = jnp.stack(b_l)                                            # (L, 1, 4Hp) f32
    w_fc = pad_to(params["fc_w"].T, (Hp, Vp)).astype(compute_dtype)   # (Hp, Vp)
    b_fc = pad_to(params["fc_b"].reshape(1, V), (1, Vp))              # (1, Vp) f32

    # ---- pad activations / states, go time-major once (input-side only).
    x_p = pad_to(x, (Bp, T_pad, Vin_p))
    x_rows = (jnp.transpose(x_p, (1, 0, 2))
              .reshape(T_pad * Bp, Vin_p).astype(compute_dtype))      # (T_pad*Bp, Vin_p)
    h0_p = pad_to(h0, (L, Bp, Hp))
    c0_p = pad_to(c0, (L, Bp, Hp))

    # ---- specs. Constant-index weights are single-buffered (no point
    # double-buffering blocks whose index never changes).
    def _const_spec(shape):
        idx = lambda i: (0,) * len(shape)
        if conservative:
            return pl.BlockSpec(shape, idx)
        return pl.BlockSpec(shape, idx, pipeline_mode=pl.Buffered(1))

    in_specs = [
        pl.BlockSpec((Tt * Bp, Vin_p), lambda i: (i, 0)),   # x chunk (pipelined)
        _const_spec((Vin_p, 4 * Hp)),                       # layer-0 W_ih
        _const_spec((max(L - 1, 1), Hp, 4 * Hp)),           # W_ih layers >= 1
        _const_spec((L, Hp, 4 * Hp)),                       # W_hh
        _const_spec((L, 1, 4 * Hp)),                        # bias
        _const_spec((L, Bp, Hp)),                           # h0
        _const_spec((L, Bp, Hp)),                           # c0
        _const_spec((Hp, Vp)),                              # fc W^T
        _const_spec((1, Vp)),                               # fc bias
    ]
    if conservative:
        logits_shape = jax.ShapeDtypeStruct((T_pad * Bp, Vp), jnp.float32)
        logits_spec = pl.BlockSpec((Tt * Bp, Vp), lambda i: (i, 0))
    else:
        logits_shape = jax.ShapeDtypeStruct((Bp, T_pad, Vp), jnp.float32)
        logits_spec = pl.BlockSpec((Bp, Tt, Vp), lambda i: (0, i, 0))

    flops = 2 * T_pad * Bp * (Vin_p * 4 * Hp + (L - 1) * Hp * 4 * Hp
                              + L * Hp * 4 * Hp + Hp * Vp)
    bytes_accessed = (T_pad * Bp * Vin_p * itemsize
                      + (Vin_p * 4 * Hp + max(L - 1, 1) * Hp * 4 * Hp
                         + L * Hp * 4 * Hp + Hp * Vp) * itemsize
                      + (L * 4 * Hp + Vp) * 4
                      + 4 * L * Bp * Hp * 4
                      + T_pad * Bp * Vp * 4)
    cost = pl.CostEstimate(flops=int(flops),
                           transcendentals=int(5 * T_pad * Bp * Hp * L),
                           bytes_accessed=int(bytes_accessed))

    kernel = functools.partial(fused_rnn_kernel, seq_len=T, unroll=unroll,
                               batch_major_out=not conservative)

    out_raw, hN_p, cN_p = pl.pallas_call(
        kernel,
        out_shape=(
            logits_shape,
            jax.ShapeDtypeStruct((L, Bp, Hp), jnp.float32),
            jax.ShapeDtypeStruct((L, Bp, Hp), jnp.float32),
        ),
        grid_spec=pltpu.PrefetchScalarGridSpec(
            num_scalar_prefetch=0,
            grid=(n_chunks,),
            in_specs=in_specs,
            out_specs=(
                logits_spec,
                pl.BlockSpec((L, Bp, Hp), lambda i: (0, 0, 0)),   # hN
                pl.BlockSpec((L, Bp, Hp), lambda i: (0, 0, 0)),   # cN
            ),
            scratch_shapes=[
                pltpu.VMEM((Tt * Bp, Hp), jnp.float32),       # activation ping
                pltpu.VMEM((Tt * Bp, Hp), jnp.float32),       # activation pong
                pltpu.VMEM((Tt * Bp, 4 * Hp), jnp.float32),   # hoisted projection
                pltpu.VMEM((L, Bp, Hp), jnp.float32),         # h carry
                pltpu.VMEM((L, Bp, Hp), jnp.float32),         # c carry
            ],
        ),
        compiler_params=pltpu.CompilerParams(
            dimension_semantics=("arbitrary",),               # serial recurrence
            vmem_limit_bytes=int(budget)),
        cost_estimate=cost,
    )(x_rows, w_ih0, w_ihr, w_hh_all, b_all, h0_p, c0_p, w_fc, b_fc)

    # ---- un-pad. PyTorch's batch_first .view(-1, H) ordering is (b, t).
    if conservative:
        out = (out_raw.reshape(T_pad, Bp, Vp)
               .transpose(1, 0, 2)[:B, :T, :V].reshape(B * T, V))
    else:
        out = out_raw[:B, :T, :V].reshape(B * T, V)           # already batch-major
    hN = hN_p[:, :B, :H]
    cN = cN_p[:, :B, :H]
    return out, (hN, cN)


# --------------------------------------------------------------------------
# Pure-JAX reference (for correctness checking only)
# --------------------------------------------------------------------------
def rnn_forward_ref(params, x, h0, c0):
    B, T, V = x.shape
    H = h0.shape[2]
    layer_in = jnp.transpose(x, (1, 0, 2))
    h_fin, c_fin = [], []
    for l, p in enumerate(params["lstm"]):
        w_ih_t, w_hh_t = p["w_ih"].T, p["w_hh"].T
        b = (p["b_ih"] + p["b_hh"])[None, :]
        h, c = h0[l], c0[l]
        ys = []
        for t in range(T):
            gates = layer_in[t] @ w_ih_t + h @ w_hh_t + b
            i = jax.nn.sigmoid(gates[:, 0 * H:1 * H])
            f = jax.nn.sigmoid(gates[:, 1 * H:2 * H])
            g = jnp.tanh(gates[:, 2 * H:3 * H])
            o = jax.nn.sigmoid(gates[:, 3 * H:4 * H])
            c = f * c + i * g
            h = o * jnp.tanh(c)
            ys.append(h)
        layer_in = jnp.stack(ys)
        h_fin.append(h)
        c_fin.append(c)
    flat = jnp.transpose(layer_in, (1, 0, 2)).reshape(B * T, H)
    out = flat @ params["fc_w"].T + params["fc_b"][None, :]
    return out, (jnp.stack(h_fin), jnp.stack(c_fin))


# --------------------------------------------------------------------------
if __name__ == "__main__":
    VOCAB = 28          # len(vocab_index)
    H = 32              # num_hidden
    L = 2               # num_layers
    B = 2               # batch
    T = 12              # sequence length (not a multiple of the time chunk)

    key = jax.random.PRNGKey(0)
    kp, kx = jax.random.split(key)
    params = init_params(kp, VOCAB, H, L)

    x = jax.random.normal(kx, (B, T, VOCAB), jnp.float32)
    h0 = jnp.zeros((L, B, H), jnp.float32)   # RNN.hidden_state(batch_size)
    c0 = jnp.zeros((L, B, H), jnp.float32)

    ref_out, (ref_h, ref_c) = rnn_forward_ref(params, x, h0, c0)

    def run(compute_dtype):
        # time_chunk=8, T=12 -> T_pad=16, grid=(2,): exercises the cross-chunk
        # (h, c) carry AND the padded-timestep masking of the last chunk.
        for conservative in (False, True):
            try:
                res = rnn_forward(params, x, h0, c0, time_chunk=8,
                                  compute_dtype=compute_dtype,
                                  conservative=conservative)
                jax.block_until_ready(res)
                return res
            except Exception:
                # Fall back if this toolchain rejects pl.Buffered(1)
                # single-buffering or the in-kernel (t,b)->(b,t) relayout.
                if conservative:
                    raise

    # 1) f32 compute path: tight check of kernel logic (padding/masking/carry).
    out32, (h32, c32) = run(jnp.float32)
    assert out32.shape == (B * T, VOCAB)
    assert h32.shape == (L, B, H) and c32.shape == (L, B, H)
    assert jnp.allclose(out32, ref_out, rtol=1e-4, atol=1e-4)
    assert jnp.allclose(h32, ref_h, rtol=1e-4, atol=1e-4)
    assert jnp.allclose(c32, ref_c, rtol=1e-4, atol=1e-4)

    # 2) bf16 weight/activation path (the perf configuration): f32 accumulation
    #    and f32 state keep it close; tolerance reflects bf16 operand rounding.
    out16, (h16, c16) = run(jnp.bfloat16)
    assert jnp.allclose(out16, ref_out, rtol=3e-2, atol=3e-2)
    assert jnp.allclose(h16, ref_h, rtol=3e-2, atol=3e-2)
    assert jnp.allclose(c16, ref_c, rtol=3e-2, atol=3e-2)

    print("KERNEL_OK")
</pallas_src>

<mosaic_0001>
module attributes {stable_mosaic.version = 11 : i64} {
  func.func @fused_rnn_kernel(%arg0: i32, %arg1: memref<64x128xf32, #tpu.memory_space<vmem>>, %arg2: memref<128x512xf32, #tpu.memory_space<vmem>>, %arg3: memref<1x128x512xf32, #tpu.memory_space<vmem>>, %arg4: memref<2x128x512xf32, #tpu.memory_space<vmem>>, %arg5: memref<2x1x512xf32, #tpu.memory_space<vmem>>, %arg6: memref<2x8x128xf32, #tpu.memory_space<vmem>>, %arg7: memref<2x8x128xf32, #tpu.memory_space<vmem>>, %arg8: memref<128x128xf32, #tpu.memory_space<vmem>>, %arg9: memref<1x128xf32, #tpu.memory_space<vmem>>, %arg10: memref<8x8x128xf32, #tpu.memory_space<vmem>>, %arg11: memref<2x8x128xf32, #tpu.memory_space<vmem>>, %arg12: memref<2x8x128xf32, #tpu.memory_space<vmem>>, %arg13: memref<64x128xf32, #tpu.memory_space<vmem>>, %arg14: memref<64x128xf32, #tpu.memory_space<vmem>>, %arg15: memref<64x512xf32, #tpu.memory_space<vmem>>, %arg16: memref<2x8x128xf32, #tpu.memory_space<vmem>>, %arg17: memref<2x8x128xf32, #tpu.memory_space<vmem>>) attributes {dimension_semantics = [#tpu.dimension_semantics<arbitrary>], iteration_bounds = array<i64: 2>, scalar_prefetch = 0 : i64, scratch_operands = 5 : i64, tpu.core_type = #tpu.core_type<tc>, window_params = [{transform_indices = @transform_0, window_bounds = array<i64: 64, 128>}, {pipeline_mode = #tpu.pipeline_mode<synchronous>, transform_indices = @transform_1, window_bounds = array<i64: 128, 512>}, {pipeline_mode = #tpu.pipeline_mode<synchronous>, transform_indices = @transform_2, window_bounds = array<i64: 1, 128, 512>}, {pipeline_mode = #tpu.pipeline_mode<synchronous>, transform_indices = @transform_3, window_bounds = array<i64: 2, 128, 512>}, {pipeline_mode = #tpu.pipeline_mode<synchronous>, transform_indices = @transform_4, window_bounds = array<i64: 2, 1, 512>}, {pipeline_mode = #tpu.pipeline_mode<synchronous>, transform_indices = @transform_5, window_bounds = array<i64: 2, 8, 128>}, {pipeline_mode = #tpu.pipeline_mode<synchronous>, transform_indices = @transform_6, window_bounds = array<i64: 2, 8, 128>}, {pipeline_mode = #tpu.pipeline_mode<synchronous>, transform_indices = @transform_7, window_bounds = array<i64: 128, 128>}, {pipeline_mode = #tpu.pipeline_mode<synchronous>, transform_indices = @transform_8, window_bounds = array<i64: 1, 128>}, {transform_indices = @transform_9, window_bounds = array<i64: 8, 8, 128>}, {pipeline_mode = #tpu.pipeline_mode<synchronous>, transform_indices = @transform_10, window_bounds = array<i64: 2, 8, 128>}, {pipeline_mode = #tpu.pipeline_mode<synchronous>, transform_indices = @transform_11, window_bounds = array<i64: 2, 8, 128>}]} {
    %c8_i32 = arith.constant 8 : i32
    %0 = arith.muli %arg0, %c8_i32 : i32
    %c0_i32 = arith.constant 0 : i32
    %1 = arith.cmpi eq, %arg0, %c0_i32 : i32
    %2 = arith.extui %1 : i1 to i32
    %c0_i32_0 = arith.constant 0 : i32
    %3 = arith.cmpi ne, %2, %c0_i32_0 : i32
    scf.if %3 {
      %c0_209 = arith.constant 0 : index
      %c0_210 = arith.constant 0 : index
      %c0_211 = arith.constant 0 : index
      %650 = vector.load %arg6[%c0_209, %c0_210, %c0_211] : memref<2x8x128xf32, #tpu.memory_space<vmem>>, vector<2x8x128xf32>
      %c0_212 = arith.constant 0 : index
      %c0_213 = arith.constant 0 : index
      %c0_214 = arith.constant 0 : index
      %651 = vector.load %arg16[%c0_212, %c0_213, %c0_214] : memref<2x8x128xf32, #tpu.memory_space<vmem>>, vector<2x8x128xf32>
      tpu.vector_store %arg16[%c0_212, %c0_213, %c0_214], %650 {strides = array<i32>} : memref<2x8x128xf32, #tpu.memory_space<vmem>>, vector<2x8x128xf32>,
      %c0_215 = arith.constant 0 : index
      %c0_216 = arith.constant 0 : index
      %c0_217 = arith.constant 0 : index
      %652 = vector.load %arg7[%c0_215, %c0_216, %c0_217] : memref<2x8x128xf32, #tpu.memory_space<vmem>>, vector<2x8x128xf32>
      %c0_218 = arith.constant 0 : index
      %c0_219 = arith.constant 0 : index
      %c0_220 = arith.constant 0 : index
      %653 = vector.load %arg17[%c0_218, %c0_219, %c0_220] : memref<2x8x128xf32, #tpu.memory_space<vmem>>, vector<2x8x128xf32>
      tpu.vector_store %arg17[%c0_218, %c0_219, %c0_220], %652 {strides = array<i32>} : memref<2x8x128xf32, #tpu.memory_space<vmem>>, vector<2x8x128xf32>,
    } else {
    }
    %c0 = arith.constant 0 : index
    %c0_1 = arith.constant 0 : index
    %4 = vector.load %arg1[%c0, %c0_1] : memref<64x128xf32, #tpu.memory_space<vmem>>, vector<64x128xf32>
    %c0_2 = arith.constant 0 : index
    %c0_3 = arith.constant 0 : index
    %5 = vector.load %arg2[%c0_2, %c0_3] : memref<128x512xf32, #tpu.memory_space<vmem>>, vector<128x512xf32>
    %cst = arith.constant dense<0.000000e+00> : vector<64x512xf32>
    %6 = tpu.matmul %4, %5, %cst {dimension_numbers = #tpu.dot_dimension_numbers<[1], [0], [0], [1], [0, 0, 1, 1], [], []>} : vector<64x128xf32>, vector<128x512xf32>, vector<64x512xf32> -> vector<64x512xf32>
    %c0_4 = arith.constant 0 : index
    %c0_5 = arith.constant 0 : index
    %c0_6 = arith.constant 0 : index
    %7 = vector.load %arg5[%c0_4, %c0_5, %c0_6] : memref<2x1x512xf32, #tpu.memory_space<vmem>>, vector<1x1x512xf32>
    %8 = vector.shape_cast %7 : vector<1x1x512xf32> to vector<1x512xf32>
    %9 = vector.broadcast %8 : vector<1x512xf32> to vector<64x512xf32>
    %10 = arith.addf %6, %9 : vector<64x512xf32>
    %c0_7 = arith.constant 0 : index
    %c0_8 = arith.constant 0 : index
    %11 = vector.load %arg15[%c0_7, %c0_8] : memref<64x512xf32, #tpu.memory_space<vmem>>, vector<64x512xf32>
    tpu.vector_store %arg15[%c0_7, %c0_8], %10 {strides = array<i32>} : memref<64x512xf32, #tpu.memory_space<vmem>>, vector<64x512xf32>,
    %c0_9 = arith.constant 0 : index
    %c0_10 = arith.constant 0 : index
    %c0_11 = arith.constant 0 : index
    %12 = vector.load %arg4[%c0_9, %c0_10, %c0_11] : memref<2x128x512xf32, #tpu.memory_space<vmem>>, vector<1x128x512xf32>
    %13 = vector.shape_cast %12 : vector<1x128x512xf32> to vector<128x512xf32>
    %c0_12 = arith.constant 0 : index
    %c0_13 = arith.constant 0 : index
    %c0_14 = arith.constant 0 : index
    %14 = vector.load %arg16[%c0_12, %c0_13, %c0_14] : memref<2x8x128xf32, #tpu.memory_space<vmem>>, vector<1x8x128xf32>
    %15 = vector.shape_cast %14 : vector<1x8x128xf32> to vector<8x128xf32>
    %c0_15 = arith.constant 0 : index
    %c0_16 = arith.constant 0 : index
    %c0_17 = arith.constant 0 : index
    %16 = vector.load %arg17[%c0_15, %c0_16, %c0_17] : memref<2x8x128xf32, #tpu.memory_space<vmem>>, vector<1x8x128xf32>
    %17 = vector.shape_cast %16 : vector<1x8x128xf32> to vector<8x128xf32>
    %c0_i32_18 = arith.constant 0 : i32
    %c8_i32_19 = arith.constant 8 : i32
    %18 = arith.muli %c0_i32_18, %c8_i32_19 : i32
    %19 = tpu.assume_multiple %18, 8 : i32
    %20 = arith.index_cast %19 : i32 to index
    %c0_20 = arith.constant 0 : index
    %21 = vector.load %arg15[%20, %c0_20] : memref<64x512xf32, #tpu.memory_space<vmem>>, vector<8x512xf32>
    %cst_21 = arith.constant dense<0.000000e+00> : vector<8x512xf32>
    %22 = tpu.matmul %15, %13, %cst_21 {dimension_numbers = #tpu.dot_dimension_numbers<[1], [0], [0], [1], [0, 0, 1, 1], [], []>} : vector<8x128xf32>, vector<128x512xf32>, vector<8x512xf32> -> vector<8x512xf32>
    %23 = arith.addf %21, %22 : vector<8x512xf32>
    %24 = vector.extract_strided_slice %23 {offsets = [0, 0], sizes = [8, 128], strides = [1, 1]} : vector<8x512xf32> to vector<8x128xf32>
    %25 = arith.negf %24 : vector<8x128xf32>
    %26 = math.exp %25 : vector<8x128xf32>
    %cst_22 = arith.constant 1.000000e+00 : f32
    %27 = vector.broadcast %cst_22 : f32 to vector<8x128xf32>
    %28 = arith.addf %27, %26 : vector<8x128xf32>
    %29 = arith.divf %27, %28 : vector<8x128xf32>
    %30 = vector.extract_strided_slice %23 {offsets = [0, 128], sizes = [8, 128], strides = [1, 1]} : vector<8x512xf32> to vector<8x128xf32>
    %31 = arith.negf %30 : vector<8x128xf32>
    %32 = math.exp %31 : vector<8x128xf32>
    %cst_23 = arith.constant 1.000000e+00 : f32
    %33 = vector.broadcast %cst_23 : f32 to vector<8x128xf32>
    %34 = arith.addf %33, %32 : vector<8x128xf32>
    %35 = arith.divf %33, %34 : vector<8x128xf32>
    %36 = vector.extract_strided_slice %23 {offsets = [0, 256], sizes = [8, 128], strides = [1, 1]} : vector<8x512xf32> to vector<8x128xf32>
    %37 = math.tanh %36 : vector<8x128xf32>
    %38 = vector.extract_strided_slice %23 {offsets = [0, 384], sizes = [8, 128], strides = [1, 1]} : vector<8x512xf32> to vector<8x128xf32>
    %39 = arith.negf %38 : vector<8x128xf32>
    %40 = math.exp %39 : vector<8x128xf32>
    %cst_24 = arith.constant 1.000000e+00 : f32
    %41 = vector.broadcast %cst_24 : f32 to vector<8x128xf32>
    %42 = arith.addf %41, %40 : vector<8x128xf32>
    %43 = arith.divf %41, %42 : vector<8x128xf32>
    %44 = arith.mulf %35, %17 : vector<8x128xf32>
    %45 = arith.mulf %29, %37 : vector<8x128xf32>
    %46 = arith.addf %44, %45 : vector<8x128xf32>
    %47 = math.tanh %46 : vector<8x128xf32>
    %48 = arith.mulf %43, %47 : vector<8x128xf32>
    %49 = arith.addi %0, %c0_i32_18 : i32
    %c12_i32 = arith.constant 12 : i32
    %50 = arith.cmpi slt, %49, %c12_i32 : i32
    %51 = arith.select %50, %48, %15 : vector<8x128xf32>
    %52 = arith.select %50, %46, %17 : vector<8x128xf32>
    %53 = arith.index_cast %19 : i32 to index
    %c0_25 = arith.constant 0 : index
    %54 = vector.load %arg13[%53, %c0_25] : memref<64x128xf32, #tpu.memory_space<vmem>>, vector<8x128xf32>
    tpu.vector_store %arg13[%53, %c0_25], %51 {strides = array<i32>} : memref<64x128xf32, #tpu.memory_space<vmem>>, vector<8x128xf32>,
    %c1_i32 = arith.constant 1 : i32
    %c8_i32_26 = arith.constant 8 : i32
    %55 = arith.muli %c1_i32, %c8_i32_26 : i32
    %56 = tpu.assume_multiple %55, 8 : i32
    %57 = arith.index_cast %56 : i32 to index
    %c0_27 = arith.constant 0 : index
    %58 = vector.load %arg15[%57, %c0_27] : memref<64x512xf32, #tpu.memory_space<vmem>>, vector<8x512xf32>
    %cst_28 = arith.constant dense<0.000000e+00> : vector<8x512xf32>
    %59 = tpu.matmul %51, %13, %cst_28 {dimension_numbers = #tpu.dot_dimension_numbers<[1], [0], [0], [1], [0, 0, 1, 1], [], []>} : vector<8x128xf32>, vector<128x512xf32>, vector<8x512xf32> -> vector<8x512xf32>
    %60 = arith.addf %58, %59 : vector<8x512xf32>
    %61 = vector.extract_strided_slice %60 {offsets = [0, 0], sizes = [8, 128], strides = [1, 1]} : vector<8x512xf32> to vector<8x128xf32>
    %62 = arith.negf %61 : vector<8x128xf32>
    %63 = math.exp %62 : vector<8x128xf32>
    %cst_29 = arith.constant 1.000000e+00 : f32
    %64 = vector.broadcast %cst_29 : f32 to vector<8x128xf32>
    %65 = arith.addf %64, %63 : vector<8x128xf32>
    %66 = arith.divf %64, %65 : vector<8x128xf32>
    %67 = vector.extract_strided_slice %60 {offsets = [0, 128], sizes = [8, 128], strides = [1, 1]} : vector<8x512xf32> to vector<8x128xf32>
    %68 = arith.negf %67 : vector<8x128xf32>
    %69 = math.exp %68 : vector<8x128xf32>
    %cst_30 = arith.constant 1.000000e+00 : f32
    %70 = vector.broadcast %cst_30 : f32 to vector<8x128xf32>
    %71 = arith.addf %70, %69 : vector<8x128xf32>
    %72 = arith.divf %70, %71 : vector<8x128xf32>
    %73 = vector.extract_strided_slice %60 {offsets = [0, 256], sizes = [8, 128], strides = [1, 1]} : vector<8x512xf32> to vector<8x128xf32>
    %74 = math.tanh %73 : vector<8x128xf32>
    %75 = vector.extract_strided_slice %60 {offsets = [0, 384], sizes = [8, 128], strides = [1, 1]} : vector<8x512xf32> to vector<8x128xf32>
    %76 = arith.negf %75 : vector<8x128xf32>
    %77 = math.exp %76 : vector<8x128xf32>
    %cst_31 = arith.constant 1.000000e+00 : f32
    %78 = vector.broadcast %cst_31 : f32 to vector<8x128xf32>
    %79 = arith.addf %78, %77 : vector<8x128xf32>
    %80 = arith.divf %78, %79 : vector<8x128xf32>
    %81 = arith.mulf %72, %52 : vector<8x128xf32>
    %82 = arith.mulf %66, %74 : vector<8x128xf32>
    %83 = arith.addf %81, %82 : vector<8x128xf32>
    %84 = math.tanh %83 : vector<8x128xf32>
    %85 = arith.mulf %80, %84 : vector<8x128xf32>
    %86 = arith.addi %0, %c1_i32 : i32
    %c12_i32_32 = arith.constant 12 : i32
    %87 = arith.cmpi slt, %86, %c12_i32_32 : i32
    %88 = arith.select %87, %85, %51 : vector<8x128xf32>
    %89 = arith.select %87, %83, %52 : vector<8x128xf32>
    %90 = arith.index_cast %56 : i32 to index
    %c0_33 = arith.constant 0 : index
    %91 = vector.load %arg13[%90, %c0_33] : memref<64x128xf32, #tpu.memory_space<vmem>>, vector<8x128xf32>
    tpu.vector_store %arg13[%90, %c0_33], %88 {strides = array<i32>} : memref<64x128xf32, #tpu.memory_space<vmem>>, vector<8x128xf32>,
    %c2_i32 = arith.constant 2 : i32
    %c8_i32_34 = arith.constant 8 : i32
    %92 = arith.muli %c2_i32, %c8_i32_34 : i32
    %93 = tpu.assume_multiple %92, 8 : i32
    %94 = arith.index_cast %93 : i32 to index
    %c0_35 = arith.constant 0 : index
    %95 = vector.load %arg15[%94, %c0_35] : memref<64x512xf32, #tpu.memory_space<vmem>>, vector<8x512xf32>
    %cst_36 = arith.constant dense<0.000000e+00> : vector<8x512xf32>
    %96 = tpu.matmul %88, %13, %cst_36 {dimension_numbers = #tpu.dot_dimension_numbers<[1], [0], [0], [1], [0, 0, 1, 1], [], []>} : vector<8x128xf32>, vector<128x512xf32>, vector<8x512xf32> -> vector<8x512xf32>
    %97 = arith.addf %95, %96 : vector<8x512xf32>
    %98 = vector.extract_strided_slice %97 {offsets = [0, 0], sizes = [8, 128], strides = [1, 1]} : vector<8x512xf32> to vector<8x128xf32>
    %99 = arith.negf %98 : vector<8x128xf32>
    %100 = math.exp %99 : vector<8x128xf32>
    %cst_37 = arith.constant 1.000000e+00 : f32
    %101 = vector.broadcast %cst_37 : f32 to vector<8x128xf32>
    %102 = arith.addf %101, %100 : vector<8x128xf32>
    %103 = arith.divf %101, %102 : vector<8x128xf32>
    %104 = vector.extract_strided_slice %97 {offsets = [0, 128], sizes = [8, 128], strides = [1, 1]} : vector<8x512xf32> to vector<8x128xf32>
    %105 = arith.negf %104 : vector<8x128xf32>
    %106 = math.exp %105 : vector<8x128xf32>
    %cst_38 = arith.constant 1.000000e+00 : f32
    %107 = vector.broadcast %cst_38 : f32 to vector<8x128xf32>
    %108 = arith.addf %107, %106 : vector<8x128xf32>
    %109 = arith.divf %107, %108 : vector<8x128xf32>
    %110 = vector.extract_strided_slice %97 {offsets = [0, 256], sizes = [8, 128], strides = [1, 1]} : vector<8x512xf32> to vector<8x128xf32>
    %111 = math.tanh %110 : vector<8x128xf32>
    %112 = vector.extract_strided_slice %97 {offsets = [0, 384], sizes = [8, 128], strides = [1, 1]} : vector<8x512xf32> to vector<8x128xf32>
    %113 = arith.negf %112 : vector<8x128xf32>
    %114 = math.exp %113 : vector<8x128xf32>
    %cst_39 = arith.constant 1.000000e+00 : f32
    %115 = vector.broadcast %cst_39 : f32 to vector<8x128xf32>
    %116 = arith.addf %115, %114 : vector<8x128xf32>
    %117 = arith.divf %115, %116 : vector<8x128xf32>
    %118 = arith.mulf %109, %89 : vector<8x128xf32>
    %119 = arith.mulf %103, %111 : vector<8x128xf32>
    %120 = arith.addf %118, %119 : vector<8x128xf32>
    %121 = math.tanh %120 : vector<8x128xf32>
    %122 = arith.mulf %117, %121 : vector<8x128xf32>
    %123 = arith.addi %0, %c2_i32 : i32
    %c12_i32_40 = arith.constant 12 : i32
    %124 = arith.cmpi slt, %123, %c12_i32_40 : i32
    %125 = arith.select %124, %122, %88 : vector<8x128xf32>
    %126 = arith.select %124, %120, %89 : vector<8x128xf32>
    %127 = arith.index_cast %93 : i32 to index
    %c0_41 = arith.constant 0 : index
    %128 = vector.load %arg13[%127, %c0_41] : memref<64x128xf32, #tpu.memory_space<vmem>>, vector<8x128xf32>
    tpu.vector_store %arg13[%127, %c0_41], %125 {strides = array<i32>} : memref<64x128xf32, #tpu.memory_space<vmem>>, vector<8x128xf32>,
    %c3_i32 = arith.constant 3 : i32
    %c8_i32_42 = arith.constant 8 : i32
    %129 = arith.muli %c3_i32, %c8_i32_42 : i32
    %130 = tpu.assume_multiple %129, 8 : i32
    %131 = arith.index_cast %130 : i32 to index
    %c0_43 = arith.constant 0 : index
    %132 = vector.load %arg15[%131, %c0_43] : memref<64x512xf32, #tpu.memory_space<vmem>>, vector<8x512xf32>
    %cst_44 = arith.constant dense<0.000000e+00> : vector<8x512xf32>
    %133 = tpu.matmul %125, %13, %cst_44 {dimension_numbers = #tpu.dot_dimension_numbers<[1], [0], [0], [1], [0, 0, 1, 1], [], []>} : vector<8x128xf32>, vector<128x512xf32>, vector<8x512xf32> -> vector<8x512xf32>
    %134 = arith.addf %132, %133 : vector<8x512xf32>
    %135 = vector.extract_strided_slice %134 {offsets = [0, 0], sizes = [8, 128], strides = [1, 1]} : vector<8x512xf32> to vector<8x128xf32>
    %136 = arith.negf %135 : vector<8x128xf32>
    %137 = math.exp %136 : vector<8x128xf32>
    %cst_45 = arith.constant 1.000000e+00 : f32
    %138 = vector.broadcast %cst_45 : f32 to vector<8x128xf32>
    %139 = arith.addf %138, %137 : vector<8x128xf32>
    %140 = arith.divf %138, %139 : vector<8x128xf32>
    %141 = vector.extract_strided_slice %134 {offsets = [0, 128], sizes = [8, 128], strides = [1, 1]} : vector<8x512xf32> to vector<8x128xf32>
    %142 = arith.negf %141 : vector<8x128xf32>
    %143 = math.exp %142 : vector<8x128xf32>
    %cst_46 = arith.constant 1.000000e+00 : f32
    %144 = vector.broadcast %cst_46 : f32 to vector<8x128xf32>
    %145 = arith.addf %144, %143 : vector<8x128xf32>
    %146 = arith.divf %144, %145 : vector<8x128xf32>
    %147 = vector.extract_strided_slice %134 {offsets = [0, 256], sizes = [8, 128], strides = [1, 1]} : vector<8x512xf32> to vector<8x128xf32>
    %148 = math.tanh %147 : vector<8x128xf32>
    %149 = vector.extract_strided_slice %134 {offsets = [0, 384], sizes = [8, 128], strides = [1, 1]} : vector<8x512xf32> to vector<8x128xf32>
    %150 = arith.negf %149 : vector<8x128xf32>
    %151 = math.exp %150 : vector<8x128xf32>
    %cst_47 = arith.constant 1.000000e+00 : f32
    %152 = vector.broadcast %cst_47 : f32 to vector<8x128xf32>
    %153 = arith.addf %152, %151 : vector<8x128xf32>
    %154 = arith.divf %152, %153 : vector<8x128xf32>
    %155 = arith.mulf %146, %126 : vector<8x128xf32>
    %156 = arith.mulf %140, %148 : vector<8x128xf32>
    %157 = arith.addf %155, %156 : vector<8x128xf32>
    %158 = math.tanh %157 : vector<8x128xf32>
    %159 = arith.mulf %154, %158 : vector<8x128xf32>
    %160 = arith.addi %0, %c3_i32 : i32
    %c12_i32_48 = arith.constant 12 : i32
    %161 = arith.cmpi slt, %160, %c12_i32_48 : i32
    %162 = arith.select %161, %159, %125 : vector<8x128xf32>
    %163 = arith.select %161, %157, %126 : vector<8x128xf32>
    %164 = arith.index_cast %130 : i32 to index
    %c0_49 = arith.constant 0 : index
    %165 = vector.load %arg13[%164, %c0_49] : memref<64x128xf32, #tpu.memory_space<vmem>>, vector<8x128xf32>
    tpu.vector_store %arg13[%164, %c0_49], %162 {strides = array<i32>} : memref<64x128xf32, #tpu.memory_space<vmem>>, vector<8x128xf32>,
    %c4_i32 = arith.constant 4 : i32
    %c8_i32_50 = arith.constant 8 : i32
    %166 = arith.muli %c4_i32, %c8_i32_50 : i32
    %167 = tpu.assume_multiple %166, 8 : i32
    %168 = arith.index_cast %167 : i32 to index
    %c0_51 = arith.constant 0 : index
    %169 = vector.load %arg15[%168, %c0_51] : memref<64x512xf32, #tpu.memory_space<vmem>>, vector<8x512xf32>
    %cst_52 = arith.constant dense<0.000000e+00> : vector<8x512xf32>
    %170 = tpu.matmul %162, %13, %cst_52 {dimension_numbers = #tpu.dot_dimension_numbers<[1], [0], [0], [1], [0, 0, 1, 1], [], []>} : vector<8x128xf32>, vector<128x512xf32>, vector<8x512xf32> -> vector<8x512xf32>
    %171 = arith.addf %169, %170 : vector<8x512xf32>
    %172 = vector.extract_strided_slice %171 {offsets = [0, 0], sizes = [8, 128], strides = [1, 1]} : vector<8x512xf32> to vector<8x128xf32>
    %173 = arith.negf %172 : vector<8x128xf32>
    %174 = math.exp %173 : vector<8x128xf32>
    %cst_53 = arith.constant 1.000000e+00 : f32
    %175 = vector.broadcast %cst_53 : f32 to vector<8x128xf32>
    %176 = arith.addf %175, %174 : vector<8x128xf32>
    %177 = arith.divf %175, %176 : vector<8x128xf32>
    %178 = vector.extract_strided_slice %171 {offsets = [0, 128], sizes = [8, 128], strides = [1, 1]} : vector<8x512xf32> to vector<8x128xf32>
    %179 = arith.negf %178 : vector<8x128xf32>
    %180 = math.exp %179 : vector<8x128xf32>
    %cst_54 = arith.constant 1.000000e+00 : f32
    %181 = vector.broadcast %cst_54 : f32 to vector<8x128xf32>
    %182 = arith.addf %181, %180 : vector<8x128xf32>
    %183 = arith.divf %181, %182 : vector<8x128xf32>
    %184 = vector.extract_strided_slice %171 {offsets = [0, 256], sizes = [8, 128], strides = [1, 1]} : vector<8x512xf32> to vector<8x128xf32>
    %185 = math.tanh %184 : vector<8x128xf32>
    %186 = vector.extract_strided_slice %171 {offsets = [0, 384], sizes = [8, 128], strides = [1, 1]} : vector<8x512xf32> to vector<8x128xf32>
    %187 = arith.negf %186 : vector<8x128xf32>
    %188 = math.exp %187 : vector<8x128xf32>
    %cst_55 = arith.constant 1.000000e+00 : f32
    %189 = vector.broadcast %cst_55 : f32 to vector<8x128xf32>
    %190 = arith.addf %189, %188 : vector<8x128xf32>
    %191 = arith.divf %189, %190 : vector<8x128xf32>
    %192 = arith.mulf %183, %163 : vector<8x128xf32>
    %193 = arith.mulf %177, %185 : vector<8x128xf32>
    %194 = arith.addf %192, %193 : vector<8x128xf32>
    %195 = math.tanh %194 : vector<8x128xf32>
    %196 = arith.mulf %191, %195 : vector<8x128xf32>
    %197 = arith.addi %0, %c4_i32 : i32
    %c12_i32_56 = arith.constant 12 : i32
    %198 = arith.cmpi slt, %197, %c12_i32_56 : i32
    %199 = arith.select %198, %196, %162 : vector<8x128xf32>
    %200 = arith.select %198, %194, %163 : vector<8x128xf32>
    %201 = arith.index_cast %167 : i32 to index
    %c0_57 = arith.constant 0 : index
    %202 = vector.load %arg13[%201, %c0_57] : memref<64x128xf32, #tpu.memory_space<vmem>>, vector<8x128xf32>
    tpu.vector_store %arg13[%201, %c0_57], %199 {strides = array<i32>} : memref<64x128xf32, #tpu.memory_space<vmem>>, vector<8x128xf32>,
    %c5_i32 = arith.constant 5 : i32
    %c8_i32_58 = arith.constant 8 : i32
    %203 = arith.muli %c5_i32, %c8_i32_58 : i32
    %204 = tpu.assume_multiple %203, 8 : i32
    %205 = arith.index_cast %204 : i32 to index
    %c0_59 = arith.constant 0 : index
    %206 = vector.load %arg15[%205, %c0_59] : memref<64x512xf32, #tpu.memory_space<vmem>>, vector<8x512xf32>
    %cst_60 = arith.constant dense<0.000000e+00> : vector<8x512xf32>
    %207 = tpu.matmul %199, %13, %cst_60 {dimension_numbers = #tpu.dot_dimension_numbers<[1], [0], [0], [1], [0, 0, 1, 1], [], []>} : vector<8x128xf32>, vector<128x512xf32>, vector<8x512xf32> -> vector<8x512xf32>
    %208 = arith.addf %206, %207 : vector<8x512xf32>
    %209 = vector.extract_strided_slice %208 {offsets = [0, 0], sizes = [8, 128], strides = [1, 1]} : vector<8x512xf32> to vector<8x128xf32>
    %210 = arith.negf %209 : vector<8x128xf32>
    %211 = math.exp %210 : vector<8x128xf32>
    %cst_61 = arith.constant 1.000000e+00 : f32
    %212 = vector.broadcast %cst_61 : f32 to vector<8x128xf32>
    %213 = arith.addf %212, %211 : vector<8x128xf32>
    %214 = arith.divf %212, %213 : vector<8x128xf32>
    %215 = vector.extract_strided_slice %208 {offsets = [0, 128], sizes = [8, 128], strides = [1, 1]} : vector<8x512xf32> to vector<8x128xf32>
    %216 = arith.negf %215 : vector<8x128xf32>
    %217 = math.exp %216 : vector<8x128xf32>
    %cst_62 = arith.constant 1.000000e+00 : f32
    %218 = vector.broadcast %cst_62 : f32 to vector<8x128xf32>
    %219 = arith.addf %218, %217 : vector<8x128xf32>
    %220 = arith.divf %218, %219 : vector<8x128xf32>
    %221 = vector.extract_strided_slice %208 {offsets = [0, 256], sizes = [8, 128], strides = [1, 1]} : vector<8x512xf32> to vector<8x128xf32>
    %222 = math.tanh %221 : vector<8x128xf32>
    %223 = vector.extract_strided_slice %208 {offsets = [0, 384], sizes = [8, 128], strides = [1, 1]} : vector<8x512xf32> to vector<8x128xf32>
    %224 = arith.negf %223 : vector<8x128xf32>
    %225 = math.exp %224 : vector<8x128xf32>
    %cst_63 = arith.constant 1.000000e+00 : f32
    %226 = vector.broadcast %cst_63 : f32 to vector<8x128xf32>
    %227 = arith.addf %226, %225 : vector<8x128xf32>
    %228 = arith.divf %226, %227 : vector<8x128xf32>
    %229 = arith.mulf %220, %200 : vector<8x128xf32>
    %230 = arith.mulf %214, %222 : vector<8x128xf32>
    %231 = arith.addf %229, %230 : vector<8x128xf32>
    %232 = math.tanh %231 : vector<8x128xf32>
    %233 = arith.mulf %228, %232 : vector<8x128xf32>
    %234 = arith.addi %0, %c5_i32 : i32
    %c12_i32_64 = arith.constant 12 : i32
    %235 = arith.cmpi slt, %234, %c12_i32_64 : i32
    %236 = arith.select %235, %233, %199 : vector<8x128xf32>
    %237 = arith.select %235, %231, %200 : vector<8x128xf32>
    %238 = arith.index_cast %204 : i32 to index
    %c0_65 = arith.constant 0 : index
    %239 = vector.load %arg13[%238, %c0_65] : memref<64x128xf32, #tpu.memory_space<vmem>>, vector<8x128xf32>
    tpu.vector_store %arg13[%238, %c0_65], %236 {strides = array<i32>} : memref<64x128xf32, #tpu.memory_space<vmem>>, vector<8x128xf32>,
    %c6_i32 = arith.constant 6 : i32
    %c8_i32_66 = arith.constant 8 : i32
    %240 = arith.muli %c6_i32, %c8_i32_66 : i32
    %241 = tpu.assume_multiple %240, 8 : i32
    %242 = arith.index_cast %241 : i32 to index
    %c0_67 = arith.constant 0 : index
    %243 = vector.load %arg15[%242, %c0_67] : memref<64x512xf32, #tpu.memory_space<vmem>>, vector<8x512xf32>
    %cst_68 = arith.constant dense<0.000000e+00> : vector<8x512xf32>
    %244 = tpu.matmul %236, %13, %cst_68 {dimension_numbers = #tpu.dot_dimension_numbers<[1], [0], [0], [1], [0, 0, 1, 1], [], []>} : vector<8x128xf32>, vector<128x512xf32>, vector<8x512xf32> -> vector<8x512xf32>
    %245 = arith.addf %243, %244 : vector<8x512xf32>
    %246 = vector.extract_strided_slice %245 {offsets = [0, 0], sizes = [8, 128], strides = [1, 1]} : vector<8x512xf32> to vector<8x128xf32>
    %247 = arith.negf %246 : vector<8x128xf32>
    %248 = math.exp %247 : vector<8x128xf32>
    %cst_69 = arith.constant 1.000000e+00 : f32
    %249 = vector.broadcast %cst_69 : f32 to vector<8x128xf32>
    %250 = arith.addf %249, %248 : vector<8x128xf32>
    %251 = arith.divf %249, %250 : vector<8x128xf32>
    %252 = vector.extract_strided_slice %245 {offsets = [0, 128], sizes = [8, 128], strides = [1, 1]} : vector<8x512xf32> to vector<8x128xf32>
    %253 = arith.negf %252 : vector<8x128xf32>
    %254 = math.exp %253 : vector<8x128xf32>
    %cst_70 = arith.constant 1.000000e+00 : f32
    %255 = vector.broadcast %cst_70 : f32 to vector<8x128xf32>
    %256 = arith.addf %255, %254 : vector<8x128xf32>
    %257 = arith.divf %255, %256 : vector<8x128xf32>
    %258 = vector.extract_strided_slice %245 {offsets = [0, 256], sizes = [8, 128], strides = [1, 1]} : vector<8x512xf32> to vector<8x128xf32>
    %259 = math.tanh %258 : vector<8x128xf32>
    %260 = vector.extract_strided_slice %245 {offsets = [0, 384], sizes = [8, 128], strides = [1, 1]} : vector<8x512xf32> to vector<8x128xf32>
    %261 = arith.negf %260 : vector<8x128xf32>
    %262 = math.exp %261 : vector<8x128xf32>
    %cst_71 = arith.constant 1.000000e+00 : f32
    %263 = vector.broadcast %cst_71 : f32 to vector<8x128xf32>
    %264 = arith.addf %263, %262 : vector<8x128xf32>
    %265 = arith.divf %263, %264 : vector<8x128xf32>
    %266 = arith.mulf %257, %237 : vector<8x128xf32>
    %267 = arith.mulf %251, %259 : vector<8x128xf32>
    %268 = arith.addf %266, %267 : vector<8x128xf32>
    %269 = math.tanh %268 : vector<8x128xf32>
    %270 = arith.mulf %265, %269 : vector<8x128xf32>
    %271 = arith.addi %0, %c6_i32 : i32
    %c12_i32_72 = arith.constant 12 : i32
    %272 = arith.cmpi slt, %271, %c12_i32_72 : i32
    %273 = arith.select %272, %270, %236 : vector<8x128xf32>
    %274 = arith.select %272, %268, %237 : vector<8x128xf32>
    %275 = arith.index_cast %241 : i32 to index
    %c0_73 = arith.constant 0 : index
    %276 = vector.load %arg13[%275, %c0_73] : memref<64x128xf32, #tpu.memory_space<vmem>>, vector<8x128xf32>
    tpu.vector_store %arg13[%275, %c0_73], %273 {strides = array<i32>} : memref<64x128xf32, #tpu.memory_space<vmem>>, vector<8x128xf32>,
    %c7_i32 = arith.constant 7 : i32
    %c8_i32_74 = arith.constant 8 : i32
    %277 = arith.muli %c7_i32, %c8_i32_74 : i32
    %278 = tpu.assume_multiple %277, 8 : i32
    %279 = arith.index_cast %278 : i32 to index
    %c0_75 = arith.constant 0 : index
    %280 = vector.load %arg15[%279, %c0_75] : memref<64x512xf32, #tpu.memory_space<vmem>>, vector<8x512xf32>
    %cst_76 = arith.constant dense<0.000000e+00> : vector<8x512xf32>
    %281 = tpu.matmul %273, %13, %cst_76 {dimension_numbers = #tpu.dot_dimension_numbers<[1], [0], [0], [1], [0, 0, 1, 1], [], []>} : vector<8x128xf32>, vector<128x512xf32>, vector<8x512xf32> -> vector<8x512xf32>
    %282 = arith.addf %280, %281 : vector<8x512xf32>
    %283 = vector.extract_strided_slice %282 {offsets = [0, 0], sizes = [8, 128], strides = [1, 1]} : vector<8x512xf32> to vector<8x128xf32>
    %284 = arith.negf %283 : vector<8x128xf32>
    %285 = math.exp %284 : vector<8x128xf32>
    %cst_77 = arith.constant 1.000000e+00 : f32
    %286 = vector.broadcast %cst_77 : f32 to vector<8x128xf32>
    %287 = arith.addf %286, %285 : vector<8x128xf32>
    %288 = arith.divf %286, %287 : vector<8x128xf32>
    %289 = vector.extract_strided_slice %282 {offsets = [0, 128], sizes = [8, 128], strides = [1, 1]} : vector<8x512xf32> to vector<8x128xf32>
    %290 = arith.negf %289 : vector<8x128xf32>
    %291 = math.exp %290 : vector<8x128xf32>
    %cst_78 = arith.constant 1.000000e+00 : f32
    %292 = vector.broadcast %cst_78 : f32 to vector<8x128xf32>
    %293 = arith.addf %292, %291 : vector<8x128xf32>
    %294 = arith.divf %292, %293 : vector<8x128xf32>
    %295 = vector.extract_strided_slice %282 {offsets = [0, 256], sizes = [8, 128], strides = [1, 1]} : vector<8x512xf32> to vector<8x128xf32>
    %296 = math.tanh %295 : vector<8x128xf32>
    %297 = vector.extract_strided_slice %282 {offsets = [0, 384], sizes = [8, 128], strides = [1, 1]} : vector<8x512xf32> to vector<8x128xf32>
    %298 = arith.negf %297 : vector<8x128xf32>
    %299 = math.exp %298 : vector<8x128xf32>
    %cst_79 = arith.constant 1.000000e+00 : f32
    %300 = vector.broadcast %cst_79 : f32 to vector<8x128xf32>
    %301 = arith.addf %300, %299 : vector<8x128xf32>
    %302 = arith.divf %300, %301 : vector<8x128xf32>
    %303 = arith.mulf %294, %274 : vector<8x128xf32>
    %304 = arith.mulf %288, %296 : vector<8x128xf32>
    %305 = arith.addf %303, %304 : vector<8x128xf32>
    %306 = math.tanh %305 : vector<8x128xf32>
    %307 = arith.mulf %302, %306 : vector<8x128xf32>
    %308 = arith.addi %0, %c7_i32 : i32
    %c12_i32_80 = arith.constant 12 : i32
    %309 = arith.cmpi slt, %308, %c12_i32_80 : i32
    %310 = arith.select %309, %307, %273 : vector<8x128xf32>
    %311 = arith.select %309, %305, %274 : vector<8x128xf32>
    %312 = arith.index_cast %278 : i32 to index
    %c0_81 = arith.constant 0 : index
    %313 = vector.load %arg13[%312, %c0_81] : memref<64x128xf32, #tpu.memory_space<vmem>>, vector<8x128xf32>
    tpu.vector_store %arg13[%312, %c0_81], %310 {strides = array<i32>} : memref<64x128xf32, #tpu.memory_space<vmem>>, vector<8x128xf32>,
    %c8_i32_82 = arith.constant 8 : i32
    %c0_83 = arith.constant 0 : index
    %c0_84 = arith.constant 0 : index
    %c0_85 = arith.constant 0 : index
    %314 = vector.load %arg16[%c0_83, %c0_84, %c0_85] : memref<2x8x128xf32, #tpu.memory_space<vmem>>, vector<1x8x128xf32>
    %315 = vector.shape_cast %314 : vector<1x8x128xf32> to vector<8x128xf32>
    %316 = vector.shape_cast %310 : vector<8x128xf32> to vector<1x8x128xf32>
    tpu.vector_store %arg16[%c0_83, %c0_84, %c0_85], %316 {strides = array<i32>} : memref<2x8x128xf32, #tpu.memory_space<vmem>>, vector<1x8x128xf32>,
    %c0_86 = arith.constant 0 : index
    %c0_87 = arith.constant 0 : index
    %c0_88 = arith.constant 0 : index
    %317 = vector.load %arg17[%c0_86, %c0_87, %c0_88] : memref<2x8x128xf32, #tpu.memory_space<vmem>>, vector<1x8x128xf32>
    %318 = vector.shape_cast %317 : vector<1x8x128xf32> to vector<8x128xf32>
    %319 = vector.shape_cast %311 : vector<8x128xf32> to vector<1x8x128xf32>
    tpu.vector_store %arg17[%c0_86, %c0_87, %c0_88], %319 {strides = array<i32>} : memref<2x8x128xf32, #tpu.memory_space<vmem>>, vector<1x8x128xf32>,
    %c0_89 = arith.constant 0 : index
    %c0_90 = arith.constant 0 : index
    %320 = vector.load %arg13[%c0_89, %c0_90] : memref<64x128xf32, #tpu.memory_space<vmem>>, vector<64x128xf32>
    %c0_91 = arith.constant 0 : index
    %c0_92 = arith.constant 0 : index
    %c0_93 = arith.constant 0 : index
    %321 = vector.load %arg3[%c0_91, %c0_92, %c0_93] : memref<1x128x512xf32, #tpu.memory_space<vmem>>, vector<1x128x512xf32>
    %322 = vector.shape_cast %321 : vector<1x128x512xf32> to vector<128x512xf32>
    %cst_94 = arith.constant dense<0.000000e+00> : vector<64x512xf32>
    %323 = tpu.matmul %320, %322, %cst_94 {dimension_numbers = #tpu.dot_dimension_numbers<[1], [0], [0], [1], [0, 0, 1, 1], [], []>} : vector<64x128xf32>, vector<128x512xf32>, vector<64x512xf32> -> vector<64x512xf32>
    %c1 = arith.constant 1 : index
    %c0_95 = arith.constant 0 : index
    %c0_96 = arith.constant 0 : index
    %324 = vector.load %arg5[%c1, %c0_95, %c0_96] : memref<2x1x512xf32, #tpu.memory_space<vmem>>, vector<1x1x512xf32>
    %325 = vector.shape_cast %324 : vector<1x1x512xf32> to vector<1x512xf32>
    %326 = vector.broadcast %325 : vector<1x512xf32> to vector<64x512xf32>
    %327 = arith.addf %323, %326 : vector<64x512xf32>
    %c0_97 = arith.constant 0 : index
    %c0_98 = arith.constant 0 : index
    %328 = vector.load %arg15[%c0_97, %c0_98] : memref<64x512xf32, #tpu.memory_space<vmem>>, vector<64x512xf32>
    tpu.vector_store %arg15[%c0_97, %c0_98], %327 {strides = array<i32>} : memref<64x512xf32, #tpu.memory_space<vmem>>, vector<64x512xf32>,
    %c1_99 = arith.constant 1 : index
    %c0_100 = arith.constant 0 : index
    %c0_101 = arith.constant 0 : index
    %329 = vector.load %arg4[%c1_99, %c0_100, %c0_101] : memref<2x128x512xf32, #tpu.memory_space<vmem>>, vector<1x128x512xf32>
    %330 = vector.shape_cast %329 : vector<1x128x512xf32> to vector<128x512xf32>
    %c1_102 = arith.constant 1 : index
    %c0_103 = arith.constant 0 : index
    %c0_104 = arith.constant 0 : index
    %331 = vector.load %arg16[%c1_102, %c0_103, %c0_104] : memref<2x8x128xf32, #tpu.memory_space<vmem>>, vector<1x8x128xf32>
    %332 = vector.shape_cast %331 : vector<1x8x128xf32> to vector<8x128xf32>
    %c1_105 = arith.constant 1 : index
    %c0_106 = arith.constant 0 : index
    %c0_107 = arith.constant 0 : index
    %333 = vector.load %arg17[%c1_105, %c0_106, %c0_107] : memref<2x8x128xf32, #tpu.memory_space<vmem>>, vector<1x8x128xf32>
    %334 = vector.shape_cast %333 : vector<1x8x128xf32> to vector<8x128xf32>
    %c0_i32_108 = arith.constant 0 : i32
    %c8_i32_109 = arith.constant 8 : i32
    %335 = arith.muli %c0_i32_108, %c8_i32_109 : i32
    %336 = tpu.assume_multiple %335, 8 : i32
    %337 = arith.index_cast %336 : i32 to index
    %c0_110 = arith.constant 0 : index
    %338 = vector.load %arg15[%337, %c0_110] : memref<64x512xf32, #tpu.memory_space<vmem>>, vector<8x512xf32>
    %cst_111 = arith.constant dense<0.000000e+00> : vector<8x512xf32>
    %339 = tpu.matmul %332, %330, %cst_111 {dimension_numbers = #tpu.dot_dimension_numbers<[1], [0], [0], [1], [0, 0, 1, 1], [], []>} : vector<8x128xf32>, vector<128x512xf32>, vector<8x512xf32> -> vector<8x512xf32>
    %340 = arith.addf %338, %339 : vector<8x512xf32>
    %341 = vector.extract_strided_slice %340 {offsets = [0, 0], sizes = [8, 128], strides = [1, 1]} : vector<8x512xf32> to vector<8x128xf32>
    %342 = arith.negf %341 : vector<8x128xf32>
    %343 = math.exp %342 : vector<8x128xf32>
    %cst_112 = arith.constant 1.000000e+00 : f32
    %344 = vector.broadcast %cst_112 : f32 to vector<8x128xf32>
    %345 = arith.addf %344, %343 : vector<8x128xf32>
    %346 = arith.divf %344, %345 : vector<8x128xf32>
    %347 = vector.extract_strided_slice %340 {offsets = [0, 128], sizes = [8, 128], strides = [1, 1]} : vector<8x512xf32> to vector<8x128xf32>
    %348 = arith.negf %347 : vector<8x128xf32>
    %349 = math.exp %348 : vector<8x128xf32>
    %cst_113 = arith.constant 1.000000e+00 : f32
    %350 = vector.broadcast %cst_113 : f32 to vector<8x128xf32>
    %351 = arith.addf %350, %349 : vector<8x128xf32>
    %352 = arith.divf %350, %351 : vector<8x128xf32>
    %353 = vector.extract_strided_slice %340 {offsets = [0, 256], sizes = [8, 128], strides = [1, 1]} : vector<8x512xf32> to vector<8x128xf32>
    %354 = math.tanh %353 : vector<8x128xf32>
    %355 = vector.extract_strided_slice %340 {offsets = [0, 384], sizes = [8, 128], strides = [1, 1]} : vector<8x512xf32> to vector<8x128xf32>
    %356 = arith.negf %355 : vector<8x128xf32>
    %357 = math.exp %356 : vector<8x128xf32>
    %cst_114 = arith.constant 1.000000e+00 : f32
    %358 = vector.broadcast %cst_114 : f32 to vector<8x128xf32>
    %359 = arith.addf %358, %357 : vector<8x128xf32>
    %360 = arith.divf %358, %359 : vector<8x128xf32>
    %361 = arith.mulf %352, %334 : vector<8x128xf32>
    %362 = arith.mulf %346, %354 : vector<8x128xf32>
    %363 = arith.addf %361, %362 : vector<8x128xf32>
    %364 = math.tanh %363 : vector<8x128xf32>
    %365 = arith.mulf %360, %364 : vector<8x128xf32>
    %366 = arith.addi %0, %c0_i32_108 : i32
    %c12_i32_115 = arith.constant 12 : i32
    %367 = arith.cmpi slt, %366, %c12_i32_115 : i32
    %368 = arith.select %367, %365, %332 : vector<8x128xf32>
    %369 = arith.select %367, %363, %334 : vector<8x128xf32>
    %370 = arith.index_cast %336 : i32 to index
    %c0_116 = arith.constant 0 : index
    %371 = vector.load %arg14[%370, %c0_116] : memref<64x128xf32, #tpu.memory_space<vmem>>, vector<8x128xf32>
    tpu.vector_store %arg14[%370, %c0_116], %368 {strides = array<i32>} : memref<64x128xf32, #tpu.memory_space<vmem>>, vector<8x128xf32>,
    %c1_i32_117 = arith.constant 1 : i32
    %c8_i32_118 = arith.constant 8 : i32
    %372 = arith.muli %c1_i32_117, %c8_i32_118 : i32
    %373 = tpu.assume_multiple %372, 8 : i32
    %374 = arith.index_cast %373 : i32 to index
    %c0_119 = arith.constant 0 : index
    %375 = vector.load %arg15[%374, %c0_119] : memref<64x512xf32, #tpu.memory_space<vmem>>, vector<8x512xf32>
    %cst_120 = arith.constant dense<0.000000e+00> : vector<8x512xf32>
    %376 = tpu.matmul %368, %330, %cst_120 {dimension_numbers = #tpu.dot_dimension_numbers<[1], [0], [0], [1], [0, 0, 1, 1], [], []>} : vector<8x128xf32>, vector<128x512xf32>, vector<8x512xf32> -> vector<8x512xf32>
    %377 = arith.addf %375, %376 : vector<8x512xf32>
    %378 = vector.extract_strided_slice %377 {offsets = [0, 0], sizes = [8, 128], strides = [1, 1]} : vector<8x512xf32> to vector<8x128xf32>
    %379 = arith.negf %378 : vector<8x128xf32>
    %380 = math.exp %379 : vector<8x128xf32>
    %cst_121 = arith.constant 1.000000e+00 : f32
    %381 = vector.broadcast %cst_121 : f32 to vector<8x128xf32>
    %382 = arith.addf %381, %380 : vector<8x128xf32>
    %383 = arith.divf %381, %382 : vector<8x128xf32>
    %384 = vector.extract_strided_slice %377 {offsets = [0, 128], sizes = [8, 128], strides = [1, 1]} : vector<8x512xf32> to vector<8x128xf32>
    %385 = arith.negf %384 : vector<8x128xf32>
    %386 = math.exp %385 : vector<8x128xf32>
    %cst_122 = arith.constant 1.000000e+00 : f32
    %387 = vector.broadcast %cst_122 : f32 to vector<8x128xf32>
    %388 = arith.addf %387, %386 : vector<8x128xf32>
    %389 = arith.divf %387, %388 : vector<8x128xf32>
    %390 = vector.extract_strided_slice %377 {offsets = [0, 256], sizes = [8, 128], strides = [1, 1]} : vector<8x512xf32> to vector<8x128xf32>
    %391 = math.tanh %390 : vector<8x128xf32>
    %392 = vector.extract_strided_slice %377 {offsets = [0, 384], sizes = [8, 128], strides = [1, 1]} : vector<8x512xf32> to vector<8x128xf32>
    %393 = arith.negf %392 : vector<8x128xf32>
    %394 = math.exp %393 : vector<8x128xf32>
    %cst_123 = arith.constant 1.000000e+00 : f32
    %395 = vector.broadcast %cst_123 : f32 to vector<8x128xf32>
    %396 = arith.addf %395, %394 : vector<8x128xf32>
    %397 = arith.divf %395, %396 : vector<8x128xf32>
    %398 = arith.mulf %389, %369 : vector<8x128xf32>
    %399 = arith.mulf %383, %391 : vector<8x128xf32>
    %400 = arith.addf %398, %399 : vector<8x128xf32>
    %401 = math.tanh %400 : vector<8x128xf32>
    %402 = arith.mulf %397, %401 : vector<8x128xf32>
    %403 = arith.addi %0, %c1_i32_117 : i32
    %c12_i32_124 = arith.constant 12 : i32
    %404 = arith.cmpi slt, %403, %c12_i32_124 : i32
    %405 = arith.select %404, %402, %368 : vector<8x128xf32>
    %406 = arith.select %404, %400, %369 : vector<8x128xf32>
    %407 = arith.index_cast %373 : i32 to index
    %c0_125 = arith.constant 0 : index
    %408 = vector.load %arg14[%407, %c0_125] : memref<64x128xf32, #tpu.memory_space<vmem>>, vector<8x128xf32>
    tpu.vector_store %arg14[%407, %c0_125], %405 {strides = array<i32>} : memref<64x128xf32, #tpu.memory_space<vmem>>, vector<8x128xf32>,
    %c2_i32_126 = arith.constant 2 : i32
    %c8_i32_127 = arith.constant 8 : i32
    %409 = arith.muli %c2_i32_126, %c8_i32_127 : i32
    %410 = tpu.assume_multiple %409, 8 : i32
    %411 = arith.index_cast %410 : i32 to index
    %c0_128 = arith.constant 0 : index
    %412 = vector.load %arg15[%411, %c0_128] : memref<64x512xf32, #tpu.memory_space<vmem>>, vector<8x512xf32>
    %cst_129 = arith.constant dense<0.000000e+00> : vector<8x512xf32>
    %413 = tpu.matmul %405, %330, %cst_129 {dimension_numbers = #tpu.dot_dimension_numbers<[1], [0], [0], [1], [0, 0, 1, 1], [], []>} : vector<8x128xf32>, vector<128x512xf32>, vector<8x512xf32> -> vector<8x512xf32>
    %414 = arith.addf %412, %413 : vector<8x512xf32>
    %415 = vector.extract_strided_slice %414 {offsets = [0, 0], sizes = [8, 128], strides = [1, 1]} : vector<8x512xf32> to vector<8x128xf32>
    %416 = arith.negf %415 : vector<8x128xf32>
    %417 = math.exp %416 : vector<8x128xf32>
    %cst_130 = arith.constant 1.000000e+00 : f32
    %418 = vector.broadcast %cst_130 : f32 to vector<8x128xf32>
    %419 = arith.addf %418, %417 : vector<8x128xf32>
    %420 = arith.divf %418, %419 : vector<8x128xf32>
    %421 = vector.extract_strided_slice %414 {offsets = [0, 128], sizes = [8, 128], strides = [1, 1]} : vector<8x512xf32> to vector<8x128xf32>
    %422 = arith.negf %421 : vector<8x128xf32>
    %423 = math.exp %422 : vector<8x128xf32>
    %cst_131 = arith.constant 1.000000e+00 : f32
    %424 = vector.broadcast %cst_131 : f32 to vector<8x128xf32>
    %425 = arith.addf %424, %423 : vector<8x128xf32>
    %426 = arith.divf %424, %425 : vector<8x128xf32>
    %427 = vector.extract_strided_slice %414 {offsets = [0, 256], sizes = [8, 128], strides = [1, 1]} : vector<8x512xf32> to vector<8x128xf32>
    %428 = math.tanh %427 : vector<8x128xf32>
    %429 = vector.extract_strided_slice %414 {offsets = [0, 384], sizes = [8, 128], strides = [1, 1]} : vector<8x512xf32> to vector<8x128xf32>
    %430 = arith.negf %429 : vector<8x128xf32>
    %431 = math.exp %430 : vector<8x128xf32>
    %cst_132 = arith.constant 1.000000e+00 : f32
    %432 = vector.broadcast %cst_132 : f32 to vector<8x128xf32>
    %433 = arith.addf %432, %431 : vector<8x128xf32>
    %434 = arith.divf %432, %433 : vector<8x128xf32>
    %435 = arith.mulf %426, %406 : vector<8x128xf32>
    %436 = arith.mulf %420, %428 : vector<8x128xf32>
    %437 = arith.addf %435, %436 : vector<8x128xf32>
    %438 = math.tanh %437 : vector<8x128xf32>
    %439 = arith.mulf %434, %438 : vector<8x128xf32>
    %440 = arith.addi %0, %c2_i32_126 : i32
    %c12_i32_133 = arith.constant 12 : i32
    %441 = arith.cmpi slt, %440, %c12_i32_133 : i32
    %442 = arith.select %441, %439, %405 : vector<8x128xf32>
    %443 = arith.select %441, %437, %406 : vector<8x128xf32>
    %444 = arith.index_cast %410 : i32 to index
    %c0_134 = arith.constant 0 : index
    %445 = vector.load %arg14[%444, %c0_134] : memref<64x128xf32, #tpu.memory_space<vmem>>, vector<8x128xf32>
    tpu.vector_store %arg14[%444, %c0_134], %442 {strides = array<i32>} : memref<64x128xf32, #tpu.memory_space<vmem>>, vector<8x128xf32>,
    %c3_i32_135 = arith.constant 3 : i32
    %c8_i32_136 = arith.constant 8 : i32
    %446 = arith.muli %c3_i32_135, %c8_i32_136 : i32
    %447 = tpu.assume_multiple %446, 8 : i32
    %448 = arith.index_cast %447 : i32 to index
    %c0_137 = arith.constant 0 : index
    %449 = vector.load %arg15[%448, %c0_137] : memref<64x512xf32, #tpu.memory_space<vmem>>, vector<8x512xf32>
    %cst_138 = arith.constant dense<0.000000e+00> : vector<8x512xf32>
    %450 = tpu.matmul %442, %330, %cst_138 {dimension_numbers = #tpu.dot_dimension_numbers<[1], [0], [0], [1], [0, 0, 1, 1], [], []>} : vector<8x128xf32>, vector<128x512xf32>, vector<8x512xf32> -> vector<8x512xf32>
    %451 = arith.addf %449, %450 : vector<8x512xf32>
    %452 = vector.extract_strided_slice %451 {offsets = [0, 0], sizes = [8, 128], strides = [1, 1]} : vector<8x512xf32> to vector<8x128xf32>
    %453 = arith.negf %452 : vector<8x128xf32>
    %454 = math.exp %453 : vector<8x128xf32>
    %cst_139 = arith.constant 1.000000e+00 : f32
    %455 = vector.broadcast %cst_139 : f32 to vector<8x128xf32>
    %456 = arith.addf %455, %454 : vector<8x128xf32>
    %457 = arith.divf %455, %456 : vector<8x128xf32>
    %458 = vector.extract_strided_slice %451 {offsets = [0, 128], sizes = [8, 128], strides = [1, 1]} : vector<8x512xf32> to vector<8x128xf32>
    %459 = arith.negf %458 : vector<8x128xf32>
    %460 = math.exp %459 : vector<8x128xf32>
    %cst_140 = arith.constant 1.000000e+00 : f32
    %461 = vector.broadcast %cst_140 : f32 to vector<8x128xf32>
    %462 = arith.addf %461, %460 : vector<8x128xf32>
    %463 = arith.divf %461, %462 : vector<8x128xf32>
    %464 = vector.extract_strided_slice %451 {offsets = [0, 256], sizes = [8, 128], strides = [1, 1]} : vector<8x512xf32> to vector<8x128xf32>
    %465 = math.tanh %464 : vector<8x128xf32>
    %466 = vector.extract_strided_slice %451 {offsets = [0, 384], sizes = [8, 128], strides = [1, 1]} : vector<8x512xf32> to vector<8x128xf32>
    %467 = arith.negf %466 : vector<8x128xf32>
    %468 = math.exp %467 : vector<8x128xf32>
    %cst_141 = arith.constant 1.000000e+00 : f32
    %469 = vector.broadcast %cst_141 : f32 to vector<8x128xf32>
    %470 = arith.addf %469, %468 : vector<8x128xf32>
    %471 = arith.divf %469, %470 : vector<8x128xf32>
    %472 = arith.mulf %463, %443 : vector<8x128xf32>
    %473 = arith.mulf %457, %465 : vector<8x128xf32>
    %474 = arith.addf %472, %473 : vector<8x128xf32>
    %475 = math.tanh %474 : vector<8x128xf32>
    %476 = arith.mulf %471, %475 : vector<8x128xf32>
    %477 = arith.addi %0, %c3_i32_135 : i32
    %c12_i32_142 = arith.constant 12 : i32
    %478 = arith.cmpi slt, %477, %c12_i32_142 : i32
    %479 = arith.select %478, %476, %442 : vector<8x128xf32>
    %480 = arith.select %478, %474, %443 : vector<8x128xf32>
    %481 = arith.index_cast %447 : i32 to index
    %c0_143 = arith.constant 0 : index
    %482 = vector.load %arg14[%481, %c0_143] : memref<64x128xf32, #tpu.memory_space<vmem>>, vector<8x128xf32>
    tpu.vector_store %arg14[%481, %c0_143], %479 {strides = array<i32>} : memref<64x128xf32, #tpu.memory_space<vmem>>, vector<8x128xf32>,
    %c4_i32_144 = arith.constant 4 : i32
    %c8_i32_145 = arith.constant 8 : i32
    %483 = arith.muli %c4_i32_144, %c8_i32_145 : i32
    %484 = tpu.assume_multiple %483, 8 : i32
    %485 = arith.index_cast %484 : i32 to index
    %c0_146 = arith.constant 0 : index
    %486 = vector.load %arg15[%485, %c0_146] : memref<64x512xf32, #tpu.memory_space<vmem>>, vector<8x512xf32>
    %cst_147 = arith.constant dense<0.000000e+00> : vector<8x512xf32>
    %487 = tpu.matmul %479, %330, %cst_147 {dimension_numbers = #tpu.dot_dimension_numbers<[1], [0], [0], [1], [0, 0, 1, 1], [], []>} : vector<8x128xf32>, vector<128x512xf32>, vector<8x512xf32> -> vector<8x512xf32>
    %488 = arith.addf %486, %487 : vector<8x512xf32>
    %489 = vector.extract_strided_slice %488 {offsets = [0, 0], sizes = [8, 128], strides = [1, 1]} : vector<8x512xf32> to vector<8x128xf32>
    %490 = arith.negf %489 : vector<8x128xf32>
    %491 = math.exp %490 : vector<8x128xf32>
    %cst_148 = arith.constant 1.000000e+00 : f32
    %492 = vector.broadcast %cst_148 : f32 to vector<8x128xf32>
    %493 = arith.addf %492, %491 : vector<8x128xf32>
    %494 = arith.divf %492, %493 : vector<8x128xf32>
    %495 = vector.extract_strided_slice %488 {offsets = [0, 128], sizes = [8, 128], strides = [1, 1]} : vector<8x512xf32> to vector<8x128xf32>
    %496 = arith.negf %495 : vector<8x128xf32>
    %497 = math.exp %496 : vector<8x128xf32>
    %cst_149 = arith.constant 1.000000e+00 : f32
    %498 = vector.broadcast %cst_149 : f32 to vector<8x128xf32>
    %499 = arith.addf %498, %497 : vector<8x128xf32>
    %500 = arith.divf %498, %499 : vector<8x128xf32>
    %501 = vector.extract_strided_slice %488 {offsets = [0, 256], sizes = [8, 128], strides = [1, 1]} : vector<8x512xf32> to vector<8x128xf32>
    %502 = math.tanh %501 : vector<8x128xf32>
    %503 = vector.extract_strided_slice %488 {offsets = [0, 384], sizes = [8, 128], strides = [1, 1]} : vector<8x512xf32> to vector<8x128xf32>
    %504 = arith.negf %503 : vector<8x128xf32>
    %505 = math.exp %504 : vector<8x128xf32>
    %cst_150 = arith.constant 1.000000e+00 : f32
    %506 = vector.broadcast %cst_150 : f32 to vector<8x128xf32>
    %507 = arith.addf %506, %505 : vector<8x128xf32>
    %508 = arith.divf %506, %507 : vector<8x128xf32>
    %509 = arith.mulf %500, %480 : vector<8x128xf32>
    %510 = arith.mulf %494, %502 : vector<8x128xf32>
    %511 = arith.addf %509, %510 : vector<8x128xf32>
    %512 = math.tanh %511 : vector<8x128xf32>
    %513 = arith.mulf %508, %512 : vector<8x128xf32>
    %514 = arith.addi %0, %c4_i32_144 : i32
    %c12_i32_151 = arith.constant 12 : i32
    %515 = arith.cmpi slt, %514, %c12_i32_151 : i32
    %516 = arith.select %515, %513, %479 : vector<8x128xf32>
    %517 = arith.select %515, %511, %480 : vector<8x128xf32>
    %518 = arith.index_cast %484 : i32 to index
    %c0_152 = arith.constant 0 : index
    %519 = vector.load %arg14[%518, %c0_152] : memref<64x128xf32, #tpu.memory_space<vmem>>, vector<8x128xf32>
    tpu.vector_store %arg14[%518, %c0_152], %516 {strides = array<i32>} : memref<64x128xf32, #tpu.memory_space<vmem>>, vector<8x128xf32>,
    %c5_i32_153 = arith.constant 5 : i32
    %c8_i32_154 = arith.constant 8 : i32
    %520 = arith.muli %c5_i32_153, %c8_i32_154 : i32
    %521 = tpu.assume_multiple %520, 8 : i32
    %522 = arith.index_cast %521 : i32 to index
    %c0_155 = arith.constant 0 : index
    %523 = vector.load %arg15[%522, %c0_155] : memref<64x512xf32, #tpu.memory_space<vmem>>, vector<8x512xf32>
    %cst_156 = arith.constant dense<0.000000e+00> : vector<8x512xf32>
    %524 = tpu.matmul %516, %330, %cst_156 {dimension_numbers = #tpu.dot_dimension_numbers<[1], [0], [0], [1], [0, 0, 1, 1], [], []>} : vector<8x128xf32>, vector<128x512xf32>, vector<8x512xf32> -> vector<8x512xf32>
    %525 = arith.addf %523, %524 : vector<8x512xf32>
    %526 = vector.extract_strided_slice %525 {offsets = [0, 0], sizes = [8, 128], strides = [1, 1]} : vector<8x512xf32> to vector<8x128xf32>
    %527 = arith.negf %526 : vector<8x128xf32>
    %528 = math.exp %527 : vector<8x128xf32>
    %cst_157 = arith.constant 1.000000e+00 : f32
    %529 = vector.broadcast %cst_157 : f32 to vector<8x128xf32>
    %530 = arith.addf %529, %528 : vector<8x128xf32>
    %531 = arith.divf %529, %530 : vector<8x128xf32>
    %532 = vector.extract_strided_slice %525 {offsets = [0, 128], sizes = [8, 128], strides = [1, 1]} : vector<8x512xf32> to vector<8x128xf32>
    %533 = arith.negf %532 : vector<8x128xf32>
    %534 = math.exp %533 : vector<8x128xf32>
    %cst_158 = arith.constant 1.000000e+00 : f32
    %535 = vector.broadcast %cst_158 : f32 to vector<8x128xf32>
    %536 = arith.addf %535, %534 : vector<8x128xf32>
    %537 = arith.divf %535, %536 : vector<8x128xf32>
    %538 = vector.extract_strided_slice %525 {offsets = [0, 256], sizes = [8, 128], strides = [1, 1]} : vector<8x512xf32> to vector<8x128xf32>
    %539 = math.tanh %538 : vector<8x128xf32>
    %540 = vector.extract_strided_slice %525 {offsets = [0, 384], sizes = [8, 128], strides = [1, 1]} : vector<8x512xf32> to vector<8x128xf32>
    %541 = arith.negf %540 : vector<8x128xf32>
    %542 = math.exp %541 : vector<8x128xf32>
    %cst_159 = arith.constant 1.000000e+00 : f32
    %543 = vector.broadcast %cst_159 : f32 to vector<8x128xf32>
    %544 = arith.addf %543, %542 : vector<8x128xf32>
    %545 = arith.divf %543, %544 : vector<8x128xf32>
    %546 = arith.mulf %537, %517 : vector<8x128xf32>
    %547 = arith.mulf %531, %539 : vector<8x128xf32>
    %548 = arith.addf %546, %547 : vector<8x128xf32>
    %549 = math.tanh %548 : vector<8x128xf32>
    %550 = arith.mulf %545, %549 : vector<8x128xf32>
    %551 = arith.addi %0, %c5_i32_153 : i32
    %c12_i32_160 = arith.constant 12 : i32
    %552 = arith.cmpi slt, %551, %c12_i32_160 : i32
    %553 = arith.select %552, %550, %516 : vector<8x128xf32>
    %554 = arith.select %552, %548, %517 : vector<8x128xf32>
    %555 = arith.index_cast %521 : i32 to index
    %c0_161 = arith.constant 0 : index
    %556 = vector.load %arg14[%555, %c0_161] : memref<64x128xf32, #tpu.memory_space<vmem>>, vector<8x128xf32>
    tpu.vector_store %arg14[%555, %c0_161], %553 {strides = array<i32>} : memref<64x128xf32, #tpu.memory_space<vmem>>, vector<8x128xf32>,
    %c6_i32_162 = arith.constant 6 : i32
    %c8_i32_163 = arith.constant 8 : i32
    %557 = arith.muli %c6_i32_162, %c8_i32_163 : i32
    %558 = tpu.assume_multiple %557, 8 : i32
    %559 = arith.index_cast %558 : i32 to index
    %c0_164 = arith.constant 0 : index
    %560 = vector.load %arg15[%559, %c0_164] : memref<64x512xf32, #tpu.memory_space<vmem>>, vector<8x512xf32>
    %cst_165 = arith.constant dense<0.000000e+00> : vector<8x512xf32>
    %561 = tpu.matmul %553, %330, %cst_165 {dimension_numbers = #tpu.dot_dimension_numbers<[1], [0], [0], [1], [0, 0, 1, 1], [], []>} : vector<8x128xf32>, vector<128x512xf32>, vector<8x512xf32> -> vector<8x512xf32>
    %562 = arith.addf %560, %561 : vector<8x512xf32>
    %563 = vector.extract_strided_slice %562 {offsets = [0, 0], sizes = [8, 128], strides = [1, 1]} : vector<8x512xf32> to vector<8x128xf32>
    %564 = arith.negf %563 : vector<8x128xf32>
    %565 = math.exp %564 : vector<8x128xf32>
    %cst_166 = arith.constant 1.000000e+00 : f32
    %566 = vector.broadcast %cst_166 : f32 to vector<8x128xf32>
    %567 = arith.addf %566, %565 : vector<8x128xf32>
    %568 = arith.divf %566, %567 : vector<8x128xf32>
    %569 = vector.extract_strided_slice %562 {offsets = [0, 128], sizes = [8, 128], strides = [1, 1]} : vector<8x512xf32> to vector<8x128xf32>
    %570 = arith.negf %569 : vector<8x128xf32>
    %571 = math.exp %570 : vector<8x128xf32>
    %cst_167 = arith.constant 1.000000e+00 : f32
    %572 = vector.broadcast %cst_167 : f32 to vector<8x128xf32>
    %573 = arith.addf %572, %571 : vector<8x128xf32>
    %574 = arith.divf %572, %573 : vector<8x128xf32>
    %575 = vector.extract_strided_slice %562 {offsets = [0, 256], sizes = [8, 128], strides = [1, 1]} : vector<8x512xf32> to vector<8x128xf32>
    %576 = math.tanh %575 : vector<8x128xf32>
    %577 = vector.extract_strided_slice %562 {offsets = [0, 384], sizes = [8, 128], strides = [1, 1]} : vector<8x512xf32> to vector<8x128xf32>
    %578 = arith.negf %577 : vector<8x128xf32>
    %579 = math.exp %578 : vector<8x128xf32>
    %cst_168 = arith.constant 1.000000e+00 : f32
    %580 = vector.broadcast %cst_168 : f32 to vector<8x128xf32>
    %581 = arith.addf %580, %579 : vector<8x128xf32>
    %582 = arith.divf %580, %581 : vector<8x128xf32>
    %583 = arith.mulf %574, %554 : vector<8x128xf32>
    %584 = arith.mulf %568, %576 : vector<8x128xf32>
    %585 = arith.addf %583, %584 : vector<8x128xf32>
    %586 = math.tanh %585 : vector<8x128xf32>
    %587 = arith.mulf %582, %586 : vector<8x128xf32>
    %588 = arith.addi %0, %c6_i32_162 : i32
    %c12_i32_169 = arith.constant 12 : i32
    %589 = arith.cmpi slt, %588, %c12_i32_169 : i32
    %590 = arith.select %589, %587, %553 : vector<8x128xf32>
    %591 = arith.select %589, %585, %554 : vector<8x128xf32>
    %592 = arith.index_cast %558 : i32 to index
    %c0_170 = arith.constant 0 : index
    %593 = vector.load %arg14[%592, %c0_170] : memref<64x128xf32, #tpu.memory_space<vmem>>, vector<8x128xf32>
    tpu.vector_store %arg14[%592, %c0_170], %590 {strides = array<i32>} : memref<64x128xf32, #tpu.memory_space<vmem>>, vector<8x128xf32>,
    %c7_i32_171 = arith.constant 7 : i32
    %c8_i32_172 = arith.constant 8 : i32
    %594 = arith.muli %c7_i32_171, %c8_i32_172 : i32
    %595 = tpu.assume_multiple %594, 8 : i32
    %596 = arith.index_cast %595 : i32 to index
    %c0_173 = arith.constant 0 : index
    %597 = vector.load %arg15[%596, %c0_173] : memref<64x512xf32, #tpu.memory_space<vmem>>, vector<8x512xf32>
    %cst_174 = arith.constant dense<0.000000e+00> : vector<8x512xf32>
    %598 = tpu.matmul %590, %330, %cst_174 {dimension_numbers = #tpu.dot_dimension_numbers<[1], [0], [0], [1], [0, 0, 1, 1], [], []>} : vector<8x128xf32>, vector<128x512xf32>, vector<8x512xf32> -> vector<8x512xf32>
    %599 = arith.addf %597, %598 : vector<8x512xf32>
    %600 = vector.extract_strided_slice %599 {offsets = [0, 0], sizes = [8, 128], strides = [1, 1]} : vector<8x512xf32> to vector<8x128xf32>
    %601 = arith.negf %600 : vector<8x128xf32>
    %602 = math.exp %601 : vector<8x128xf32>
    %cst_175 = arith.constant 1.000000e+00 : f32
    %603 = vector.broadcast %cst_175 : f32 to vector<8x128xf32>
    %604 = arith.addf %603, %602 : vector<8x128xf32>
    %605 = arith.divf %603, %604 : vector<8x128xf32>
    %606 = vector.extract_strided_slice %599 {offsets = [0, 128], sizes = [8, 128], strides = [1, 1]} : vector<8x512xf32> to vector<8x128xf32>
    %607 = arith.negf %606 : vector<8x128xf32>
    %608 = math.exp %607 : vector<8x128xf32>
    %cst_176 = arith.constant 1.000000e+00 : f32
    %609 = vector.broadcast %cst_176 : f32 to vector<8x128xf32>
    %610 = arith.addf %609, %608 : vector<8x128xf32>
    %611 = arith.divf %609, %610 : vector<8x128xf32>
    %612 = vector.extract_strided_slice %599 {offsets = [0, 256], sizes = [8, 128], strides = [1, 1]} : vector<8x512xf32> to vector<8x128xf32>
    %613 = math.tanh %612 : vector<8x128xf32>
    %614 = vector.extract_strided_slice %599 {offsets = [0, 384], sizes = [8, 128], strides = [1, 1]} : vector<8x512xf32> to vector<8x128xf32>
    %615 = arith.negf %614 : vector<8x128xf32>
    %616 = math.exp %615 : vector<8x128xf32>
    %cst_177 = arith.constant 1.000000e+00 : f32
    %617 = vector.broadcast %cst_177 : f32 to vector<8x128xf32>
    %618 = arith.addf %617, %616 : vector<8x128xf32>
    %619 = arith.divf %617, %618 : vector<8x128xf32>
    %620 = arith.mulf %611, %591 : vector<8x128xf32>
    %621 = arith.mulf %605, %613 : vector<8x128xf32>
    %622 = arith.addf %620, %621 : vector<8x128xf32>
    %623 = math.tanh %622 : vector<8x128xf32>
    %624 = arith.mulf %619, %623 : vector<8x128xf32>
    %625 = arith.addi %0, %c7_i32_171 : i32
    %c12_i32_178 = arith.constant 12 : i32
    %626 = arith.cmpi slt, %625, %c12_i32_178 : i32
    %627 = arith.select %626, %624, %590 : vector<8x128xf32>
    %628 = arith.select %626, %622, %591 : vector<8x128xf32>
    %629 = arith.index_cast %595 : i32 to index
    %c0_179 = arith.constant 0 : index
    %630 = vector.load %arg14[%629, %c0_179] : memref<64x128xf32, #tpu.memory_space<vmem>>, vector<8x128xf32>
    tpu.vector_store %arg14[%629, %c0_179], %627 {strides = array<i32>} : memref<64x128xf32, #tpu.memory_space<vmem>>, vector<8x128xf32>,
    %c8_i32_180 = arith.constant 8 : i32
    %c1_181 = arith.constant 1 : index
    %c0_182 = arith.constant 0 : index
    %c0_183 = arith.constant 0 : index
    %631 = vector.load %arg16[%c1_181, %c0_182, %c0_183] : memref<2x8x128xf32, #tpu.memory_space<vmem>>, vector<1x8x128xf32>
    %632 = vector.shape_cast %631 : vector<1x8x128xf32> to vector<8x128xf32>
    %633 = vector.shape_cast %627 : vector<8x128xf32> to vector<1x8x128xf32>
    tpu.vector_store %arg16[%c1_181, %c0_182, %c0_183], %633 {strides = array<i32>} : memref<2x8x128xf32, #tpu.memory_space<vmem>>, vector<1x8x128xf32>,
    %c1_184 = arith.constant 1 : index
    %c0_185 = arith.constant 0 : index
    %c0_186 = arith.constant 0 : index
    %634 = vector.load %arg17[%c1_184, %c0_185, %c0_186] : memref<2x8x128xf32, #tpu.memory_space<vmem>>, vector<1x8x128xf32>
    %635 = vector.shape_cast %634 : vector<1x8x128xf32> to vector<8x128xf32>
    %636 = vector.shape_cast %628 : vector<8x128xf32> to vector<1x8x128xf32>
    tpu.vector_store %arg17[%c1_184, %c0_185, %c0_186], %636 {strides = array<i32>} : memref<2x8x128xf32, #tpu.memory_space<vmem>>, vector<1x8x128xf32>,
    %c0_187 = arith.constant 0 : index
    %c0_188 = arith.constant 0 : index
    %637 = vector.load %arg14[%c0_187, %c0_188] : memref<64x128xf32, #tpu.memory_space<vmem>>, vector<64x128xf32>
    %c0_189 = arith.constant 0 : index
    %c0_190 = arith.constant 0 : index
    %638 = vector.load %arg8[%c0_189, %c0_190] : memref<128x128xf32, #tpu.memory_space<vmem>>, vector<128x128xf32>
    %cst_191 = arith.constant dense<0.000000e+00> : vector<64x128xf32>
    %639 = tpu.matmul %637, %638, %cst_191 {dimension_numbers = #tpu.dot_dimension_numbers<[1], [0], [0], [1], [0, 0, 1, 1], [], []>} : vector<64x128xf32>, vector<128x128xf32>, vector<64x128xf32> -> vector<64x128xf32>
    %c0_192 = arith.constant 0 : index
    %c0_193 = arith.constant 0 : index
    %640 = vector.load %arg9[%c0_192, %c0_193] : memref<1x128xf32, #tpu.memory_space<vmem>>, vector<1x128xf32>
    %641 = vector.broadcast %640 : vector<1x128xf32> to vector<64x128xf32>
    %642 = arith.addf %639, %641 : vector<64x128xf32>
    %643 = vector.shape_cast %642 : vector<64x128xf32> to vector<8x8x128xf32>
    %644 = tpu.transpose %643, [1, 0, 2] : vector<8x8x128xf32> -> vector<8x8x128xf32>
    %c0_194 = arith.constant 0 : index
    %c0_195 = arith.constant 0 : index
    %c0_196 = arith.constant 0 : index
    %645 = vector.load %arg10[%c0_194, %c0_195, %c0_196] : memref<8x8x128xf32, #tpu.memory_space<vmem>>, vector<8x8x128xf32>
    tpu.vector_store %arg10[%c0_194, %c0_195, %c0_196], %644 {strides = array<i32>} : memref<8x8x128xf32, #tpu.memory_space<vmem>>, vector<8x8x128xf32>,
    %c0_197 = arith.constant 0 : index
    %c0_198 = arith.constant 0 : index
    %c0_199 = arith.constant 0 : index
    %646 = vector.load %arg16[%c0_197, %c0_198, %c0_199] : memref<2x8x128xf32, #tpu.memory_space<vmem>>, vector<2x8x128xf32>
    %c0_200 = arith.constant 0 : index
    %c0_201 = arith.constant 0 : index
    %c0_202 = arith.constant 0 : index
    %647 = vector.load %arg11[%c0_200, %c0_201, %c0_202] : memref<2x8x128xf32, #tpu.memory_space<vmem>>, vector<2x8x128xf32>
    tpu.vector_store %arg11[%c0_200, %c0_201, %c0_202], %646 {strides = array<i32>} : memref<2x8x128xf32, #tpu.memory_space<vmem>>, vector<2x8x128xf32>,
    %c0_203 = arith.constant 0 : index
    %c0_204 = arith.constant 0 : index
    %c0_205 = arith.constant 0 : index
    %648 = vector.load %arg17[%c0_203, %c0_204, %c0_205] : memref<2x8x128xf32, #tpu.memory_space<vmem>>, vector<2x8x128xf32>
    %c0_206 = arith.constant 0 : index
    %c0_207 = arith.constant 0 : index
    %c0_208 = arith.constant 0 : index
    %649 = vector.load %arg12[%c0_206, %c0_207, %c0_208] : memref<2x8x128xf32, #tpu.memory_space<vmem>>, vector<2x8x128xf32>
    tpu.vector_store %arg12[%c0_206, %c0_207, %c0_208], %648 {strides = array<i32>} : memref<2x8x128xf32, #tpu.memory_space<vmem>>, vector<2x8x128xf32>,
    return
  }
  func.func @transform_0(%arg0: i32) -> (i32, i32) {
    %c0_i32 = arith.constant 0 : i32
    %c0_i32_0 = arith.constant 0 : i32
    return %arg0, %c0_i32 : i32, i32
  }
  func.func @transform_1(%arg0: i32) -> (i32, i32) {
    %c0_i32 = arith.constant 0 : i32
    %c0_i32_0 = arith.constant 0 : i32
    %c0_i32_1 = arith.constant 0 : i32
    return %c0_i32, %c0_i32_0 : i32, i32
  }
  func.func @transform_2(%arg0: i32) -> (i32, i32, i32) {
    %c0_i32 = arith.constant 0 : i32
    %c0_i32_0 = arith.constant 0 : i32
    %c0_i32_1 = arith.constant 0 : i32
    %c0_i32_2 = arith.constant 0 : i32
    return %c0_i32, %c0_i32_0, %c0_i32_1 : i32, i32, i32
  }
  func.func @transform_3(%arg0: i32) -> (i32, i32, i32) {
    %c0_i32 = arith.constant 0 : i32
    %c0_i32_0 = arith.constant 0 : i32
    %c0_i32_1 = arith.constant 0 : i32
    %c0_i32_2 = arith.constant 0 : i32
    return %c0_i32, %c0_i32_0, %c0_i32_1 : i32, i32, i32
  }
  func.func @transform_4(%arg0: i32) -> (i32, i32, i32) {
    %c0_i32 = arith.constant 0 : i32
    %c0_i32_0 = arith.constant 0 : i32
    %c0_i32_1 = arith.constant 0 : i32
    %c0_i32_2 = arith.constant 0 : i32
    return %c0_i32, %c0_i32_0, %c0_i32_1 : i32, i32, i32
  }
  func.func @transform_5(%arg0: i32) -> (i32, i32, i32) {
    %c0_i32 = arith.constant 0 : i32
    %c0_i32_0 = arith.constant 0 : i32
    %c0_i32_1 = arith.constant 0 : i32
    %c0_i32_2 = arith.constant 0 : i32
    return %c0_i32, %c0_i32_0, %c0_i32_1 : i32, i32, i32
  }
  func.func @transform_6(%arg0: i32) -> (i32, i32, i32) {
    %c0_i32 = arith.constant 0 : i32
    %c0_i32_0 = arith.constant 0 : i32
    %c0_i32_1 = arith.constant 0 : i32
    %c0_i32_2 = arith.constant 0 : i32
    return %c0_i32, %c0_i32_0, %c0_i32_1 : i32, i32, i32
  }
  func.func @transform_7(%arg0: i32) -> (i32, i32) {
    %c0_i32 = arith.constant 0 : i32
    %c0_i32_0 = arith.constant 0 : i32
    %c0_i32_1 = arith.constant 0 : i32
    return %c0_i32, %c0_i32_0 : i32, i32
  }
  func.func @transform_8(%arg0: i32) -> (i32, i32) {
    %c0_i32 = arith.constant 0 : i32
    %c0_i32_0 = arith.constant 0 : i32
    %c0_i32_1 = arith.constant 0 : i32
    return %c0_i32, %c0_i32_0 : i32, i32
  }
  func.func @transform_9(%arg0: i32) -> (i32, i32, i32) {
    %c0_i32 = arith.constant 0 : i32
    %c0_i32_0 = arith.constant 0 : i32
    %c0_i32_1 = arith.constant 0 : i32
    return %c0_i32, %arg0, %c0_i32_0 : i32, i32, i32
  }
  func.func @transform_10(%arg0: i32) -> (i32, i32, i32) {
    %c0_i32 = arith.constant 0 : i32
    %c0_i32_0 = arith.constant 0 : i32
    %c0_i32_1 = arith.constant 0 : i32
    %c0_i32_2 = arith.constant 0 : i32
    return %c0_i32, %c0_i32_0, %c0_i32_1 : i32, i32, i32
  }
  func.func @transform_11(%arg0: i32) -> (i32, i32, i32) {
    %c0_i32 = arith.constant 0 : i32
    %c0_i32_0 = arith.constant 0 : i32
    %c0_i32_1 = arith.constant 0 : i32
    %c0_i32_2 = arith.constant 0 : i32
    return %c0_i32, %c0_i32_0, %c0_i32_1 : i32, i32, i32
  }
}

module attributes {stable_mosaic.version = 11 : i64} {
  func.func @fused_rnn_kernel(%arg0: i32, %arg1: memref<64x128xf32, #tpu.memory_space<vmem>>, %arg2: memref<128x512xf32, #tpu.memory_space<vmem>>, %arg3: memref<1x128x512xf32, #tpu.memory_space<vmem>>, %arg4: memref<2x128x512xf32, #tpu.memory_space<vmem>>, %arg5: memref<2x1x512xf32, #tpu.memory_space<vmem>>, %arg6: memref<2x8x128xf32, #tpu.memory_space<vmem>>, %arg7: memref<2x8x128xf32, #tpu.memory_space<vmem>>, %arg8: memref<128x128xf32, #tpu.memory_space<vmem>>, %arg9: memref<1x128xf32, #tpu.memory_space<vmem>>, %arg10: memref<64x128xf32, #tpu.memory_space<vmem>>, %arg11: memref<2x8x128xf32, #tpu.memory_space<vmem>>, %arg12: memref<2x8x128xf32, #tpu.memory_space<vmem>>, %arg13: memref<64x128xf32, #tpu.memory_space<vmem>>, %arg14: memref<64x128xf32, #tpu.memory_space<vmem>>, %arg15: memref<64x512xf32, #tpu.memory_space<vmem>>, %arg16: memref<2x8x128xf32, #tpu.memory_space<vmem>>, %arg17: memref<2x8x128xf32, #tpu.memory_space<vmem>>) attributes {dimension_semantics = [#tpu.dimension_semantics<arbitrary>], iteration_bounds = array<i64: 2>, scalar_prefetch = 0 : i64, scratch_operands = 5 : i64, tpu.core_type = #tpu.core_type<tc>, window_params = [{transform_indices = @transform_0, window_bounds = array<i64: 64, 128>}, {pipeline_mode = #tpu.pipeline_mode<synchronous>, transform_indices = @transform_1, window_bounds = array<i64: 128, 512>}, {pipeline_mode = #tpu.pipeline_mode<synchronous>, transform_indices = @transform_2, window_bounds = array<i64: 1, 128, 512>}, {pipeline_mode = #tpu.pipeline_mode<synchronous>, transform_indices = @transform_3, window_bounds = array<i64: 2, 128, 512>}, {pipeline_mode = #tpu.pipeline_mode<synchronous>, transform_indices = @transform_4, window_bounds = array<i64: 2, 1, 512>}, {pipeline_mode = #tpu.pipeline_mode<synchronous>, transform_indices = @transform_5, window_bounds = array<i64: 2, 8, 128>}, {pipeline_mode = #tpu.pipeline_mode<synchronous>, transform_indices = @transform_6, window_bounds = array<i64: 2, 8, 128>}, {pipeline_mode = #tpu.pipeline_mode<synchronous>, transform_indices = @transform_7, window_bounds = array<i64: 128, 128>}, {pipeline_mode = #tpu.pipeline_mode<synchronous>, transform_indices = @transform_8, window_bounds = array<i64: 1, 128>}, {transform_indices = @transform_9, window_bounds = array<i64: 64, 128>}, {pipeline_mode = #tpu.pipeline_mode<synchronous>, transform_indices = @transform_10, window_bounds = array<i64: 2, 8, 128>}, {pipeline_mode = #tpu.pipeline_mode<synchronous>, transform_indices = @transform_11, window_bounds = array<i64: 2, 8, 128>}]} {
    %c8_i32 = arith.constant 8 : i32
    %0 = arith.muli %arg0, %c8_i32 : i32
    %c0_i32 = arith.constant 0 : i32
    %1 = arith.cmpi eq, %arg0, %c0_i32 : i32
    %2 = arith.extui %1 : i1 to i32
    %c0_i32_0 = arith.constant 0 : i32
    %3 = arith.cmpi ne, %2, %c0_i32_0 : i32
    scf.if %3 {
      %c0_208 = arith.constant 0 : index
      %c0_209 = arith.constant 0 : index
      %c0_210 = arith.constant 0 : index
      %648 = vector.load %arg6[%c0_208, %c0_209, %c0_210] : memref<2x8x128xf32, #tpu.memory_space<vmem>>, vector<2x8x128xf32>
      %c0_211 = arith.constant 0 : index
      %c0_212 = arith.constant 0 : index
      %c0_213 = arith.constant 0 : index
      %649 = vector.load %arg16[%c0_211, %c0_212, %c0_213] : memref<2x8x128xf32, #tpu.memory_space<vmem>>, vector<2x8x128xf32>
      tpu.vector_store %arg16[%c0_211, %c0_212, %c0_213], %648 {strides = array<i32>} : memref<2x8x128xf32, #tpu.memory_space<vmem>>, vector<2x8x128xf32>,
      %c0_214 = arith.constant 0 : index
      %c0_215 = arith.constant 0 : index
      %c0_216 = arith.constant 0 : index
      %650 = vector.load %arg7[%c0_214, %c0_215, %c0_216] : memref<2x8x128xf32, #tpu.memory_space<vmem>>, vector<2x8x128xf32>
      %c0_217 = arith.constant 0 : index
      %c0_218 = arith.constant 0 : index
      %c0_219 = arith.constant 0 : index
      %651 = vector.load %arg17[%c0_217, %c0_218, %c0_219] : memref<2x8x128xf32, #tpu.memory_space<vmem>>, vector<2x8x128xf32>
      tpu.vector_store %arg17[%c0_217, %c0_218, %c0_219], %650 {strides = array<i32>} : memref<2x8x128xf32, #tpu.memory_space<vmem>>, vector<2x8x128xf32>,
    } else {
    }
    %c0 = arith.constant 0 : index
    %c0_1 = arith.constant 0 : index
    %4 = vector.load %arg1[%c0, %c0_1] : memref<64x128xf32, #tpu.memory_space<vmem>>, vector<64x128xf32>
    %c0_2 = arith.constant 0 : index
    %c0_3 = arith.constant 0 : index
    %5 = vector.load %arg2[%c0_2, %c0_3] : memref<128x512xf32, #tpu.memory_space<vmem>>, vector<128x512xf32>
    %cst = arith.constant dense<0.000000e+00> : vector<64x512xf32>
    %6 = tpu.matmul %4, %5, %cst {dimension_numbers = #tpu.dot_dimension_numbers<[1], [0], [0], [1], [0, 0, 1, 1], [], []>} : vector<64x128xf32>, vector<128x512xf32>, vector<64x512xf32> -> vector<64x512xf32>
    %c0_4 = arith.constant 0 : index
    %c0_5 = arith.constant 0 : index
    %c0_6 = arith.constant 0 : index
    %7 = vector.load %arg5[%c0_4, %c0_5, %c0_6] : memref<2x1x512xf32, #tpu.memory_space<vmem>>, vector<1x1x512xf32>
    %8 = vector.shape_cast %7 : vector<1x1x512xf32> to vector<1x512xf32>
    %9 = vector.broadcast %8 : vector<1x512xf32> to vector<64x512xf32>
    %10 = arith.addf %6, %9 : vector<64x512xf32>
    %c0_7 = arith.constant 0 : index
    %c0_8 = arith.constant 0 : index
    %11 = vector.load %arg15[%c0_7, %c0_8] : memref<64x512xf32, #tpu.memory_space<vmem>>, vector<64x512xf32>
    tpu.vector_store %arg15[%c0_7, %c0_8], %10 {strides = array<i32>} : memref<64x512xf32, #tpu.memory_space<vmem>>, vector<64x512xf32>,
    %c0_9 = arith.constant 0 : index
    %c0_10 = arith.constant 0 : index
    %c0_11 = arith.constant 0 : index
    %12 = vector.load %arg4[%c0_9, %c0_10, %c0_11] : memref<2x128x512xf32, #tpu.memory_space<vmem>>, vector<1x128x512xf32>
    %13 = vector.shape_cast %12 : vector<1x128x512xf32> to vector<128x512xf32>
    %c0_12 = arith.constant 0 : index
    %c0_13 = arith.constant 0 : index
    %c0_14 = arith.constant 0 : index
    %14 = vector.load %arg16[%c0_12, %c0_13, %c0_14] : memref<2x8x128xf32, #tpu.memory_space<vmem>>, vector<1x8x128xf32>
    %15 = vector.shape_cast %14 : vector<1x8x128xf32> to vector<8x128xf32>
    %c0_15 = arith.constant 0 : index
    %c0_16 = arith.constant 0 : index
    %c0_17 = arith.constant 0 : index
    %16 = vector.load %arg17[%c0_15, %c0_16, %c0_17] : memref<2x8x128xf32, #tpu.memory_space<vmem>>, vector<1x8x128xf32>
    %17 = vector.shape_cast %16 : vector<1x8x128xf32> to vector<8x128xf32>
    %c0_i32_18 = arith.constant 0 : i32
    %c8_i32_19 = arith.constant 8 : i32
    %18 = arith.muli %c0_i32_18, %c8_i32_19 : i32
    %19 = tpu.assume_multiple %18, 8 : i32
    %20 = arith.index_cast %19 : i32 to index
    %c0_20 = arith.constant 0 : index
    %21 = vector.load %arg15[%20, %c0_20] : memref<64x512xf32, #tpu.memory_space<vmem>>, vector<8x512xf32>
    %cst_21 = arith.constant dense<0.000000e+00> : vector<8x512xf32>
    %22 = tpu.matmul %15, %13, %cst_21 {dimension_numbers = #tpu.dot_dimension_numbers<[1], [0], [0], [1], [0, 0, 1, 1], [], []>} : vector<8x128xf32>, vector<128x512xf32>, vector<8x512xf32> -> vector<8x512xf32>
    %23 = arith.addf %21, %22 : vector<8x512xf32>
    %24 = vector.extract_strided_slice %23 {offsets = [0, 0], sizes = [8, 128], strides = [1, 1]} : vector<8x512xf32> to vector<8x128xf32>
    %25 = arith.negf %24 : vector<8x128xf32>
    %26 = math.exp %25 : vector<8x128xf32>
    %cst_22 = arith.constant 1.000000e+00 : f32
    %27 = vector.broadcast %cst_22 : f32 to vector<8x128xf32>
    %28 = arith.addf %27, %26 : vector<8x128xf32>
    %29 = arith.divf %27, %28 : vector<8x128xf32>
    %30 = vector.extract_strided_slice %23 {offsets = [0, 128], sizes = [8, 128], strides = [1, 1]} : vector<8x512xf32> to vector<8x128xf32>
    %31 = arith.negf %30 : vector<8x128xf32>
    %32 = math.exp %31 : vector<8x128xf32>
    %cst_23 = arith.constant 1.000000e+00 : f32
    %33 = vector.broadcast %cst_23 : f32 to vector<8x128xf32>
    %34 = arith.addf %33, %32 : vector<8x128xf32>
    %35 = arith.divf %33, %34 : vector<8x128xf32>
    %36 = vector.extract_strided_slice %23 {offsets = [0, 256], sizes = [8, 128], strides = [1, 1]} : vector<8x512xf32> to vector<8x128xf32>
    %37 = math.tanh %36 : vector<8x128xf32>
    %38 = vector.extract_strided_slice %23 {offsets = [0, 384], sizes = [8, 128], strides = [1, 1]} : vector<8x512xf32> to vector<8x128xf32>
    %39 = arith.negf %38 : vector<8x128xf32>
    %40 = math.exp %39 : vector<8x128xf32>
    %cst_24 = arith.constant 1.000000e+00 : f32
    %41 = vector.broadcast %cst_24 : f32 to vector<8x128xf32>
    %42 = arith.addf %41, %40 : vector<8x128xf32>
    %43 = arith.divf %41, %42 : vector<8x128xf32>
    %44 = arith.mulf %35, %17 : vector<8x128xf32>
    %45 = arith.mulf %29, %37 : vector<8x128xf32>
    %46 = arith.addf %44, %45 : vector<8x128xf32>
    %47 = math.tanh %46 : vector<8x128xf32>
    %48 = arith.mulf %43, %47 : vector<8x128xf32>
    %49 = arith.addi %0, %c0_i32_18 : i32
    %c12_i32 = arith.constant 12 : i32
    %50 = arith.cmpi slt, %49, %c12_i32 : i32
    %51 = arith.select %50, %48, %15 : vector<8x128xf32>
    %52 = arith.select %50, %46, %17 : vector<8x128xf32>
    %53 = arith.index_cast %19 : i32 to index
    %c0_25 = arith.constant 0 : index
    %54 = vector.load %arg13[%53, %c0_25] : memref<64x128xf32, #tpu.memory_space<vmem>>, vector<8x128xf32>
    tpu.vector_store %arg13[%53, %c0_25], %51 {strides = array<i32>} : memref<64x128xf32, #tpu.memory_space<vmem>>, vector<8x128xf32>,
    %c1_i32 = arith.constant 1 : i32
    %c8_i32_26 = arith.constant 8 : i32
    %55 = arith.muli %c1_i32, %c8_i32_26 : i32
    %56 = tpu.assume_multiple %55, 8 : i32
    %57 = arith.index_cast %56 : i32 to index
    %c0_27 = arith.constant 0 : index
    %58 = vector.load %arg15[%57, %c0_27] : memref<64x512xf32, #tpu.memory_space<vmem>>, vector<8x512xf32>
    %cst_28 = arith.constant dense<0.000000e+00> : vector<8x512xf32>
    %59 = tpu.matmul %51, %13, %cst_28 {dimension_numbers = #tpu.dot_dimension_numbers<[1], [0], [0], [1], [0, 0, 1, 1], [], []>} : vector<8x128xf32>, vector<128x512xf32>, vector<8x512xf32> -> vector<8x512xf32>
    %60 = arith.addf %58, %59 : vector<8x512xf32>
    %61 = vector.extract_strided_slice %60 {offsets = [0, 0], sizes = [8, 128], strides = [1, 1]} : vector<8x512xf32> to vector<8x128xf32>
    %62 = arith.negf %61 : vector<8x128xf32>
    %63 = math.exp %62 : vector<8x128xf32>
    %cst_29 = arith.constant 1.000000e+00 : f32
    %64 = vector.broadcast %cst_29 : f32 to vector<8x128xf32>
    %65 = arith.addf %64, %63 : vector<8x128xf32>
    %66 = arith.divf %64, %65 : vector<8x128xf32>
    %67 = vector.extract_strided_slice %60 {offsets = [0, 128], sizes = [8, 128], strides = [1, 1]} : vector<8x512xf32> to vector<8x128xf32>
    %68 = arith.negf %67 : vector<8x128xf32>
    %69 = math.exp %68 : vector<8x128xf32>
    %cst_30 = arith.constant 1.000000e+00 : f32
    %70 = vector.broadcast %cst_30 : f32 to vector<8x128xf32>
    %71 = arith.addf %70, %69 : vector<8x128xf32>
    %72 = arith.divf %70, %71 : vector<8x128xf32>
    %73 = vector.extract_strided_slice %60 {offsets = [0, 256], sizes = [8, 128], strides = [1, 1]} : vector<8x512xf32> to vector<8x128xf32>
    %74 = math.tanh %73 : vector<8x128xf32>
    %75 = vector.extract_strided_slice %60 {offsets = [0, 384], sizes = [8, 128], strides = [1, 1]} : vector<8x512xf32> to vector<8x128xf32>
    %76 = arith.negf %75 : vector<8x128xf32>
    %77 = math.exp %76 : vector<8x128xf32>
    %cst_31 = arith.constant 1.000000e+00 : f32
    %78 = vector.broadcast %cst_31 : f32 to vector<8x128xf32>
    %79 = arith.addf %78, %77 : vector<8x128xf32>
    %80 = arith.divf %78, %79 : vector<8x128xf32>
    %81 = arith.mulf %72, %52 : vector<8x128xf32>
    %82 = arith.mulf %66, %74 : vector<8x128xf32>
    %83 = arith.addf %81, %82 : vector<8x128xf32>
    %84 = math.tanh %83 : vector<8x128xf32>
    %85 = arith.mulf %80, %84 : vector<8x128xf32>
    %86 = arith.addi %0, %c1_i32 : i32
    %c12_i32_32 = arith.constant 12 : i32
    %87 = arith.cmpi slt, %86, %c12_i32_32 : i32
    %88 = arith.select %87, %85, %51 : vector<8x128xf32>
    %89 = arith.select %87, %83, %52 : vector<8x128xf32>
    %90 = arith.index_cast %56 : i32 to index
    %c0_33 = arith.constant 0 : index
    %91 = vector.load %arg13[%90, %c0_33] : memref<64x128xf32, #tpu.memory_space<vmem>>, vector<8x128xf32>
    tpu.vector_store %arg13[%90, %c0_33], %88 {strides = array<i32>} : memref<64x128xf32, #tpu.memory_space<vmem>>, vector<8x128xf32>,
    %c2_i32 = arith.constant 2 : i32
    %c8_i32_34 = arith.constant 8 : i32
    %92 = arith.muli %c2_i32, %c8_i32_34 : i32
    %93 = tpu.assume_multiple %92, 8 : i32
    %94 = arith.index_cast %93 : i32 to index
    %c0_35 = arith.constant 0 : index
    %95 = vector.load %arg15[%94, %c0_35] : memref<64x512xf32, #tpu.memory_space<vmem>>, vector<8x512xf32>
    %cst_36 = arith.constant dense<0.000000e+00> : vector<8x512xf32>
    %96 = tpu.matmul %88, %13, %cst_36 {dimension_numbers = #tpu.dot_dimension_numbers<[1], [0], [0], [1], [0, 0, 1, 1], [], []>} : vector<8x128xf32>, vector<128x512xf32>, vector<8x512xf32> -> vector<8x512xf32>
    %97 = arith.addf %95, %96 : vector<8x512xf32>
    %98 = vector.extract_strided_slice %97 {offsets = [0, 0], sizes = [8, 128], strides = [1, 1]} : vector<8x512xf32> to vector<8x128xf32>
    %99 = arith.negf %98 : vector<8x128xf32>
    %100 = math.exp %99 : vector<8x128xf32>
    %cst_37 = arith.constant 1.000000e+00 : f32
    %101 = vector.broadcast %cst_37 : f32 to vector<8x128xf32>
    %102 = arith.addf %101, %100 : vector<8x128xf32>
    %103 = arith.divf %101, %102 : vector<8x128xf32>
    %104 = vector.extract_strided_slice %97 {offsets = [0, 128], sizes = [8, 128], strides = [1, 1]} : vector<8x512xf32> to vector<8x128xf32>
    %105 = arith.negf %104 : vector<8x128xf32>
    %106 = math.exp %105 : vector<8x128xf32>
    %cst_38 = arith.constant 1.000000e+00 : f32
    %107 = vector.broadcast %cst_38 : f32 to vector<8x128xf32>
    %108 = arith.addf %107, %106 : vector<8x128xf32>
    %109 = arith.divf %107, %108 : vector<8x128xf32>
    %110 = vector.extract_strided_slice %97 {offsets = [0, 256], sizes = [8, 128], strides = [1, 1]} : vector<8x512xf32> to vector<8x128xf32>
    %111 = math.tanh %110 : vector<8x128xf32>
    %112 = vector.extract_strided_slice %97 {offsets = [0, 384], sizes = [8, 128], strides = [1, 1]} : vector<8x512xf32> to vector<8x128xf32>
    %113 = arith.negf %112 : vector<8x128xf32>
    %114 = math.exp %113 : vector<8x128xf32>
    %cst_39 = arith.constant 1.000000e+00 : f32
    %115 = vector.broadcast %cst_39 : f32 to vector<8x128xf32>
    %116 = arith.addf %115, %114 : vector<8x128xf32>
    %117 = arith.divf %115, %116 : vector<8x128xf32>
    %118 = arith.mulf %109, %89 : vector<8x128xf32>
    %119 = arith.mulf %103, %111 : vector<8x128xf32>
    %120 = arith.addf %118, %119 : vector<8x128xf32>
    %121 = math.tanh %120 : vector<8x128xf32>
    %122 = arith.mulf %117, %121 : vector<8x128xf32>
    %123 = arith.addi %0, %c2_i32 : i32
    %c12_i32_40 = arith.constant 12 : i32
    %124 = arith.cmpi slt, %123, %c12_i32_40 : i32
    %125 = arith.select %124, %122, %88 : vector<8x128xf32>
    %126 = arith.select %124, %120, %89 : vector<8x128xf32>
    %127 = arith.index_cast %93 : i32 to index
    %c0_41 = arith.constant 0 : index
    %128 = vector.load %arg13[%127, %c0_41] : memref<64x128xf32, #tpu.memory_space<vmem>>, vector<8x128xf32>
    tpu.vector_store %arg13[%127, %c0_41], %125 {strides = array<i32>} : memref<64x128xf32, #tpu.memory_space<vmem>>, vector<8x128xf32>,
    %c3_i32 = arith.constant 3 : i32
    %c8_i32_42 = arith.constant 8 : i32
    %129 = arith.muli %c3_i32, %c8_i32_42 : i32
    %130 = tpu.assume_multiple %129, 8 : i32
    %131 = arith.index_cast %130 : i32 to index
    %c0_43 = arith.constant 0 : index
    %132 = vector.load %arg15[%131, %c0_43] : memref<64x512xf32, #tpu.memory_space<vmem>>, vector<8x512xf32>
    %cst_44 = arith.constant dense<0.000000e+00> : vector<8x512xf32>
    %133 = tpu.matmul %125, %13, %cst_44 {dimension_numbers = #tpu.dot_dimension_numbers<[1], [0], [0], [1], [0, 0, 1, 1], [], []>} : vector<8x128xf32>, vector<128x512xf32>, vector<8x512xf32> -> vector<8x512xf32>
    %134 = arith.addf %132, %133 : vector<8x512xf32>
    %135 = vector.extract_strided_slice %134 {offsets = [0, 0], sizes = [8, 128], strides = [1, 1]} : vector<8x512xf32> to vector<8x128xf32>
    %136 = arith.negf %135 : vector<8x128xf32>
    %137 = math.exp %136 : vector<8x128xf32>
    %cst_45 = arith.constant 1.000000e+00 : f32
    %138 = vector.broadcast %cst_45 : f32 to vector<8x128xf32>
    %139 = arith.addf %138, %137 : vector<8x128xf32>
    %140 = arith.divf %138, %139 : vector<8x128xf32>
    %141 = vector.extract_strided_slice %134 {offsets = [0, 128], sizes = [8, 128], strides = [1, 1]} : vector<8x512xf32> to vector<8x128xf32>
    %142 = arith.negf %141 : vector<8x128xf32>
    %143 = math.exp %142 : vector<8x128xf32>
    %cst_46 = arith.constant 1.000000e+00 : f32
    %144 = vector.broadcast %cst_46 : f32 to vector<8x128xf32>
    %145 = arith.addf %144, %143 : vector<8x128xf32>
    %146 = arith.divf %144, %145 : vector<8x128xf32>
    %147 = vector.extract_strided_slice %134 {offsets = [0, 256], sizes = [8, 128], strides = [1, 1]} : vector<8x512xf32> to vector<8x128xf32>
    %148 = math.tanh %147 : vector<8x128xf32>
    %149 = vector.extract_strided_slice %134 {offsets = [0, 384], sizes = [8, 128], strides = [1, 1]} : vector<8x512xf32> to vector<8x128xf32>
    %150 = arith.negf %149 : vector<8x128xf32>
    %151 = math.exp %150 : vector<8x128xf32>
    %cst_47 = arith.constant 1.000000e+00 : f32
    %152 = vector.broadcast %cst_47 : f32 to vector<8x128xf32>
    %153 = arith.addf %152, %151 : vector<8x128xf32>
    %154 = arith.divf %152, %153 : vector<8x128xf32>
    %155 = arith.mulf %146, %126 : vector<8x128xf32>
    %156 = arith.mulf %140, %148 : vector<8x128xf32>
    %157 = arith.addf %155, %156 : vector<8x128xf32>
    %158 = math.tanh %157 : vector<8x128xf32>
    %159 = arith.mulf %154, %158 : vector<8x128xf32>
    %160 = arith.addi %0, %c3_i32 : i32
    %c12_i32_48 = arith.constant 12 : i32
    %161 = arith.cmpi slt, %160, %c12_i32_48 : i32
    %162 = arith.select %161, %159, %125 : vector<8x128xf32>
    %163 = arith.select %161, %157, %126 : vector<8x128xf32>
    %164 = arith.index_cast %130 : i32 to index
    %c0_49 = arith.constant 0 : index
    %165 = vector.load %arg13[%164, %c0_49] : memref<64x128xf32, #tpu.memory_space<vmem>>, vector<8x128xf32>
    tpu.vector_store %arg13[%164, %c0_49], %162 {strides = array<i32>} : memref<64x128xf32, #tpu.memory_space<vmem>>, vector<8x128xf32>,
    %c4_i32 = arith.constant 4 : i32
    %c8_i32_50 = arith.constant 8 : i32
    %166 = arith.muli %c4_i32, %c8_i32_50 : i32
    %167 = tpu.assume_multiple %166, 8 : i32
    %168 = arith.index_cast %167 : i32 to index
    %c0_51 = arith.constant 0 : index
    %169 = vector.load %arg15[%168, %c0_51] : memref<64x512xf32, #tpu.memory_space<vmem>>, vector<8x512xf32>
    %cst_52 = arith.constant dense<0.000000e+00> : vector<8x512xf32>
    %170 = tpu.matmul %162, %13, %cst_52 {dimension_numbers = #tpu.dot_dimension_numbers<[1], [0], [0], [1], [0, 0, 1, 1], [], []>} : vector<8x128xf32>, vector<128x512xf32>, vector<8x512xf32> -> vector<8x512xf32>
    %171 = arith.addf %169, %170 : vector<8x512xf32>
    %172 = vector.extract_strided_slice %171 {offsets = [0, 0], sizes = [8, 128], strides = [1, 1]} : vector<8x512xf32> to vector<8x128xf32>
    %173 = arith.negf %172 : vector<8x128xf32>
    %174 = math.exp %173 : vector<8x128xf32>
    %cst_53 = arith.constant 1.000000e+00 : f32
    %175 = vector.broadcast %cst_53 : f32 to vector<8x128xf32>
    %176 = arith.addf %175, %174 : vector<8x128xf32>
    %177 = arith.divf %175, %176 : vector<8x128xf32>
    %178 = vector.extract_strided_slice %171 {offsets = [0, 128], sizes = [8, 128], strides = [1, 1]} : vector<8x512xf32> to vector<8x128xf32>
    %179 = arith.negf %178 : vector<8x128xf32>
    %180 = math.exp %179 : vector<8x128xf32>
    %cst_54 = arith.constant 1.000000e+00 : f32
    %181 = vector.broadcast %cst_54 : f32 to vector<8x128xf32>
    %182 = arith.addf %181, %180 : vector<8x128xf32>
    %183 = arith.divf %181, %182 : vector<8x128xf32>
    %184 = vector.extract_strided_slice %171 {offsets = [0, 256], sizes = [8, 128], strides = [1, 1]} : vector<8x512xf32> to vector<8x128xf32>
    %185 = math.tanh %184 : vector<8x128xf32>
    %186 = vector.extract_strided_slice %171 {offsets = [0, 384], sizes = [8, 128], strides = [1, 1]} : vector<8x512xf32> to vector<8x128xf32>
    %187 = arith.negf %186 : vector<8x128xf32>
    %188 = math.exp %187 : vector<8x128xf32>
    %cst_55 = arith.constant 1.000000e+00 : f32
    %189 = vector.broadcast %cst_55 : f32 to vector<8x128xf32>
    %190 = arith.addf %189, %188 : vector<8x128xf32>
    %191 = arith.divf %189, %190 : vector<8x128xf32>
    %192 = arith.mulf %183, %163 : vector<8x128xf32>
    %193 = arith.mulf %177, %185 : vector<8x128xf32>
    %194 = arith.addf %192, %193 : vector<8x128xf32>
    %195 = math.tanh %194 : vector<8x128xf32>
    %196 = arith.mulf %191, %195 : vector<8x128xf32>
    %197 = arith.addi %0, %c4_i32 : i32
    %c12_i32_56 = arith.constant 12 : i32
    %198 = arith.cmpi slt, %197, %c12_i32_56 : i32
    %199 = arith.select %198, %196, %162 : vector<8x128xf32>
    %200 = arith.select %198, %194, %163 : vector<8x128xf32>
    %201 = arith.index_cast %167 : i32 to index
    %c0_57 = arith.constant 0 : index
    %202 = vector.load %arg13[%201, %c0_57] : memref<64x128xf32, #tpu.memory_space<vmem>>, vector<8x128xf32>
    tpu.vector_store %arg13[%201, %c0_57], %199 {strides = array<i32>} : memref<64x128xf32, #tpu.memory_space<vmem>>, vector<8x128xf32>,
    %c5_i32 = arith.constant 5 : i32
    %c8_i32_58 = arith.constant 8 : i32
    %203 = arith.muli %c5_i32, %c8_i32_58 : i32
    %204 = tpu.assume_multiple %203, 8 : i32
    %205 = arith.index_cast %204 : i32 to index
    %c0_59 = arith.constant 0 : index
    %206 = vector.load %arg15[%205, %c0_59] : memref<64x512xf32, #tpu.memory_space<vmem>>, vector<8x512xf32>
    %cst_60 = arith.constant dense<0.000000e+00> : vector<8x512xf32>
    %207 = tpu.matmul %199, %13, %cst_60 {dimension_numbers = #tpu.dot_dimension_numbers<[1], [0], [0], [1], [0, 0, 1, 1], [], []>} : vector<8x128xf32>, vector<128x512xf32>, vector<8x512xf32> -> vector<8x512xf32>
    %208 = arith.addf %206, %207 : vector<8x512xf32>
    %209 = vector.extract_strided_slice %208 {offsets = [0, 0], sizes = [8, 128], strides = [1, 1]} : vector<8x512xf32> to vector<8x128xf32>
    %210 = arith.negf %209 : vector<8x128xf32>
    %211 = math.exp %210 : vector<8x128xf32>
    %cst_61 = arith.constant 1.000000e+00 : f32
    %212 = vector.broadcast %cst_61 : f32 to vector<8x128xf32>
    %213 = arith.addf %212, %211 : vector<8x128xf32>
    %214 = arith.divf %212, %213 : vector<8x128xf32>
    %215 = vector.extract_strided_slice %208 {offsets = [0, 128], sizes = [8, 128], strides = [1, 1]} : vector<8x512xf32> to vector<8x128xf32>
    %216 = arith.negf %215 : vector<8x128xf32>
    %217 = math.exp %216 : vector<8x128xf32>
    %cst_62 = arith.constant 1.000000e+00 : f32
    %218 = vector.broadcast %cst_62 : f32 to vector<8x128xf32>
    %219 = arith.addf %218, %217 : vector<8x128xf32>
    %220 = arith.divf %218, %219 : vector<8x128xf32>
    %221 = vector.extract_strided_slice %208 {offsets = [0, 256], sizes = [8, 128], strides = [1, 1]} : vector<8x512xf32> to vector<8x128xf32>
    %222 = math.tanh %221 : vector<8x128xf32>
    %223 = vector.extract_strided_slice %208 {offsets = [0, 384], sizes = [8, 128], strides = [1, 1]} : vector<8x512xf32> to vector<8x128xf32>
    %224 = arith.negf %223 : vector<8x128xf32>
    %225 = math.exp %224 : vector<8x128xf32>
    %cst_63 = arith.constant 1.000000e+00 : f32
    %226 = vector.broadcast %cst_63 : f32 to vector<8x128xf32>
    %227 = arith.addf %226, %225 : vector<8x128xf32>
    %228 = arith.divf %226, %227 : vector<8x128xf32>
    %229 = arith.mulf %220, %200 : vector<8x128xf32>
    %230 = arith.mulf %214, %222 : vector<8x128xf32>
    %231 = arith.addf %229, %230 : vector<8x128xf32>
    %232 = math.tanh %231 : vector<8x128xf32>
    %233 = arith.mulf %228, %232 : vector<8x128xf32>
    %234 = arith.addi %0, %c5_i32 : i32
    %c12_i32_64 = arith.constant 12 : i32
    %235 = arith.cmpi slt, %234, %c12_i32_64 : i32
    %236 = arith.select %235, %233, %199 : vector<8x128xf32>
    %237 = arith.select %235, %231, %200 : vector<8x128xf32>
    %238 = arith.index_cast %204 : i32 to index
    %c0_65 = arith.constant 0 : index
    %239 = vector.load %arg13[%238, %c0_65] : memref<64x128xf32, #tpu.memory_space<vmem>>, vector<8x128xf32>
    tpu.vector_store %arg13[%238, %c0_65], %236 {strides = array<i32>} : memref<64x128xf32, #tpu.memory_space<vmem>>, vector<8x128xf32>,
    %c6_i32 = arith.constant 6 : i32
    %c8_i32_66 = arith.constant 8 : i32
    %240 = arith.muli %c6_i32, %c8_i32_66 : i32
    %241 = tpu.assume_multiple %240, 8 : i32
    %242 = arith.index_cast %241 : i32 to index
    %c0_67 = arith.constant 0 : index
    %243 = vector.load %arg15[%242, %c0_67] : memref<64x512xf32, #tpu.memory_space<vmem>>, vector<8x512xf32>
    %cst_68 = arith.constant dense<0.000000e+00> : vector<8x512xf32>
    %244 = tpu.matmul %236, %13, %cst_68 {dimension_numbers = #tpu.dot_dimension_numbers<[1], [0], [0], [1], [0, 0, 1, 1], [], []>} : vector<8x128xf32>, vector<128x512xf32>, vector<8x512xf32> -> vector<8x512xf32>
    %245 = arith.addf %243, %244 : vector<8x512xf32>
    %246 = vector.extract_strided_slice %245 {offsets = [0, 0], sizes = [8, 128], strides = [1, 1]} : vector<8x512xf32> to vector<8x128xf32>
    %247 = arith.negf %246 : vector<8x128xf32>
    %248 = math.exp %247 : vector<8x128xf32>
    %cst_69 = arith.constant 1.000000e+00 : f32
    %249 = vector.broadcast %cst_69 : f32 to vector<8x128xf32>
    %250 = arith.addf %249, %248 : vector<8x128xf32>
    %251 = arith.divf %249, %250 : vector<8x128xf32>
    %252 = vector.extract_strided_slice %245 {offsets = [0, 128], sizes = [8, 128], strides = [1, 1]} : vector<8x512xf32> to vector<8x128xf32>
    %253 = arith.negf %252 : vector<8x128xf32>
    %254 = math.exp %253 : vector<8x128xf32>
    %cst_70 = arith.constant 1.000000e+00 : f32
    %255 = vector.broadcast %cst_70 : f32 to vector<8x128xf32>
    %256 = arith.addf %255, %254 : vector<8x128xf32>
    %257 = arith.divf %255, %256 : vector<8x128xf32>
    %258 = vector.extract_strided_slice %245 {offsets = [0, 256], sizes = [8, 128], strides = [1, 1]} : vector<8x512xf32> to vector<8x128xf32>
    %259 = math.tanh %258 : vector<8x128xf32>
    %260 = vector.extract_strided_slice %245 {offsets = [0, 384], sizes = [8, 128], strides = [1, 1]} : vector<8x512xf32> to vector<8x128xf32>
    %261 = arith.negf %260 : vector<8x128xf32>
    %262 = math.exp %261 : vector<8x128xf32>
    %cst_71 = arith.constant 1.000000e+00 : f32
    %263 = vector.broadcast %cst_71 : f32 to vector<8x128xf32>
    %264 = arith.addf %263, %262 : vector<8x128xf32>
    %265 = arith.divf %263, %264 : vector<8x128xf32>
    %266 = arith.mulf %257, %237 : vector<8x128xf32>
    %267 = arith.mulf %251, %259 : vector<8x128xf32>
    %268 = arith.addf %266, %267 : vector<8x128xf32>
    %269 = math.tanh %268 : vector<8x128xf32>
    %270 = arith.mulf %265, %269 : vector<8x128xf32>
    %271 = arith.addi %0, %c6_i32 : i32
    %c12_i32_72 = arith.constant 12 : i32
    %272 = arith.cmpi slt, %271, %c12_i32_72 : i32
    %273 = arith.select %272, %270, %236 : vector<8x128xf32>
    %274 = arith.select %272, %268, %237 : vector<8x128xf32>
    %275 = arith.index_cast %241 : i32 to index
    %c0_73 = arith.constant 0 : index
    %276 = vector.load %arg13[%275, %c0_73] : memref<64x128xf32, #tpu.memory_space<vmem>>, vector<8x128xf32>
    tpu.vector_store %arg13[%275, %c0_73], %273 {strides = array<i32>} : memref<64x128xf32, #tpu.memory_space<vmem>>, vector<8x128xf32>,
    %c7_i32 = arith.constant 7 : i32
    %c8_i32_74 = arith.constant 8 : i32
    %277 = arith.muli %c7_i32, %c8_i32_74 : i32
    %278 = tpu.assume_multiple %277, 8 : i32
    %279 = arith.index_cast %278 : i32 to index
    %c0_75 = arith.constant 0 : index
    %280 = vector.load %arg15[%279, %c0_75] : memref<64x512xf32, #tpu.memory_space<vmem>>, vector<8x512xf32>
    %cst_76 = arith.constant dense<0.000000e+00> : vector<8x512xf32>
    %281 = tpu.matmul %273, %13, %cst_76 {dimension_numbers = #tpu.dot_dimension_numbers<[1], [0], [0], [1], [0, 0, 1, 1], [], []>} : vector<8x128xf32>, vector<128x512xf32>, vector<8x512xf32> -> vector<8x512xf32>
    %282 = arith.addf %280, %281 : vector<8x512xf32>
    %283 = vector.extract_strided_slice %282 {offsets = [0, 0], sizes = [8, 128], strides = [1, 1]} : vector<8x512xf32> to vector<8x128xf32>
    %284 = arith.negf %283 : vector<8x128xf32>
    %285 = math.exp %284 : vector<8x128xf32>
    %cst_77 = arith.constant 1.000000e+00 : f32
    %286 = vector.broadcast %cst_77 : f32 to vector<8x128xf32>
    %287 = arith.addf %286, %285 : vector<8x128xf32>
    %288 = arith.divf %286, %287 : vector<8x128xf32>
    %289 = vector.extract_strided_slice %282 {offsets = [0, 128], sizes = [8, 128], strides = [1, 1]} : vector<8x512xf32> to vector<8x128xf32>
    %290 = arith.negf %289 : vector<8x128xf32>
    %291 = math.exp %290 : vector<8x128xf32>
    %cst_78 = arith.constant 1.000000e+00 : f32
    %292 = vector.broadcast %cst_78 : f32 to vector<8x128xf32>
    %293 = arith.addf %292, %291 : vector<8x128xf32>
    %294 = arith.divf %292, %293 : vector<8x128xf32>
    %295 = vector.extract_strided_slice %282 {offsets = [0, 256], sizes = [8, 128], strides = [1, 1]} : vector<8x512xf32> to vector<8x128xf32>
    %296 = math.tanh %295 : vector<8x128xf32>
    %297 = vector.extract_strided_slice %282 {offsets = [0, 384], sizes = [8, 128], strides = [1, 1]} : vector<8x512xf32> to vector<8x128xf32>
    %298 = arith.negf %297 : vector<8x128xf32>
    %299 = math.exp %298 : vector<8x128xf32>
    %cst_79 = arith.constant 1.000000e+00 : f32
    %300 = vector.broadcast %cst_79 : f32 to vector<8x128xf32>
    %301 = arith.addf %300, %299 : vector<8x128xf32>
    %302 = arith.divf %300, %301 : vector<8x128xf32>
    %303 = arith.mulf %294, %274 : vector<8x128xf32>
    %304 = arith.mulf %288, %296 : vector<8x128xf32>
    %305 = arith.addf %303, %304 : vector<8x128xf32>
    %306 = math.tanh %305 : vector<8x128xf32>
    %307 = arith.mulf %302, %306 : vector<8x128xf32>
    %308 = arith.addi %0, %c7_i32 : i32
    %c12_i32_80 = arith.constant 12 : i32
    %309 = arith.cmpi slt, %308, %c12_i32_80 : i32
    %310 = arith.select %309, %307, %273 : vector<8x128xf32>
    %311 = arith.select %309, %305, %274 : vector<8x128xf32>
    %312 = arith.index_cast %278 : i32 to index
    %c0_81 = arith.constant 0 : index
    %313 = vector.load %arg13[%312, %c0_81] : memref<64x128xf32, #tpu.memory_space<vmem>>, vector<8x128xf32>
    tpu.vector_store %arg13[%312, %c0_81], %310 {strides = array<i32>} : memref<64x128xf32, #tpu.memory_space<vmem>>, vector<8x128xf32>,
    %c8_i32_82 = arith.constant 8 : i32
    %c0_83 = arith.constant 0 : index
    %c0_84 = arith.constant 0 : index
    %c0_85 = arith.constant 0 : index
    %314 = vector.load %arg16[%c0_83, %c0_84, %c0_85] : memref<2x8x128xf32, #tpu.memory_space<vmem>>, vector<1x8x128xf32>
    %315 = vector.shape_cast %314 : vector<1x8x128xf32> to vector<8x128xf32>
    %316 = vector.shape_cast %310 : vector<8x128xf32> to vector<1x8x128xf32>
    tpu.vector_store %arg16[%c0_83, %c0_84, %c0_85], %316 {strides = array<i32>} : memref<2x8x128xf32, #tpu.memory_space<vmem>>, vector<1x8x128xf32>,
    %c0_86 = arith.constant 0 : index
    %c0_87 = arith.constant 0 : index
    %c0_88 = arith.constant 0 : index
    %317 = vector.load %arg17[%c0_86, %c0_87, %c0_88] : memref<2x8x128xf32, #tpu.memory_space<vmem>>, vector<1x8x128xf32>
    %318 = vector.shape_cast %317 : vector<1x8x128xf32> to vector<8x128xf32>
    %319 = vector.shape_cast %311 : vector<8x128xf32> to vector<1x8x128xf32>
    tpu.vector_store %arg17[%c0_86, %c0_87, %c0_88], %319 {strides = array<i32>} : memref<2x8x128xf32, #tpu.memory_space<vmem>>, vector<1x8x128xf32>,
    %c0_89 = arith.constant 0 : index
    %c0_90 = arith.constant 0 : index
    %320 = vector.load %arg13[%c0_89, %c0_90] : memref<64x128xf32, #tpu.memory_space<vmem>>, vector<64x128xf32>
    %c0_91 = arith.constant 0 : index
    %c0_92 = arith.constant 0 : index
    %c0_93 = arith.constant 0 : index
    %321 = vector.load %arg3[%c0_91, %c0_92, %c0_93] : memref<1x128x512xf32, #tpu.memory_space<vmem>>, vector<1x128x512xf32>
    %322 = vector.shape_cast %321 : vector<1x128x512xf32> to vector<128x512xf32>
    %cst_94 = arith.constant dense<0.000000e+00> : vector<64x512xf32>
    %323 = tpu.matmul %320, %322, %cst_94 {dimension_numbers = #tpu.dot_dimension_numbers<[1], [0], [0], [1], [0, 0, 1, 1], [], []>} : vector<64x128xf32>, vector<128x512xf32>, vector<64x512xf32> -> vector<64x512xf32>
    %c1 = arith.constant 1 : index
    %c0_95 = arith.constant 0 : index
    %c0_96 = arith.constant 0 : index
    %324 = vector.load %arg5[%c1, %c0_95, %c0_96] : memref<2x1x512xf32, #tpu.memory_space<vmem>>, vector<1x1x512xf32>
    %325 = vector.shape_cast %324 : vector<1x1x512xf32> to vector<1x512xf32>
    %326 = vector.broadcast %325 : vector<1x512xf32> to vector<64x512xf32>
    %327 = arith.addf %323, %326 : vector<64x512xf32>
    %c0_97 = arith.constant 0 : index
    %c0_98 = arith.constant 0 : index
    %328 = vector.load %arg15[%c0_97, %c0_98] : memref<64x512xf32, #tpu.memory_space<vmem>>, vector<64x512xf32>
    tpu.vector_store %arg15[%c0_97, %c0_98], %327 {strides = array<i32>} : memref<64x512xf32, #tpu.memory_space<vmem>>, vector<64x512xf32>,
    %c1_99 = arith.constant 1 : index
    %c0_100 = arith.constant 0 : index
    %c0_101 = arith.constant 0 : index
    %329 = vector.load %arg4[%c1_99, %c0_100, %c0_101] : memref<2x128x512xf32, #tpu.memory_space<vmem>>, vector<1x128x512xf32>
    %330 = vector.shape_cast %329 : vector<1x128x512xf32> to vector<128x512xf32>
    %c1_102 = arith.constant 1 : index
    %c0_103 = arith.constant 0 : index
    %c0_104 = arith.constant 0 : index
    %331 = vector.load %arg16[%c1_102, %c0_103, %c0_104] : memref<2x8x128xf32, #tpu.memory_space<vmem>>, vector<1x8x128xf32>
    %332 = vector.shape_cast %331 : vector<1x8x128xf32> to vector<8x128xf32>
    %c1_105 = arith.constant 1 : index
    %c0_106 = arith.constant 0 : index
    %c0_107 = arith.constant 0 : index
    %333 = vector.load %arg17[%c1_105, %c0_106, %c0_107] : memref<2x8x128xf32, #tpu.memory_space<vmem>>, vector<1x8x128xf32>
    %334 = vector.shape_cast %333 : vector<1x8x128xf32> to vector<8x128xf32>
    %c0_i32_108 = arith.constant 0 : i32
    %c8_i32_109 = arith.constant 8 : i32
    %335 = arith.muli %c0_i32_108, %c8_i32_109 : i32
    %336 = tpu.assume_multiple %335, 8 : i32
    %337 = arith.index_cast %336 : i32 to index
    %c0_110 = arith.constant 0 : index
    %338 = vector.load %arg15[%337, %c0_110] : memref<64x512xf32, #tpu.memory_space<vmem>>, vector<8x512xf32>
    %cst_111 = arith.constant dense<0.000000e+00> : vector<8x512xf32>
    %339 = tpu.matmul %332, %330, %cst_111 {dimension_numbers = #tpu.dot_dimension_numbers<[1], [0], [0], [1], [0, 0, 1, 1], [], []>} : vector<8x128xf32>, vector<128x512xf32>, vector<8x512xf32> -> vector<8x512xf32>
    %340 = arith.addf %338, %339 : vector<8x512xf32>
    %341 = vector.extract_strided_slice %340 {offsets = [0, 0], sizes = [8, 128], strides = [1, 1]} : vector<8x512xf32> to vector<8x128xf32>
    %342 = arith.negf %341 : vector<8x128xf32>
    %343 = math.exp %342 : vector<8x128xf32>
    %cst_112 = arith.constant 1.000000e+00 : f32
    %344 = vector.broadcast %cst_112 : f32 to vector<8x128xf32>
    %345 = arith.addf %344, %343 : vector<8x128xf32>
    %346 = arith.divf %344, %345 : vector<8x128xf32>
    %347 = vector.extract_strided_slice %340 {offsets = [0, 128], sizes = [8, 128], strides = [1, 1]} : vector<8x512xf32> to vector<8x128xf32>
    %348 = arith.negf %347 : vector<8x128xf32>
    %349 = math.exp %348 : vector<8x128xf32>
    %cst_113 = arith.constant 1.000000e+00 : f32
    %350 = vector.broadcast %cst_113 : f32 to vector<8x128xf32>
    %351 = arith.addf %350, %349 : vector<8x128xf32>
    %352 = arith.divf %350, %351 : vector<8x128xf32>
    %353 = vector.extract_strided_slice %340 {offsets = [0, 256], sizes = [8, 128], strides = [1, 1]} : vector<8x512xf32> to vector<8x128xf32>
    %354 = math.tanh %353 : vector<8x128xf32>
    %355 = vector.extract_strided_slice %340 {offsets = [0, 384], sizes = [8, 128], strides = [1, 1]} : vector<8x512xf32> to vector<8x128xf32>
    %356 = arith.negf %355 : vector<8x128xf32>
    %357 = math.exp %356 : vector<8x128xf32>
    %cst_114 = arith.constant 1.000000e+00 : f32
    %358 = vector.broadcast %cst_114 : f32 to vector<8x128xf32>
    %359 = arith.addf %358, %357 : vector<8x128xf32>
    %360 = arith.divf %358, %359 : vector<8x128xf32>
    %361 = arith.mulf %352, %334 : vector<8x128xf32>
    %362 = arith.mulf %346, %354 : vector<8x128xf32>
    %363 = arith.addf %361, %362 : vector<8x128xf32>
    %364 = math.tanh %363 : vector<8x128xf32>
    %365 = arith.mulf %360, %364 : vector<8x128xf32>
    %366 = arith.addi %0, %c0_i32_108 : i32
    %c12_i32_115 = arith.constant 12 : i32
    %367 = arith.cmpi slt, %366, %c12_i32_115 : i32
    %368 = arith.select %367, %365, %332 : vector<8x128xf32>
    %369 = arith.select %367, %363, %334 : vector<8x128xf32>
    %370 = arith.index_cast %336 : i32 to index
    %c0_116 = arith.constant 0 : index
    %371 = vector.load %arg14[%370, %c0_116] : memref<64x128xf32, #tpu.memory_space<vmem>>, vector<8x128xf32>
    tpu.vector_store %arg14[%370, %c0_116], %368 {strides = array<i32>} : memref<64x128xf32, #tpu.memory_space<vmem>>, vector<8x128xf32>,
    %c1_i32_117 = arith.constant 1 : i32
    %c8_i32_118 = arith.constant 8 : i32
    %372 = arith.muli %c1_i32_117, %c8_i32_118 : i32
    %373 = tpu.assume_multiple %372, 8 : i32
    %374 = arith.index_cast %373 : i32 to index
    %c0_119 = arith.constant 0 : index
    %375 = vector.load %arg15[%374, %c0_119] : memref<64x512xf32, #tpu.memory_space<vmem>>, vector<8x512xf32>
    %cst_120 = arith.constant dense<0.000000e+00> : vector<8x512xf32>
    %376 = tpu.matmul %368, %330, %cst_120 {dimension_numbers = #tpu.dot_dimension_numbers<[1], [0], [0], [1], [0, 0, 1, 1], [], []>} : vector<8x128xf32>, vector<128x512xf32>, vector<8x512xf32> -> vector<8x512xf32>
    %377 = arith.addf %375, %376 : vector<8x512xf32>
    %378 = vector.extract_strided_slice %377 {offsets = [0, 0], sizes = [8, 128], strides = [1, 1]} : vector<8x512xf32> to vector<8x128xf32>
    %379 = arith.negf %378 : vector<8x128xf32>
    %380 = math.exp %379 : vector<8x128xf32>
    %cst_121 = arith.constant 1.000000e+00 : f32
    %381 = vector.broadcast %cst_121 : f32 to vector<8x128xf32>
    %382 = arith.addf %381, %380 : vector<8x128xf32>
    %383 = arith.divf %381, %382 : vector<8x128xf32>
    %384 = vector.extract_strided_slice %377 {offsets = [0, 128], sizes = [8, 128], strides = [1, 1]} : vector<8x512xf32> to vector<8x128xf32>
    %385 = arith.negf %384 : vector<8x128xf32>
    %386 = math.exp %385 : vector<8x128xf32>
    %cst_122 = arith.constant 1.000000e+00 : f32
    %387 = vector.broadcast %cst_122 : f32 to vector<8x128xf32>
    %388 = arith.addf %387, %386 : vector<8x128xf32>
    %389 = arith.divf %387, %388 : vector<8x128xf32>
    %390 = vector.extract_strided_slice %377 {offsets = [0, 256], sizes = [8, 128], strides = [1, 1]} : vector<8x512xf32> to vector<8x128xf32>
    %391 = math.tanh %390 : vector<8x128xf32>
    %392 = vector.extract_strided_slice %377 {offsets = [0, 384], sizes = [8, 128], strides = [1, 1]} : vector<8x512xf32> to vector<8x128xf32>
    %393 = arith.negf %392 : vector<8x128xf32>
    %394 = math.exp %393 : vector<8x128xf32>
    %cst_123 = arith.constant 1.000000e+00 : f32
    %395 = vector.broadcast %cst_123 : f32 to vector<8x128xf32>
    %396 = arith.addf %395, %394 : vector<8x128xf32>
    %397 = arith.divf %395, %396 : vector<8x128xf32>
    %398 = arith.mulf %389, %369 : vector<8x128xf32>
    %399 = arith.mulf %383, %391 : vector<8x128xf32>
    %400 = arith.addf %398, %399 : vector<8x128xf32>
    %401 = math.tanh %400 : vector<8x128xf32>
    %402 = arith.mulf %397, %401 : vector<8x128xf32>
    %403 = arith.addi %0, %c1_i32_117 : i32
    %c12_i32_124 = arith.constant 12 : i32
    %404 = arith.cmpi slt, %403, %c12_i32_124 : i32
    %405 = arith.select %404, %402, %368 : vector<8x128xf32>
    %406 = arith.select %404, %400, %369 : vector<8x128xf32>
    %407 = arith.index_cast %373 : i32 to index
    %c0_125 = arith.constant 0 : index
    %408 = vector.load %arg14[%407, %c0_125] : memref<64x128xf32, #tpu.memory_space<vmem>>, vector<8x128xf32>
    tpu.vector_store %arg14[%407, %c0_125], %405 {strides = array<i32>} : memref<64x128xf32, #tpu.memory_space<vmem>>, vector<8x128xf32>,
    %c2_i32_126 = arith.constant 2 : i32
    %c8_i32_127 = arith.constant 8 : i32
    %409 = arith.muli %c2_i32_126, %c8_i32_127 : i32
    %410 = tpu.assume_multiple %409, 8 : i32
    %411 = arith.index_cast %410 : i32 to index
    %c0_128 = arith.constant 0 : index
    %412 = vector.load %arg15[%411, %c0_128] : memref<64x512xf32, #tpu.memory_space<vmem>>, vector<8x512xf32>
    %cst_129 = arith.constant dense<0.000000e+00> : vector<8x512xf32>
    %413 = tpu.matmul %405, %330, %cst_129 {dimension_numbers = #tpu.dot_dimension_numbers<[1], [0], [0], [1], [0, 0, 1, 1], [], []>} : vector<8x128xf32>, vector<128x512xf32>, vector<8x512xf32> -> vector<8x512xf32>
    %414 = arith.addf %412, %413 : vector<8x512xf32>
    %415 = vector.extract_strided_slice %414 {offsets = [0, 0], sizes = [8, 128], strides = [1, 1]} : vector<8x512xf32> to vector<8x128xf32>
    %416 = arith.negf %415 : vector<8x128xf32>
    %417 = math.exp %416 : vector<8x128xf32>
    %cst_130 = arith.constant 1.000000e+00 : f32
    %418 = vector.broadcast %cst_130 : f32 to vector<8x128xf32>
    %419 = arith.addf %418, %417 : vector<8x128xf32>
    %420 = arith.divf %418, %419 : vector<8x128xf32>
    %421 = vector.extract_strided_slice %414 {offsets = [0, 128], sizes = [8, 128], strides = [1, 1]} : vector<8x512xf32> to vector<8x128xf32>
    %422 = arith.negf %421 : vector<8x128xf32>
    %423 = math.exp %422 : vector<8x128xf32>
    %cst_131 = arith.constant 1.000000e+00 : f32
    %424 = vector.broadcast %cst_131 : f32 to vector<8x128xf32>
    %425 = arith.addf %424, %423 : vector<8x128xf32>
    %426 = arith.divf %424, %425 : vector<8x128xf32>
    %427 = vector.extract_strided_slice %414 {offsets = [0, 256], sizes = [8, 128], strides = [1, 1]} : vector<8x512xf32> to vector<8x128xf32>
    %428 = math.tanh %427 : vector<8x128xf32>
    %429 = vector.extract_strided_slice %414 {offsets = [0, 384], sizes = [8, 128], strides = [1, 1]} : vector<8x512xf32> to vector<8x128xf32>
    %430 = arith.negf %429 : vector<8x128xf32>
    %431 = math.exp %430 : vector<8x128xf32>
    %cst_132 = arith.constant 1.000000e+00 : f32
    %432 = vector.broadcast %cst_132 : f32 to vector<8x128xf32>
    %433 = arith.addf %432, %431 : vector<8x128xf32>
    %434 = arith.divf %432, %433 : vector<8x128xf32>
    %435 = arith.mulf %426, %406 : vector<8x128xf32>
    %436 = arith.mulf %420, %428 : vector<8x128xf32>
    %437 = arith.addf %435, %436 : vector<8x128xf32>
    %438 = math.tanh %437 : vector<8x128xf32>
    %439 = arith.mulf %434, %438 : vector<8x128xf32>
    %440 = arith.addi %0, %c2_i32_126 : i32
    %c12_i32_133 = arith.constant 12 : i32
    %441 = arith.cmpi slt, %440, %c12_i32_133 : i32
    %442 = arith.select %441, %439, %405 : vector<8x128xf32>
    %443 = arith.select %441, %437, %406 : vector<8x128xf32>
    %444 = arith.index_cast %410 : i32 to index
    %c0_134 = arith.constant 0 : index
    %445 = vector.load %arg14[%444, %c0_134] : memref<64x128xf32, #tpu.memory_space<vmem>>, vector<8x128xf32>
    tpu.vector_store %arg14[%444, %c0_134], %442 {strides = array<i32>} : memref<64x128xf32, #tpu.memory_space<vmem>>, vector<8x128xf32>,
    %c3_i32_135 = arith.constant 3 : i32
    %c8_i32_136 = arith.constant 8 : i32
    %446 = arith.muli %c3_i32_135, %c8_i32_136 : i32
    %447 = tpu.assume_multiple %446, 8 : i32
    %448 = arith.index_cast %447 : i32 to index
    %c0_137 = arith.constant 0 : index
    %449 = vector.load %arg15[%448, %c0_137] : memref<64x512xf32, #tpu.memory_space<vmem>>, vector<8x512xf32>
    %cst_138 = arith.constant dense<0.000000e+00> : vector<8x512xf32>
    %450 = tpu.matmul %442, %330, %cst_138 {dimension_numbers = #tpu.dot_dimension_numbers<[1], [0], [0], [1], [0, 0, 1, 1], [], []>} : vector<8x128xf32>, vector<128x512xf32>, vector<8x512xf32> -> vector<8x512xf32>
    %451 = arith.addf %449, %450 : vector<8x512xf32>
    %452 = vector.extract_strided_slice %451 {offsets = [0, 0], sizes = [8, 128], strides = [1, 1]} : vector<8x512xf32> to vector<8x128xf32>
    %453 = arith.negf %452 : vector<8x128xf32>
    %454 = math.exp %453 : vector<8x128xf32>
    %cst_139 = arith.constant 1.000000e+00 : f32
    %455 = vector.broadcast %cst_139 : f32 to vector<8x128xf32>
    %456 = arith.addf %455, %454 : vector<8x128xf32>
    %457 = arith.divf %455, %456 : vector<8x128xf32>
    %458 = vector.extract_strided_slice %451 {offsets = [0, 128], sizes = [8, 128], strides = [1, 1]} : vector<8x512xf32> to vector<8x128xf32>
    %459 = arith.negf %458 : vector<8x128xf32>
    %460 = math.exp %459 : vector<8x128xf32>
    %cst_140 = arith.constant 1.000000e+00 : f32
    %461 = vector.broadcast %cst_140 : f32 to vector<8x128xf32>
    %462 = arith.addf %461, %460 : vector<8x128xf32>
    %463 = arith.divf %461, %462 : vector<8x128xf32>
    %464 = vector.extract_strided_slice %451 {offsets = [0, 256], sizes = [8, 128], strides = [1, 1]} : vector<8x512xf32> to vector<8x128xf32>
    %465 = math.tanh %464 : vector<8x128xf32>
    %466 = vector.extract_strided_slice %451 {offsets = [0, 384], sizes = [8, 128], strides = [1, 1]} : vector<8x512xf32> to vector<8x128xf32>
    %467 = arith.negf %466 : vector<8x128xf32>
    %468 = math.exp %467 : vector<8x128xf32>
    %cst_141 = arith.constant 1.000000e+00 : f32
    %469 = vector.broadcast %cst_141 : f32 to vector<8x128xf32>
    %470 = arith.addf %469, %468 : vector<8x128xf32>
    %471 = arith.divf %469, %470 : vector<8x128xf32>
    %472 = arith.mulf %463, %443 : vector<8x128xf32>
    %473 = arith.mulf %457, %465 : vector<8x128xf32>
    %474 = arith.addf %472, %473 : vector<8x128xf32>
    %475 = math.tanh %474 : vector<8x128xf32>
    %476 = arith.mulf %471, %475 : vector<8x128xf32>
    %477 = arith.addi %0, %c3_i32_135 : i32
    %c12_i32_142 = arith.constant 12 : i32
    %478 = arith.cmpi slt, %477, %c12_i32_142 : i32
    %479 = arith.select %478, %476, %442 : vector<8x128xf32>
    %480 = arith.select %478, %474, %443 : vector<8x128xf32>
    %481 = arith.index_cast %447 : i32 to index
    %c0_143 = arith.constant 0 : index
    %482 = vector.load %arg14[%481, %c0_143] : memref<64x128xf32, #tpu.memory_space<vmem>>, vector<8x128xf32>
    tpu.vector_store %arg14[%481, %c0_143], %479 {strides = array<i32>} : memref<64x128xf32, #tpu.memory_space<vmem>>, vector<8x128xf32>,
    %c4_i32_144 = arith.constant 4 : i32
    %c8_i32_145 = arith.constant 8 : i32
    %483 = arith.muli %c4_i32_144, %c8_i32_145 : i32
    %484 = tpu.assume_multiple %483, 8 : i32
    %485 = arith.index_cast %484 : i32 to index
    %c0_146 = arith.constant 0 : index
    %486 = vector.load %arg15[%485, %c0_146] : memref<64x512xf32, #tpu.memory_space<vmem>>, vector<8x512xf32>
    %cst_147 = arith.constant dense<0.000000e+00> : vector<8x512xf32>
    %487 = tpu.matmul %479, %330, %cst_147 {dimension_numbers = #tpu.dot_dimension_numbers<[1], [0], [0], [1], [0, 0, 1, 1], [], []>} : vector<8x128xf32>, vector<128x512xf32>, vector<8x512xf32> -> vector<8x512xf32>
    %488 = arith.addf %486, %487 : vector<8x512xf32>
    %489 = vector.extract_strided_slice %488 {offsets = [0, 0], sizes = [8, 128], strides = [1, 1]} : vector<8x512xf32> to vector<8x128xf32>
    %490 = arith.negf %489 : vector<8x128xf32>
    %491 = math.exp %490 : vector<8x128xf32>
    %cst_148 = arith.constant 1.000000e+00 : f32
    %492 = vector.broadcast %cst_148 : f32 to vector<8x128xf32>
    %493 = arith.addf %492, %491 : vector<8x128xf32>
    %494 = arith.divf %492, %493 : vector<8x128xf32>
    %495 = vector.extract_strided_slice %488 {offsets = [0, 128], sizes = [8, 128], strides = [1, 1]} : vector<8x512xf32> to vector<8x128xf32>
    %496 = arith.negf %495 : vector<8x128xf32>
    %497 = math.exp %496 : vector<8x128xf32>
    %cst_149 = arith.constant 1.000000e+00 : f32
    %498 = vector.broadcast %cst_149 : f32 to vector<8x128xf32>
    %499 = arith.addf %498, %497 : vector<8x128xf32>
    %500 = arith.divf %498, %499 : vector<8x128xf32>
    %501 = vector.extract_strided_slice %488 {offsets = [0, 256], sizes = [8, 128], strides = [1, 1]} : vector<8x512xf32> to vector<8x128xf32>
    %502 = math.tanh %501 : vector<8x128xf32>
    %503 = vector.extract_strided_slice %488 {offsets = [0, 384], sizes = [8, 128], strides = [1, 1]} : vector<8x512xf32> to vector<8x128xf32>
    %504 = arith.negf %503 : vector<8x128xf32>
    %505 = math.exp %504 : vector<8x128xf32>
    %cst_150 = arith.constant 1.000000e+00 : f32
    %506 = vector.broadcast %cst_150 : f32 to vector<8x128xf32>
    %507 = arith.addf %506, %505 : vector<8x128xf32>
    %508 = arith.divf %506, %507 : vector<8x128xf32>
    %509 = arith.mulf %500, %480 : vector<8x128xf32>
    %510 = arith.mulf %494, %502 : vector<8x128xf32>
    %511 = arith.addf %509, %510 : vector<8x128xf32>
    %512 = math.tanh %511 : vector<8x128xf32>
    %513 = arith.mulf %508, %512 : vector<8x128xf32>
    %514 = arith.addi %0, %c4_i32_144 : i32
    %c12_i32_151 = arith.constant 12 : i32
    %515 = arith.cmpi slt, %514, %c12_i32_151 : i32
    %516 = arith.select %515, %513, %479 : vector<8x128xf32>
    %517 = arith.select %515, %511, %480 : vector<8x128xf32>
    %518 = arith.index_cast %484 : i32 to index
    %c0_152 = arith.constant 0 : index
    %519 = vector.load %arg14[%518, %c0_152] : memref<64x128xf32, #tpu.memory_space<vmem>>, vector<8x128xf32>
    tpu.vector_store %arg14[%518, %c0_152], %516 {strides = array<i32>} : memref<64x128xf32, #tpu.memory_space<vmem>>, vector<8x128xf32>,
    %c5_i32_153 = arith.constant 5 : i32
    %c8_i32_154 = arith.constant 8 : i32
    %520 = arith.muli %c5_i32_153, %c8_i32_154 : i32
    %521 = tpu.assume_multiple %520, 8 : i32
    %522 = arith.index_cast %521 : i32 to index
    %c0_155 = arith.constant 0 : index
    %523 = vector.load %arg15[%522, %c0_155] : memref<64x512xf32, #tpu.memory_space<vmem>>, vector<8x512xf32>
    %cst_156 = arith.constant dense<0.000000e+00> : vector<8x512xf32>
    %524 = tpu.matmul %516, %330, %cst_156 {dimension_numbers = #tpu.dot_dimension_numbers<[1], [0], [0], [1], [0, 0, 1, 1], [], []>} : vector<8x128xf32>, vector<128x512xf32>, vector<8x512xf32> -> vector<8x512xf32>
    %525 = arith.addf %523, %524 : vector<8x512xf32>
    %526 = vector.extract_strided_slice %525 {offsets = [0, 0], sizes = [8, 128], strides = [1, 1]} : vector<8x512xf32> to vector<8x128xf32>
    %527 = arith.negf %526 : vector<8x128xf32>
    %528 = math.exp %527 : vector<8x128xf32>
    %cst_157 = arith.constant 1.000000e+00 : f32
    %529 = vector.broadcast %cst_157 : f32 to vector<8x128xf32>
    %530 = arith.addf %529, %528 : vector<8x128xf32>
    %531 = arith.divf %529, %530 : vector<8x128xf32>
    %532 = vector.extract_strided_slice %525 {offsets = [0, 128], sizes = [8, 128], strides = [1, 1]} : vector<8x512xf32> to vector<8x128xf32>
    %533 = arith.negf %532 : vector<8x128xf32>
    %534 = math.exp %533 : vector<8x128xf32>
    %cst_158 = arith.constant 1.000000e+00 : f32
    %535 = vector.broadcast %cst_158 : f32 to vector<8x128xf32>
    %536 = arith.addf %535, %534 : vector<8x128xf32>
    %537 = arith.divf %535, %536 : vector<8x128xf32>
    %538 = vector.extract_strided_slice %525 {offsets = [0, 256], sizes = [8, 128], strides = [1, 1]} : vector<8x512xf32> to vector<8x128xf32>
    %539 = math.tanh %538 : vector<8x128xf32>
    %540 = vector.extract_strided_slice %525 {offsets = [0, 384], sizes = [8, 128], strides = [1, 1]} : vector<8x512xf32> to vector<8x128xf32>
    %541 = arith.negf %540 : vector<8x128xf32>
    %542 = math.exp %541 : vector<8x128xf32>
    %cst_159 = arith.constant 1.000000e+00 : f32
    %543 = vector.broadcast %cst_159 : f32 to vector<8x128xf32>
    %544 = arith.addf %543, %542 : vector<8x128xf32>
    %545 = arith.divf %543, %544 : vector<8x128xf32>
    %546 = arith.mulf %537, %517 : vector<8x128xf32>
    %547 = arith.mulf %531, %539 : vector<8x128xf32>
    %548 = arith.addf %546, %547 : vector<8x128xf32>
    %549 = math.tanh %548 : vector<8x128xf32>
    %550 = arith.mulf %545, %549 : vector<8x128xf32>
    %551 = arith.addi %0, %c5_i32_153 : i32
    %c12_i32_160 = arith.constant 12 : i32
    %552 = arith.cmpi slt, %551, %c12_i32_160 : i32
    %553 = arith.select %552, %550, %516 : vector<8x128xf32>
    %554 = arith.select %552, %548, %517 : vector<8x128xf32>
    %555 = arith.index_cast %521 : i32 to index
    %c0_161 = arith.constant 0 : index
    %556 = vector.load %arg14[%555, %c0_161] : memref<64x128xf32, #tpu.memory_space<vmem>>, vector<8x128xf32>
    tpu.vector_store %arg14[%555, %c0_161], %553 {strides = array<i32>} : memref<64x128xf32, #tpu.memory_space<vmem>>, vector<8x128xf32>,
    %c6_i32_162 = arith.constant 6 : i32
    %c8_i32_163 = arith.constant 8 : i32
    %557 = arith.muli %c6_i32_162, %c8_i32_163 : i32
    %558 = tpu.assume_multiple %557, 8 : i32
    %559 = arith.index_cast %558 : i32 to index
    %c0_164 = arith.constant 0 : index
    %560 = vector.load %arg15[%559, %c0_164] : memref<64x512xf32, #tpu.memory_space<vmem>>, vector<8x512xf32>
    %cst_165 = arith.constant dense<0.000000e+00> : vector<8x512xf32>
    %561 = tpu.matmul %553, %330, %cst_165 {dimension_numbers = #tpu.dot_dimension_numbers<[1], [0], [0], [1], [0, 0, 1, 1], [], []>} : vector<8x128xf32>, vector<128x512xf32>, vector<8x512xf32> -> vector<8x512xf32>
    %562 = arith.addf %560, %561 : vector<8x512xf32>
    %563 = vector.extract_strided_slice %562 {offsets = [0, 0], sizes = [8, 128], strides = [1, 1]} : vector<8x512xf32> to vector<8x128xf32>
    %564 = arith.negf %563 : vector<8x128xf32>
    %565 = math.exp %564 : vector<8x128xf32>
    %cst_166 = arith.constant 1.000000e+00 : f32
    %566 = vector.broadcast %cst_166 : f32 to vector<8x128xf32>
    %567 = arith.addf %566, %565 : vector<8x128xf32>
    %568 = arith.divf %566, %567 : vector<8x128xf32>
    %569 = vector.extract_strided_slice %562 {offsets = [0, 128], sizes = [8, 128], strides = [1, 1]} : vector<8x512xf32> to vector<8x128xf32>
    %570 = arith.negf %569 : vector<8x128xf32>
    %571 = math.exp %570 : vector<8x128xf32>
    %cst_167 = arith.constant 1.000000e+00 : f32
    %572 = vector.broadcast %cst_167 : f32 to vector<8x128xf32>
    %573 = arith.addf %572, %571 : vector<8x128xf32>
    %574 = arith.divf %572, %573 : vector<8x128xf32>
    %575 = vector.extract_strided_slice %562 {offsets = [0, 256], sizes = [8, 128], strides = [1, 1]} : vector<8x512xf32> to vector<8x128xf32>
    %576 = math.tanh %575 : vector<8x128xf32>
    %577 = vector.extract_strided_slice %562 {offsets = [0, 384], sizes = [8, 128], strides = [1, 1]} : vector<8x512xf32> to vector<8x128xf32>
    %578 = arith.negf %577 : vector<8x128xf32>
    %579 = math.exp %578 : vector<8x128xf32>
    %cst_168 = arith.constant 1.000000e+00 : f32
    %580 = vector.broadcast %cst_168 : f32 to vector<8x128xf32>
    %581 = arith.addf %580, %579 : vector<8x128xf32>
    %582 = arith.divf %580, %581 : vector<8x128xf32>
    %583 = arith.mulf %574, %554 : vector<8x128xf32>
    %584 = arith.mulf %568, %576 : vector<8x128xf32>
    %585 = arith.addf %583, %584 : vector<8x128xf32>
    %586 = math.tanh %585 : vector<8x128xf32>
    %587 = arith.mulf %582, %586 : vector<8x128xf32>
    %588 = arith.addi %0, %c6_i32_162 : i32
    %c12_i32_169 = arith.constant 12 : i32
    %589 = arith.cmpi slt, %588, %c12_i32_169 : i32
    %590 = arith.select %589, %587, %553 : vector<8x128xf32>
    %591 = arith.select %589, %585, %554 : vector<8x128xf32>
    %592 = arith.index_cast %558 : i32 to index
    %c0_170 = arith.constant 0 : index
    %593 = vector.load %arg14[%592, %c0_170] : memref<64x128xf32, #tpu.memory_space<vmem>>, vector<8x128xf32>
    tpu.vector_store %arg14[%592, %c0_170], %590 {strides = array<i32>} : memref<64x128xf32, #tpu.memory_space<vmem>>, vector<8x128xf32>,
    %c7_i32_171 = arith.constant 7 : i32
    %c8_i32_172 = arith.constant 8 : i32
    %594 = arith.muli %c7_i32_171, %c8_i32_172 : i32
    %595 = tpu.assume_multiple %594, 8 : i32
    %596 = arith.index_cast %595 : i32 to index
    %c0_173 = arith.constant 0 : index
    %597 = vector.load %arg15[%596, %c0_173] : memref<64x512xf32, #tpu.memory_space<vmem>>, vector<8x512xf32>
    %cst_174 = arith.constant dense<0.000000e+00> : vector<8x512xf32>
    %598 = tpu.matmul %590, %330, %cst_174 {dimension_numbers = #tpu.dot_dimension_numbers<[1], [0], [0], [1], [0, 0, 1, 1], [], []>} : vector<8x128xf32>, vector<128x512xf32>, vector<8x512xf32> -> vector<8x512xf32>
    %599 = arith.addf %597, %598 : vector<8x512xf32>
    %600 = vector.extract_strided_slice %599 {offsets = [0, 0], sizes = [8, 128], strides = [1, 1]} : vector<8x512xf32> to vector<8x128xf32>
    %601 = arith.negf %600 : vector<8x128xf32>
    %602 = math.exp %601 : vector<8x128xf32>
    %cst_175 = arith.constant 1.000000e+00 : f32
    %603 = vector.broadcast %cst_175 : f32 to vector<8x128xf32>
    %604 = arith.addf %603, %602 : vector<8x128xf32>
    %605 = arith.divf %603, %604 : vector<8x128xf32>
    %606 = vector.extract_strided_slice %599 {offsets = [0, 128], sizes = [8, 128], strides = [1, 1]} : vector<8x512xf32> to vector<8x128xf32>
    %607 = arith.negf %606 : vector<8x128xf32>
    %608 = math.exp %607 : vector<8x128xf32>
    %cst_176 = arith.constant 1.000000e+00 : f32
    %609 = vector.broadcast %cst_176 : f32 to vector<8x128xf32>
    %610 = arith.addf %609, %608 : vector<8x128xf32>
    %611 = arith.divf %609, %610 : vector<8x128xf32>
    %612 = vector.extract_strided_slice %599 {offsets = [0, 256], sizes = [8, 128], strides = [1, 1]} : vector<8x512xf32> to vector<8x128xf32>
    %613 = math.tanh %612 : vector<8x128xf32>
    %614 = vector.extract_strided_slice %599 {offsets = [0, 384], sizes = [8, 128], strides = [1, 1]} : vector<8x512xf32> to vector<8x128xf32>
    %615 = arith.negf %614 : vector<8x128xf32>
    %616 = math.exp %615 : vector<8x128xf32>
    %cst_177 = arith.constant 1.000000e+00 : f32
    %617 = vector.broadcast %cst_177 : f32 to vector<8x128xf32>
    %618 = arith.addf %617, %616 : vector<8x128xf32>
    %619 = arith.divf %617, %618 : vector<8x128xf32>
    %620 = arith.mulf %611, %591 : vector<8x128xf32>
    %621 = arith.mulf %605, %613 : vector<8x128xf32>
    %622 = arith.addf %620, %621 : vector<8x128xf32>
    %623 = math.tanh %622 : vector<8x128xf32>
    %624 = arith.mulf %619, %623 : vector<8x128xf32>
    %625 = arith.addi %0, %c7_i32_171 : i32
    %c12_i32_178 = arith.constant 12 : i32
    %626 = arith.cmpi slt, %625, %c12_i32_178 : i32
    %627 = arith.select %626, %624, %590 : vector<8x128xf32>
    %628 = arith.select %626, %622, %591 : vector<8x128xf32>
    %629 = arith.index_cast %595 : i32 to index
    %c0_179 = arith.constant 0 : index
    %630 = vector.load %arg14[%629, %c0_179] : memref<64x128xf32, #tpu.memory_space<vmem>>, vector<8x128xf32>
    tpu.vector_store %arg14[%629, %c0_179], %627 {strides = array<i32>} : memref<64x128xf32, #tpu.memory_space<vmem>>, vector<8x128xf32>,
    %c8_i32_180 = arith.constant 8 : i32
    %c1_181 = arith.constant 1 : index
    %c0_182 = arith.constant 0 : index
    %c0_183 = arith.constant 0 : index
    %631 = vector.load %arg16[%c1_181, %c0_182, %c0_183] : memref<2x8x128xf32, #tpu.memory_space<vmem>>, vector<1x8x128xf32>
    %632 = vector.shape_cast %631 : vector<1x8x128xf32> to vector<8x128xf32>
    %633 = vector.shape_cast %627 : vector<8x128xf32> to vector<1x8x128xf32>
    tpu.vector_store %arg16[%c1_181, %c0_182, %c0_183], %633 {strides = array<i32>} : memref<2x8x128xf32, #tpu.memory_space<vmem>>, vector<1x8x128xf32>,
    %c1_184 = arith.constant 1 : index
    %c0_185 = arith.constant 0 : index
    %c0_186 = arith.constant 0 : index
    %634 = vector.load %arg17[%c1_184, %c0_185, %c0_186] : memref<2x8x128xf32, #tpu.memory_space<vmem>>, vector<1x8x128xf32>
    %635 = vector.shape_cast %634 : vector<1x8x128xf32> to vector<8x128xf32>
    %636 = vector.shape_cast %628 : vector<8x128xf32> to vector<1x8x128xf32>
    tpu.vector_store %arg17[%c1_184, %c0_185, %c0_186], %636 {strides = array<i32>} : memref<2x8x128xf32, #tpu.memory_space<vmem>>, vector<1x8x128xf32>,
    %c0_187 = arith.constant 0 : index
    %c0_188 = arith.constant 0 : index
    %637 = vector.load %arg14[%c0_187, %c0_188] : memref<64x128xf32, #tpu.memory_space<vmem>>, vector<64x128xf32>
    %c0_189 = arith.constant 0 : index
    %c0_190 = arith.constant 0 : index
    %638 = vector.load %arg8[%c0_189, %c0_190] : memref<128x128xf32, #tpu.memory_space<vmem>>, vector<128x128xf32>
    %cst_191 = arith.constant dense<0.000000e+00> : vector<64x128xf32>
    %639 = tpu.matmul %637, %638, %cst_191 {dimension_numbers = #tpu.dot_dimension_numbers<[1], [0], [0], [1], [0, 0, 1, 1], [], []>} : vector<64x128xf32>, vector<128x128xf32>, vector<64x128xf32> -> vector<64x128xf32>
    %c0_192 = arith.constant 0 : index
    %c0_193 = arith.constant 0 : index
    %640 = vector.load %arg9[%c0_192, %c0_193] : memref<1x128xf32, #tpu.memory_space<vmem>>, vector<1x128xf32>
    %641 = vector.broadcast %640 : vector<1x128xf32> to vector<64x128xf32>
    %642 = arith.addf %639, %641 : vector<64x128xf32>
    %c0_194 = arith.constant 0 : index
    %c0_195 = arith.constant 0 : index
    %643 = vector.load %arg10[%c0_194, %c0_195] : memref<64x128xf32, #tpu.memory_space<vmem>>, vector<64x128xf32>
    tpu.vector_store %arg10[%c0_194, %c0_195], %642 {strides = array<i32>} : memref<64x128xf32, #tpu.memory_space<vmem>>, vector<64x128xf32>,
    %c0_196 = arith.constant 0 : index
    %c0_197 = arith.constant 0 : index
    %c0_198 = arith.constant 0 : index
    %644 = vector.load %arg16[%c0_196, %c0_197, %c0_198] : memref<2x8x128xf32, #tpu.memory_space<vmem>>, vector<2x8x128xf32>
    %c0_199 = arith.constant 0 : index
    %c0_200 = arith.constant 0 : index
    %c0_201 = arith.constant 0 : index
    %645 = vector.load %arg11[%c0_199, %c0_200, %c0_201] : memref<2x8x128xf32, #tpu.memory_space<vmem>>, vector<2x8x128xf32>
    tpu.vector_store %arg11[%c0_199, %c0_200, %c0_201], %644 {strides = array<i32>} : memref<2x8x128xf32, #tpu.memory_space<vmem>>, vector<2x8x128xf32>,
    %c0_202 = arith.constant 0 : index
    %c0_203 = arith.constant 0 : index
    %c0_204 = arith.constant 0 : index
    %646 = vector.load %arg17[%c0_202, %c0_203, %c0_204] : memref<2x8x128xf32, #tpu.memory_space<vmem>>, vector<2x8x128xf32>
    %c0_205 = arith.constant 0 : index
    %c0_206 = arith.constant 0 : index
    %c0_207 = arith.constant 0 : index
    %647 = vector.load %arg12[%c0_205, %c0_206, %c0_207] : memref<2x8x128xf32, #tpu.memory_space<vmem>>, vector<2x8x128xf32>
    tpu.vector_store %arg12[%c0_205, %c0_206, %c0_207], %646 {strides = array<i32>} : memref<2x8x128xf32, #tpu.memory_space<vmem>>, vector<2x8x128xf32>,
    return
  }
  func.func @transform_0(%arg0: i32) -> (i32, i32) {
    %c0_i32 = arith.constant 0 : i32
    %c0_i32_0 = arith.constant 0 : i32
    return %arg0, %c0_i32 : i32, i32
  }
  func.func @transform_1(%arg0: i32) -> (i32, i32) {
    %c0_i32 = arith.constant 0 : i32
    %c0_i32_0 = arith.constant 0 : i32
    %c0_i32_1 = arith.constant 0 : i32
    return %c0_i32, %c0_i32_0 : i32, i32
  }
  func.func @transform_2(%arg0: i32) -> (i32, i32, i32) {
    %c0_i32 = arith.constant 0 : i32
    %c0_i32_0 = arith.constant 0 : i32
    %c0_i32_1 = arith.constant 0 : i32
    %c0_i32_2 = arith.constant 0 : i32
    return %c0_i32, %c0_i32_0, %c0_i32_1 : i32, i32, i32
  }
  func.func @transform_3(%arg0: i32) -> (i32, i32, i32) {
    %c0_i32 = arith.constant 0 : i32
    %c0_i32_0 = arith.constant 0 : i32
    %c0_i32_1 = arith.constant 0 : i32
    %c0_i32_2 = arith.constant 0 : i32
    return %c0_i32, %c0_i32_0, %c0_i32_1 : i32, i32, i32
  }
  func.func @transform_4(%arg0: i32) -> (i32, i32, i32) {
    %c0_i32 = arith.constant 0 : i32
    %c0_i32_0 = arith.constant 0 : i32
    %c0_i32_1 = arith.constant 0 : i32
    %c0_i32_2 = arith.constant 0 : i32
    return %c0_i32, %c0_i32_0, %c0_i32_1 : i32, i32, i32
  }
  func.func @transform_5(%arg0: i32) -> (i32, i32, i32) {
    %c0_i32 = arith.constant 0 : i32
    %c0_i32_0 = arith.constant 0 : i32
    %c0_i32_1 = arith.constant 0 : i32
    %c0_i32_2 = arith.constant 0 : i32
    return %c0_i32, %c0_i32_0, %c0_i32_1 : i32, i32, i32
  }
  func.func @transform_6(%arg0: i32) -> (i32, i32, i32) {
    %c0_i32 = arith.constant 0 : i32
    %c0_i32_0 = arith.constant 0 : i32
    %c0_i32_1 = arith.constant 0 : i32
    %c0_i32_2 = arith.constant 0 : i32
    return %c0_i32, %c0_i32_0, %c0_i32_1 : i32, i32, i32
  }
  func.func @transform_7(%arg0: i32) -> (i32, i32) {
    %c0_i32 = arith.constant 0 : i32
    %c0_i32_0 = arith.constant 0 : i32
    %c0_i32_1 = arith.constant 0 : i32
    return %c0_i32, %c0_i32_0 : i32, i32
  }
  func.func @transform_8(%arg0: i32) -> (i32, i32) {
    %c0_i32 = arith.constant 0 : i32
    %c0_i32_0 = arith.constant 0 : i32
    %c0_i32_1 = arith.constant 0 : i32
    return %c0_i32, %c0_i32_0 : i32, i32
  }
  func.func @transform_9(%arg0: i32) -> (i32, i32) {
    %c0_i32 = arith.constant 0 : i32
    %c0_i32_0 = arith.constant 0 : i32
    return %arg0, %c0_i32 : i32, i32
  }
  func.func @transform_10(%arg0: i32) -> (i32, i32, i32) {
    %c0_i32 = arith.constant 0 : i32
    %c0_i32_0 = arith.constant 0 : i32
    %c0_i32_1 = arith.constant 0 : i32
    %c0_i32_2 = arith.constant 0 : i32
    return %c0_i32, %c0_i32_0, %c0_i32_1 : i32, i32, i32
  }
  func.func @transform_11(%arg0: i32) -> (i32, i32, i32) {
    %c0_i32 = arith.constant 0 : i32
    %c0_i32_0 = arith.constant 0 : i32
    %c0_i32_1 = arith.constant 0 : i32
    %c0_i32_2 = arith.constant 0 : i32
    return %c0_i32, %c0_i32_0, %c0_i32_1 : i32, i32, i32
  }
}

</mosaic_0001>

<llo_original>
// kernel: rnn_forward.1
$region0: #{rnn_forward.1}
  #allocation0 [shape = 'u32[]', space=smem, size = 0x4, offset = 0x4, fixed_abs, tag = 'smem constant byte address 0x4 - core index']
  #allocation1 [shape = 'u32[72,128]{1,0:T(1,128)}', space=vmem, size = 0x9000, scoped, tag = 'internal scratch']
  #allocation2 [shape = 'f32[64,128]{1,0:T(8,128)}', space=vmem, size = 0x8000, scoped, tag = 'scratch operand']
  #allocation3 [shape = 'f32[64,128]{1,0:T(8,128)}', space=vmem, size = 0x8000, scoped, tag = 'scratch operand']
  #allocation4 [shape = 'f32[64,512]{1,0:T(8,128)}', space=vmem, size = 0x20000, scoped, tag = 'scratch operand']
  #allocation5 [shape = 'f32[2,8,128]{2,1,0:T(8,128)}', space=vmem, size = 0x2000, scoped, tag = 'scratch operand']
  #allocation6 [shape = 'f32[2,8,128]{2,1,0:T(8,128)}', space=vmem, size = 0x2000, scoped, tag = 'scratch operand']
  %s0 = inlined_call_operand.vmem [shape: f32[128,128], index: 0, kind: input, shape index: {}]
  %s1 = inlined_call_operand.vmem [shape: f32[128,512], index: 1, kind: input, shape index: {}]
  %s2 = inlined_call_operand.vmem [shape: f32[1,128,512], index: 2, kind: input, shape index: {}]
  %s3 = inlined_call_operand.vmem [shape: f32[2,128,512], index: 3, kind: input, shape index: {}]
  %s4 = inlined_call_operand.vmem [shape: f32[2,1,512], index: 4, kind: input, shape index: {}]
  %s5 = inlined_call_operand.vmem [shape: f32[2,8,128], index: 5, kind: input, shape index: {}]
  %s6 = inlined_call_operand.vmem [shape: f32[2,8,128], index: 6, kind: input, shape index: {}]
  %s7 = inlined_call_operand.vmem [shape: f32[128,128], index: 7, kind: input, shape index: {}]
  %s8 = inlined_call_operand.vmem [shape: f32[1,128], index: 8, kind: input, shape index: {}]
  %s9 = inlined_call_operand.vmem [shape: f32[8,16,128], index: 9, kind: output, shape index: {0}]
  %s10 = inlined_call_operand.vmem [shape: f32[2,8,128], index: 10, kind: output, shape index: {1}]
  %s11 = inlined_call_operand.vmem [shape: f32[2,8,128], index: 11, kind: output, shape index: {2}]
  %12 = xla_tuple %s9, %s10, %s11
  %s13 = sld [smem:[#allocation0]]
  $region123: #{rnn_forward.1} parent=0
    _
  %s15 = ssub.s32 1, %s13
  %s16 = scalar_select 0, %s15, %s13
  $region1: #{rnn_forward.1} parent=0
    #allocation7 [shape = 'u8[65536]{0}', space=vmem, size = 0x10000, scoped, tag = 'output window, operand 0']
    loop: start=0, step=1, limit=4
    $region2: #{rnn_forward.1} parent=1 // loop_pre_header
      _
    $region3: #{rnn_forward.1} parent=1 // loop_header
      %s18 = sphi 0, %s22
      %p19 = scmp.ge.s32.totalorder %s18, 4
      %s28 = sphi 0, %s30
      %s31 = sphi 0, %s28
      %s32 = sphi 0, %s31
      %s48 = sphi 0, %s32
      %s52 = sphi 0, %s52
      %s54 = sphi 0, %s52
      %s55 = sphi 0, %s54
      %s69 = sphi 0, %s55
      %s73 = sphi 0, %s73
      %s75 = sphi 0, %s73
      %s76 = sphi 0, %s75
      %s90 = sphi 0, %s76
      %s94 = sphi 0, %s94
      %s96 = sphi 0, %s94
      %s97 = sphi 0, %s96
      %s111 = sphi 0, %s97
      %s115 = sphi 0, %s115
      %s117 = sphi 0, %s115
      %s118 = sphi 0, %s117
      %s132 = sphi 0, %s118
      %s136 = sphi 0, %s136
      %s138 = sphi 0, %s136
      %s139 = sphi 0, %s138
      %s153 = sphi 0, %s139
      %s157 = sphi 0, %s157
      %s159 = sphi 0, %s157
      %s160 = sphi 0, %s159
      %s174 = sphi 0, %s160
      %s178 = sphi 0, %s178
      %s180 = sphi 0, %s178
      %s181 = sphi 0, %s180
      %s195 = sphi 0, %s181
      %s199 = sphi 0, %s199
      %s201 = sphi 0, %s199
      %s202 = sphi 0, %s201
      %s216 = sphi 0, %s202
      %s222 = sphi 0, %s224
      %s225 = sphi 0, %s222
      %s226 = sphi 0, %s225
      %s242 = sphi 0, %s226
      %s246 = sphi 0, %s246
      %s248 = sphi 0, %s246
      %s249 = sphi 0, %s248
      %s263 = sphi 0, %s249
      %s267 = sphi 0, %s267
      %s269 = sphi 0, %s267
      %s270 = sphi 0, %s269
      %s284 = sphi 0, %s270
    $region4: #{rnn_forward.1} parent=1 // loop_header_branch
      %21 = sbr.rel (%p19) target = $region8
    $region5: #{rnn_forward.1} parent=1 // loop_body
      %s23 = ssub.s32 %s18, 1
      %s24 = ssub.s32 %s18, 2
      %s25 = sadd.s32 %s18, 1
      %s26 = ssub.s32 %s18, %s25
      %p27 = scmp.eq.s32.totalorder %s26, 0
      %s29 = sadd.s32 %s28, 1
      %s30 = scalar_select %p27, %s28, %s29
      %p33 = pneg %p27
      %p34 = scmp.eq.s32.totalorder %s18, 1
      %p35 = por %p33, %p34
      %p36 = scmp.ne.s32.totalorder %s28, %s31
      %p37 = scmp.eq.s32.totalorder %s18, 0
      %p38 = por %p36, %p37
      %p39 = scmp.ne.s32.totalorder %s28, %s31
      %p40 = scmp.eq.s32.totalorder %s23, 1
      %p41 = por %p39, %p40
      %p42 = scmp.ne.s32.totalorder %s31, %s32
      %p43 = scmp.eq.s32.totalorder %s23, 0
      %p44 = por %p42, %p43
      %p45 = scmp.ne.s32.totalorder %s31, %s32
      %p46 = scmp.eq.s32.totalorder %s24, 1
      %p47 = por %p45, %p46
      %p49 = scmp.ne.s32.totalorder %s32, %s48
      %p50 = scmp.eq.s32.totalorder %s24, 0
      %p51 = por %p49, %p50
      %s53 = sadd.s32 %s52, 1
      %p56 = scmp.eq.s32.totalorder %s18, 1
      %p57 = scmp.ne.s32.totalorder %s52, %s54
      %p58 = scmp.eq.s32.totalorder %s18, 0
      %p59 = por %p57, %p58
      %p60 = scmp.ne.s32.totalorder %s52, %s54
      %p61 = scmp.eq.s32.totalorder %s23, 1
      %p62 = por %p60, %p61
      %p63 = scmp.ne.s32.totalorder %s54, %s55
      %p64 = scmp.eq.s32.totalorder %s23, 0
      %p65 = por %p63, %p64
      %p66 = scmp.ne.s32.totalorder %s54, %s55
      %p67 = scmp.eq.s32.totalorder %s24, 1
      %p68 = por %p66, %p67
      %p70 = scmp.ne.s32.totalorder %s55, %s69
      %p71 = scmp.eq.s32.totalorder %s24, 0
      %p72 = por %p70, %p71
      %s74 = sadd.s32 %s73, 1
      %p77 = scmp.eq.s32.totalorder %s18, 1
      %p78 = scmp.ne.s32.totalorder %s73, %s75
      %p79 = scmp.eq.s32.totalorder %s18, 0
      %p80 = por %p78, %p79
      %p81 = scmp.ne.s32.totalorder %s73, %s75
      %p82 = scmp.eq.s32.totalorder %s23, 1
      %p83 = por %p81, %p82
      %p84 = scmp.ne.s32.totalorder %s75, %s76
      %p85 = scmp.eq.s32.totalorder %s23, 0
      %p86 = por %p84, %p85
      %p87 = scmp.ne.s32.totalorder %s75, %s76
      %p88 = scmp.eq.s32.totalorder %s24, 1
      %p89 = por %p87, %p88
      %p91 = scmp.ne.s32.totalorder %s76, %s90
      %p92 = scmp.eq.s32.totalorder %s24, 0
      %p93 = por %p91, %p92
      %s95 = sadd.s32 %s94, 1
      %p98 = scmp.eq.s32.totalorder %s18, 1
      %p99 = scmp.ne.s32.totalorder %s94, %s96
      %p100 = scmp.eq.s32.totalorder %s18, 0
      %p101 = por %p99, %p100
      %p102 = scmp.ne.s32.totalorder %s94, %s96
      %p103 = scmp.eq.s32.totalorder %s23, 1
      %p104 = por %p102, %p103
      %p105 = scmp.ne.s32.totalorder %s96, %s97
      %p106 = scmp.eq.s32.totalorder %s23, 0
      %p107 = por %p105, %p106
      %p108 = scmp.ne.s32.totalorder %s96, %s97
      %p109 = scmp.eq.s32.totalorder %s24, 1
      %p110 = por %p108, %p109
      %p112 = scmp.ne.s32.totalorder %s97, %s111
      %p113 = scmp.eq.s32.totalorder %s24, 0
      %p114 = por %p112, %p113
      %s116 = sadd.s32 %s115, 1
      %p119 = scmp.eq.s32.totalorder %s18, 1
      %p120 = scmp.ne.s32.totalorder %s115, %s117
      %p121 = scmp.eq.s32.totalorder %s18, 0
      %p122 = por %p120, %p121
      %p123 = scmp.ne.s32.totalorder %s115, %s117
      %p124 = scmp.eq.s32.totalorder %s23, 1
      %p125 = por %p123, %p124
      %p126 = scmp.ne.s32.totalorder %s117, %s118
      %p127 = scmp.eq.s32.totalorder %s23, 0
      %p128 = por %p126, %p127
      %p129 = scmp.ne.s32.totalorder %s117, %s118
      %p130 = scmp.eq.s32.totalorder %s24, 1
      %p131 = por %p129, %p130
      %p133 = scmp.ne.s32.totalorder %s118, %s132
      %p134 = scmp.eq.s32.totalorder %s24, 0
      %p135 = por %p133, %p134
      %s137 = sadd.s32 %s136, 1
      %p140 = scmp.eq.s32.totalorder %s18, 1
      %p141 = scmp.ne.s32.totalorder %s136, %s138
      %p142 = scmp.eq.s32.totalorder %s18, 0
      %p143 = por %p141, %p142
      %p144 = scmp.ne.s32.totalorder %s136, %s138
      %p145 = scmp.eq.s32.totalorder %s23, 1
      %p146 = por %p144, %p145
      %p147 = scmp.ne.s32.totalorder %s138, %s139
      %p148 = scmp.eq.s32.totalorder %s23, 0
      %p149 = por %p147, %p148
      %p150 = scmp.ne.s32.totalorder %s138, %s139
      %p151 = scmp.eq.s32.totalorder %s24, 1
      %p152 = por %p150, %p151
      %p154 = scmp.ne.s32.totalorder %s139, %s153
      %p155 = scmp.eq.s32.totalorder %s24, 0
      %p156 = por %p154, %p155
      %s158 = sadd.s32 %s157, 1
      %p161 = scmp.eq.s32.totalorder %s18, 1
      %p162 = scmp.ne.s32.totalorder %s157, %s159
      %p163 = scmp.eq.s32.totalorder %s18, 0
      %p164 = por %p162, %p163
      %p165 = scmp.ne.s32.totalorder %s157, %s159
      %p166 = scmp.eq.s32.totalorder %s23, 1
      %p167 = por %p165, %p166
      %p168 = scmp.ne.s32.totalorder %s159, %s160
      %p169 = scmp.eq.s32.totalorder %s23, 0
      %p170 = por %p168, %p169
      %p171 = scmp.ne.s32.totalorder %s159, %s160
      %p172 = scmp.eq.s32.totalorder %s24, 1
      %p173 = por %p171, %p172
      %p175 = scmp.ne.s32.totalorder %s160, %s174
      %p176 = scmp.eq.s32.totalorder %s24, 0
      %p177 = por %p175, %p176
      %s179 = sadd.s32 %s178, 1
      %p182 = scmp.eq.s32.totalorder %s18, 1
      %p183 = scmp.ne.s32.totalorder %s178, %s180
      %p184 = scmp.eq.s32.totalorder %s18, 0
      %p185 = por %p183, %p184
      %p186 = scmp.ne.s32.totalorder %s178, %s180
      %p187 = scmp.eq.s32.totalorder %s23, 1
      %p188 = por %p186, %p187
      %p189 = scmp.ne.s32.totalorder %s180, %s181
      %p190 = scmp.eq.s32.totalorder %s23, 0
      %p191 = por %p189, %p190
      %p192 = scmp.ne.s32.totalorder %s180, %s181
      %p193 = scmp.eq.s32.totalorder %s24, 1
      %p194 = por %p192, %p193
      %p196 = scmp.ne.s32.totalorder %s181, %s195
      %p197 = scmp.eq.s32.totalorder %s24, 0
      %p198 = por %p196, %p197
      %s200 = sadd.s32 %s199, 1
      %p203 = scmp.eq.s32.totalorder %s18, 1
      %p204 = scmp.ne.s32.totalorder %s199, %s201
      %p205 = scmp.eq.s32.totalorder %s18, 0
      %p206 = por %p204, %p205
      %p207 = scmp.ne.s32.totalorder %s199, %s201
      %p208 = scmp.eq.s32.totalorder %s23, 1
      %p209 = por %p207, %p208
      %p210 = scmp.ne.s32.totalorder %s201, %s202
      %p211 = scmp.eq.s32.totalorder %s23, 0
      %p212 = por %p210, %p211
      %p213 = scmp.ne.s32.totalorder %s201, %s202
      %p214 = scmp.eq.s32.totalorder %s24, 1
      %p215 = por %p213, %p214
      %p217 = scmp.ne.s32.totalorder %s202, %s216
      %p218 = scmp.eq.s32.totalorder %s24, 0
      %p219 = por %p217, %p218
      %s220 = ssub.s32 %s18, %s25
      %p221 = scmp.eq.s32.totalorder %s220, 0
      %s223 = sadd.s32 %s222, 1
      %s224 = scalar_select %p221, %s222, %s223
      %p227 = pneg %p221
      %p228 = scmp.eq.s32.totalorder %s18, 1
      %p229 = por %p227, %p228
      %p230 = scmp.ne.s32.totalorder %s222, %s225
      %p231 = scmp.eq.s32.totalorder %s18, 0
      %p232 = por %p230, %p231
      %p233 = scmp.ne.s32.totalorder %s222, %s225
      %p234 = scmp.eq.s32.totalorder %s23, 1
      %p235 = por %p233, %p234
      %p236 = scmp.ne.s32.totalorder %s225, %s226
      %p237 = scmp.eq.s32.totalorder %s23, 0
      %p238 = por %p236, %p237
      %p239 = scmp.ne.s32.totalorder %s225, %s226
      %p240 = scmp.eq.s32.totalorder %s24, 1
      %p241 = por %p239, %p240
      %p243 = scmp.ne.s32.totalorder %s226, %s242
      %p244 = scmp.eq.s32.totalorder %s24, 0
      %p245 = por %p243, %p244
      %s247 = sadd.s32 %s246, 1
      %p250 = scmp.eq.s32.totalorder %s18, 1
      %p251 = scmp.ne.s32.totalorder %s246, %s248
      %p252 = scmp.eq.s32.totalorder %s18, 0
      %p253 = por %p251, %p252
      %p254 = scmp.ne.s32.totalorder %s246, %s248
      %p255 = scmp.eq.s32.totalorder %s23, 1
      %p256 = por %p254, %p255
      %p257 = scmp.ne.s32.totalorder %s248, %s249
      %p258 = scmp.eq.s32.totalorder %s23, 0
      %p259 = por %p257, %p258
      %p260 = scmp.ne.s32.totalorder %s248, %s249
      %p261 = scmp.eq.s32.totalorder %s24, 1
      %p262 = por %p260, %p261
      %p264 = scmp.ne.s32.totalorder %s249, %s263
      %p265 = scmp.eq.s32.totalorder %s24, 0
      %p266 = por %p264, %p265
      %s268 = sadd.s32 %s267, 1
      %p271 = scmp.eq.s32.totalorder %s18, 1
      %p272 = scmp.ne.s32.totalorder %s267, %s269
      %p273 = scmp.eq.s32.totalorder %s18, 0
      %p274 = por %p272, %p273
      %p275 = scmp.ne.s32.totalorder %s267, %s269
      %p276 = scmp.eq.s32.totalorder %s23, 1
      %p277 = por %p275, %p276
      %p278 = scmp.ne.s32.totalorder %s269, %s270
      %p279 = scmp.eq.s32.totalorder %s23, 0
      %p280 = por %p278, %p279
      %p281 = scmp.ne.s32.totalorder %s269, %s270
      %p282 = scmp.eq.s32.totalorder %s24, 1
      %p283 = por %p281, %p282
      %p285 = scmp.ne.s32.totalorder %s270, %s284
      %p286 = scmp.eq.s32.totalorder %s24, 0
      %p287 = por %p285, %p286
      %p288 = scmp.le.s32.totalorder 1, %s18
      %p289 = scmp.lt.s32.totalorder %s18, 3
      %p290 = pnand %p288, %p289
      %p291 = pneg %p290
      // Predicated region
      $region9: #{rnn_forward.1} parent=5 // pred_check
        _
      $region10: #{rnn_forward.1} parent=5 // pred_check_branch
        %293 = sbr.rel (%p290) target = $region12
      $region11: #{rnn_forward.1} parent=5 // pred_region
        %s294 = ssub.s32 %s18, 1
        // Predicated region
        $region13: #{rnn_forward.1} parent=11 // pred_check
          %p295 = pneg %p65
        $region14: #{rnn_forward.1} parent=11 // pred_check_branch
          %297 = sbr.rel (%p295) target = $region16
        $region15: #{rnn_forward.1} parent=11 // pred_region
          _
        $region16: #{rnn_forward.1} parent=11 // pred_fallthru
          _
        // Predicated region
        $region17: #{rnn_forward.1} parent=11 // pred_check
          %p298 = pneg %p86
        $region18: #{rnn_forward.1} parent=11 // pred_check_branch
          %300 = sbr.rel (%p298) target = $region20
        $region19: #{rnn_forward.1} parent=11 // pred_region
          _
        $region20: #{rnn_forward.1} parent=11 // pred_fallthru
          _
        // Predicated region
        $region21: #{rnn_forward.1} parent=11 // pred_check
          %p301 = pneg %p107
        $region22: #{rnn_forward.1} parent=11 // pred_check_branch
          %303 = sbr.rel (%p301) target = $region24
        $region23: #{rnn_forward.1} parent=11 // pred_region
          _
        $region24: #{rnn_forward.1} parent=11 // pred_fallthru
          _
        // Predicated region
        $region25: #{rnn_forward.1} parent=11 // pred_check
          %p304 = pneg %p128
        $region26: #{rnn_forward.1} parent=11 // pred_check_branch
          %306 = sbr.rel (%p304) target = $region28
        $region27: #{rnn_forward.1} parent=11 // pred_region
          _
        $region28: #{rnn_forward.1} parent=11 // pred_fallthru
          _
        // Predicated region
        $region29: #{rnn_forward.1} parent=11 // pred_check
          %p307 = pneg %p149
        $region30: #{rnn_forward.1} parent=11 // pred_check_branch
          %309 = sbr.rel (%p307) target = $region32
        $region31: #{rnn_forward.1} parent=11 // pred_region
          _
        $region32: #{rnn_forward.1} parent=11 // pred_fallthru
          _
        // Predicated region
        $region33: #{rnn_forward.1} parent=11 // pred_check
          %p310 = pneg %p170
        $region34: #{rnn_forward.1} parent=11 // pred_check_branch
          %312 = sbr.rel (%p310) target = $region36
        $region35: #{rnn_forward.1} parent=11 // pred_region
          _
        $region36: #{rnn_forward.1} parent=11 // pred_fallthru
          _
        // Predicated region
        $region37: #{rnn_forward.1} parent=11 // pred_check
          %p313 = pneg %p191
        $region38: #{rnn_forward.1} parent=11 // pred_check_branch
          %315 = sbr.rel (%p313) target = $region40
        $region39: #{rnn_forward.1} parent=11 // pred_region
          _
        $region40: #{rnn_forward.1} parent=11 // pred_fallthru
          _
        // Predicated region
        $region41: #{rnn_forward.1} parent=11 // pred_check
          %p316 = pneg %p212
        $region42: #{rnn_forward.1} parent=11 // pred_check_branch
          %318 = sbr.rel (%p316) target = $region44
        $region43: #{rnn_forward.1} parent=11 // pred_region
          _
        $region44: #{rnn_forward.1} parent=11 // pred_fallthru
          _
      $region12: #{rnn_forward.1} parent=5 // pred_fallthru
        _
      %p319 = scmp.lt.s32.totalorder %s18, 2
      // Predicated region
      $region45: #{rnn_forward.1} parent=5 // pred_check
        %p320 = pneg %p319
      $region46: #{rnn_forward.1} parent=5 // pred_check_branch
        %322 = sbr.rel (%p320) target = $region48
      $region47: #{rnn_forward.1} parent=5 // pred_region
        // Predicated region
        $region49: #{rnn_forward.1} parent=47 // pred_check
          %p323 = pneg %p38
        $region50: #{rnn_forward.1} parent=47 // pred_check_branch
          %325 = sbr.rel (%p323) target = $region52
        $region51: #{rnn_forward.1} parent=47 // pred_region
          %s326 = smul.u32 8, %s18
          %p327 = scmp.lt.s32.totalorder %s326, 15
          %s328 = scalar_select %p327, %s326, 15
          %s329 = smul.addr %s328, 8
          %s330 = scalar_lea.vmem %s0, %s329
          %s331 = smul.u32 8, %s18
        $region52: #{rnn_forward.1} parent=47 // pred_fallthru
          _
      $region48: #{rnn_forward.1} parent=5 // pred_fallthru
        _
      %p332 = scmp.le.s32.totalorder 1, %s18
      %p333 = scmp.lt.s32.totalorder %s18, 3
      %p334 = pnand %p332, %p333
      %p335 = pneg %p334
      // Predicated region
      $region53: #{rnn_forward.1} parent=5 // pred_check
        _
      $region54: #{rnn_forward.1} parent=5 // pred_check_branch
        %337 = sbr.rel (%p334) target = $region56
      $region55: #{rnn_forward.1} parent=5 // pred_region
        %s338 = ssub.s32 %s18, 1
        %s339 = smul.u32 8, %s23
        %p340 = scmp.lt.s32.totalorder %s339, 15
        %s341 = scalar_select %p340, %s339, 15
        %s342 = smul.addr %s341, 8
        %s343 = scalar_lea.vmem %s0, %s342
        %p344 = pneg %p44
        %p345 = pneg %p41
        %p346 = pneg %p65
        %p347 = pneg %p62
        %p348 = pneg %p86
        %p349 = pneg %p83
        %p350 = pneg %p107
        %p351 = pneg %p104
        %p352 = pneg %p128
        %p353 = pneg %p125
        %p354 = pneg %p149
        %p355 = pneg %p146
        %p356 = pneg %p170
        %p357 = pneg %p167
        %p358 = pneg %p191
        %p359 = pneg %p188
        %p360 = pneg %p212
        %p361 = pneg %p209
        %p362 = pneg %p238
        %p363 = pneg %p235
        %s364 = sand.u32 %s225, 1
        %s365 = sand.u32 %s225, 1
        %s366 = smul.addr %s365, 64
        %s367 = scalar_lea.vmem [#allocation7], %s366
        %p368 = pneg %p259
        %p369 = pneg %p256
        %p370 = pneg %p280
        %p371 = pneg %p277
        %s372 = smul.u32 8, %s23
        %p373 = scmp.lt.s32.totalorder %s372, 15
        %s374 = scalar_select %p373, %s372, 15
        %s375 = smul.addr %s374, 8
        %s376 = scalar_lea.vmem %s0, %s375
        %s377 = smul.u32 8, %s23
        %s378 = smul.u32 %s23, 8
        %p379 = scmp.eq.s32.totalorder %s23, 0
        // Predicated region
        $region57: #{rnn_forward.1} parent=55 // pred_check
          %p380 = pneg %p379
        $region58: #{rnn_forward.1} parent=55 // pred_check_branch
          %382 = sbr.rel (%p380) target = $region60
        $region59: #{rnn_forward.1} parent=55 // pred_region
          %v383 = vld [vmem:[%s5] sm:$0xff]
          %v384 = vld [vmem:[%s5 + $0x8] sm:$0xff]
          %385 = vst [vmem:[#allocation5] sm:$0xff] %v383
          %386 = vst [vmem:[#allocation5 + $0x8] sm:$0xff] %v384
          %v387 = vld [vmem:[%s6] sm:$0xff]
          %v388 = vld [vmem:[%s6 + $0x8] sm:$0xff]
          %389 = vst [vmem:[#allocation6] sm:$0xff] %v387
          %390 = vst [vmem:[#allocation6 + $0x8] sm:$0xff] %v388
        $region60: #{rnn_forward.1} parent=55 // pred_fallthru
          _
        %v391 = vld [vmem:[%s376] sm:$0xff]
        %v392 = vld [vmem:[%s376 + $0x8] sm:$0xff]
        %v393 = vld [vmem:[%s376 + $0x10] sm:$0xff]
        %v394 = vld [vmem:[%s376 + $0x18] sm:$0xff]
        %v395 = vld [vmem:[%s376 + $0x20] sm:$0xff]
        %v396 = vld [vmem:[%s376 + $0x28] sm:$0xff]
        %v397 = vld [vmem:[%s376 + $0x30] sm:$0xff]
        %v398 = vld [vmem:[%s376 + $0x38] sm:$0xff]
        %v399 = vld [vmem:[%s1] sm:$0xff]
        %v400 = vld [vmem:[%s1 + $0x8] sm:$0xff]
        %v401 = vld [vmem:[%s1 + $0x10] sm:$0xff]
        %v402 = vld [vmem:[%s1 + $0x18] sm:$0xff]
        %v403 = vld [vmem:[%s1 + $0x20] sm:$0xff]
        %v404 = vld [vmem:[%s1 + $0x28] sm:$0xff]
        %v405 = vld [vmem:[%s1 + $0x30] sm:$0xff]
        %v406 = vld [vmem:[%s1 + $0x38] sm:$0xff]
        %v407 = vld [vmem:[%s1 + $0x40] sm:$0xff]
        %v408 = vld [vmem:[%s1 + $0x48] sm:$0xff]
        %v409 = vld [vmem:[%s1 + $0x50] sm:$0xff]
        %v410 = vld [vmem:[%s1 + $0x58] sm:$0xff]
        %v411 = vld [vmem:[%s1 + $0x60] sm:$0xff]
        %v412 = vld [vmem:[%s1 + $0x68] sm:$0xff]
        %v413 = vld [vmem:[%s1 + $0x70] sm:$0xff]
        %v414 = vld [vmem:[%s1 + $0x78] sm:$0xff]
        %v415 = vld [vmem:[%s1 + $0x80] sm:$0xff]
        %v416 = vld [vmem:[%s1 + $0x88] sm:$0xff]
        %v417 = vld [vmem:[%s1 + $0x90] sm:$0xff]
        %v418 = vld [vmem:[%s1 + $0x98] sm:$0xff]
        %v419 = vld [vmem:[%s1 + $0xa0] sm:$0xff]
        %v420 = vld [vmem:[%s1 + $0xa8] sm:$0xff]
        %v421 = vld [vmem:[%s1 + $0xb0] sm:$0xff]
        %v422 = vld [vmem:[%s1 + $0xb8] sm:$0xff]
        %v423 = vld [vmem:[%s1 + $0xc0] sm:$0xff]
        %v424 = vld [vmem:[%s1 + $0xc8] sm:$0xff]
        %v425 = vld [vmem:[%s1 + $0xd0] sm:$0xff]
        %v426 = vld [vmem:[%s1 + $0xd8] sm:$0xff]
        %v427 = vld [vmem:[%s1 + $0xe0] sm:$0xff]
        %v428 = vld [vmem:[%s1 + $0xe8] sm:$0xff]
        %v429 = vld [vmem:[%s1 + $0xf0] sm:$0xff]
        %v430 = vld [vmem:[%s1 + $0xf8] sm:$0xff]
        %v431 = vld [vmem:[%s1 + $0x100] sm:$0xff]
        %v432 = vld [vmem:[%s1 + $0x108] sm:$0xff]
        %v433 = vld [vmem:[%s1 + $0x110] sm:$0xff]
        %v434 = vld [vmem:[%s1 + $0x118] sm:$0xff]
        %v435 = vld [vmem:[%s1 + $0x120] sm:$0xff]
        %v436 = vld [vmem:[%s1 + $0x128] sm:$0xff]
        %v437 = vld [vmem:[%s1 + $0x130] sm:$0xff]
        %v438 = vld [vmem:[%s1 + $0x138] sm:$0xff]
        %v439 = vld [vmem:[%s1 + $0x140] sm:$0xff]
        %v440 = vld [vmem:[%s1 + $0x148] sm:$0xff]
        %v441 = vld [vmem:[%s1 + $0x150] sm:$0xff]
        %v442 = vld [vmem:[%s1 + $0x158] sm:$0xff]
        %v443 = vld [vmem:[%s1 + $0x160] sm:$0xff]
        %v444 = vld [vmem:[%s1 + $0x168] sm:$0xff]
        %v445 = vld [vmem:[%s1 + $0x170] sm:$0xff]
        %v446 = vld [vmem:[%s1 + $0x178] sm:$0xff]
        %v447 = vld [vmem:[%s1 + $0x180] sm:$0xff]
        %v448 = vld [vmem:[%s1 + $0x188] sm:$0xff]
        %v449 = vld [vmem:[%s1 + $0x190] sm:$0xff]
        %v450 = vld [vmem:[%s1 + $0x198] sm:$0xff]
        %v451 = vld [vmem:[%s1 + $0x1a0] sm:$0xff]
        %v452 = vld [vmem:[%s1 + $0x1a8] sm:$0xff]
        %v453 = vld [vmem:[%s1 + $0x1b0] sm:$0xff]
        %v454 = vld [vmem:[%s1 + $0x1b8] sm:$0xff]
        %v455 = vld [vmem:[%s1 + $0x1c0] sm:$0xff]
        %v456 = vld [vmem:[%s1 + $0x1c8] sm:$0xff]
        %v457 = vld [vmem:[%s1 + $0x1d0] sm:$0xff]
        %v458 = vld [vmem:[%s1 + $0x1d8] sm:$0xff]
        %v459 = vld [vmem:[%s1 + $0x1e0] sm:$0xff]
        %v460 = vld [vmem:[%s1 + $0x1e8] sm:$0xff]
        %v461 = vld [vmem:[%s1 + $0x1f0] sm:$0xff]
        %v462 = vld [vmem:[%s1 + $0x1f8] sm:$0xff]
        %v463 = vld [vmem:[%s4] sm:$0xf]
        %v465 = vperm.slane %v463, 0
        %v466 = vperm.slane %v463, 1
        %v467 = vperm.slane %v463, 2
        %v468 = vperm.slane %v463, 3
        %473 = vmatpush.msra.mxu0 %v459
        %474 = vmatpush.msra.mxu0 %v455
        %475 = vmatpush.msra.mxu0 %v451
        %476 = vmatpush.msra.mxu0 %v447
        %477 = vmatpush.msra.mxu0 %v443
        %478 = vmatpush.msra.mxu0 %v439
        %479 = vmatpush.msra.mxu0 %v435
        %480 = vmatpush.msra.mxu0 %v431
        %481 = vmatpush.msra.mxu0 %v427
        %482 = vmatpush.msra.mxu0 %v423
        %483 = vmatpush.msra.mxu0 %v419
        %484 = vmatpush.msra.mxu0 %v415
        %485 = vmatpush.msra.mxu0 %v411
        %486 = vmatpush.msra.mxu0 %v407
        %487 = vmatpush.msra.mxu0 %v403
        %488 = vmatpush.msra.mxu0 %v399
        %489 = vmatmul.f32.gmra.mxu0 %v391
        %v490 = vpop.f32.mrf.mxu0
        %v491 = vadd.f32 %v465, %v490
        %492 = vmatmul.f32.gmra.mxu0 %v392
        %v493 = vpop.f32.mrf.mxu0
        %v494 = vadd.f32 %v465, %v493
        %495 = vmatmul.f32.gmra.mxu0 %v393
        %v496 = vpop.f32.mrf.mxu0
        %v497 = vadd.f32 %v465, %v496
        %498 = vmatmul.f32.gmra.mxu0 %v394
        %v499 = vpop.f32.mrf.mxu0
        %v500 = vadd.f32 %v465, %v499
        %501 = vmatmul.f32.gmra.mxu0 %v395
        %v502 = vpop.f32.mrf.mxu0
        %v503 = vadd.f32 %v465, %v502
        %504 = vmatmul.f32.gmra.mxu0 %v396
        %v505 = vpop.f32.mrf.mxu0
        %v506 = vadd.f32 %v465, %v505
        %507 = vmatmul.f32.gmra.mxu0 %v397
        %v508 = vpop.f32.mrf.mxu0
        %v509 = vadd.f32 %v465, %v508
        %510 = vmatmul.f32.gmra.mxu0 %v398
        %v511 = vpop.f32.mrf.mxu0
        %v512 = vadd.f32 %v465, %v511
        %513 = vdwg.mxu0
        %514 = vmatpush.msra.mxu0 %v460
        %515 = vmatpush.msra.mxu0 %v456
        %516 = vmatpush.msra.mxu0 %v452
        %517 = vmatpush.msra.mxu0 %v448
        %518 = vmatpush.msra.mxu0 %v444
        %519 = vmatpush.msra.mxu0 %v440
        %520 = vmatpush.msra.mxu0 %v436
        %521 = vmatpush.msra.mxu0 %v432
        %522 = vmatpush.msra.mxu0 %v428
        %523 = vmatpush.msra.mxu0 %v424
        %524 = vmatpush.msra.mxu0 %v420
        %525 = vmatpush.msra.mxu0 %v416
        %526 = vmatpush.msra.mxu0 %v412
        %527 = vmatpush.msra.mxu0 %v408
        %528 = vmatpush.msra.mxu0 %v404
        %529 = vmatpush.msra.mxu0 %v400
        %530 = vmatmul.f32.gmra.mxu0 %v391
        %v531 = vpop.f32.mrf.mxu0
        %v532 = vadd.f32 %v466, %v531
        %533 = vmatmul.f32.gmra.mxu0 %v392
        %v534 = vpop.f32.mrf.mxu0
        %v535 = vadd.f32 %v466, %v534
        %536 = vmatmul.f32.gmra.mxu0 %v393
        %v537 = vpop.f32.mrf.mxu0
        %v538 = vadd.f32 %v466, %v537
        %539 = vmatmul.f32.gmra.mxu0 %v394
        %v540 = vpop.f32.mrf.mxu0
        %v541 = vadd.f32 %v466, %v540
        %542 = vmatmul.f32.gmra.mxu0 %v395
        %v543 = vpop.f32.mrf.mxu0
        %v544 = vadd.f32 %v466, %v543
        %545 = vmatmul.f32.gmra.mxu0 %v396
        %v546 = vpop.f32.mrf.mxu0
        %v547 = vadd.f32 %v466, %v546
        %548 = vmatmul.f32.gmra.mxu0 %v397
        %v549 = vpop.f32.mrf.mxu0
        %v550 = vadd.f32 %v466, %v549
        %551 = vmatmul.f32.gmra.mxu0 %v398
        %v552 = vpop.f32.mrf.mxu0
        %v553 = vadd.f32 %v466, %v552
        %554 = vdwg.mxu0
        %555 = vmatpush.msra.mxu0 %v461
        %556 = vmatpush.msra.mxu0 %v457
        %557 = vmatpush.msra.mxu0 %v453
        %558 = vmatpush.msra.mxu0 %v449
        %559 = vmatpush.msra.mxu0 %v445
        %560 = vmatpush.msra.mxu0 %v441
        %561 = vmatpush.msra.mxu0 %v437
        %562 = vmatpush.msra.mxu0 %v433
        %563 = vmatpush.msra.mxu0 %v429
        %564 = vmatpush.msra.mxu0 %v425
        %565 = vmatpush.msra.mxu0 %v421
        %566 = vmatpush.msra.mxu0 %v417
        %567 = vmatpush.msra.mxu0 %v413
        %568 = vmatpush.msra.mxu0 %v409
        %569 = vmatpush.msra.mxu0 %v405
        %570 = vmatpush.msra.mxu0 %v401
        %571 = vmatmul.f32.gmra.mxu0 %v391
        %v572 = vpop.f32.mrf.mxu0
        %v573 = vadd.f32 %v467, %v572
        %574 = vmatmul.f32.gmra.mxu0 %v392
        %v575 = vpop.f32.mrf.mxu0
        %v576 = vadd.f32 %v467, %v575
        %577 = vmatmul.f32.gmra.mxu0 %v393
        %v578 = vpop.f32.mrf.mxu0
        %v579 = vadd.f32 %v467, %v578
        %580 = vmatmul.f32.gmra.mxu0 %v394
        %v581 = vpop.f32.mrf.mxu0
        %v582 = vadd.f32 %v467, %v581
        %583 = vmatmul.f32.gmra.mxu0 %v395
        %v584 = vpop.f32.mrf.mxu0
        %v585 = vadd.f32 %v467, %v584
        %586 = vmatmul.f32.gmra.mxu0 %v396
        %v587 = vpop.f32.mrf.mxu0
        %v588 = vadd.f32 %v467, %v587
        %589 = vmatmul.f32.gmra.mxu0 %v397
        %v590 = vpop.f32.mrf.mxu0
        %v591 = vadd.f32 %v467, %v590
        %592 = vmatmul.f32.gmra.mxu0 %v398
        %v593 = vpop.f32.mrf.mxu0
        %v594 = vadd.f32 %v467, %v593
        %595 = vdwg.mxu0
        %596 = vmatpush.msra.mxu0 %v462
        %597 = vmatpush.msra.mxu0 %v458
        %598 = vmatpush.msra.mxu0 %v454
        %599 = vmatpush.msra.mxu0 %v450
        %600 = vmatpush.msra.mxu0 %v446
        %601 = vmatpush.msra.mxu0 %v442
        %602 = vmatpush.msra.mxu0 %v438
        %603 = vmatpush.msra.mxu0 %v434
        %604 = vmatpush.msra.mxu0 %v430
        %605 = vmatpush.msra.mxu0 %v426
        %606 = vmatpush.msra.mxu0 %v422
        %607 = vmatpush.msra.mxu0 %v418
        %608 = vmatpush.msra.mxu0 %v414
        %609 = vmatpush.msra.mxu0 %v410
        %610 = vmatpush.msra.mxu0 %v406
        %611 = vmatpush.msra.mxu0 %v402
        %612 = vmatmul.f32.gmra.mxu0 %v391
        %v613 = vpop.f32.mrf.mxu0
        %v614 = vadd.f32 %v468, %v613
        %615 = vmatmul.f32.gmra.mxu0 %v392
        %v616 = vpop.f32.mrf.mxu0
        %v617 = vadd.f32 %v468, %v616
        %618 = vmatmul.f32.gmra.mxu0 %v393
        %v619 = vpop.f32.mrf.mxu0
        %v620 = vadd.f32 %v468, %v619
        %621 = vmatmul.f32.gmra.mxu0 %v394
        %v622 = vpop.f32.mrf.mxu0
        %v623 = vadd.f32 %v468, %v622
        %624 = vmatmul.f32.gmra.mxu0 %v395
        %v625 = vpop.f32.mrf.mxu0
        %v626 = vadd.f32 %v468, %v625
        %627 = vmatmul.f32.gmra.mxu0 %v396
        %v628 = vpop.f32.mrf.mxu0
        %v629 = vadd.f32 %v468, %v628
        %630 = vmatmul.f32.gmra.mxu0 %v397
        %v631 = vpop.f32.mrf.mxu0
        %v632 = vadd.f32 %v468, %v631
        %633 = vmatmul.f32.gmra.mxu0 %v398
        %v634 = vpop.f32.mrf.mxu0
        %v635 = vadd.f32 %v468, %v634
        %636 = vdwg.mxu0
        %637 = vst [vmem:[#allocation4] sm:$0xff] %v491
        %638 = vst [vmem:[#allocation4 + $0x8] sm:$0xff] %v532
        %639 = vst [vmem:[#allocation4 + $0x10] sm:$0xff] %v573
        %640 = vst [vmem:[#allocation4 + $0x18] sm:$0xff] %v614
        %641 = vst [vmem:[#allocation4 + $0x20] sm:$0xff] %v494
        %642 = vst [vmem:[#allocation4 + $0x28] sm:$0xff] %v535
        %643 = vst [vmem:[#allocation4 + $0x30] sm:$0xff] %v576
        %644 = vst [vmem:[#allocation4 + $0x38] sm:$0xff] %v617
        %645 = vst [vmem:[#allocation4 + $0x40] sm:$0xff] %v497
        %646 = vst [vmem:[#allocation4 + $0x48] sm:$0xff] %v538
        %647 = vst [vmem:[#allocation4 + $0x50] sm:$0xff] %v579
        %648 = vst [vmem:[#allocation4 + $0x58] sm:$0xff] %v620
        %649 = vst [vmem:[#allocation4 + $0x60] sm:$0xff] %v500
        %650 = vst [vmem:[#allocation4 + $0x68] sm:$0xff] %v541
        %651 = vst [vmem:[#allocation4 + $0x70] sm:$0xff] %v582
        %652 = vst [vmem:[#allocation4 + $0x78] sm:$0xff] %v623
        %653 = vst [vmem:[#allocation4 + $0x80] sm:$0xff] %v503
        %654 = vst [vmem:[#allocation4 + $0x88] sm:$0xff] %v544
        %655 = vst [vmem:[#allocation4 + $0x90] sm:$0xff] %v585
        %656 = vst [vmem:[#allocation4 + $0x98] sm:$0xff] %v626
        %657 = vst [vmem:[#allocation4 + $0xa0] sm:$0xff] %v506
        %658 = vst [vmem:[#allocation4 + $0xa8] sm:$0xff] %v547
        %659 = vst [vmem:[#allocation4 + $0xb0] sm:$0xff] %v588
        %660 = vst [vmem:[#allocation4 + $0xb8] sm:$0xff] %v629
        %661 = vst [vmem:[#allocation4 + $0xc0] sm:$0xff] %v509
        %662 = vst [vmem:[#allocation4 + $0xc8] sm:$0xff] %v550
        %663 = vst [vmem:[#allocation4 + $0xd0] sm:$0xff] %v591
        %664 = vst [vmem:[#allocation4 + $0xd8] sm:$0xff] %v632
        %665 = vst [vmem:[#allocation4 + $0xe0] sm:$0xff] %v512
        %666 = vst [vmem:[#allocation4 + $0xe8] sm:$0xff] %v553
        %667 = vst [vmem:[#allocation4 + $0xf0] sm:$0xff] %v594
        %668 = vst [vmem:[#allocation4 + $0xf8] sm:$0xff] %v635
        %v669 = vld [vmem:[%s3] sm:$0xff]
        %v670 = vld [vmem:[%s3 + $0x8] sm:$0xff]
        %v671 = vld [vmem:[%s3 + $0x10] sm:$0xff]
        %v672 = vld [vmem:[%s3 + $0x18] sm:$0xff]
        %v673 = vld [vmem:[%s3 + $0x20] sm:$0xff]
        %v674 = vld [vmem:[%s3 + $0x28] sm:$0xff]
        %v675 = vld [vmem:[%s3 + $0x30] sm:$0xff]
        %v676 = vld [vmem:[%s3 + $0x38] sm:$0xff]
        %v677 = vld [vmem:[%s3 + $0x40] sm:$0xff]
        %v678 = vld [vmem:[%s3 + $0x48] sm:$0xff]
        %v679 = vld [vmem:[%s3 + $0x50] sm:$0xff]
        %v680 = vld [vmem:[%s3 + $0x58] sm:$0xff]
        %v681 = vld [vmem:[%s3 + $0x60] sm:$0xff]
        %v682 = vld [vmem:[%s3 + $0x68] sm:$0xff]
        %v683 = vld [vmem:[%s3 + $0x70] sm:$0xff]
        %v684 = vld [vmem:[%s3 + $0x78] sm:$0xff]
        %v685 = vld [vmem:[%s3 + $0x80] sm:$0xff]
        %v686 = vld [vmem:[%s3 + $0x88] sm:$0xff]
        %v687 = vld [vmem:[%s3 + $0x90] sm:$0xff]
        %v688 = vld [vmem:[%s3 + $0x98] sm:$0xff]
        %v689 = vld [vmem:[%s3 + $0xa0] sm:$0xff]
        %v690 = vld [vmem:[%s3 + $0xa8] sm:$0xff]
        %v691 = vld [vmem:[%s3 + $0xb0] sm:$0xff]
        %v692 = vld [vmem:[%s3 + $0xb8] sm:$0xff]
        %v693 = vld [vmem:[%s3 + $0xc0] sm:$0xff]
        %v694 = vld [vmem:[%s3 + $0xc8] sm:$0xff]
        %v695 = vld [vmem:[%s3 + $0xd0] sm:$0xff]
        %v696 = vld [vmem:[%s3 + $0xd8] sm:$0xff]
        %v697 = vld [vmem:[%s3 + $0xe0] sm:$0xff]
        %v698 = vld [vmem:[%s3 + $0xe8] sm:$0xff]
        %v699 = vld [vmem:[%s3 + $0xf0] sm:$0xff]
        %v700 = vld [vmem:[%s3 + $0xf8] sm:$0xff]
        %v701 = vld [vmem:[%s3 + $0x100] sm:$0xff]
        %v702 = vld [vmem:[%s3 + $0x108] sm:$0xff]
        %v703 = vld [vmem:[%s3 + $0x110] sm:$0xff]
        %v704 = vld [vmem:[%s3 + $0x118] sm:$0xff]
        %v705 = vld [vmem:[%s3 + $0x120] sm:$0xff]
        %v706 = vld [vmem:[%s3 + $0x128] sm:$0xff]
        %v707 = vld [vmem:[%s3 + $0x130] sm:$0xff]
        %v708 = vld [vmem:[%s3 + $0x138] sm:$0xff]
        %v709 = vld [vmem:[%s3 + $0x140] sm:$0xff]
        %v710 = vld [vmem:[%s3 + $0x148] sm:$0xff]
        %v711 = vld [vmem:[%s3 + $0x150] sm:$0xff]
        %v712 = vld [vmem:[%s3 + $0x158] sm:$0xff]
        %v713 = vld [vmem:[%s3 + $0x160] sm:$0xff]
        %v714 = vld [vmem:[%s3 + $0x168] sm:$0xff]
        %v715 = vld [vmem:[%s3 + $0x170] sm:$0xff]
        %v716 = vld [vmem:[%s3 + $0x178] sm:$0xff]
        %v717 = vld [vmem:[%s3 + $0x180] sm:$0xff]
        %v718 = vld [vmem:[%s3 + $0x188] sm:$0xff]
        %v719 = vld [vmem:[%s3 + $0x190] sm:$0xff]
        %v720 = vld [vmem:[%s3 + $0x198] sm:$0xff]
        %v721 = vld [vmem:[%s3 + $0x1a0] sm:$0xff]
        %v722 = vld [vmem:[%s3 + $0x1a8] sm:$0xff]
        %v723 = vld [vmem:[%s3 + $0x1b0] sm:$0xff]
        %v724 = vld [vmem:[%s3 + $0x1b8] sm:$0xff]
        %v725 = vld [vmem:[%s3 + $0x1c0] sm:$0xff]
        %v726 = vld [vmem:[%s3 + $0x1c8] sm:$0xff]
        %v727 = vld [vmem:[%s3 + $0x1d0] sm:$0xff]
        %v728 = vld [vmem:[%s3 + $0x1d8] sm:$0xff]
        %v729 = vld [vmem:[%s3 + $0x1e0] sm:$0xff]
        %v730 = vld [vmem:[%s3 + $0x1e8] sm:$0xff]
        %v731 = vld [vmem:[%s3 + $0x1f0] sm:$0xff]
        %v732 = vld [vmem:[%s3 + $0x1f8] sm:$0xff]
        %v733 = vld [vmem:[#allocation5] sm:$0xff]
        %v734 = vld [vmem:[#allocation6] sm:$0xff]
        %s735 = smul.u32 0, 4
        %s736 = smul.addr %s735, 8
        %s737 = scalar_lea.vmem [#allocation4], %s736
        %v738 = vld [vmem:[%s737] sm:$0xff]
        %v739 = vld [vmem:[%s737 + $0x8] sm:$0xff]
        %v740 = vld [vmem:[%s737 + $0x10] sm:$0xff]
        %v741 = vld [vmem:[%s737 + $0x18] sm:$0xff]
        %742 = vmatpush.msra.mxu0 %v729
        %743 = vmatpush.msra.mxu0 %v725
        %744 = vmatpush.msra.mxu0 %v721
        %745 = vmatpush.msra.mxu0 %v717
        %746 = vmatpush.msra.mxu0 %v713
        %747 = vmatpush.msra.mxu0 %v709
        %748 = vmatpush.msra.mxu0 %v705
        %749 = vmatpush.msra.mxu0 %v701
        %750 = vmatpush.msra.mxu0 %v697
        %751 = vmatpush.msra.mxu0 %v693
        %752 = vmatpush.msra.mxu0 %v689
        %753 = vmatpush.msra.mxu0 %v685
        %754 = vmatpush.msra.mxu0 %v681
        %755 = vmatpush.msra.mxu0 %v677
        %756 = vmatpush.msra.mxu0 %v673
        %757 = vmatpush.msra.mxu0 %v669
        %758 = vmatmul.f32.gmra.mxu0 %v733
        %v759 = vpop.f32.mrf.mxu0
        %v760 = vadd.f32 0.0, %v759
        %761 = vdwg.mxu0
        %762 = vmatpush.msra.mxu0 %v730
        %763 = vmatpush.msra.mxu0 %v726
        %764 = vmatpush.msra.mxu0 %v722
        %765 = vmatpush.msra.mxu0 %v718
        %766 = vmatpush.msra.mxu0 %v714
        %767 = vmatpush.msra.mxu0 %v710
        %768 = vmatpush.msra.mxu0 %v706
        %769 = vmatpush.msra.mxu0 %v702
        %770 = vmatpush.msra.mxu0 %v698
        %771 = vmatpush.msra.mxu0 %v694
        %772 = vmatpush.msra.mxu0 %v690
        %773 = vmatpush.msra.mxu0 %v686
        %774 = vmatpush.msra.mxu0 %v682
        %775 = vmatpush.msra.mxu0 %v678
        %776 = vmatpush.msra.mxu0 %v674
        %777 = vmatpush.msra.mxu0 %v670
        %778 = vmatmul.f32.gmra.mxu0 %v733
        %v779 = vpop.f32.mrf.mxu0
        %v780 = vadd.f32 0.0, %v779
        %781 = vdwg.mxu0
        %782 = vmatpush.msra.mxu0 %v731
        %783 = vmatpush.msra.mxu0 %v727
        %784 = vmatpush.msra.mxu0 %v723
        %785 = vmatpush.msra.mxu0 %v719
        %786 = vmatpush.msra.mxu0 %v715
        %787 = vmatpush.msra.mxu0 %v711
        %788 = vmatpush.msra.mxu0 %v707
        %789 = vmatpush.msra.mxu0 %v703
        %790 = vmatpush.msra.mxu0 %v699
        %791 = vmatpush.msra.mxu0 %v695
        %792 = vmatpush.msra.mxu0 %v691
        %793 = vmatpush.msra.mxu0 %v687
        %794 = vmatpush.msra.mxu0 %v683
        %795 = vmatpush.msra.mxu0 %v679
        %796 = vmatpush.msra.mxu0 %v675
        %797 = vmatpush.msra.mxu0 %v671
        %798 = vmatmul.f32.gmra.mxu0 %v733
        %v799 = vpop.f32.mrf.mxu0
        %v800 = vadd.f32 0.0, %v799
        %801 = vdwg.mxu0
        %802 = vmatpush.msra.mxu0 %v732
        %803 = vmatpush.msra.mxu0 %v728
        %804 = vmatpush.msra.mxu0 %v724
        %805 = vmatpush.msra.mxu0 %v720
        %806 = vmatpush.msra.mxu0 %v716
        %807 = vmatpush.msra.mxu0 %v712
        %808 = vmatpush.msra.mxu0 %v708
        %809 = vmatpush.msra.mxu0 %v704
        %810 = vmatpush.msra.mxu0 %v700
        %811 = vmatpush.msra.mxu0 %v696
        %812 = vmatpush.msra.mxu0 %v692
        %813 = vmatpush.msra.mxu0 %v688
        %814 = vmatpush.msra.mxu0 %v684
        %815 = vmatpush.msra.mxu0 %v680
        %816 = vmatpush.msra.mxu0 %v676
        %817 = vmatpush.msra.mxu0 %v672
        %818 = vmatmul.f32.gmra.mxu0 %v733
        %v819 = vpop.f32.mrf.mxu0
        %v820 = vadd.f32 0.0, %v819
        %821 = vdwg.mxu0
        %v822 = vadd.f32 %v738, %v760
        %v823 = vadd.f32 %v739, %v780
        %v824 = vadd.f32 %v740, %v800
        %v825 = vadd.f32 %v741, %v820
        %v826 = vxor.u32 %v822, 2147483648
        %v827 = vmul.f32 %v826, 1.442695
        %v828 = vpow.pop %v827
        %v829 = vadd.f32 %v828, 1.0
        %v830 = vrcp.pop %v829
        %v831 = vmul.f32 %v829, %v830
        %v832 = vsub.f32 1.0, %v831
        %v833 = vmul.f32 %v830, %v832
        %v834 = vadd.f32 %v830, %v833
        %vm835 = vweird.f32 %v829
        %vm836 = vweird.f32 %v830
        %vm837 = vmor %vm835, %vm836
        %v838 = vsel %vm837, %v830, %v834
        %v839 = vand.u32 2147483647, %v829
        %vm840 = vcmp.eq.f32.partialorder %v839, 8.507059e+37
        %v841 = vand.u32 %v829, 2147483648
        %v842 = vor.u32 1.1754944e-38, %v841
        %v843 = vsel %vm840, %v842, %v838
        %v844 = vmul.f32 1.0, %v843
        %v845 = vxor.u32 %v823, 2147483648
        %v846 = vmul.f32 %v845, 1.442695
        %v847 = vpow.pop %v846
        %v848 = vadd.f32 %v847, 1.0
        %v849 = vrcp.pop %v848
        %v850 = vmul.f32 %v848, %v849
        %v851 = vsub.f32 1.0, %v850
        %v852 = vmul.f32 %v849, %v851
        %v853 = vadd.f32 %v849, %v852
        %vm854 = vweird.f32 %v848
        %vm855 = vweird.f32 %v849
        %vm856 = vmor %vm854, %vm855
        %v857 = vsel %vm856, %v849, %v853
        %v858 = vand.u32 2147483647, %v848
        %vm859 = vcmp.eq.f32.partialorder %v858, 8.507059e+37
        %v860 = vand.u32 %v848, 2147483648
        %v861 = vor.u32 1.1754944e-38, %v860
        %v862 = vsel %vm859, %v861, %v857
        %v863 = vmul.f32 1.0, %v862
        %v864 = vtanh.pop %v824
        %v865 = vxor.u32 %v825, 2147483648
        %v866 = vmul.f32 %v865, 1.442695
        %v867 = vpow.pop %v866
        %v868 = vadd.f32 %v867, 1.0
        %v869 = vrcp.pop %v868
        %v870 = vmul.f32 %v868, %v869
        %v871 = vsub.f32 1.0, %v870
        %v872 = vmul.f32 %v869, %v871
        %v873 = vadd.f32 %v869, %v872
        %vm874 = vweird.f32 %v868
        %vm875 = vweird.f32 %v869
        %vm876 = vmor %vm874, %vm875
        %v877 = vsel %vm876, %v869, %v873
        %v878 = vand.u32 2147483647, %v868
        %vm879 = vcmp.eq.f32.partialorder %v878, 8.507059e+37
        %v880 = vand.u32 %v868, 2147483648
        %v881 = vor.u32 1.1754944e-38, %v880
        %v882 = vsel %vm879, %v881, %v877
        %v883 = vmul.f32 1.0, %v882
        %v884 = vmul.f32 %v863, %v734
        %v885 = vmul.f32 %v844, %v864
        %v886 = vadd.f32 %v884, %v885
        %v887 = vtanh.pop %v886
        %v888 = vmul.f32 %v883, %v887
        %p889 = scmp.lt.s32.totalorder %s378, 12
        %s890 = scalar_select %p889, 1, 0
        %v891 = vstv %s890
        %vm892 = vcmp.eq.s32.totalorder %v891, 1
        %v893 = vsel %vm892, %v888, %v733
        %v894 = vsel %vm892, %v886, %v734
        %895 = vst [vmem:[#allocation2] sm:$0xff] %v893
        %s896 = smul.u32 1, 4
        %s897 = smul.addr %s896, 8
        %s898 = scalar_lea.vmem [#allocation4], %s897
        %v899 = vld [vmem:[%s898] sm:$0xff]
        %v900 = vld [vmem:[%s898 + $0x8] sm:$0xff]
        %v901 = vld [vmem:[%s898 + $0x10] sm:$0xff]
        %v902 = vld [vmem:[%s898 + $0x18] sm:$0xff]
        %903 = vmatpush.msra.mxu0 %v729
        %904 = vmatpush.msra.mxu0 %v725
        %905 = vmatpush.msra.mxu0 %v721
        %906 = vmatpush.msra.mxu0 %v717
        %907 = vmatpush.msra.mxu0 %v713
        %908 = vmatpush.msra.mxu0 %v709
        %909 = vmatpush.msra.mxu0 %v705
        %910 = vmatpush.msra.mxu0 %v701
        %911 = vmatpush.msra.mxu0 %v697
        %912 = vmatpush.msra.mxu0 %v693
        %913 = vmatpush.msra.mxu0 %v689
        %914 = vmatpush.msra.mxu0 %v685
        %915 = vmatpush.msra.mxu0 %v681
        %916 = vmatpush.msra.mxu0 %v677
        %917 = vmatpush.msra.mxu0 %v673
        %918 = vmatpush.msra.mxu0 %v669
        %919 = vmatmul.f32.gmra.mxu0 %v893
        %v920 = vpop.f32.mrf.mxu0
        %v921 = vadd.f32 0.0, %v920
        %922 = vdwg.mxu0
        %923 = vmatpush.msra.mxu0 %v730
        %924 = vmatpush.msra.mxu0 %v726
        %925 = vmatpush.msra.mxu0 %v722
        %926 = vmatpush.msra.mxu0 %v718
        %927 = vmatpush.msra.mxu0 %v714
        %928 = vmatpush.msra.mxu0 %v710
        %929 = vmatpush.msra.mxu0 %v706
        %930 = vmatpush.msra.mxu0 %v702
        %931 = vmatpush.msra.mxu0 %v698
        %932 = vmatpush.msra.mxu0 %v694
        %933 = vmatpush.msra.mxu0 %v690
        %934 = vmatpush.msra.mxu0 %v686
        %935 = vmatpush.msra.mxu0 %v682
        %936 = vmatpush.msra.mxu0 %v678
        %937 = vmatpush.msra.mxu0 %v674
        %938 = vmatpush.msra.mxu0 %v670
        %939 = vmatmul.f32.gmra.mxu0 %v893
        %v940 = vpop.f32.mrf.mxu0
        %v941 = vadd.f32 0.0, %v940
        %942 = vdwg.mxu0
        %943 = vmatpush.msra.mxu0 %v731
        %944 = vmatpush.msra.mxu0 %v727
        %945 = vmatpush.msra.mxu0 %v723
        %946 = vmatpush.msra.mxu0 %v719
        %947 = vmatpush.msra.mxu0 %v715
        %948 = vmatpush.msra.mxu0 %v711
        %949 = vmatpush.msra.mxu0 %v707
        %950 = vmatpush.msra.mxu0 %v703
        %951 = vmatpush.msra.mxu0 %v699
        %952 = vmatpush.msra.mxu0 %v695
        %953 = vmatpush.msra.mxu0 %v691
        %954 = vmatpush.msra.mxu0 %v687
        %955 = vmatpush.msra.mxu0 %v683
        %956 = vmatpush.msra.mxu0 %v679
        %957 = vmatpush.msra.mxu0 %v675
        %958 = vmatpush.msra.mxu0 %v671
        %959 = vmatmul.f32.gmra.mxu0 %v893
        %v960 = vpop.f32.mrf.mxu0
        %v961 = vadd.f32 0.0, %v960
        %962 = vdwg.mxu0
        %963 = vmatpush.msra.mxu0 %v732
        %964 = vmatpush.msra.mxu0 %v728
        %965 = vmatpush.msra.mxu0 %v724
        %966 = vmatpush.msra.mxu0 %v720
        %967 = vmatpush.msra.mxu0 %v716
        %968 = vmatpush.msra.mxu0 %v712
        %969 = vmatpush.msra.mxu0 %v708
        %970 = vmatpush.msra.mxu0 %v704
        %971 = vmatpush.msra.mxu0 %v700
        %972 = vmatpush.msra.mxu0 %v696
        %973 = vmatpush.msra.mxu0 %v692
        %974 = vmatpush.msra.mxu0 %v688
        %975 = vmatpush.msra.mxu0 %v684
        %976 = vmatpush.msra.mxu0 %v680
        %977 = vmatpush.msra.mxu0 %v676
        %978 = vmatpush.msra.mxu0 %v672
        %979 = vmatmul.f32.gmra.mxu0 %v893
        %v980 = vpop.f32.mrf.mxu0
        %v981 = vadd.f32 0.0, %v980
        %982 = vdwg.mxu0
        %v983 = vadd.f32 %v899, %v921
        %v984 = vadd.f32 %v900, %v941
        %v985 = vadd.f32 %v901, %v961
        %v986 = vadd.f32 %v902, %v981
        %v987 = vxor.u32 %v983, 2147483648
        %v988 = vmul.f32 %v987, 1.442695
        %v989 = vpow.pop %v988
        %v990 = vadd.f32 %v989, 1.0
        %v991 = vrcp.pop %v990
        %v992 = vmul.f32 %v990, %v991
        %v993 = vsub.f32 1.0, %v992
        %v994 = vmul.f32 %v991, %v993
        %v995 = vadd.f32 %v991, %v994
        %vm996 = vweird.f32 %v990
        %vm997 = vweird.f32 %v991
        %vm998 = vmor %vm996, %vm997
        %v999 = vsel %vm998, %v991, %v995
        %v1000 = vand.u32 2147483647, %v990
        %vm1001 = vcmp.eq.f32.partialorder %v1000, 8.507059e+37
        %v1002 = vand.u32 %v990, 2147483648
        %v1003 = vor.u32 1.1754944e-38, %v1002
        %v1004 = vsel %vm1001, %v1003, %v999
        %v1005 = vmul.f32 1.0, %v1004
        %v1006 = vxor.u32 %v984, 2147483648
        %v1007 = vmul.f32 %v1006, 1.442695
        %v1008 = vpow.pop %v1007
        %v1009 = vadd.f32 %v1008, 1.0
        %v1010 = vrcp.pop %v1009
        %v1011 = vmul.f32 %v1009, %v1010
        %v1012 = vsub.f32 1.0, %v1011
        %v1013 = vmul.f32 %v1010, %v1012
        %v1014 = vadd.f32 %v1010, %v1013
        %vm1015 = vweird.f32 %v1009
        %vm1016 = vweird.f32 %v1010
        %vm1017 = vmor %vm1015, %vm1016
        %v1018 = vsel %vm1017, %v1010, %v1014
        %v1019 = vand.u32 2147483647, %v1009
        %vm1020 = vcmp.eq.f32.partialorder %v1019, 8.507059e+37
        %v1021 = vand.u32 %v1009, 2147483648
        %v1022 = vor.u32 1.1754944e-38, %v1021
        %v1023 = vsel %vm1020, %v1022, %v1018
        %v1024 = vmul.f32 1.0, %v1023
        %v1025 = vtanh.pop %v985
        %v1026 = vxor.u32 %v986, 2147483648
        %v1027 = vmul.f32 %v1026, 1.442695
        %v1028 = vpow.pop %v1027
        %v1029 = vadd.f32 %v1028, 1.0
        %v1030 = vrcp.pop %v1029
        %v1031 = vmul.f32 %v1029, %v1030
        %v1032 = vsub.f32 1.0, %v1031
        %v1033 = vmul.f32 %v1030, %v1032
        %v1034 = vadd.f32 %v1030, %v1033
        %vm1035 = vweird.f32 %v1029
        %vm1036 = vweird.f32 %v1030
        %vm1037 = vmor %vm1035, %vm1036
        %v1038 = vsel %vm1037, %v1030, %v1034
        %v1039 = vand.u32 2147483647, %v1029
        %vm1040 = vcmp.eq.f32.partialorder %v1039, 8.507059e+37
        %v1041 = vand.u32 %v1029, 2147483648
        %v1042 = vor.u32 1.1754944e-38, %v1041
        %v1043 = vsel %vm1040, %v1042, %v1038
        %v1044 = vmul.f32 1.0, %v1043
        %v1045 = vmul.f32 %v1024, %v894
        %v1046 = vmul.f32 %v1005, %v1025
        %v1047 = vadd.f32 %v1045, %v1046
        %v1048 = vtanh.pop %v1047
        %v1049 = vmul.f32 %v1044, %v1048
        %s1050 = sadd.s32 %s378, 1
        %p1051 = scmp.lt.s32.totalorder %s1050, 12
        %s1052 = scalar_select %p1051, 1, 0
        %v1053 = vstv %s1052
        %vm1054 = vcmp.eq.s32.totalorder %v1053, 1
        %v1055 = vsel %vm1054, %v1049, %v893
        %v1056 = vsel %vm1054, %v1047, %v894
        %s1057 = scalar_lea.vmem [#allocation2], 8
        %1058 = vst [vmem:[%s1057] sm:$0xff] %v1055
        %s1059 = smul.u32 2, 4
        %s1060 = smul.addr %s1059, 8
        %s1061 = scalar_lea.vmem [#allocation4], %s1060
        %v1062 = vld [vmem:[%s1061] sm:$0xff]
        %v1063 = vld [vmem:[%s1061 + $0x8] sm:$0xff]
        %v1064 = vld [vmem:[%s1061 + $0x10] sm:$0xff]
        %v1065 = vld [vmem:[%s1061 + $0x18] sm:$0xff]
        %1066 = vmatpush.msra.mxu0 %v729
        %1067 = vmatpush.msra.mxu0 %v725
        %1068 = vmatpush.msra.mxu0 %v721
        %1069 = vmatpush.msra.mxu0 %v717
        %1070 = vmatpush.msra.mxu0 %v713
        %1071 = vmatpush.msra.mxu0 %v709
        %1072 = vmatpush.msra.mxu0 %v705
        %1073 = vmatpush.msra.mxu0 %v701
        %1074 = vmatpush.msra.mxu0 %v697
        %1075 = vmatpush.msra.mxu0 %v693
        %1076 = vmatpush.msra.mxu0 %v689
        %1077 = vmatpush.msra.mxu0 %v685
        %1078 = vmatpush.msra.mxu0 %v681
        %1079 = vmatpush.msra.mxu0 %v677
        %1080 = vmatpush.msra.mxu0 %v673
        %1081 = vmatpush.msra.mxu0 %v669
        %1082 = vmatmul.f32.gmra.mxu0 %v1055
        %v1083 = vpop.f32.mrf.mxu0
        %v1084 = vadd.f32 0.0, %v1083
        %1085 = vdwg.mxu0
        %1086 = vmatpush.msra.mxu0 %v730
        %1087 = vmatpush.msra.mxu0 %v726
        %1088 = vmatpush.msra.mxu0 %v722
        %1089 = vmatpush.msra.mxu0 %v718
        %1090 = vmatpush.msra.mxu0 %v714
        %1091 = vmatpush.msra.mxu0 %v710
        %1092 = vmatpush.msra.mxu0 %v706
        %1093 = vmatpush.msra.mxu0 %v702
        %1094 = vmatpush.msra.mxu0 %v698
        %1095 = vmatpush.msra.mxu0 %v694
        %1096 = vmatpush.msra.mxu0 %v690
        %1097 = vmatpush.msra.mxu0 %v686
        %1098 = vmatpush.msra.mxu0 %v682
        %1099 = vmatpush.msra.mxu0 %v678
        %1100 = vmatpush.msra.mxu0 %v674
        %1101 = vmatpush.msra.mxu0 %v670
        %1102 = vmatmul.f32.gmra.mxu0 %v1055
        %v1103 = vpop.f32.mrf.mxu0
        %v1104 = vadd.f32 0.0, %v1103
        %1105 = vdwg.mxu0
        %1106 = vmatpush.msra.mxu0 %v731
        %1107 = vmatpush.msra.mxu0 %v727
        %1108 = vmatpush.msra.mxu0 %v723
        %1109 = vmatpush.msra.mxu0 %v719
        %1110 = vmatpush.msra.mxu0 %v715
        %1111 = vmatpush.msra.mxu0 %v711
        %1112 = vmatpush.msra.mxu0 %v707
        %1113 = vmatpush.msra.mxu0 %v703
        %1114 = vmatpush.msra.mxu0 %v699
        %1115 = vmatpush.msra.mxu0 %v695
        %1116 = vmatpush.msra.mxu0 %v691
        %1117 = vmatpush.msra.mxu0 %v687
        %1118 = vmatpush.msra.mxu0 %v683
        %1119 = vmatpush.msra.mxu0 %v679
        %1120 = vmatpush.msra.mxu0 %v675
        %1121 = vmatpush.msra.mxu0 %v671
        %1122 = vmatmul.f32.gmra.mxu0 %v1055
        %v1123 = vpop.f32.mrf.mxu0
        %v1124 = vadd.f32 0.0, %v1123
        %1125 = vdwg.mxu0
        %1126 = vmatpush.msra.mxu0 %v732
        %1127 = vmatpush.msra.mxu0 %v728
        %1128 = vmatpush.msra.mxu0 %v724
        %1129 = vmatpush.msra.mxu0 %v720
        %1130 = vmatpush.msra.mxu0 %v716
        %1131 = vmatpush.msra.mxu0 %v712
        %1132 = vmatpush.msra.mxu0 %v708
        %1133 = vmatpush.msra.mxu0 %v704
        %1134 = vmatpush.msra.mxu0 %v700
        %1135 = vmatpush.msra.mxu0 %v696
        %1136 = vmatpush.msra.mxu0 %v692
        %1137 = vmatpush.msra.mxu0 %v688
        %1138 = vmatpush.msra.mxu0 %v684
        %1139 = vmatpush.msra.mxu0 %v680
        %1140 = vmatpush.msra.mxu0 %v676
        %1141 = vmatpush.msra.mxu0 %v672
        %1142 = vmatmul.f32.gmra.mxu0 %v1055
        %v1143 = vpop.f32.mrf.mxu0
        %v1144 = vadd.f32 0.0, %v1143
        %1145 = vdwg.mxu0
        %v1146 = vadd.f32 %v1062, %v1084
        %v1147 = vadd.f32 %v1063, %v1104
        %v1148 = vadd.f32 %v1064, %v1124
        %v1149 = vadd.f32 %v1065, %v1144
        %v1150 = vxor.u32 %v1146, 2147483648
        %v1151 = vmul.f32 %v1150, 1.442695
        %v1152 = vpow.pop %v1151
        %v1153 = vadd.f32 %v1152, 1.0
        %v1154 = vrcp.pop %v1153
        %v1155 = vmul.f32 %v1153, %v1154
        %v1156 = vsub.f32 1.0, %v1155
        %v1157 = vmul.f32 %v1154, %v1156
        %v1158 = vadd.f32 %v1154, %v1157
        %vm1159 = vweird.f32 %v1153
        %vm1160 = vweird.f32 %v1154
        %vm1161 = vmor %vm1159, %vm1160
        %v1162 = vsel %vm1161, %v1154, %v1158
        %v1163 = vand.u32 2147483647, %v1153
        %vm1164 = vcmp.eq.f32.partialorder %v1163, 8.507059e+37
        %v1165 = vand.u32 %v1153, 2147483648
        %v1166 = vor.u32 1.1754944e-38, %v1165
        %v1167 = vsel %vm1164, %v1166, %v1162
        %v1168 = vmul.f32 1.0, %v1167
        %v1169 = vxor.u32 %v1147, 2147483648
        %v1170 = vmul.f32 %v1169, 1.442695
        %v1171 = vpow.pop %v1170
        %v1172 = vadd.f32 %v1171, 1.0
        %v1173 = vrcp.pop %v1172
        %v1174 = vmul.f32 %v1172, %v1173
        %v1175 = vsub.f32 1.0, %v1174
        %v1176 = vmul.f32 %v1173, %v1175
        %v1177 = vadd.f32 %v1173, %v1176
        %vm1178 = vweird.f32 %v1172
        %vm1179 = vweird.f32 %v1173
        %vm1180 = vmor %vm1178, %vm1179
        %v1181 = vsel %vm1180, %v1173, %v1177
        %v1182 = vand.u32 2147483647, %v1172
        %vm1183 = vcmp.eq.f32.partialorder %v1182, 8.507059e+37
        %v1184 = vand.u32 %v1172, 2147483648
        %v1185 = vor.u32 1.1754944e-38, %v1184
        %v1186 = vsel %vm1183, %v1185, %v1181
        %v1187 = vmul.f32 1.0, %v1186
        %v1188 = vtanh.pop %v1148
        %v1189 = vxor.u32 %v1149, 2147483648
        %v1190 = vmul.f32 %v1189, 1.442695
        %v1191 = vpow.pop %v1190
        %v1192 = vadd.f32 %v1191, 1.0
        %v1193 = vrcp.pop %v1192
        %v1194 = vmul.f32 %v1192, %v1193
        %v1195 = vsub.f32 1.0, %v1194
        %v1196 = vmul.f32 %v1193, %v1195
        %v1197 = vadd.f32 %v1193, %v1196
        %vm1198 = vweird.f32 %v1192
        %vm1199 = vweird.f32 %v1193
        %vm1200 = vmor %vm1198, %vm1199
        %v1201 = vsel %vm1200, %v1193, %v1197
        %v1202 = vand.u32 2147483647, %v1192
        %vm1203 = vcmp.eq.f32.partialorder %v1202, 8.507059e+37
        %v1204 = vand.u32 %v1192, 2147483648
        %v1205 = vor.u32 1.1754944e-38, %v1204
        %v1206 = vsel %vm1203, %v1205, %v1201
        %v1207 = vmul.f32 1.0, %v1206
        %v1208 = vmul.f32 %v1187, %v1056
        %v1209 = vmul.f32 %v1168, %v1188
        %v1210 = vadd.f32 %v1208, %v1209
        %v1211 = vtanh.pop %v1210
        %v1212 = vmul.f32 %v1207, %v1211
        %s1213 = sadd.s32 %s378, 2
        %p1214 = scmp.lt.s32.totalorder %s1213, 12
        %s1215 = scalar_select %p1214, 1, 0
        %v1216 = vstv %s1215
        %vm1217 = vcmp.eq.s32.totalorder %v1216, 1
        %v1218 = vsel %vm1217, %v1212, %v1055
        %v1219 = vsel %vm1217, %v1210, %v1056
        %s1220 = scalar_lea.vmem [#allocation2], 16
        %1221 = vst [vmem:[%s1220] sm:$0xff] %v1218
        %s1222 = smul.u32 3, 4
        %s1223 = smul.addr %s1222, 8
        %s1224 = scalar_lea.vmem [#allocation4], %s1223
        %v1225 = vld [vmem:[%s1224] sm:$0xff]
        %v1226 = vld [vmem:[%s1224 + $0x8] sm:$0xff]
        %v1227 = vld [vmem:[%s1224 + $0x10] sm:$0xff]
        %v1228 = vld [vmem:[%s1224 + $0x18] sm:$0xff]
        %1229 = vmatpush.msra.mxu0 %v729
        %1230 = vmatpush.msra.mxu0 %v725
        %1231 = vmatpush.msra.mxu0 %v721
        %1232 = vmatpush.msra.mxu0 %v717
        %1233 = vmatpush.msra.mxu0 %v713
        %1234 = vmatpush.msra.mxu0 %v709
        %1235 = vmatpush.msra.mxu0 %v705
        %1236 = vmatpush.msra.mxu0 %v701
        %1237 = vmatpush.msra.mxu0 %v697
        %1238 = vmatpush.msra.mxu0 %v693
        %1239 = vmatpush.msra.mxu0 %v689
        %1240 = vmatpush.msra.mxu0 %v685
        %1241 = vmatpush.msra.mxu0 %v681
        %1242 = vmatpush.msra.mxu0 %v677
        %1243 = vmatpush.msra.mxu0 %v673
        %1244 = vmatpush.msra.mxu0 %v669
        %1245 = vmatmul.f32.gmra.mxu0 %v1218
        %v1246 = vpop.f32.mrf.mxu0
        %v1247 = vadd.f32 0.0, %v1246
        %1248 = vdwg.mxu0
        %1249 = vmatpush.msra.mxu0 %v730
        %1250 = vmatpush.msra.mxu0 %v726
        %1251 = vmatpush.msra.mxu0 %v722
        %1252 = vmatpush.msra.mxu0 %v718
        %1253 = vmatpush.msra.mxu0 %v714
        %1254 = vmatpush.msra.mxu0 %v710
        %1255 = vmatpush.msra.mxu0 %v706
        %1256 = vmatpush.msra.mxu0 %v702
        %1257 = vmatpush.msra.mxu0 %v698
        %1258 = vmatpush.msra.mxu0 %v694
        %1259 = vmatpush.msra.mxu0 %v690
        %1260 = vmatpush.msra.mxu0 %v686
        %1261 = vmatpush.msra.mxu0 %v682
        %1262 = vmatpush.msra.mxu0 %v678
        %1263 = vmatpush.msra.mxu0 %v674
        %1264 = vmatpush.msra.mxu0 %v670
        %1265 = vmatmul.f32.gmra.mxu0 %v1218
        %v1266 = vpop.f32.mrf.mxu0
        %v1267 = vadd.f32 0.0, %v1266
        %1268 = vdwg.mxu0
        %1269 = vmatpush.msra.mxu0 %v731
        %1270 = vmatpush.msra.mxu0 %v727
        %1271 = vmatpush.msra.mxu0 %v723
        %1272 = vmatpush.msra.mxu0 %v719
        %1273 = vmatpush.msra.mxu0 %v715
        %1274 = vmatpush.msra.mxu0 %v711
        %1275 = vmatpush.msra.mxu0 %v707
        %1276 = vmatpush.msra.mxu0 %v703
        %1277 = vmatpush.msra.mxu0 %v699
        %1278 = vmatpush.msra.mxu0 %v695
        %1279 = vmatpush.msra.mxu0 %v691
        %1280 = vmatpush.msra.mxu0 %v687
        %1281 = vmatpush.msra.mxu0 %v683
        %1282 = vmatpush.msra.mxu0 %v679
        %1283 = vmatpush.msra.mxu0 %v675
        %1284 = vmatpush.msra.mxu0 %v671
        %1285 = vmatmul.f32.gmra.mxu0 %v1218
        %v1286 = vpop.f32.mrf.mxu0
        %v1287 = vadd.f32 0.0, %v1286
        %1288 = vdwg.mxu0
        %1289 = vmatpush.msra.mxu0 %v732
        %1290 = vmatpush.msra.mxu0 %v728
        %1291 = vmatpush.msra.mxu0 %v724
        %1292 = vmatpush.msra.mxu0 %v720
        %1293 = vmatpush.msra.mxu0 %v716
        %1294 = vmatpush.msra.mxu0 %v712
        %1295 = vmatpush.msra.mxu0 %v708
        %1296 = vmatpush.msra.mxu0 %v704
        %1297 = vmatpush.msra.mxu0 %v700
        %1298 = vmatpush.msra.mxu0 %v696
        %1299 = vmatpush.msra.mxu0 %v692
        %1300 = vmatpush.msra.mxu0 %v688
        %1301 = vmatpush.msra.mxu0 %v684
        %1302 = vmatpush.msra.mxu0 %v680
        %1303 = vmatpush.msra.mxu0 %v676
        %1304 = vmatpush.msra.mxu0 %v672
        %1305 = vmatmul.f32.gmra.mxu0 %v1218
        %v1306 = vpop.f32.mrf.mxu0
        %v1307 = vadd.f32 0.0, %v1306
        %1308 = vdwg.mxu0
        %v1309 = vadd.f32 %v1225, %v1247
        %v1310 = vadd.f32 %v1226, %v1267
        %v1311 = vadd.f32 %v1227, %v1287
        %v1312 = vadd.f32 %v1228, %v1307
        %v1313 = vxor.u32 %v1309, 2147483648
        %v1314 = vmul.f32 %v1313, 1.442695
        %v1315 = vpow.pop %v1314
        %v1316 = vadd.f32 %v1315, 1.0
        %v1317 = vrcp.pop %v1316
        %v1318 = vmul.f32 %v1316, %v1317
        %v1319 = vsub.f32 1.0, %v1318
        %v1320 = vmul.f32 %v1317, %v1319
        %v1321 = vadd.f32 %v1317, %v1320
        %vm1322 = vweird.f32 %v1316
        %vm1323 = vweird.f32 %v1317
        %vm1324 = vmor %vm1322, %vm1323
        %v1325 = vsel %vm1324, %v1317, %v1321
        %v1326 = vand.u32 2147483647, %v1316
        %vm1327 = vcmp.eq.f32.partialorder %v1326, 8.507059e+37
        %v1328 = vand.u32 %v1316, 2147483648
        %v1329 = vor.u32 1.1754944e-38, %v1328
        %v1330 = vsel %vm1327, %v1329, %v1325
        %v1331 = vmul.f32 1.0, %v1330
        %v1332 = vxor.u32 %v1310, 2147483648
        %v1333 = vmul.f32 %v1332, 1.442695
        %v1334 = vpow.pop %v1333
        %v1335 = vadd.f32 %v1334, 1.0
        %v1336 = vrcp.pop %v1335
        %v1337 = vmul.f32 %v1335, %v1336
        %v1338 = vsub.f32 1.0, %v1337
        %v1339 = vmul.f32 %v1336, %v1338
        %v1340 = vadd.f32 %v1336, %v1339
        %vm1341 = vweird.f32 %v1335
        %vm1342 = vweird.f32 %v1336
        %vm1343 = vmor %vm1341, %vm1342
        %v1344 = vsel %vm1343, %v1336, %v1340
        %v1345 = vand.u32 2147483647, %v1335
        %vm1346 = vcmp.eq.f32.partialorder %v1345, 8.507059e+37
        %v1347 = vand.u32 %v1335, 2147483648
        %v1348 = vor.u32 1.1754944e-38, %v1347
        %v1349 = vsel %vm1346, %v1348, %v1344
        %v1350 = vmul.f32 1.0, %v1349
        %v1351 = vtanh.pop %v1311
        %v1352 = vxor.u32 %v1312, 2147483648
        %v1353 = vmul.f32 %v1352, 1.442695
        %v1354 = vpow.pop %v1353
        %v1355 = vadd.f32 %v1354, 1.0
        %v1356 = vrcp.pop %v1355
        %v1357 = vmul.f32 %v1355, %v1356
        %v1358 = vsub.f32 1.0, %v1357
        %v1359 = vmul.f32 %v1356, %v1358
        %v1360 = vadd.f32 %v1356, %v1359
        %vm1361 = vweird.f32 %v1355
        %vm1362 = vweird.f32 %v1356
        %vm1363 = vmor %vm1361, %vm1362
        %v1364 = vsel %vm1363, %v1356, %v1360
        %v1365 = vand.u32 2147483647, %v1355
        %vm1366 = vcmp.eq.f32.partialorder %v1365, 8.507059e+37
        %v1367 = vand.u32 %v1355, 2147483648
        %v1368 = vor.u32 1.1754944e-38, %v1367
        %v1369 = vsel %vm1366, %v1368, %v1364
        %v1370 = vmul.f32 1.0, %v1369
        %v1371 = vmul.f32 %v1350, %v1219
        %v1372 = vmul.f32 %v1331, %v1351
        %v1373 = vadd.f32 %v1371, %v1372
        %v1374 = vtanh.pop %v1373
        %v1375 = vmul.f32 %v1370, %v1374
        %s1376 = sadd.s32 %s378, 3
        %p1377 = scmp.lt.s32.totalorder %s1376, 12
        %s1378 = scalar_select %p1377, 1, 0
        %v1379 = vstv %s1378
        %vm1380 = vcmp.eq.s32.totalorder %v1379, 1
        %v1381 = vsel %vm1380, %v1375, %v1218
        %v1382 = vsel %vm1380, %v1373, %v1219
        %s1383 = scalar_lea.vmem [#allocation2], 24
        %1384 = vst [vmem:[%s1383] sm:$0xff] %v1381
        %s1385 = smul.u32 4, 4
        %s1386 = smul.addr %s1385, 8
        %s1387 = scalar_lea.vmem [#allocation4], %s1386
        %v1388 = vld [vmem:[%s1387] sm:$0xff]
        %v1389 = vld [vmem:[%s1387 + $0x8] sm:$0xff]
        %v1390 = vld [vmem:[%s1387 + $0x10] sm:$0xff]
        %v1391 = vld [vmem:[%s1387 + $0x18] sm:$0xff]
        %1392 = vmatpush.msra.mxu0 %v729
        %1393 = vmatpush.msra.mxu0 %v725
        %1394 = vmatpush.msra.mxu0 %v721
        %1395 = vmatpush.msra.mxu0 %v717
        %1396 = vmatpush.msra.mxu0 %v713
        %1397 = vmatpush.msra.mxu0 %v709
        %1398 = vmatpush.msra.mxu0 %v705
        %1399 = vmatpush.msra.mxu0 %v701
        %1400 = vmatpush.msra.mxu0 %v697
        %1401 = vmatpush.msra.mxu0 %v693
        %1402 = vmatpush.msra.mxu0 %v689
        %1403 = vmatpush.msra.mxu0 %v685
        %1404 = vmatpush.msra.mxu0 %v681
        %1405 = vmatpush.msra.mxu0 %v677
        %1406 = vmatpush.msra.mxu0 %v673
        %1407 = vmatpush.msra.mxu0 %v669
        %1408 = vmatmul.f32.gmra.mxu0 %v1381
        %v1409 = vpop.f32.mrf.mxu0
        %v1410 = vadd.f32 0.0, %v1409
        %1411 = vdwg.mxu0
        %1412 = vmatpush.msra.mxu0 %v730
        %1413 = vmatpush.msra.mxu0 %v726
        %1414 = vmatpush.msra.mxu0 %v722
        %1415 = vmatpush.msra.mxu0 %v718
        %1416 = vmatpush.msra.mxu0 %v714
        %1417 = vmatpush.msra.mxu0 %v710
        %1418 = vmatpush.msra.mxu0 %v706
        %1419 = vmatpush.msra.mxu0 %v702
        %1420 = vmatpush.msra.mxu0 %v698
        %1421 = vmatpush.msra.mxu0 %v694
        %1422 = vmatpush.msra.mxu0 %v690
        %1423 = vmatpush.msra.mxu0 %v686
        %1424 = vmatpush.msra.mxu0 %v682
        %1425 = vmatpush.msra.mxu0 %v678
        %1426 = vmatpush.msra.mxu0 %v674
        %1427 = vmatpush.msra.mxu0 %v670
        %1428 = vmatmul.f32.gmra.mxu0 %v1381
        %v1429 = vpop.f32.mrf.mxu0
        %v1430 = vadd.f32 0.0, %v1429
        %1431 = vdwg.mxu0
        %1432 = vmatpush.msra.mxu0 %v731
        %1433 = vmatpush.msra.mxu0 %v727
        %1434 = vmatpush.msra.mxu0 %v723
        %1435 = vmatpush.msra.mxu0 %v719
        %1436 = vmatpush.msra.mxu0 %v715
        %1437 = vmatpush.msra.mxu0 %v711
        %1438 = vmatpush.msra.mxu0 %v707
        %1439 = vmatpush.msra.mxu0 %v703
        %1440 = vmatpush.msra.mxu0 %v699
        %1441 = vmatpush.msra.mxu0 %v695
        %1442 = vmatpush.msra.mxu0 %v691
        %1443 = vmatpush.msra.mxu0 %v687
        %1444 = vmatpush.msra.mxu0 %v683
        %1445 = vmatpush.msra.mxu0 %v679
        %1446 = vmatpush.msra.mxu0 %v675
        %1447 = vmatpush.msra.mxu0 %v671
        %1448 = vmatmul.f32.gmra.mxu0 %v1381
        %v1449 = vpop.f32.mrf.mxu0
        %v1450 = vadd.f32 0.0, %v1449
        %1451 = vdwg.mxu0
        %1452 = vmatpush.msra.mxu0 %v732
        %1453 = vmatpush.msra.mxu0 %v728
        %1454 = vmatpush.msra.mxu0 %v724
        %1455 = vmatpush.msra.mxu0 %v720
        %1456 = vmatpush.msra.mxu0 %v716
        %1457 = vmatpush.msra.mxu0 %v712
        %1458 = vmatpush.msra.mxu0 %v708
        %1459 = vmatpush.msra.mxu0 %v704
        %1460 = vmatpush.msra.mxu0 %v700
        %1461 = vmatpush.msra.mxu0 %v696
        %1462 = vmatpush.msra.mxu0 %v692
        %1463 = vmatpush.msra.mxu0 %v688
        %1464 = vmatpush.msra.mxu0 %v684
        %1465 = vmatpush.msra.mxu0 %v680
        %1466 = vmatpush.msra.mxu0 %v676
        %1467 = vmatpush.msra.mxu0 %v672
        %1468 = vmatmul.f32.gmra.mxu0 %v1381
        %v1469 = vpop.f32.mrf.mxu0
        %v1470 = vadd.f32 0.0, %v1469
        %1471 = vdwg.mxu0
        %v1472 = vadd.f32 %v1388, %v1410
        %v1473 = vadd.f32 %v1389, %v1430
        %v1474 = vadd.f32 %v1390, %v1450
        %v1475 = vadd.f32 %v1391, %v1470
        %v1476 = vxor.u32 %v1472, 2147483648
        %v1477 = vmul.f32 %v1476, 1.442695
        %v1478 = vpow.pop %v1477
        %v1479 = vadd.f32 %v1478, 1.0
        %v1480 = vrcp.pop %v1479
        %v1481 = vmul.f32 %v1479, %v1480
        %v1482 = vsub.f32 1.0, %v1481
        %v1483 = vmul.f32 %v1480, %v1482
        %v1484 = vadd.f32 %v1480, %v1483
        %vm1485 = vweird.f32 %v1479
        %vm1486 = vweird.f32 %v1480
        %vm1487 = vmor %vm1485, %vm1486
        %v1488 = vsel %vm1487, %v1480, %v1484
        %v1489 = vand.u32 2147483647, %v1479
        %vm1490 = vcmp.eq.f32.partialorder %v1489, 8.507059e+37
        %v1491 = vand.u32 %v1479, 2147483648
        %v1492 = vor.u32 1.1754944e-38, %v1491
        %v1493 = vsel %vm1490, %v1492, %v1488
        %v1494 = vmul.f32 1.0, %v1493
        %v1495 = vxor.u32 %v1473, 2147483648
        %v1496 = vmul.f32 %v1495, 1.442695
        %v1497 = vpow.pop %v1496
        %v1498 = vadd.f32 %v1497, 1.0
        %v1499 = vrcp.pop %v1498
        %v1500 = vmul.f32 %v1498, %v1499
        %v1501 = vsub.f32 1.0, %v1500
        %v1502 = vmul.f32 %v1499, %v1501
        %v1503 = vadd.f32 %v1499, %v1502
        %vm1504 = vweird.f32 %v1498
        %vm1505 = vweird.f32 %v1499
        %vm1506 = vmor %vm1504, %vm1505
        %v1507 = vsel %vm1506, %v1499, %v1503
        %v1508 = vand.u32 2147483647, %v1498
        %vm1509 = vcmp.eq.f32.partialorder %v1508, 8.507059e+37
        %v1510 = vand.u32 %v1498, 2147483648
        %v1511 = vor.u32 1.1754944e-38, %v1510
        %v1512 = vsel %vm1509, %v1511, %v1507
        %v1513 = vmul.f32 1.0, %v1512
        %v1514 = vtanh.pop %v1474
        %v1515 = vxor.u32 %v1475, 2147483648
        %v1516 = vmul.f32 %v1515, 1.442695
        %v1517 = vpow.pop %v1516
        %v1518 = vadd.f32 %v1517, 1.0
        %v1519 = vrcp.pop %v1518
        %v1520 = vmul.f32 %v1518, %v1519
        %v1521 = vsub.f32 1.0, %v1520
        %v1522 = vmul.f32 %v1519, %v1521
        %v1523 = vadd.f32 %v1519, %v1522
        %vm1524 = vweird.f32 %v1518
        %vm1525 = vweird.f32 %v1519
        %vm1526 = vmor %vm1524, %vm1525
        %v1527 = vsel %vm1526, %v1519, %v1523
        %v1528 = vand.u32 2147483647, %v1518
        %vm1529 = vcmp.eq.f32.partialorder %v1528, 8.507059e+37
        %v1530 = vand.u32 %v1518, 2147483648
        %v1531 = vor.u32 1.1754944e-38, %v1530
        %v1532 = vsel %vm1529, %v1531, %v1527
        %v1533 = vmul.f32 1.0, %v1532
        %v1534 = vmul.f32 %v1513, %v1382
        %v1535 = vmul.f32 %v1494, %v1514
        %v1536 = vadd.f32 %v1534, %v1535
        %v1537 = vtanh.pop %v1536
        %v1538 = vmul.f32 %v1533, %v1537
        %s1539 = sadd.s32 %s378, 4
        %p1540 = scmp.lt.s32.totalorder %s1539, 12
        %s1541 = scalar_select %p1540, 1, 0
        %v1542 = vstv %s1541
        %vm1543 = vcmp.eq.s32.totalorder %v1542, 1
        %v1544 = vsel %vm1543, %v1538, %v1381
        %v1545 = vsel %vm1543, %v1536, %v1382
        %s1546 = scalar_lea.vmem [#allocation2], 32
        %1547 = vst [vmem:[%s1546] sm:$0xff] %v1544
        %s1548 = smul.u32 5, 4
        %s1549 = smul.addr %s1548, 8
        %s1550 = scalar_lea.vmem [#allocation4], %s1549
        %v1551 = vld [vmem:[%s1550] sm:$0xff]
        %v1552 = vld [vmem:[%s1550 + $0x8] sm:$0xff]
        %v1553 = vld [vmem:[%s1550 + $0x10] sm:$0xff]
        %v1554 = vld [vmem:[%s1550 + $0x18] sm:$0xff]
        %1555 = vmatpush.msra.mxu0 %v729
        %1556 = vmatpush.msra.mxu0 %v725
        %1557 = vmatpush.msra.mxu0 %v721
        %1558 = vmatpush.msra.mxu0 %v717
        %1559 = vmatpush.msra.mxu0 %v713
        %1560 = vmatpush.msra.mxu0 %v709
        %1561 = vmatpush.msra.mxu0 %v705
        %1562 = vmatpush.msra.mxu0 %v701
        %1563 = vmatpush.msra.mxu0 %v697
        %1564 = vmatpush.msra.mxu0 %v693
        %1565 = vmatpush.msra.mxu0 %v689
        %1566 = vmatpush.msra.mxu0 %v685
        %1567 = vmatpush.msra.mxu0 %v681
        %1568 = vmatpush.msra.mxu0 %v677
        %1569 = vmatpush.msra.mxu0 %v673
        %1570 = vmatpush.msra.mxu0 %v669
        %1571 = vmatmul.f32.gmra.mxu0 %v1544
        %v1572 = vpop.f32.mrf.mxu0
        %v1573 = vadd.f32 0.0, %v1572
        %1574 = vdwg.mxu0
        %1575 = vmatpush.msra.mxu0 %v730
        %1576 = vmatpush.msra.mxu0 %v726
        %1577 = vmatpush.msra.mxu0 %v722
        %1578 = vmatpush.msra.mxu0 %v718
        %1579 = vmatpush.msra.mxu0 %v714
        %1580 = vmatpush.msra.mxu0 %v710
        %1581 = vmatpush.msra.mxu0 %v706
        %1582 = vmatpush.msra.mxu0 %v702
        %1583 = vmatpush.msra.mxu0 %v698
        %1584 = vmatpush.msra.mxu0 %v694
        %1585 = vmatpush.msra.mxu0 %v690
        %1586 = vmatpush.msra.mxu0 %v686
        %1587 = vmatpush.msra.mxu0 %v682
        %1588 = vmatpush.msra.mxu0 %v678
        %1589 = vmatpush.msra.mxu0 %v674
        %1590 = vmatpush.msra.mxu0 %v670
        %1591 = vmatmul.f32.gmra.mxu0 %v1544
        %v1592 = vpop.f32.mrf.mxu0
        %v1593 = vadd.f32 0.0, %v1592
        %1594 = vdwg.mxu0
        %1595 = vmatpush.msra.mxu0 %v731
        %1596 = vmatpush.msra.mxu0 %v727
        %1597 = vmatpush.msra.mxu0 %v723
        %1598 = vmatpush.msra.mxu0 %v719
        %1599 = vmatpush.msra.mxu0 %v715
        %1600 = vmatpush.msra.mxu0 %v711
        %1601 = vmatpush.msra.mxu0 %v707
        %1602 = vmatpush.msra.mxu0 %v703
        %1603 = vmatpush.msra.mxu0 %v699
        %1604 = vmatpush.msra.mxu0 %v695
        %1605 = vmatpush.msra.mxu0 %v691
        %1606 = vmatpush.msra.mxu0 %v687
        %1607 = vmatpush.msra.mxu0 %v683
        %1608 = vmatpush.msra.mxu0 %v679
        %1609 = vmatpush.msra.mxu0 %v675
        %1610 = vmatpush.msra.mxu0 %v671
        %1611 = vmatmul.f32.gmra.mxu0 %v1544
        %v1612 = vpop.f32.mrf.mxu0
        %v1613 = vadd.f32 0.0, %v1612
        %1614 = vdwg.mxu0
        %1615 = vmatpush.msra.mxu0 %v732
        %1616 = vmatpush.msra.mxu0 %v728
        %1617 = vmatpush.msra.mxu0 %v724
        %1618 = vmatpush.msra.mxu0 %v720
        %1619 = vmatpush.msra.mxu0 %v716
        %1620 = vmatpush.msra.mxu0 %v712
        %1621 = vmatpush.msra.mxu0 %v708
        %1622 = vmatpush.msra.mxu0 %v704
        %1623 = vmatpush.msra.mxu0 %v700
        %1624 = vmatpush.msra.mxu0 %v696
        %1625 = vmatpush.msra.mxu0 %v692
        %1626 = vmatpush.msra.mxu0 %v688
        %1627 = vmatpush.msra.mxu0 %v684
        %1628 = vmatpush.msra.mxu0 %v680
        %1629 = vmatpush.msra.mxu0 %v676
        %1630 = vmatpush.msra.mxu0 %v672
        %1631 = vmatmul.f32.gmra.mxu0 %v1544
        %v1632 = vpop.f32.mrf.mxu0
        %v1633 = vadd.f32 0.0, %v1632
        %1634 = vdwg.mxu0
        %v1635 = vadd.f32 %v1551, %v1573
        %v1636 = vadd.f32 %v1552, %v1593
        %v1637 = vadd.f32 %v1553, %v1613
        %v1638 = vadd.f32 %v1554, %v1633
        %v1639 = vxor.u32 %v1635, 2147483648
        %v1640 = vmul.f32 %v1639, 1.442695
        %v1641 = vpow.pop %v1640
        %v1642 = vadd.f32 %v1641, 1.0
        %v1643 = vrcp.pop %v1642
        %v1644 = vmul.f32 %v1642, %v1643
        %v1645 = vsub.f32 1.0, %v1644
        %v1646 = vmul.f32 %v1643, %v1645
        %v1647 = vadd.f32 %v1643, %v1646
        %vm1648 = vweird.f32 %v1642
        %vm1649 = vweird.f32 %v1643
        %vm1650 = vmor %vm1648, %vm1649
        %v1651 = vsel %vm1650, %v1643, %v1647
        %v1652 = vand.u32 2147483647, %v1642
        %vm1653 = vcmp.eq.f32.partialorder %v1652, 8.507059e+37
        %v1654 = vand.u32 %v1642, 2147483648
        %v1655 = vor.u32 1.1754944e-38, %v1654
        %v1656 = vsel %vm1653, %v1655, %v1651
        %v1657 = vmul.f32 1.0, %v1656
        %v1658 = vxor.u32 %v1636, 2147483648
        %v1659 = vmul.f32 %v1658, 1.442695
        %v1660 = vpow.pop %v1659
        %v1661 = vadd.f32 %v1660, 1.0
        %v1662 = vrcp.pop %v1661
        %v1663 = vmul.f32 %v1661, %v1662
        %v1664 = vsub.f32 1.0, %v1663
        %v1665 = vmul.f32 %v1662, %v1664
        %v1666 = vadd.f32 %v1662, %v1665
        %vm1667 = vweird.f32 %v1661
        %vm1668 = vweird.f32 %v1662
        %vm1669 = vmor %vm1667, %vm1668
        %v1670 = vsel %vm1669, %v1662, %v1666
        %v1671 = vand.u32 2147483647, %v1661
        %vm1672 = vcmp.eq.f32.partialorder %v1671, 8.507059e+37
        %v1673 = vand.u32 %v1661, 2147483648
        %v1674 = vor.u32 1.1754944e-38, %v1673
        %v1675 = vsel %vm1672, %v1674, %v1670
        %v1676 = vmul.f32 1.0, %v1675
        %v1677 = vtanh.pop %v1637
        %v1678 = vxor.u32 %v1638, 2147483648
        %v1679 = vmul.f32 %v1678, 1.442695
        %v1680 = vpow.pop %v1679
        %v1681 = vadd.f32 %v1680, 1.0
        %v1682 = vrcp.pop %v1681
        %v1683 = vmul.f32 %v1681, %v1682
        %v1684 = vsub.f32 1.0, %v1683
        %v1685 = vmul.f32 %v1682, %v1684
        %v1686 = vadd.f32 %v1682, %v1685
        %vm1687 = vweird.f32 %v1681
        %vm1688 = vweird.f32 %v1682
        %vm1689 = vmor %vm1687, %vm1688
        %v1690 = vsel %vm1689, %v1682, %v1686
        %v1691 = vand.u32 2147483647, %v1681
        %vm1692 = vcmp.eq.f32.partialorder %v1691, 8.507059e+37
        %v1693 = vand.u32 %v1681, 2147483648
        %v1694 = vor.u32 1.1754944e-38, %v1693
        %v1695 = vsel %vm1692, %v1694, %v1690
        %v1696 = vmul.f32 1.0, %v1695
        %v1697 = vmul.f32 %v1676, %v1545
        %v1698 = vmul.f32 %v1657, %v1677
        %v1699 = vadd.f32 %v1697, %v1698
        %v1700 = vtanh.pop %v1699
        %v1701 = vmul.f32 %v1696, %v1700
        %s1702 = sadd.s32 %s378, 5
        %p1703 = scmp.lt.s32.totalorder %s1702, 12
        %s1704 = scalar_select %p1703, 1, 0
        %v1705 = vstv %s1704
        %vm1706 = vcmp.eq.s32.totalorder %v1705, 1
        %v1707 = vsel %vm1706, %v1701, %v1544
        %v1708 = vsel %vm1706, %v1699, %v1545
        %s1709 = scalar_lea.vmem [#allocation2], 40
        %1710 = vst [vmem:[%s1709] sm:$0xff] %v1707
        %s1711 = smul.u32 6, 4
        %s1712 = smul.addr %s1711, 8
        %s1713 = scalar_lea.vmem [#allocation4], %s1712
        %v1714 = vld [vmem:[%s1713] sm:$0xff]
        %v1715 = vld [vmem:[%s1713 + $0x8] sm:$0xff]
        %v1716 = vld [vmem:[%s1713 + $0x10] sm:$0xff]
        %v1717 = vld [vmem:[%s1713 + $0x18] sm:$0xff]
        %1718 = vmatpush.msra.mxu0 %v729
        %1719 = vmatpush.msra.mxu0 %v725
        %1720 = vmatpush.msra.mxu0 %v721
        %1721 = vmatpush.msra.mxu0 %v717
        %1722 = vmatpush.msra.mxu0 %v713
        %1723 = vmatpush.msra.mxu0 %v709
        %1724 = vmatpush.msra.mxu0 %v705
        %1725 = vmatpush.msra.mxu0 %v701
        %1726 = vmatpush.msra.mxu0 %v697
        %1727 = vmatpush.msra.mxu0 %v693
        %1728 = vmatpush.msra.mxu0 %v689
        %1729 = vmatpush.msra.mxu0 %v685
        %1730 = vmatpush.msra.mxu0 %v681
        %1731 = vmatpush.msra.mxu0 %v677
        %1732 = vmatpush.msra.mxu0 %v673
        %1733 = vmatpush.msra.mxu0 %v669
        %1734 = vmatmul.f32.gmra.mxu0 %v1707
        %v1735 = vpop.f32.mrf.mxu0
        %v1736 = vadd.f32 0.0, %v1735
        %1737 = vdwg.mxu0
        %1738 = vmatpush.msra.mxu0 %v730
        %1739 = vmatpush.msra.mxu0 %v726
        %1740 = vmatpush.msra.mxu0 %v722
        %1741 = vmatpush.msra.mxu0 %v718
        %1742 = vmatpush.msra.mxu0 %v714
        %1743 = vmatpush.msra.mxu0 %v710
        %1744 = vmatpush.msra.mxu0 %v706
        %1745 = vmatpush.msra.mxu0 %v702
        %1746 = vmatpush.msra.mxu0 %v698
        %1747 = vmatpush.msra.mxu0 %v694
        %1748 = vmatpush.msra.mxu0 %v690
        %1749 = vmatpush.msra.mxu0 %v686
        %1750 = vmatpush.msra.mxu0 %v682
        %1751 = vmatpush.msra.mxu0 %v678
        %1752 = vmatpush.msra.mxu0 %v674
        %1753 = vmatpush.msra.mxu0 %v670
        %1754 = vmatmul.f32.gmra.mxu0 %v1707
        %v1755 = vpop.f32.mrf.mxu0
        %v1756 = vadd.f32 0.0, %v1755
        %1757 = vdwg.mxu0
        %1758 = vmatpush.msra.mxu0 %v731
        %1759 = vmatpush.msra.mxu0 %v727
        %1760 = vmatpush.msra.mxu0 %v723
        %1761 = vmatpush.msra.mxu0 %v719
        %1762 = vmatpush.msra.mxu0 %v715
        %1763 = vmatpush.msra.mxu0 %v711
        %1764 = vmatpush.msra.mxu0 %v707
        %1765 = vmatpush.msra.mxu0 %v703
        %1766 = vmatpush.msra.mxu0 %v699
        %1767 = vmatpush.msra.mxu0 %v695
        %1768 = vmatpush.msra.mxu0 %v691
        %1769 = vmatpush.msra.mxu0 %v687
        %1770 = vmatpush.msra.mxu0 %v683
        %1771 = vmatpush.msra.mxu0 %v679
        %1772 = vmatpush.msra.mxu0 %v675
        %1773 = vmatpush.msra.mxu0 %v671
        %1774 = vmatmul.f32.gmra.mxu0 %v1707
        %v1775 = vpop.f32.mrf.mxu0
        %v1776 = vadd.f32 0.0, %v1775
        %1777 = vdwg.mxu0
        %1778 = vmatpush.msra.mxu0 %v732
        %1779 = vmatpush.msra.mxu0 %v728
        %1780 = vmatpush.msra.mxu0 %v724
        %1781 = vmatpush.msra.mxu0 %v720
        %1782 = vmatpush.msra.mxu0 %v716
        %1783 = vmatpush.msra.mxu0 %v712
        %1784 = vmatpush.msra.mxu0 %v708
        %1785 = vmatpush.msra.mxu0 %v704
        %1786 = vmatpush.msra.mxu0 %v700
        %1787 = vmatpush.msra.mxu0 %v696
        %1788 = vmatpush.msra.mxu0 %v692
        %1789 = vmatpush.msra.mxu0 %v688
        %1790 = vmatpush.msra.mxu0 %v684
        %1791 = vmatpush.msra.mxu0 %v680
        %1792 = vmatpush.msra.mxu0 %v676
        %1793 = vmatpush.msra.mxu0 %v672
        %1794 = vmatmul.f32.gmra.mxu0 %v1707
        %v1795 = vpop.f32.mrf.mxu0
        %v1796 = vadd.f32 0.0, %v1795
        %1797 = vdwg.mxu0
        %v1798 = vadd.f32 %v1714, %v1736
        %v1799 = vadd.f32 %v1715, %v1756
        %v1800 = vadd.f32 %v1716, %v1776
        %v1801 = vadd.f32 %v1717, %v1796
        %v1802 = vxor.u32 %v1798, 2147483648
        %v1803 = vmul.f32 %v1802, 1.442695
        %v1804 = vpow.pop %v1803
        %v1805 = vadd.f32 %v1804, 1.0
        %v1806 = vrcp.pop %v1805
        %v1807 = vmul.f32 %v1805, %v1806
        %v1808 = vsub.f32 1.0, %v1807
        %v1809 = vmul.f32 %v1806, %v1808
        %v1810 = vadd.f32 %v1806, %v1809
        %vm1811 = vweird.f32 %v1805
        %vm1812 = vweird.f32 %v1806
        %vm1813 = vmor %vm1811, %vm1812
        %v1814 = vsel %vm1813, %v1806, %v1810
        %v1815 = vand.u32 2147483647, %v1805
        %vm1816 = vcmp.eq.f32.partialorder %v1815, 8.507059e+37
        %v1817 = vand.u32 %v1805, 2147483648
        %v1818 = vor.u32 1.1754944e-38, %v1817
        %v1819 = vsel %vm1816, %v1818, %v1814
        %v1820 = vmul.f32 1.0, %v1819
        %v1821 = vxor.u32 %v1799, 2147483648
        %v1822 = vmul.f32 %v1821, 1.442695
        %v1823 = vpow.pop %v1822
        %v1824 = vadd.f32 %v1823, 1.0
        %v1825 = vrcp.pop %v1824
        %v1826 = vmul.f32 %v1824, %v1825
        %v1827 = vsub.f32 1.0, %v1826
        %v1828 = vmul.f32 %v1825, %v1827
        %v1829 = vadd.f32 %v1825, %v1828
        %vm1830 = vweird.f32 %v1824
        %vm1831 = vweird.f32 %v1825
        %vm1832 = vmor %vm1830, %vm1831
        %v1833 = vsel %vm1832, %v1825, %v1829
        %v1834 = vand.u32 2147483647, %v1824
        %vm1835 = vcmp.eq.f32.partialorder %v1834, 8.507059e+37
        %v1836 = vand.u32 %v1824, 2147483648
        %v1837 = vor.u32 1.1754944e-38, %v1836
        %v1838 = vsel %vm1835, %v1837, %v1833
        %v1839 = vmul.f32 1.0, %v1838
        %v1840 = vtanh.pop %v1800
        %v1841 = vxor.u32 %v1801, 2147483648
        %v1842 = vmul.f32 %v1841, 1.442695
        %v1843 = vpow.pop %v1842
        %v1844 = vadd.f32 %v1843, 1.0
        %v1845 = vrcp.pop %v1844
        %v1846 = vmul.f32 %v1844, %v1845
        %v1847 = vsub.f32 1.0, %v1846
        %v1848 = vmul.f32 %v1845, %v1847
        %v1849 = vadd.f32 %v1845, %v1848
        %vm1850 = vweird.f32 %v1844
        %vm1851 = vweird.f32 %v1845
        %vm1852 = vmor %vm1850, %vm1851
        %v1853 = vsel %vm1852, %v1845, %v1849
        %v1854 = vand.u32 2147483647, %v1844
        %vm1855 = vcmp.eq.f32.partialorder %v1854, 8.507059e+37
        %v1856 = vand.u32 %v1844, 2147483648
        %v1857 = vor.u32 1.1754944e-38, %v1856
        %v1858 = vsel %vm1855, %v1857, %v1853
        %v1859 = vmul.f32 1.0, %v1858
        %v1860 = vmul.f32 %v1839, %v1708
        %v1861 = vmul.f32 %v1820, %v1840
        %v1862 = vadd.f32 %v1860, %v1861
        %v1863 = vtanh.pop %v1862
        %v1864 = vmul.f32 %v1859, %v1863
        %s1865 = sadd.s32 %s378, 6
        %p1866 = scmp.lt.s32.totalorder %s1865, 12
        %s1867 = scalar_select %p1866, 1, 0
        %v1868 = vstv %s1867
        %vm1869 = vcmp.eq.s32.totalorder %v1868, 1
        %v1870 = vsel %vm1869, %v1864, %v1707
        %v1871 = vsel %vm1869, %v1862, %v1708
        %s1872 = scalar_lea.vmem [#allocation2], 48
        %1873 = vst [vmem:[%s1872] sm:$0xff] %v1870
        %s1874 = smul.u32 7, 4
        %s1875 = smul.addr %s1874, 8
        %s1876 = scalar_lea.vmem [#allocation4], %s1875
        %v1877 = vld [vmem:[%s1876] sm:$0xff]
        %v1878 = vld [vmem:[%s1876 + $0x8] sm:$0xff]
        %v1879 = vld [vmem:[%s1876 + $0x10] sm:$0xff]
        %v1880 = vld [vmem:[%s1876 + $0x18] sm:$0xff]
        %1881 = vmatpush.msra.mxu0 %v729
        %1882 = vmatpush.msra.mxu0 %v725
        %1883 = vmatpush.msra.mxu0 %v721
        %1884 = vmatpush.msra.mxu0 %v717
        %1885 = vmatpush.msra.mxu0 %v713
        %1886 = vmatpush.msra.mxu0 %v709
        %1887 = vmatpush.msra.mxu0 %v705
        %1888 = vmatpush.msra.mxu0 %v701
        %1889 = vmatpush.msra.mxu0 %v697
        %1890 = vmatpush.msra.mxu0 %v693
        %1891 = vmatpush.msra.mxu0 %v689
        %1892 = vmatpush.msra.mxu0 %v685
        %1893 = vmatpush.msra.mxu0 %v681
        %1894 = vmatpush.msra.mxu0 %v677
        %1895 = vmatpush.msra.mxu0 %v673
        %1896 = vmatpush.msra.mxu0 %v669
        %1897 = vmatmul.f32.gmra.mxu0 %v1870
        %v1898 = vpop.f32.mrf.mxu0
        %v1899 = vadd.f32 0.0, %v1898
        %1900 = vdwg.mxu0
        %1901 = vmatpush.msra.mxu0 %v730
        %1902 = vmatpush.msra.mxu0 %v726
        %1903 = vmatpush.msra.mxu0 %v722
        %1904 = vmatpush.msra.mxu0 %v718
        %1905 = vmatpush.msra.mxu0 %v714
        %1906 = vmatpush.msra.mxu0 %v710
        %1907 = vmatpush.msra.mxu0 %v706
        %1908 = vmatpush.msra.mxu0 %v702
        %1909 = vmatpush.msra.mxu0 %v698
        %1910 = vmatpush.msra.mxu0 %v694
        %1911 = vmatpush.msra.mxu0 %v690
        %1912 = vmatpush.msra.mxu0 %v686
        %1913 = vmatpush.msra.mxu0 %v682
        %1914 = vmatpush.msra.mxu0 %v678
        %1915 = vmatpush.msra.mxu0 %v674
        %1916 = vmatpush.msra.mxu0 %v670
        %1917 = vmatmul.f32.gmra.mxu0 %v1870
        %v1918 = vpop.f32.mrf.mxu0
        %v1919 = vadd.f32 0.0, %v1918
        %1920 = vdwg.mxu0
        %1921 = vmatpush.msra.mxu0 %v731
        %1922 = vmatpush.msra.mxu0 %v727
        %1923 = vmatpush.msra.mxu0 %v723
        %1924 = vmatpush.msra.mxu0 %v719
        %1925 = vmatpush.msra.mxu0 %v715
        %1926 = vmatpush.msra.mxu0 %v711
        %1927 = vmatpush.msra.mxu0 %v707
        %1928 = vmatpush.msra.mxu0 %v703
        %1929 = vmatpush.msra.mxu0 %v699
        %1930 = vmatpush.msra.mxu0 %v695
        %1931 = vmatpush.msra.mxu0 %v691
        %1932 = vmatpush.msra.mxu0 %v687
        %1933 = vmatpush.msra.mxu0 %v683
        %1934 = vmatpush.msra.mxu0 %v679
        %1935 = vmatpush.msra.mxu0 %v675
        %1936 = vmatpush.msra.mxu0 %v671
        %1937 = vmatmul.f32.gmra.mxu0 %v1870
        %v1938 = vpop.f32.mrf.mxu0
        %v1939 = vadd.f32 0.0, %v1938
        %1940 = vdwg.mxu0
        %1941 = vmatpush.msra.mxu0 %v732
        %1942 = vmatpush.msra.mxu0 %v728
        %1943 = vmatpush.msra.mxu0 %v724
        %1944 = vmatpush.msra.mxu0 %v720
        %1945 = vmatpush.msra.mxu0 %v716
        %1946 = vmatpush.msra.mxu0 %v712
        %1947 = vmatpush.msra.mxu0 %v708
        %1948 = vmatpush.msra.mxu0 %v704
        %1949 = vmatpush.msra.mxu0 %v700
        %1950 = vmatpush.msra.mxu0 %v696
        %1951 = vmatpush.msra.mxu0 %v692
        %1952 = vmatpush.msra.mxu0 %v688
        %1953 = vmatpush.msra.mxu0 %v684
        %1954 = vmatpush.msra.mxu0 %v680
        %1955 = vmatpush.msra.mxu0 %v676
        %1956 = vmatpush.msra.mxu0 %v672
        %1957 = vmatmul.f32.gmra.mxu0 %v1870
        %v1958 = vpop.f32.mrf.mxu0
        %v1959 = vadd.f32 0.0, %v1958
        %1960 = vdwg.mxu0
        %v1961 = vadd.f32 %v1877, %v1899
        %v1962 = vadd.f32 %v1878, %v1919
        %v1963 = vadd.f32 %v1879, %v1939
        %v1964 = vadd.f32 %v1880, %v1959
        %v1965 = vxor.u32 %v1961, 2147483648
        %v1966 = vmul.f32 %v1965, 1.442695
        %v1967 = vpow.pop %v1966
        %v1968 = vadd.f32 %v1967, 1.0
        %v1969 = vrcp.pop %v1968
        %v1970 = vmul.f32 %v1968, %v1969
        %v1971 = vsub.f32 1.0, %v1970
        %v1972 = vmul.f32 %v1969, %v1971
        %v1973 = vadd.f32 %v1969, %v1972
        %vm1974 = vweird.f32 %v1968
        %vm1975 = vweird.f32 %v1969
        %vm1976 = vmor %vm1974, %vm1975
        %v1977 = vsel %vm1976, %v1969, %v1973
        %v1978 = vand.u32 2147483647, %v1968
        %vm1979 = vcmp.eq.f32.partialorder %v1978, 8.507059e+37
        %v1980 = vand.u32 %v1968, 2147483648
        %v1981 = vor.u32 1.1754944e-38, %v1980
        %v1982 = vsel %vm1979, %v1981, %v1977
        %v1983 = vmul.f32 1.0, %v1982
        %v1984 = vxor.u32 %v1962, 2147483648
        %v1985 = vmul.f32 %v1984, 1.442695
        %v1986 = vpow.pop %v1985
        %v1987 = vadd.f32 %v1986, 1.0
        %v1988 = vrcp.pop %v1987
        %v1989 = vmul.f32 %v1987, %v1988
        %v1990 = vsub.f32 1.0, %v1989
        %v1991 = vmul.f32 %v1988, %v1990
        %v1992 = vadd.f32 %v1988, %v1991
        %vm1993 = vweird.f32 %v1987
        %vm1994 = vweird.f32 %v1988
        %vm1995 = vmor %vm1993, %vm1994
        %v1996 = vsel %vm1995, %v1988, %v1992
        %v1997 = vand.u32 2147483647, %v1987
        %vm1998 = vcmp.eq.f32.partialorder %v1997, 8.507059e+37
        %v1999 = vand.u32 %v1987, 2147483648
        %v2000 = vor.u32 1.1754944e-38, %v1999
        %v2001 = vsel %vm1998, %v2000, %v1996
        %v2002 = vmul.f32 1.0, %v2001
        %v2003 = vtanh.pop %v1963
        %v2004 = vxor.u32 %v1964, 2147483648
        %v2005 = vmul.f32 %v2004, 1.442695
        %v2006 = vpow.pop %v2005
        %v2007 = vadd.f32 %v2006, 1.0
        %v2008 = vrcp.pop %v2007
        %v2009 = vmul.f32 %v2007, %v2008
        %v2010 = vsub.f32 1.0, %v2009
        %v2011 = vmul.f32 %v2008, %v2010
        %v2012 = vadd.f32 %v2008, %v2011
        %vm2013 = vweird.f32 %v2007
        %vm2014 = vweird.f32 %v2008
        %vm2015 = vmor %vm2013, %vm2014
        %v2016 = vsel %vm2015, %v2008, %v2012
        %v2017 = vand.u32 2147483647, %v2007
        %vm2018 = vcmp.eq.f32.partialorder %v2017, 8.507059e+37
        %v2019 = vand.u32 %v2007, 2147483648
        %v2020 = vor.u32 1.1754944e-38, %v2019
        %v2021 = vsel %vm2018, %v2020, %v2016
        %v2022 = vmul.f32 1.0, %v2021
        %v2023 = vmul.f32 %v2002, %v1871
        %v2024 = vmul.f32 %v1983, %v2003
        %v2025 = vadd.f32 %v2023, %v2024
        %v2026 = vtanh.pop %v2025
        %v2027 = vmul.f32 %v2022, %v2026
        %s2028 = sadd.s32 %s378, 7
        %p2029 = scmp.lt.s32.totalorder %s2028, 12
        %s2030 = scalar_select %p2029, 1, 0
        %v2031 = vstv %s2030
        %vm2032 = vcmp.eq.s32.totalorder %v2031, 1
        %v2033 = vsel %vm2032, %v2027, %v1870
        %v2034 = vsel %vm2032, %v2025, %v1871
        %s2035 = scalar_lea.vmem [#allocation2], 56
        %2036 = vst [vmem:[%s2035] sm:$0xff] %v2033
        %2037 = vst [vmem:[#allocation5] sm:$0xff] %v2033
        %2038 = vst [vmem:[#allocation6] sm:$0xff] %v2034
        %v2039 = vld [vmem:[#allocation2] sm:$0xff]
        %v2040 = vld [vmem:[#allocation2 + $0x8] sm:$0xff]
        %v2041 = vld [vmem:[#allocation2 + $0x10] sm:$0xff]
        %v2042 = vld [vmem:[#allocation2 + $0x18] sm:$0xff]
        %v2043 = vld [vmem:[#allocation2 + $0x20] sm:$0xff]
        %v2044 = vld [vmem:[#allocation2 + $0x28] sm:$0xff]
        %v2045 = vld [vmem:[#allocation2 + $0x30] sm:$0xff]
        %v2046 = vld [vmem:[#allocation2 + $0x38] sm:$0xff]
        %v2047 = vld [vmem:[%s2] sm:$0xff]
        %v2048 = vld [vmem:[%s2 + $0x8] sm:$0xff]
        %v2049 = vld [vmem:[%s2 + $0x10] sm:$0xff]
        %v2050 = vld [vmem:[%s2 + $0x18] sm:$0xff]
        %v2051 = vld [vmem:[%s2 + $0x20] sm:$0xff]
        %v2052 = vld [vmem:[%s2 + $0x28] sm:$0xff]
        %v2053 = vld [vmem:[%s2 + $0x30] sm:$0xff]
        %v2054 = vld [vmem:[%s2 + $0x38] sm:$0xff]
        %v2055 = vld [vmem:[%s2 + $0x40] sm:$0xff]
        %v2056 = vld [vmem:[%s2 + $0x48] sm:$0xff]
        %v2057 = vld [vmem:[%s2 + $0x50] sm:$0xff]
        %v2058 = vld [vmem:[%s2 + $0x58] sm:$0xff]
        %v2059 = vld [vmem:[%s2 + $0x60] sm:$0xff]
        %v2060 = vld [vmem:[%s2 + $0x68] sm:$0xff]
        %v2061 = vld [vmem:[%s2 + $0x70] sm:$0xff]
        %v2062 = vld [vmem:[%s2 + $0x78] sm:$0xff]
        %v2063 = vld [vmem:[%s2 + $0x80] sm:$0xff]
        %v2064 = vld [vmem:[%s2 + $0x88] sm:$0xff]
        %v2065 = vld [vmem:[%s2 + $0x90] sm:$0xff]
        %v2066 = vld [vmem:[%s2 + $0x98] sm:$0xff]
        %v2067 = vld [vmem:[%s2 + $0xa0] sm:$0xff]
        %v2068 = vld [vmem:[%s2 + $0xa8] sm:$0xff]
        %v2069 = vld [vmem:[%s2 + $0xb0] sm:$0xff]
        %v2070 = vld [vmem:[%s2 + $0xb8] sm:$0xff]
        %v2071 = vld [vmem:[%s2 + $0xc0] sm:$0xff]
        %v2072 = vld [vmem:[%s2 + $0xc8] sm:$0xff]
        %v2073 = vld [vmem:[%s2 + $0xd0] sm:$0xff]
        %v2074 = vld [vmem:[%s2 + $0xd8] sm:$0xff]
        %v2075 = vld [vmem:[%s2 + $0xe0] sm:$0xff]
        %v2076 = vld [vmem:[%s2 + $0xe8] sm:$0xff]
        %v2077 = vld [vmem:[%s2 + $0xf0] sm:$0xff]
        %v2078 = vld [vmem:[%s2 + $0xf8] sm:$0xff]
        %v2079 = vld [vmem:[%s2 + $0x100] sm:$0xff]
        %v2080 = vld [vmem:[%s2 + $0x108] sm:$0xff]
        %v2081 = vld [vmem:[%s2 + $0x110] sm:$0xff]
        %v2082 = vld [vmem:[%s2 + $0x118] sm:$0xff]
        %v2083 = vld [vmem:[%s2 + $0x120] sm:$0xff]
        %v2084 = vld [vmem:[%s2 + $0x128] sm:$0xff]
        %v2085 = vld [vmem:[%s2 + $0x130] sm:$0xff]
        %v2086 = vld [vmem:[%s2 + $0x138] sm:$0xff]
        %v2087 = vld [vmem:[%s2 + $0x140] sm:$0xff]
        %v2088 = vld [vmem:[%s2 + $0x148] sm:$0xff]
        %v2089 = vld [vmem:[%s2 + $0x150] sm:$0xff]
        %v2090 = vld [vmem:[%s2 + $0x158] sm:$0xff]
        %v2091 = vld [vmem:[%s2 + $0x160] sm:$0xff]
        %v2092 = vld [vmem:[%s2 + $0x168] sm:$0xff]
        %v2093 = vld [vmem:[%s2 + $0x170] sm:$0xff]
        %v2094 = vld [vmem:[%s2 + $0x178] sm:$0xff]
        %v2095 = vld [vmem:[%s2 + $0x180] sm:$0xff]
        %v2096 = vld [vmem:[%s2 + $0x188] sm:$0xff]
        %v2097 = vld [vmem:[%s2 + $0x190] sm:$0xff]
        %v2098 = vld [vmem:[%s2 + $0x198] sm:$0xff]
        %v2099 = vld [vmem:[%s2 + $0x1a0] sm:$0xff]
        %v2100 = vld [vmem:[%s2 + $0x1a8] sm:$0xff]
        %v2101 = vld [vmem:[%s2 + $0x1b0] sm:$0xff]
        %v2102 = vld [vmem:[%s2 + $0x1b8] sm:$0xff]
        %v2103 = vld [vmem:[%s2 + $0x1c0] sm:$0xff]
        %v2104 = vld [vmem:[%s2 + $0x1c8] sm:$0xff]
        %v2105 = vld [vmem:[%s2 + $0x1d0] sm:$0xff]
        %v2106 = vld [vmem:[%s2 + $0x1d8] sm:$0xff]
        %v2107 = vld [vmem:[%s2 + $0x1e0] sm:$0xff]
        %v2108 = vld [vmem:[%s2 + $0x1e8] sm:$0xff]
        %v2109 = vld [vmem:[%s2 + $0x1f0] sm:$0xff]
        %v2110 = vld [vmem:[%s2 + $0x1f8] sm:$0xff]
        %s2111 = scalar_lea.vmem %s4, 4
        %v2112 = vld [vmem:[%s2111] sm:$0xf]
        %v2114 = vperm.slane %v2112, 0
        %v2115 = vperm.slane %v2112, 1
        %v2116 = vperm.slane %v2112, 2
        %v2117 = vperm.slane %v2112, 3
        %2122 = vmatpush.msra.mxu0 %v2107
        %2123 = vmatpush.msra.mxu0 %v2103
        %2124 = vmatpush.msra.mxu0 %v2099
        %2125 = vmatpush.msra.mxu0 %v2095
        %2126 = vmatpush.msra.mxu0 %v2091
        %2127 = vmatpush.msra.mxu0 %v2087
        %2128 = vmatpush.msra.mxu0 %v2083
        %2129 = vmatpush.msra.mxu0 %v2079
        %2130 = vmatpush.msra.mxu0 %v2075
        %2131 = vmatpush.msra.mxu0 %v2071
        %2132 = vmatpush.msra.mxu0 %v2067
        %2133 = vmatpush.msra.mxu0 %v2063
        %2134 = vmatpush.msra.mxu0 %v2059
        %2135 = vmatpush.msra.mxu0 %v2055
        %2136 = vmatpush.msra.mxu0 %v2051
        %2137 = vmatpush.msra.mxu0 %v2047
        %2138 = vmatmul.f32.gmra.mxu0 %v2039
        %v2139 = vpop.f32.mrf.mxu0
        %v2140 = vadd.f32 %v2114, %v2139
        %2141 = vmatmul.f32.gmra.mxu0 %v2040
        %v2142 = vpop.f32.mrf.mxu0
        %v2143 = vadd.f32 %v2114, %v2142
        %2144 = vmatmul.f32.gmra.mxu0 %v2041
        %v2145 = vpop.f32.mrf.mxu0
        %v2146 = vadd.f32 %v2114, %v2145
        %2147 = vmatmul.f32.gmra.mxu0 %v2042
        %v2148 = vpop.f32.mrf.mxu0
        %v2149 = vadd.f32 %v2114, %v2148
        %2150 = vmatmul.f32.gmra.mxu0 %v2043
        %v2151 = vpop.f32.mrf.mxu0
        %v2152 = vadd.f32 %v2114, %v2151
        %2153 = vmatmul.f32.gmra.mxu0 %v2044
        %v2154 = vpop.f32.mrf.mxu0
        %v2155 = vadd.f32 %v2114, %v2154
        %2156 = vmatmul.f32.gmra.mxu0 %v2045
        %v2157 = vpop.f32.mrf.mxu0
        %v2158 = vadd.f32 %v2114, %v2157
        %2159 = vmatmul.f32.gmra.mxu0 %v2046
        %v2160 = vpop.f32.mrf.mxu0
        %v2161 = vadd.f32 %v2114, %v2160
        %2162 = vdwg.mxu0
        %2163 = vmatpush.msra.mxu0 %v2108
        %2164 = vmatpush.msra.mxu0 %v2104
        %2165 = vmatpush.msra.mxu0 %v2100
        %2166 = vmatpush.msra.mxu0 %v2096
        %2167 = vmatpush.msra.mxu0 %v2092
        %2168 = vmatpush.msra.mxu0 %v2088
        %2169 = vmatpush.msra.mxu0 %v2084
        %2170 = vmatpush.msra.mxu0 %v2080
        %2171 = vmatpush.msra.mxu0 %v2076
        %2172 = vmatpush.msra.mxu0 %v2072
        %2173 = vmatpush.msra.mxu0 %v2068
        %2174 = vmatpush.msra.mxu0 %v2064
        %2175 = vmatpush.msra.mxu0 %v2060
        %2176 = vmatpush.msra.mxu0 %v2056
        %2177 = vmatpush.msra.mxu0 %v2052
        %2178 = vmatpush.msra.mxu0 %v2048
        %2179 = vmatmul.f32.gmra.mxu0 %v2039
        %v2180 = vpop.f32.mrf.mxu0
        %v2181 = vadd.f32 %v2115, %v2180
        %2182 = vmatmul.f32.gmra.mxu0 %v2040
        %v2183 = vpop.f32.mrf.mxu0
        %v2184 = vadd.f32 %v2115, %v2183
        %2185 = vmatmul.f32.gmra.mxu0 %v2041
        %v2186 = vpop.f32.mrf.mxu0
        %v2187 = vadd.f32 %v2115, %v2186
        %2188 = vmatmul.f32.gmra.mxu0 %v2042
        %v2189 = vpop.f32.mrf.mxu0
        %v2190 = vadd.f32 %v2115, %v2189
        %2191 = vmatmul.f32.gmra.mxu0 %v2043
        %v2192 = vpop.f32.mrf.mxu0
        %v2193 = vadd.f32 %v2115, %v2192
        %2194 = vmatmul.f32.gmra.mxu0 %v2044
        %v2195 = vpop.f32.mrf.mxu0
        %v2196 = vadd.f32 %v2115, %v2195
        %2197 = vmatmul.f32.gmra.mxu0 %v2045
        %v2198 = vpop.f32.mrf.mxu0
        %v2199 = vadd.f32 %v2115, %v2198
        %2200 = vmatmul.f32.gmra.mxu0 %v2046
        %v2201 = vpop.f32.mrf.mxu0
        %v2202 = vadd.f32 %v2115, %v2201
        %2203 = vdwg.mxu0
        %2204 = vmatpush.msra.mxu0 %v2109
        %2205 = vmatpush.msra.mxu0 %v2105
        %2206 = vmatpush.msra.mxu0 %v2101
        %2207 = vmatpush.msra.mxu0 %v2097
        %2208 = vmatpush.msra.mxu0 %v2093
        %2209 = vmatpush.msra.mxu0 %v2089
        %2210 = vmatpush.msra.mxu0 %v2085
        %2211 = vmatpush.msra.mxu0 %v2081
        %2212 = vmatpush.msra.mxu0 %v2077
        %2213 = vmatpush.msra.mxu0 %v2073
        %2214 = vmatpush.msra.mxu0 %v2069
        %2215 = vmatpush.msra.mxu0 %v2065
        %2216 = vmatpush.msra.mxu0 %v2061
        %2217 = vmatpush.msra.mxu0 %v2057
        %2218 = vmatpush.msra.mxu0 %v2053
        %2219 = vmatpush.msra.mxu0 %v2049
        %2220 = vmatmul.f32.gmra.mxu0 %v2039
        %v2221 = vpop.f32.mrf.mxu0
        %v2222 = vadd.f32 %v2116, %v2221
        %2223 = vmatmul.f32.gmra.mxu0 %v2040
        %v2224 = vpop.f32.mrf.mxu0
        %v2225 = vadd.f32 %v2116, %v2224
        %2226 = vmatmul.f32.gmra.mxu0 %v2041
        %v2227 = vpop.f32.mrf.mxu0
        %v2228 = vadd.f32 %v2116, %v2227
        %2229 = vmatmul.f32.gmra.mxu0 %v2042
        %v2230 = vpop.f32.mrf.mxu0
        %v2231 = vadd.f32 %v2116, %v2230
        %2232 = vmatmul.f32.gmra.mxu0 %v2043
        %v2233 = vpop.f32.mrf.mxu0
        %v2234 = vadd.f32 %v2116, %v2233
        %2235 = vmatmul.f32.gmra.mxu0 %v2044
        %v2236 = vpop.f32.mrf.mxu0
        %v2237 = vadd.f32 %v2116, %v2236
        %2238 = vmatmul.f32.gmra.mxu0 %v2045
        %v2239 = vpop.f32.mrf.mxu0
        %v2240 = vadd.f32 %v2116, %v2239
        %2241 = vmatmul.f32.gmra.mxu0 %v2046
        %v2242 = vpop.f32.mrf.mxu0
        %v2243 = vadd.f32 %v2116, %v2242
        %2244 = vdwg.mxu0
        %2245 = vmatpush.msra.mxu0 %v2110
        %2246 = vmatpush.msra.mxu0 %v2106
        %2247 = vmatpush.msra.mxu0 %v2102
        %2248 = vmatpush.msra.mxu0 %v2098
        %2249 = vmatpush.msra.mxu0 %v2094
        %2250 = vmatpush.msra.mxu0 %v2090
        %2251 = vmatpush.msra.mxu0 %v2086
        %2252 = vmatpush.msra.mxu0 %v2082
        %2253 = vmatpush.msra.mxu0 %v2078
        %2254 = vmatpush.msra.mxu0 %v2074
        %2255 = vmatpush.msra.mxu0 %v2070
        %2256 = vmatpush.msra.mxu0 %v2066
        %2257 = vmatpush.msra.mxu0 %v2062
        %2258 = vmatpush.msra.mxu0 %v2058
        %2259 = vmatpush.msra.mxu0 %v2054
        %2260 = vmatpush.msra.mxu0 %v2050
        %2261 = vmatmul.f32.gmra.mxu0 %v2039
        %v2262 = vpop.f32.mrf.mxu0
        %v2263 = vadd.f32 %v2117, %v2262
        %2264 = vmatmul.f32.gmra.mxu0 %v2040
        %v2265 = vpop.f32.mrf.mxu0
        %v2266 = vadd.f32 %v2117, %v2265
        %2267 = vmatmul.f32.gmra.mxu0 %v2041
        %v2268 = vpop.f32.mrf.mxu0
        %v2269 = vadd.f32 %v2117, %v2268
        %2270 = vmatmul.f32.gmra.mxu0 %v2042
        %v2271 = vpop.f32.mrf.mxu0
        %v2272 = vadd.f32 %v2117, %v2271
        %2273 = vmatmul.f32.gmra.mxu0 %v2043
        %v2274 = vpop.f32.mrf.mxu0
        %v2275 = vadd.f32 %v2117, %v2274
        %2276 = vmatmul.f32.gmra.mxu0 %v2044
        %v2277 = vpop.f32.mrf.mxu0
        %v2278 = vadd.f32 %v2117, %v2277
        %2279 = vmatmul.f32.gmra.mxu0 %v2045
        %v2280 = vpop.f32.mrf.mxu0
        %v2281 = vadd.f32 %v2117, %v2280
        %2282 = vmatmul.f32.gmra.mxu0 %v2046
        %v2283 = vpop.f32.mrf.mxu0
        %v2284 = vadd.f32 %v2117, %v2283
        %2285 = vdwg.mxu0
        %2286 = vst [vmem:[#allocation4] sm:$0xff] %v2140
        %2287 = vst [vmem:[#allocation4 + $0x8] sm:$0xff] %v2181
        %2288 = vst [vmem:[#allocation4 + $0x10] sm:$0xff] %v2222
        %2289 = vst [vmem:[#allocation4 + $0x18] sm:$0xff] %v2263
        %2290 = vst [vmem:[#allocation4 + $0x20] sm:$0xff] %v2143
        %2291 = vst [vmem:[#allocation4 + $0x28] sm:$0xff] %v2184
        %2292 = vst [vmem:[#allocation4 + $0x30] sm:$0xff] %v2225
        %2293 = vst [vmem:[#allocation4 + $0x38] sm:$0xff] %v2266
        %2294 = vst [vmem:[#allocation4 + $0x40] sm:$0xff] %v2146
        %2295 = vst [vmem:[#allocation4 + $0x48] sm:$0xff] %v2187
        %2296 = vst [vmem:[#allocation4 + $0x50] sm:$0xff] %v2228
        %2297 = vst [vmem:[#allocation4 + $0x58] sm:$0xff] %v2269
        %2298 = vst [vmem:[#allocation4 + $0x60] sm:$0xff] %v2149
        %2299 = vst [vmem:[#allocation4 + $0x68] sm:$0xff] %v2190
        %2300 = vst [vmem:[#allocation4 + $0x70] sm:$0xff] %v2231
        %2301 = vst [vmem:[#allocation4 + $0x78] sm:$0xff] %v2272
        %2302 = vst [vmem:[#allocation4 + $0x80] sm:$0xff] %v2152
        %2303 = vst [vmem:[#allocation4 + $0x88] sm:$0xff] %v2193
        %2304 = vst [vmem:[#allocation4 + $0x90] sm:$0xff] %v2234
        %2305 = vst [vmem:[#allocation4 + $0x98] sm:$0xff] %v2275
        %2306 = vst [vmem:[#allocation4 + $0xa0] sm:$0xff] %v2155
        %2307 = vst [vmem:[#allocation4 + $0xa8] sm:$0xff] %v2196
        %2308 = vst [vmem:[#allocation4 + $0xb0] sm:$0xff] %v2237
        %2309 = vst [vmem:[#allocation4 + $0xb8] sm:$0xff] %v2278
        %2310 = vst [vmem:[#allocation4 + $0xc0] sm:$0xff] %v2158
        %2311 = vst [vmem:[#allocation4 + $0xc8] sm:$0xff] %v2199
        %2312 = vst [vmem:[#allocation4 + $0xd0] sm:$0xff] %v2240
        %2313 = vst [vmem:[#allocation4 + $0xd8] sm:$0xff] %v2281
        %2314 = vst [vmem:[#allocation4 + $0xe0] sm:$0xff] %v2161
        %2315 = vst [vmem:[#allocation4 + $0xe8] sm:$0xff] %v2202
        %2316 = vst [vmem:[#allocation4 + $0xf0] sm:$0xff] %v2243
        %2317 = vst [vmem:[#allocation4 + $0xf8] sm:$0xff] %v2284
        %s2318 = scalar_lea.vmem %s3, 512
        %v2319 = vld [vmem:[%s2318] sm:$0xff]
        %v2320 = vld [vmem:[%s2318 + $0x8] sm:$0xff]
        %v2321 = vld [vmem:[%s2318 + $0x10] sm:$0xff]
        %v2322 = vld [vmem:[%s2318 + $0x18] sm:$0xff]
        %v2323 = vld [vmem:[%s2318 + $0x20] sm:$0xff]
        %v2324 = vld [vmem:[%s2318 + $0x28] sm:$0xff]
        %v2325 = vld [vmem:[%s2318 + $0x30] sm:$0xff]
        %v2326 = vld [vmem:[%s2318 + $0x38] sm:$0xff]
        %v2327 = vld [vmem:[%s2318 + $0x40] sm:$0xff]
        %v2328 = vld [vmem:[%s2318 + $0x48] sm:$0xff]
        %v2329 = vld [vmem:[%s2318 + $0x50] sm:$0xff]
        %v2330 = vld [vmem:[%s2318 + $0x58] sm:$0xff]
        %v2331 = vld [vmem:[%s2318 + $0x60] sm:$0xff]
        %v2332 = vld [vmem:[%s2318 + $0x68] sm:$0xff]
        %v2333 = vld [vmem:[%s2318 + $0x70] sm:$0xff]
        %v2334 = vld [vmem:[%s2318 + $0x78] sm:$0xff]
        %v2335 = vld [vmem:[%s2318 + $0x80] sm:$0xff]
        %v2336 = vld [vmem:[%s2318 + $0x88] sm:$0xff]
        %v2337 = vld [vmem:[%s2318 + $0x90] sm:$0xff]
        %v2338 = vld [vmem:[%s2318 + $0x98] sm:$0xff]
        %v2339 = vld [vmem:[%s2318 + $0xa0] sm:$0xff]
        %v2340 = vld [vmem:[%s2318 + $0xa8] sm:$0xff]
        %v2341 = vld [vmem:[%s2318 + $0xb0] sm:$0xff]
        %v2342 = vld [vmem:[%s2318 + $0xb8] sm:$0xff]
        %v2343 = vld [vmem:[%s2318 + $0xc0] sm:$0xff]
        %v2344 = vld [vmem:[%s2318 + $0xc8] sm:$0xff]
        %v2345 = vld [vmem:[%s2318 + $0xd0] sm:$0xff]
        %v2346 = vld [vmem:[%s2318 + $0xd8] sm:$0xff]
        %v2347 = vld [vmem:[%s2318 + $0xe0] sm:$0xff]
        %v2348 = vld [vmem:[%s2318 + $0xe8] sm:$0xff]
        %v2349 = vld [vmem:[%s2318 + $0xf0] sm:$0xff]
        %v2350 = vld [vmem:[%s2318 + $0xf8] sm:$0xff]
        %v2351 = vld [vmem:[%s2318 + $0x100] sm:$0xff]
        %v2352 = vld [vmem:[%s2318 + $0x108] sm:$0xff]
        %v2353 = vld [vmem:[%s2318 + $0x110] sm:$0xff]
        %v2354 = vld [vmem:[%s2318 + $0x118] sm:$0xff]
        %v2355 = vld [vmem:[%s2318 + $0x120] sm:$0xff]
        %v2356 = vld [vmem:[%s2318 + $0x128] sm:$0xff]
        %v2357 = vld [vmem:[%s2318 + $0x130] sm:$0xff]
        %v2358 = vld [vmem:[%s2318 + $0x138] sm:$0xff]
        %v2359 = vld [vmem:[%s2318 + $0x140] sm:$0xff]
        %v2360 = vld [vmem:[%s2318 + $0x148] sm:$0xff]
        %v2361 = vld [vmem:[%s2318 + $0x150] sm:$0xff]
        %v2362 = vld [vmem:[%s2318 + $0x158] sm:$0xff]
        %v2363 = vld [vmem:[%s2318 + $0x160] sm:$0xff]
        %v2364 = vld [vmem:[%s2318 + $0x168] sm:$0xff]
        %v2365 = vld [vmem:[%s2318 + $0x170] sm:$0xff]
        %v2366 = vld [vmem:[%s2318 + $0x178] sm:$0xff]
        %v2367 = vld [vmem:[%s2318 + $0x180] sm:$0xff]
        %v2368 = vld [vmem:[%s2318 + $0x188] sm:$0xff]
        %v2369 = vld [vmem:[%s2318 + $0x190] sm:$0xff]
        %v2370 = vld [vmem:[%s2318 + $0x198] sm:$0xff]
        %v2371 = vld [vmem:[%s2318 + $0x1a0] sm:$0xff]
        %v2372 = vld [vmem:[%s2318 + $0x1a8] sm:$0xff]
        %v2373 = vld [vmem:[%s2318 + $0x1b0] sm:$0xff]
        %v2374 = vld [vmem:[%s2318 + $0x1b8] sm:$0xff]
        %v2375 = vld [vmem:[%s2318 + $0x1c0] sm:$0xff]
        %v2376 = vld [vmem:[%s2318 + $0x1c8] sm:$0xff]
        %v2377 = vld [vmem:[%s2318 + $0x1d0] sm:$0xff]
        %v2378 = vld [vmem:[%s2318 + $0x1d8] sm:$0xff]
        %v2379 = vld [vmem:[%s2318 + $0x1e0] sm:$0xff]
        %v2380 = vld [vmem:[%s2318 + $0x1e8] sm:$0xff]
        %v2381 = vld [vmem:[%s2318 + $0x1f0] sm:$0xff]
        %v2382 = vld [vmem:[%s2318 + $0x1f8] sm:$0xff]
        %s2383 = scalar_lea.vmem [#allocation5], 8
        %v2384 = vld [vmem:[%s2383] sm:$0xff]
        %s2385 = scalar_lea.vmem [#allocation6], 8
        %v2386 = vld [vmem:[%s2385] sm:$0xff]
        %v2387 = vld [vmem:[%s737] sm:$0xff]
        %v2388 = vld [vmem:[%s737 + $0x8] sm:$0xff]
        %v2389 = vld [vmem:[%s737 + $0x10] sm:$0xff]
        %v2390 = vld [vmem:[%s737 + $0x18] sm:$0xff]
        %2391 = vmatpush.msra.mxu0 %v2379
        %2392 = vmatpush.msra.mxu0 %v2375
        %2393 = vmatpush.msra.mxu0 %v2371
        %2394 = vmatpush.msra.mxu0 %v2367
        %2395 = vmatpush.msra.mxu0 %v2363
        %2396 = vmatpush.msra.mxu0 %v2359
        %2397 = vmatpush.msra.mxu0 %v2355
        %2398 = vmatpush.msra.mxu0 %v2351
        %2399 = vmatpush.msra.mxu0 %v2347
        %2400 = vmatpush.msra.mxu0 %v2343
        %2401 = vmatpush.msra.mxu0 %v2339
        %2402 = vmatpush.msra.mxu0 %v2335
        %2403 = vmatpush.msra.mxu0 %v2331
        %2404 = vmatpush.msra.mxu0 %v2327
        %2405 = vmatpush.msra.mxu0 %v2323
        %2406 = vmatpush.msra.mxu0 %v2319
        %2407 = vmatmul.f32.gmra.mxu0 %v2384
        %v2408 = vpop.f32.mrf.mxu0
        %v2409 = vadd.f32 0.0, %v2408
        %2410 = vdwg.mxu0
        %2411 = vmatpush.msra.mxu0 %v2380
        %2412 = vmatpush.msra.mxu0 %v2376
        %2413 = vmatpush.msra.mxu0 %v2372
        %2414 = vmatpush.msra.mxu0 %v2368
        %2415 = vmatpush.msra.mxu0 %v2364
        %2416 = vmatpush.msra.mxu0 %v2360
        %2417 = vmatpush.msra.mxu0 %v2356
        %2418 = vmatpush.msra.mxu0 %v2352
        %2419 = vmatpush.msra.mxu0 %v2348
        %2420 = vmatpush.msra.mxu0 %v2344
        %2421 = vmatpush.msra.mxu0 %v2340
        %2422 = vmatpush.msra.mxu0 %v2336
        %2423 = vmatpush.msra.mxu0 %v2332
        %2424 = vmatpush.msra.mxu0 %v2328
        %2425 = vmatpush.msra.mxu0 %v2324
        %2426 = vmatpush.msra.mxu0 %v2320
        %2427 = vmatmul.f32.gmra.mxu0 %v2384
        %v2428 = vpop.f32.mrf.mxu0
        %v2429 = vadd.f32 0.0, %v2428
        %2430 = vdwg.mxu0
        %2431 = vmatpush.msra.mxu0 %v2381
        %2432 = vmatpush.msra.mxu0 %v2377
        %2433 = vmatpush.msra.mxu0 %v2373
        %2434 = vmatpush.msra.mxu0 %v2369
        %2435 = vmatpush.msra.mxu0 %v2365
        %2436 = vmatpush.msra.mxu0 %v2361
        %2437 = vmatpush.msra.mxu0 %v2357
        %2438 = vmatpush.msra.mxu0 %v2353
        %2439 = vmatpush.msra.mxu0 %v2349
        %2440 = vmatpush.msra.mxu0 %v2345
        %2441 = vmatpush.msra.mxu0 %v2341
        %2442 = vmatpush.msra.mxu0 %v2337
        %2443 = vmatpush.msra.mxu0 %v2333
        %2444 = vmatpush.msra.mxu0 %v2329
        %2445 = vmatpush.msra.mxu0 %v2325
        %2446 = vmatpush.msra.mxu0 %v2321
        %2447 = vmatmul.f32.gmra.mxu0 %v2384
        %v2448 = vpop.f32.mrf.mxu0
        %v2449 = vadd.f32 0.0, %v2448
        %2450 = vdwg.mxu0
        %2451 = vmatpush.msra.mxu0 %v2382
        %2452 = vmatpush.msra.mxu0 %v2378
        %2453 = vmatpush.msra.mxu0 %v2374
        %2454 = vmatpush.msra.mxu0 %v2370
        %2455 = vmatpush.msra.mxu0 %v2366
        %2456 = vmatpush.msra.mxu0 %v2362
        %2457 = vmatpush.msra.mxu0 %v2358
        %2458 = vmatpush.msra.mxu0 %v2354
        %2459 = vmatpush.msra.mxu0 %v2350
        %2460 = vmatpush.msra.mxu0 %v2346
        %2461 = vmatpush.msra.mxu0 %v2342
        %2462 = vmatpush.msra.mxu0 %v2338
        %2463 = vmatpush.msra.mxu0 %v2334
        %2464 = vmatpush.msra.mxu0 %v2330
        %2465 = vmatpush.msra.mxu0 %v2326
        %2466 = vmatpush.msra.mxu0 %v2322
        %2467 = vmatmul.f32.gmra.mxu0 %v2384
        %v2468 = vpop.f32.mrf.mxu0
        %v2469 = vadd.f32 0.0, %v2468
        %2470 = vdwg.mxu0
        %v2471 = vadd.f32 %v2387, %v2409
        %v2472 = vadd.f32 %v2388, %v2429
        %v2473 = vadd.f32 %v2389, %v2449
        %v2474 = vadd.f32 %v2390, %v2469
        %v2475 = vxor.u32 %v2471, 2147483648
        %v2476 = vmul.f32 %v2475, 1.442695
        %v2477 = vpow.pop %v2476
        %v2478 = vadd.f32 %v2477, 1.0
        %v2479 = vrcp.pop %v2478
        %v2480 = vmul.f32 %v2478, %v2479
        %v2481 = vsub.f32 1.0, %v2480
        %v2482 = vmul.f32 %v2479, %v2481
        %v2483 = vadd.f32 %v2479, %v2482
        %vm2484 = vweird.f32 %v2478
        %vm2485 = vweird.f32 %v2479
        %vm2486 = vmor %vm2484, %vm2485
        %v2487 = vsel %vm2486, %v2479, %v2483
        %v2488 = vand.u32 2147483647, %v2478
        %vm2489 = vcmp.eq.f32.partialorder %v2488, 8.507059e+37
        %v2490 = vand.u32 %v2478, 2147483648
        %v2491 = vor.u32 1.1754944e-38, %v2490
        %v2492 = vsel %vm2489, %v2491, %v2487
        %v2493 = vmul.f32 1.0, %v2492
        %v2494 = vxor.u32 %v2472, 2147483648
        %v2495 = vmul.f32 %v2494, 1.442695
        %v2496 = vpow.pop %v2495
        %v2497 = vadd.f32 %v2496, 1.0
        %v2498 = vrcp.pop %v2497
        %v2499 = vmul.f32 %v2497, %v2498
        %v2500 = vsub.f32 1.0, %v2499
        %v2501 = vmul.f32 %v2498, %v2500
        %v2502 = vadd.f32 %v2498, %v2501
        %vm2503 = vweird.f32 %v2497
        %vm2504 = vweird.f32 %v2498
        %vm2505 = vmor %vm2503, %vm2504
        %v2506 = vsel %vm2505, %v2498, %v2502
        %v2507 = vand.u32 2147483647, %v2497
        %vm2508 = vcmp.eq.f32.partialorder %v2507, 8.507059e+37
        %v2509 = vand.u32 %v2497, 2147483648
        %v2510 = vor.u32 1.1754944e-38, %v2509
        %v2511 = vsel %vm2508, %v2510, %v2506
        %v2512 = vmul.f32 1.0, %v2511
        %v2513 = vtanh.pop %v2473
        %v2514 = vxor.u32 %v2474, 2147483648
        %v2515 = vmul.f32 %v2514, 1.442695
        %v2516 = vpow.pop %v2515
        %v2517 = vadd.f32 %v2516, 1.0
        %v2518 = vrcp.pop %v2517
        %v2519 = vmul.f32 %v2517, %v2518
        %v2520 = vsub.f32 1.0, %v2519
        %v2521 = vmul.f32 %v2518, %v2520
        %v2522 = vadd.f32 %v2518, %v2521
        %vm2523 = vweird.f32 %v2517
        %vm2524 = vweird.f32 %v2518
        %vm2525 = vmor %vm2523, %vm2524
        %v2526 = vsel %vm2525, %v2518, %v2522
        %v2527 = vand.u32 2147483647, %v2517
        %vm2528 = vcmp.eq.f32.partialorder %v2527, 8.507059e+37
        %v2529 = vand.u32 %v2517, 2147483648
        %v2530 = vor.u32 1.1754944e-38, %v2529
        %v2531 = vsel %vm2528, %v2530, %v2526
        %v2532 = vmul.f32 1.0, %v2531
        %v2533 = vmul.f32 %v2512, %v2386
        %v2534 = vmul.f32 %v2493, %v2513
        %v2535 = vadd.f32 %v2533, %v2534
        %v2536 = vtanh.pop %v2535
        %v2537 = vmul.f32 %v2532, %v2536
        %v2538 = vsel %vm892, %v2537, %v2384
        %v2539 = vsel %vm892, %v2535, %v2386
        %2540 = vst [vmem:[#allocation3] sm:$0xff] %v2538
        %v2541 = vld [vmem:[%s898] sm:$0xff]
        %v2542 = vld [vmem:[%s898 + $0x8] sm:$0xff]
        %v2543 = vld [vmem:[%s898 + $0x10] sm:$0xff]
        %v2544 = vld [vmem:[%s898 + $0x18] sm:$0xff]
        %2545 = vmatpush.msra.mxu0 %v2379
        %2546 = vmatpush.msra.mxu0 %v2375
        %2547 = vmatpush.msra.mxu0 %v2371
        %2548 = vmatpush.msra.mxu0 %v2367
        %2549 = vmatpush.msra.mxu0 %v2363
        %2550 = vmatpush.msra.mxu0 %v2359
        %2551 = vmatpush.msra.mxu0 %v2355
        %2552 = vmatpush.msra.mxu0 %v2351
        %2553 = vmatpush.msra.mxu0 %v2347
        %2554 = vmatpush.msra.mxu0 %v2343
        %2555 = vmatpush.msra.mxu0 %v2339
        %2556 = vmatpush.msra.mxu0 %v2335
        %2557 = vmatpush.msra.mxu0 %v2331
        %2558 = vmatpush.msra.mxu0 %v2327
        %2559 = vmatpush.msra.mxu0 %v2323
        %2560 = vmatpush.msra.mxu0 %v2319
        %2561 = vmatmul.f32.gmra.mxu0 %v2538
        %v2562 = vpop.f32.mrf.mxu0
        %v2563 = vadd.f32 0.0, %v2562
        %2564 = vdwg.mxu0
        %2565 = vmatpush.msra.mxu0 %v2380
        %2566 = vmatpush.msra.mxu0 %v2376
        %2567 = vmatpush.msra.mxu0 %v2372
        %2568 = vmatpush.msra.mxu0 %v2368
        %2569 = vmatpush.msra.mxu0 %v2364
        %2570 = vmatpush.msra.mxu0 %v2360
        %2571 = vmatpush.msra.mxu0 %v2356
        %2572 = vmatpush.msra.mxu0 %v2352
        %2573 = vmatpush.msra.mxu0 %v2348
        %2574 = vmatpush.msra.mxu0 %v2344
        %2575 = vmatpush.msra.mxu0 %v2340
        %2576 = vmatpush.msra.mxu0 %v2336
        %2577 = vmatpush.msra.mxu0 %v2332
        %2578 = vmatpush.msra.mxu0 %v2328
        %2579 = vmatpush.msra.mxu0 %v2324
        %2580 = vmatpush.msra.mxu0 %v2320
        %2581 = vmatmul.f32.gmra.mxu0 %v2538
        %v2582 = vpop.f32.mrf.mxu0
        %v2583 = vadd.f32 0.0, %v2582
        %2584 = vdwg.mxu0
        %2585 = vmatpush.msra.mxu0 %v2381
        %2586 = vmatpush.msra.mxu0 %v2377
        %2587 = vmatpush.msra.mxu0 %v2373
        %2588 = vmatpush.msra.mxu0 %v2369
        %2589 = vmatpush.msra.mxu0 %v2365
        %2590 = vmatpush.msra.mxu0 %v2361
        %2591 = vmatpush.msra.mxu0 %v2357
        %2592 = vmatpush.msra.mxu0 %v2353
        %2593 = vmatpush.msra.mxu0 %v2349
        %2594 = vmatpush.msra.mxu0 %v2345
        %2595 = vmatpush.msra.mxu0 %v2341
        %2596 = vmatpush.msra.mxu0 %v2337
        %2597 = vmatpush.msra.mxu0 %v2333
        %2598 = vmatpush.msra.mxu0 %v2329
        %2599 = vmatpush.msra.mxu0 %v2325
        %2600 = vmatpush.msra.mxu0 %v2321
        %2601 = vmatmul.f32.gmra.mxu0 %v2538
        %v2602 = vpop.f32.mrf.mxu0
        %v2603 = vadd.f32 0.0, %v2602
        %2604 = vdwg.mxu0
        %2605 = vmatpush.msra.mxu0 %v2382
        %2606 = vmatpush.msra.mxu0 %v2378
        %2607 = vmatpush.msra.mxu0 %v2374
        %2608 = vmatpush.msra.mxu0 %v2370
        %2609 = vmatpush.msra.mxu0 %v2366
        %2610 = vmatpush.msra.mxu0 %v2362
        %2611 = vmatpush.msra.mxu0 %v2358
        %2612 = vmatpush.msra.mxu0 %v2354
        %2613 = vmatpush.msra.mxu0 %v2350
        %2614 = vmatpush.msra.mxu0 %v2346
        %2615 = vmatpush.msra.mxu0 %v2342
        %2616 = vmatpush.msra.mxu0 %v2338
        %2617 = vmatpush.msra.mxu0 %v2334
        %2618 = vmatpush.msra.mxu0 %v2330
        %2619 = vmatpush.msra.mxu0 %v2326
        %2620 = vmatpush.msra.mxu0 %v2322
        %2621 = vmatmul.f32.gmra.mxu0 %v2538
        %v2622 = vpop.f32.mrf.mxu0
        %v2623 = vadd.f32 0.0, %v2622
        %2624 = vdwg.mxu0
        %v2625 = vadd.f32 %v2541, %v2563
        %v2626 = vadd.f32 %v2542, %v2583
        %v2627 = vadd.f32 %v2543, %v2603
        %v2628 = vadd.f32 %v2544, %v2623
        %v2629 = vxor.u32 %v2625, 2147483648
        %v2630 = vmul.f32 %v2629, 1.442695
        %v2631 = vpow.pop %v2630
        %v2632 = vadd.f32 %v2631, 1.0
        %v2633 = vrcp.pop %v2632
        %v2634 = vmul.f32 %v2632, %v2633
        %v2635 = vsub.f32 1.0, %v2634
        %v2636 = vmul.f32 %v2633, %v2635
        %v2637 = vadd.f32 %v2633, %v2636
        %vm2638 = vweird.f32 %v2632
        %vm2639 = vweird.f32 %v2633
        %vm2640 = vmor %vm2638, %vm2639
        %v2641 = vsel %vm2640, %v2633, %v2637
        %v2642 = vand.u32 2147483647, %v2632
        %vm2643 = vcmp.eq.f32.partialorder %v2642, 8.507059e+37
        %v2644 = vand.u32 %v2632, 2147483648
        %v2645 = vor.u32 1.1754944e-38, %v2644
        %v2646 = vsel %vm2643, %v2645, %v2641
        %v2647 = vmul.f32 1.0, %v2646
        %v2648 = vxor.u32 %v2626, 2147483648
        %v2649 = vmul.f32 %v2648, 1.442695
        %v2650 = vpow.pop %v2649
        %v2651 = vadd.f32 %v2650, 1.0
        %v2652 = vrcp.pop %v2651
        %v2653 = vmul.f32 %v2651, %v2652
        %v2654 = vsub.f32 1.0, %v2653
        %v2655 = vmul.f32 %v2652, %v2654
        %v2656 = vadd.f32 %v2652, %v2655
        %vm2657 = vweird.f32 %v2651
        %vm2658 = vweird.f32 %v2652
        %vm2659 = vmor %vm2657, %vm2658
        %v2660 = vsel %vm2659, %v2652, %v2656
        %v2661 = vand.u32 2147483647, %v2651
        %vm2662 = vcmp.eq.f32.partialorder %v2661, 8.507059e+37
        %v2663 = vand.u32 %v2651, 2147483648
        %v2664 = vor.u32 1.1754944e-38, %v2663
        %v2665 = vsel %vm2662, %v2664, %v2660
        %v2666 = vmul.f32 1.0, %v2665
        %v2667 = vtanh.pop %v2627
        %v2668 = vxor.u32 %v2628, 2147483648
        %v2669 = vmul.f32 %v2668, 1.442695
        %v2670 = vpow.pop %v2669
        %v2671 = vadd.f32 %v2670, 1.0
        %v2672 = vrcp.pop %v2671
        %v2673 = vmul.f32 %v2671, %v2672
        %v2674 = vsub.f32 1.0, %v2673
        %v2675 = vmul.f32 %v2672, %v2674
        %v2676 = vadd.f32 %v2672, %v2675
        %vm2677 = vweird.f32 %v2671
        %vm2678 = vweird.f32 %v2672
        %vm2679 = vmor %vm2677, %vm2678
        %v2680 = vsel %vm2679, %v2672, %v2676
        %v2681 = vand.u32 2147483647, %v2671
        %vm2682 = vcmp.eq.f32.partialorder %v2681, 8.507059e+37
        %v2683 = vand.u32 %v2671, 2147483648
        %v2684 = vor.u32 1.1754944e-38, %v2683
        %v2685 = vsel %vm2682, %v2684, %v2680
        %v2686 = vmul.f32 1.0, %v2685
        %v2687 = vmul.f32 %v2666, %v2539
        %v2688 = vmul.f32 %v2647, %v2667
        %v2689 = vadd.f32 %v2687, %v2688
        %v2690 = vtanh.pop %v2689
        %v2691 = vmul.f32 %v2686, %v2690
        %v2692 = vsel %vm1054, %v2691, %v2538
        %v2693 = vsel %vm1054, %v2689, %v2539
        %s2694 = scalar_lea.vmem [#allocation3], 8
        %2695 = vst [vmem:[%s2694] sm:$0xff] %v2692
        %v2696 = vld [vmem:[%s1061] sm:$0xff]
        %v2697 = vld [vmem:[%s1061 + $0x8] sm:$0xff]
        %v2698 = vld [vmem:[%s1061 + $0x10] sm:$0xff]
        %v2699 = vld [vmem:[%s1061 + $0x18] sm:$0xff]
        %2700 = vmatpush.msra.mxu0 %v2379
        %2701 = vmatpush.msra.mxu0 %v2375
        %2702 = vmatpush.msra.mxu0 %v2371
        %2703 = vmatpush.msra.mxu0 %v2367
        %2704 = vmatpush.msra.mxu0 %v2363
        %2705 = vmatpush.msra.mxu0 %v2359
        %2706 = vmatpush.msra.mxu0 %v2355
        %2707 = vmatpush.msra.mxu0 %v2351
        %2708 = vmatpush.msra.mxu0 %v2347
        %2709 = vmatpush.msra.mxu0 %v2343
        %2710 = vmatpush.msra.mxu0 %v2339
        %2711 = vmatpush.msra.mxu0 %v2335
        %2712 = vmatpush.msra.mxu0 %v2331
        %2713 = vmatpush.msra.mxu0 %v2327
        %2714 = vmatpush.msra.mxu0 %v2323
        %2715 = vmatpush.msra.mxu0 %v2319
        %2716 = vmatmul.f32.gmra.mxu0 %v2692
        %v2717 = vpop.f32.mrf.mxu0
        %v2718 = vadd.f32 0.0, %v2717
        %2719 = vdwg.mxu0
        %2720 = vmatpush.msra.mxu0 %v2380
        %2721 = vmatpush.msra.mxu0 %v2376
        %2722 = vmatpush.msra.mxu0 %v2372
        %2723 = vmatpush.msra.mxu0 %v2368
        %2724 = vmatpush.msra.mxu0 %v2364
        %2725 = vmatpush.msra.mxu0 %v2360
        %2726 = vmatpush.msra.mxu0 %v2356
        %2727 = vmatpush.msra.mxu0 %v2352
        %2728 = vmatpush.msra.mxu0 %v2348
        %2729 = vmatpush.msra.mxu0 %v2344
        %2730 = vmatpush.msra.mxu0 %v2340
        %2731 = vmatpush.msra.mxu0 %v2336
        %2732 = vmatpush.msra.mxu0 %v2332
        %2733 = vmatpush.msra.mxu0 %v2328
        %2734 = vmatpush.msra.mxu0 %v2324
        %2735 = vmatpush.msra.mxu0 %v2320
        %2736 = vmatmul.f32.gmra.mxu0 %v2692
        %v2737 = vpop.f32.mrf.mxu0
        %v2738 = vadd.f32 0.0, %v2737
        %2739 = vdwg.mxu0
        %2740 = vmatpush.msra.mxu0 %v2381
        %2741 = vmatpush.msra.mxu0 %v2377
        %2742 = vmatpush.msra.mxu0 %v2373
        %2743 = vmatpush.msra.mxu0 %v2369
        %2744 = vmatpush.msra.mxu0 %v2365
        %2745 = vmatpush.msra.mxu0 %v2361
        %2746 = vmatpush.msra.mxu0 %v2357
        %2747 = vmatpush.msra.mxu0 %v2353
        %2748 = vmatpush.msra.mxu0 %v2349
        %2749 = vmatpush.msra.mxu0 %v2345
        %2750 = vmatpush.msra.mxu0 %v2341
        %2751 = vmatpush.msra.mxu0 %v2337
        %2752 = vmatpush.msra.mxu0 %v2333
        %2753 = vmatpush.msra.mxu0 %v2329
        %2754 = vmatpush.msra.mxu0 %v2325
        %2755 = vmatpush.msra.mxu0 %v2321
        %2756 = vmatmul.f32.gmra.mxu0 %v2692
        %v2757 = vpop.f32.mrf.mxu0
        %v2758 = vadd.f32 0.0, %v2757
        %2759 = vdwg.mxu0
        %2760 = vmatpush.msra.mxu0 %v2382
        %2761 = vmatpush.msra.mxu0 %v2378
        %2762 = vmatpush.msra.mxu0 %v2374
        %2763 = vmatpush.msra.mxu0 %v2370
        %2764 = vmatpush.msra.mxu0 %v2366
        %2765 = vmatpush.msra.mxu0 %v2362
        %2766 = vmatpush.msra.mxu0 %v2358
        %2767 = vmatpush.msra.mxu0 %v2354
        %2768 = vmatpush.msra.mxu0 %v2350
        %2769 = vmatpush.msra.mxu0 %v2346
        %2770 = vmatpush.msra.mxu0 %v2342
        %2771 = vmatpush.msra.mxu0 %v2338
        %2772 = vmatpush.msra.mxu0 %v2334
        %2773 = vmatpush.msra.mxu0 %v2330
        %2774 = vmatpush.msra.mxu0 %v2326
        %2775 = vmatpush.msra.mxu0 %v2322
        %2776 = vmatmul.f32.gmra.mxu0 %v2692
        %v2777 = vpop.f32.mrf.mxu0
        %v2778 = vadd.f32 0.0, %v2777
        %2779 = vdwg.mxu0
        %v2780 = vadd.f32 %v2696, %v2718
        %v2781 = vadd.f32 %v2697, %v2738
        %v2782 = vadd.f32 %v2698, %v2758
        %v2783 = vadd.f32 %v2699, %v2778
        %v2784 = vxor.u32 %v2780, 2147483648
        %v2785 = vmul.f32 %v2784, 1.442695
        %v2786 = vpow.pop %v2785
        %v2787 = vadd.f32 %v2786, 1.0
        %v2788 = vrcp.pop %v2787
        %v2789 = vmul.f32 %v2787, %v2788
        %v2790 = vsub.f32 1.0, %v2789
        %v2791 = vmul.f32 %v2788, %v2790
        %v2792 = vadd.f32 %v2788, %v2791
        %vm2793 = vweird.f32 %v2787
        %vm2794 = vweird.f32 %v2788
        %vm2795 = vmor %vm2793, %vm2794
        %v2796 = vsel %vm2795, %v2788, %v2792
        %v2797 = vand.u32 2147483647, %v2787
        %vm2798 = vcmp.eq.f32.partialorder %v2797, 8.507059e+37
        %v2799 = vand.u32 %v2787, 2147483648
        %v2800 = vor.u32 1.1754944e-38, %v2799
        %v2801 = vsel %vm2798, %v2800, %v2796
        %v2802 = vmul.f32 1.0, %v2801
        %v2803 = vxor.u32 %v2781, 2147483648
        %v2804 = vmul.f32 %v2803, 1.442695
        %v2805 = vpow.pop %v2804
        %v2806 = vadd.f32 %v2805, 1.0
        %v2807 = vrcp.pop %v2806
        %v2808 = vmul.f32 %v2806, %v2807
        %v2809 = vsub.f32 1.0, %v2808
        %v2810 = vmul.f32 %v2807, %v2809
        %v2811 = vadd.f32 %v2807, %v2810
        %vm2812 = vweird.f32 %v2806
        %vm2813 = vweird.f32 %v2807
        %vm2814 = vmor %vm2812, %vm2813
        %v2815 = vsel %vm2814, %v2807, %v2811
        %v2816 = vand.u32 2147483647, %v2806
        %vm2817 = vcmp.eq.f32.partialorder %v2816, 8.507059e+37
        %v2818 = vand.u32 %v2806, 2147483648
        %v2819 = vor.u32 1.1754944e-38, %v2818
        %v2820 = vsel %vm2817, %v2819, %v2815
        %v2821 = vmul.f32 1.0, %v2820
        %v2822 = vtanh.pop %v2782
        %v2823 = vxor.u32 %v2783, 2147483648
        %v2824 = vmul.f32 %v2823, 1.442695
        %v2825 = vpow.pop %v2824
        %v2826 = vadd.f32 %v2825, 1.0
        %v2827 = vrcp.pop %v2826
        %v2828 = vmul.f32 %v2826, %v2827
        %v2829 = vsub.f32 1.0, %v2828
        %v2830 = vmul.f32 %v2827, %v2829
        %v2831 = vadd.f32 %v2827, %v2830
        %vm2832 = vweird.f32 %v2826
        %vm2833 = vweird.f32 %v2827
        %vm2834 = vmor %vm2832, %vm2833
        %v2835 = vsel %vm2834, %v2827, %v2831
        %v2836 = vand.u32 2147483647, %v2826
        %vm2837 = vcmp.eq.f32.partialorder %v2836, 8.507059e+37
        %v2838 = vand.u32 %v2826, 2147483648
        %v2839 = vor.u32 1.1754944e-38, %v2838
        %v2840 = vsel %vm2837, %v2839, %v2835
        %v2841 = vmul.f32 1.0, %v2840
        %v2842 = vmul.f32 %v2821, %v2693
        %v2843 = vmul.f32 %v2802, %v2822
        %v2844 = vadd.f32 %v2842, %v2843
        %v2845 = vtanh.pop %v2844
        %v2846 = vmul.f32 %v2841, %v2845
        %v2847 = vsel %vm1217, %v2846, %v2692
        %v2848 = vsel %vm1217, %v2844, %v2693
        %s2849 = scalar_lea.vmem [#allocation3], 16
        %2850 = vst [vmem:[%s2849] sm:$0xff] %v2847
        %v2851 = vld [vmem:[%s1224] sm:$0xff]
        %v2852 = vld [vmem:[%s1224 + $0x8] sm:$0xff]
        %v2853 = vld [vmem:[%s1224 + $0x10] sm:$0xff]
        %v2854 = vld [vmem:[%s1224 + $0x18] sm:$0xff]
        %2855 = vmatpush.msra.mxu0 %v2379
        %2856 = vmatpush.msra.mxu0 %v2375
        %2857 = vmatpush.msra.mxu0 %v2371
        %2858 = vmatpush.msra.mxu0 %v2367
        %2859 = vmatpush.msra.mxu0 %v2363
        %2860 = vmatpush.msra.mxu0 %v2359
        %2861 = vmatpush.msra.mxu0 %v2355
        %2862 = vmatpush.msra.mxu0 %v2351
        %2863 = vmatpush.msra.mxu0 %v2347
        %2864 = vmatpush.msra.mxu0 %v2343
        %2865 = vmatpush.msra.mxu0 %v2339
        %2866 = vmatpush.msra.mxu0 %v2335
        %2867 = vmatpush.msra.mxu0 %v2331
        %2868 = vmatpush.msra.mxu0 %v2327
        %2869 = vmatpush.msra.mxu0 %v2323
        %2870 = vmatpush.msra.mxu0 %v2319
        %2871 = vmatmul.f32.gmra.mxu0 %v2847
        %v2872 = vpop.f32.mrf.mxu0
        %v2873 = vadd.f32 0.0, %v2872
        %2874 = vdwg.mxu0
        %2875 = vmatpush.msra.mxu0 %v2380
        %2876 = vmatpush.msra.mxu0 %v2376
        %2877 = vmatpush.msra.mxu0 %v2372
        %2878 = vmatpush.msra.mxu0 %v2368
        %2879 = vmatpush.msra.mxu0 %v2364
        %2880 = vmatpush.msra.mxu0 %v2360
        %2881 = vmatpush.msra.mxu0 %v2356
        %2882 = vmatpush.msra.mxu0 %v2352
        %2883 = vmatpush.msra.mxu0 %v2348
        %2884 = vmatpush.msra.mxu0 %v2344
        %2885 = vmatpush.msra.mxu0 %v2340
        %2886 = vmatpush.msra.mxu0 %v2336
        %2887 = vmatpush.msra.mxu0 %v2332
        %2888 = vmatpush.msra.mxu0 %v2328
        %2889 = vmatpush.msra.mxu0 %v2324
        %2890 = vmatpush.msra.mxu0 %v2320
        %2891 = vmatmul.f32.gmra.mxu0 %v2847
        %v2892 = vpop.f32.mrf.mxu0
        %v2893 = vadd.f32 0.0, %v2892
        %2894 = vdwg.mxu0
        %2895 = vmatpush.msra.mxu0 %v2381
        %2896 = vmatpush.msra.mxu0 %v2377
        %2897 = vmatpush.msra.mxu0 %v2373
        %2898 = vmatpush.msra.mxu0 %v2369
        %2899 = vmatpush.msra.mxu0 %v2365
        %2900 = vmatpush.msra.mxu0 %v2361
        %2901 = vmatpush.msra.mxu0 %v2357
        %2902 = vmatpush.msra.mxu0 %v2353
        %2903 = vmatpush.msra.mxu0 %v2349
        %2904 = vmatpush.msra.mxu0 %v2345
        %2905 = vmatpush.msra.mxu0 %v2341
        %2906 = vmatpush.msra.mxu0 %v2337
        %2907 = vmatpush.msra.mxu0 %v2333
        %2908 = vmatpush.msra.mxu0 %v2329
        %2909 = vmatpush.msra.mxu0 %v2325
        %2910 = vmatpush.msra.mxu0 %v2321
        %2911 = vmatmul.f32.gmra.mxu0 %v2847
        %v2912 = vpop.f32.mrf.mxu0
        %v2913 = vadd.f32 0.0, %v2912
        %2914 = vdwg.mxu0
        %2915 = vmatpush.msra.mxu0 %v2382
        %2916 = vmatpush.msra.mxu0 %v2378
        %2917 = vmatpush.msra.mxu0 %v2374
        %2918 = vmatpush.msra.mxu0 %v2370
        %2919 = vmatpush.msra.mxu0 %v2366
        %2920 = vmatpush.msra.mxu0 %v2362
        %2921 = vmatpush.msra.mxu0 %v2358
        %2922 = vmatpush.msra.mxu0 %v2354
        %2923 = vmatpush.msra.mxu0 %v2350
        %2924 = vmatpush.msra.mxu0 %v2346
        %2925 = vmatpush.msra.mxu0 %v2342
        %2926 = vmatpush.msra.mxu0 %v2338
        %2927 = vmatpush.msra.mxu0 %v2334
        %2928 = vmatpush.msra.mxu0 %v2330
        %2929 = vmatpush.msra.mxu0 %v2326
        %2930 = vmatpush.msra.mxu0 %v2322
        %2931 = vmatmul.f32.gmra.mxu0 %v2847
        %v2932 = vpop.f32.mrf.mxu0
        %v2933 = vadd.f32 0.0, %v2932
        %2934 = vdwg.mxu0
        %v2935 = vadd.f32 %v2851, %v2873
        %v2936 = vadd.f32 %v2852, %v2893
        %v2937 = vadd.f32 %v2853, %v2913
        %v2938 = vadd.f32 %v2854, %v2933
        %v2939 = vxor.u32 %v2935, 2147483648
        %v2940 = vmul.f32 %v2939, 1.442695
        %v2941 = vpow.pop %v2940
        %v2942 = vadd.f32 %v2941, 1.0
        %v2943 = vrcp.pop %v2942
        %v2944 = vmul.f32 %v2942, %v2943
        %v2945 = vsub.f32 1.0, %v2944
        %v2946 = vmul.f32 %v2943, %v2945
        %v2947 = vadd.f32 %v2943, %v2946
        %vm2948 = vweird.f32 %v2942
        %vm2949 = vweird.f32 %v2943
        %vm2950 = vmor %vm2948, %vm2949
        %v2951 = vsel %vm2950, %v2943, %v2947
        %v2952 = vand.u32 2147483647, %v2942
        %vm2953 = vcmp.eq.f32.partialorder %v2952, 8.507059e+37
        %v2954 = vand.u32 %v2942, 2147483648
        %v2955 = vor.u32 1.1754944e-38, %v2954
        %v2956 = vsel %vm2953, %v2955, %v2951
        %v2957 = vmul.f32 1.0, %v2956
        %v2958 = vxor.u32 %v2936, 2147483648
        %v2959 = vmul.f32 %v2958, 1.442695
        %v2960 = vpow.pop %v2959
        %v2961 = vadd.f32 %v2960, 1.0
        %v2962 = vrcp.pop %v2961
        %v2963 = vmul.f32 %v2961, %v2962
        %v2964 = vsub.f32 1.0, %v2963
        %v2965 = vmul.f32 %v2962, %v2964
        %v2966 = vadd.f32 %v2962, %v2965
        %vm2967 = vweird.f32 %v2961
        %vm2968 = vweird.f32 %v2962
        %vm2969 = vmor %vm2967, %vm2968
        %v2970 = vsel %vm2969, %v2962, %v2966
        %v2971 = vand.u32 2147483647, %v2961
        %vm2972 = vcmp.eq.f32.partialorder %v2971, 8.507059e+37
        %v2973 = vand.u32 %v2961, 2147483648
        %v2974 = vor.u32 1.1754944e-38, %v2973
        %v2975 = vsel %vm2972, %v2974, %v2970
        %v2976 = vmul.f32 1.0, %v2975
        %v2977 = vtanh.pop %v2937
        %v2978 = vxor.u32 %v2938, 2147483648
        %v2979 = vmul.f32 %v2978, 1.442695
        %v2980 = vpow.pop %v2979
        %v2981 = vadd.f32 %v2980, 1.0
        %v2982 = vrcp.pop %v2981
        %v2983 = vmul.f32 %v2981, %v2982
        %v2984 = vsub.f32 1.0, %v2983
        %v2985 = vmul.f32 %v2982, %v2984
        %v2986 = vadd.f32 %v2982, %v2985
        %vm2987 = vweird.f32 %v2981
        %vm2988 = vweird.f32 %v2982
        %vm2989 = vmor %vm2987, %vm2988
        %v2990 = vsel %vm2989, %v2982, %v2986
        %v2991 = vand.u32 2147483647, %v2981
        %vm2992 = vcmp.eq.f32.partialorder %v2991, 8.507059e+37
        %v2993 = vand.u32 %v2981, 2147483648
        %v2994 = vor.u32 1.1754944e-38, %v2993
        %v2995 = vsel %vm2992, %v2994, %v2990
        %v2996 = vmul.f32 1.0, %v2995
        %v2997 = vmul.f32 %v2976, %v2848
        %v2998 = vmul.f32 %v2957, %v2977
        %v2999 = vadd.f32 %v2997, %v2998
        %v3000 = vtanh.pop %v2999
        %v3001 = vmul.f32 %v2996, %v3000
        %v3002 = vsel %vm1380, %v3001, %v2847
        %v3003 = vsel %vm1380, %v2999, %v2848
        %s3004 = scalar_lea.vmem [#allocation3], 24
        %3005 = vst [vmem:[%s3004] sm:$0xff] %v3002
        %v3006 = vld [vmem:[%s1387] sm:$0xff]
        %v3007 = vld [vmem:[%s1387 + $0x8] sm:$0xff]
        %v3008 = vld [vmem:[%s1387 + $0x10] sm:$0xff]
        %v3009 = vld [vmem:[%s1387 + $0x18] sm:$0xff]
        %3010 = vmatpush.msra.mxu0 %v2379
        %3011 = vmatpush.msra.mxu0 %v2375
        %3012 = vmatpush.msra.mxu0 %v2371
        %3013 = vmatpush.msra.mxu0 %v2367
        %3014 = vmatpush.msra.mxu0 %v2363
        %3015 = vmatpush.msra.mxu0 %v2359
        %3016 = vmatpush.msra.mxu0 %v2355
        %3017 = vmatpush.msra.mxu0 %v2351
        %3018 = vmatpush.msra.mxu0 %v2347
        %3019 = vmatpush.msra.mxu0 %v2343
        %3020 = vmatpush.msra.mxu0 %v2339
        %3021 = vmatpush.msra.mxu0 %v2335
        %3022 = vmatpush.msra.mxu0 %v2331
        %3023 = vmatpush.msra.mxu0 %v2327
        %3024 = vmatpush.msra.mxu0 %v2323
        %3025 = vmatpush.msra.mxu0 %v2319
        %3026 = vmatmul.f32.gmra.mxu0 %v3002
        %v3027 = vpop.f32.mrf.mxu0
        %v3028 = vadd.f32 0.0, %v3027
        %3029 = vdwg.mxu0
        %3030 = vmatpush.msra.mxu0 %v2380
        %3031 = vmatpush.msra.mxu0 %v2376
        %3032 = vmatpush.msra.mxu0 %v2372
        %3033 = vmatpush.msra.mxu0 %v2368
        %3034 = vmatpush.msra.mxu0 %v2364
        %3035 = vmatpush.msra.mxu0 %v2360
        %3036 = vmatpush.msra.mxu0 %v2356
        %3037 = vmatpush.msra.mxu0 %v2352
        %3038 = vmatpush.msra.mxu0 %v2348
        %3039 = vmatpush.msra.mxu0 %v2344
        %3040 = vmatpush.msra.mxu0 %v2340
        %3041 = vmatpush.msra.mxu0 %v2336
        %3042 = vmatpush.msra.mxu0 %v2332
        %3043 = vmatpush.msra.mxu0 %v2328
        %3044 = vmatpush.msra.mxu0 %v2324
        %3045 = vmatpush.msra.mxu0 %v2320
        %3046 = vmatmul.f32.gmra.mxu0 %v3002
        %v3047 = vpop.f32.mrf.mxu0
        %v3048 = vadd.f32 0.0, %v3047
        %3049 = vdwg.mxu0
        %3050 = vmatpush.msra.mxu0 %v2381
        %3051 = vmatpush.msra.mxu0 %v2377
        %3052 = vmatpush.msra.mxu0 %v2373
        %3053 = vmatpush.msra.mxu0 %v2369
        %3054 = vmatpush.msra.mxu0 %v2365
        %3055 = vmatpush.msra.mxu0 %v2361
        %3056 = vmatpush.msra.mxu0 %v2357
        %3057 = vmatpush.msra.mxu0 %v2353
        %3058 = vmatpush.msra.mxu0 %v2349
        %3059 = vmatpush.msra.mxu0 %v2345
        %3060 = vmatpush.msra.mxu0 %v2341
        %3061 = vmatpush.msra.mxu0 %v2337
        %3062 = vmatpush.msra.mxu0 %v2333
        %3063 = vmatpush.msra.mxu0 %v2329
        %3064 = vmatpush.msra.mxu0 %v2325
        %3065 = vmatpush.msra.mxu0 %v2321
        %3066 = vmatmul.f32.gmra.mxu0 %v3002
        %v3067 = vpop.f32.mrf.mxu0
        %v3068 = vadd.f32 0.0, %v3067
        %3069 = vdwg.mxu0
        %3070 = vmatpush.msra.mxu0 %v2382
        %3071 = vmatpush.msra.mxu0 %v2378
        %3072 = vmatpush.msra.mxu0 %v2374
        %3073 = vmatpush.msra.mxu0 %v2370
        %3074 = vmatpush.msra.mxu0 %v2366
        %3075 = vmatpush.msra.mxu0 %v2362
        %3076 = vmatpush.msra.mxu0 %v2358
        %3077 = vmatpush.msra.mxu0 %v2354
        %3078 = vmatpush.msra.mxu0 %v2350
        %3079 = vmatpush.msra.mxu0 %v2346
        %3080 = vmatpush.msra.mxu0 %v2342
        %3081 = vmatpush.msra.mxu0 %v2338
        %3082 = vmatpush.msra.mxu0 %v2334
        %3083 = vmatpush.msra.mxu0 %v2330
        %3084 = vmatpush.msra.mxu0 %v2326
        %3085 = vmatpush.msra.mxu0 %v2322
        %3086 = vmatmul.f32.gmra.mxu0 %v3002
        %v3087 = vpop.f32.mrf.mxu0
        %v3088 = vadd.f32 0.0, %v3087
        %3089 = vdwg.mxu0
        %v3090 = vadd.f32 %v3006, %v3028
        %v3091 = vadd.f32 %v3007, %v3048
        %v3092 = vadd.f32 %v3008, %v3068
        %v3093 = vadd.f32 %v3009, %v3088
        %v3094 = vxor.u32 %v3090, 2147483648
        %v3095 = vmul.f32 %v3094, 1.442695
        %v3096 = vpow.pop %v3095
        %v3097 = vadd.f32 %v3096, 1.0
        %v3098 = vrcp.pop %v3097
        %v3099 = vmul.f32 %v3097, %v3098
        %v3100 = vsub.f32 1.0, %v3099
        %v3101 = vmul.f32 %v3098, %v3100
        %v3102 = vadd.f32 %v3098, %v3101
        %vm3103 = vweird.f32 %v3097
        %vm3104 = vweird.f32 %v3098
        %vm3105 = vmor %vm3103, %vm3104
        %v3106 = vsel %vm3105, %v3098, %v3102
        %v3107 = vand.u32 2147483647, %v3097
        %vm3108 = vcmp.eq.f32.partialorder %v3107, 8.507059e+37
        %v3109 = vand.u32 %v3097, 2147483648
        %v3110 = vor.u32 1.1754944e-38, %v3109
        %v3111 = vsel %vm3108, %v3110, %v3106
        %v3112 = vmul.f32 1.0, %v3111
        %v3113 = vxor.u32 %v3091, 2147483648
        %v3114 = vmul.f32 %v3113, 1.442695
        %v3115 = vpow.pop %v3114
        %v3116 = vadd.f32 %v3115, 1.0
        %v3117 = vrcp.pop %v3116
        %v3118 = vmul.f32 %v3116, %v3117
        %v3119 = vsub.f32 1.0, %v3118
        %v3120 = vmul.f32 %v3117, %v3119
        %v3121 = vadd.f32 %v3117, %v3120
        %vm3122 = vweird.f32 %v3116
        %vm3123 = vweird.f32 %v3117
        %vm3124 = vmor %vm3122, %vm3123
        %v3125 = vsel %vm3124, %v3117, %v3121
        %v3126 = vand.u32 2147483647, %v3116
        %vm3127 = vcmp.eq.f32.partialorder %v3126, 8.507059e+37
        %v3128 = vand.u32 %v3116, 2147483648
        %v3129 = vor.u32 1.1754944e-38, %v3128
        %v3130 = vsel %vm3127, %v3129, %v3125
        %v3131 = vmul.f32 1.0, %v3130
        %v3132 = vtanh.pop %v3092
        %v3133 = vxor.u32 %v3093, 2147483648
        %v3134 = vmul.f32 %v3133, 1.442695
        %v3135 = vpow.pop %v3134
        %v3136 = vadd.f32 %v3135, 1.0
        %v3137 = vrcp.pop %v3136
        %v3138 = vmul.f32 %v3136, %v3137
        %v3139 = vsub.f32 1.0, %v3138
        %v3140 = vmul.f32 %v3137, %v3139
        %v3141 = vadd.f32 %v3137, %v3140
        %vm3142 = vweird.f32 %v3136
        %vm3143 = vweird.f32 %v3137
        %vm3144 = vmor %vm3142, %vm3143
        %v3145 = vsel %vm3144, %v3137, %v3141
        %v3146 = vand.u32 2147483647, %v3136
        %vm3147 = vcmp.eq.f32.partialorder %v3146, 8.507059e+37
        %v3148 = vand.u32 %v3136, 2147483648
        %v3149 = vor.u32 1.1754944e-38, %v3148
        %v3150 = vsel %vm3147, %v3149, %v3145
        %v3151 = vmul.f32 1.0, %v3150
        %v3152 = vmul.f32 %v3131, %v3003
        %v3153 = vmul.f32 %v3112, %v3132
        %v3154 = vadd.f32 %v3152, %v3153
        %v3155 = vtanh.pop %v3154
        %v3156 = vmul.f32 %v3151, %v3155
        %v3157 = vsel %vm1543, %v3156, %v3002
        %v3158 = vsel %vm1543, %v3154, %v3003
        %s3159 = scalar_lea.vmem [#allocation3], 32
        %3160 = vst [vmem:[%s3159] sm:$0xff] %v3157
        %v3161 = vld [vmem:[%s1550] sm:$0xff]
        %v3162 = vld [vmem:[%s1550 + $0x8] sm:$0xff]
        %v3163 = vld [vmem:[%s1550 + $0x10] sm:$0xff]
        %v3164 = vld [vmem:[%s1550 + $0x18] sm:$0xff]
        %3165 = vmatpush.msra.mxu0 %v2379
        %3166 = vmatpush.msra.mxu0 %v2375
        %3167 = vmatpush.msra.mxu0 %v2371
        %3168 = vmatpush.msra.mxu0 %v2367
        %3169 = vmatpush.msra.mxu0 %v2363
        %3170 = vmatpush.msra.mxu0 %v2359
        %3171 = vmatpush.msra.mxu0 %v2355
        %3172 = vmatpush.msra.mxu0 %v2351
        %3173 = vmatpush.msra.mxu0 %v2347
        %3174 = vmatpush.msra.mxu0 %v2343
        %3175 = vmatpush.msra.mxu0 %v2339
        %3176 = vmatpush.msra.mxu0 %v2335
        %3177 = vmatpush.msra.mxu0 %v2331
        %3178 = vmatpush.msra.mxu0 %v2327
        %3179 = vmatpush.msra.mxu0 %v2323
        %3180 = vmatpush.msra.mxu0 %v2319
        %3181 = vmatmul.f32.gmra.mxu0 %v3157
        %v3182 = vpop.f32.mrf.mxu0
        %v3183 = vadd.f32 0.0, %v3182
        %3184 = vdwg.mxu0
        %3185 = vmatpush.msra.mxu0 %v2380
        %3186 = vmatpush.msra.mxu0 %v2376
        %3187 = vmatpush.msra.mxu0 %v2372
        %3188 = vmatpush.msra.mxu0 %v2368
        %3189 = vmatpush.msra.mxu0 %v2364
        %3190 = vmatpush.msra.mxu0 %v2360
        %3191 = vmatpush.msra.mxu0 %v2356
        %3192 = vmatpush.msra.mxu0 %v2352
        %3193 = vmatpush.msra.mxu0 %v2348
        %3194 = vmatpush.msra.mxu0 %v2344
        %3195 = vmatpush.msra.mxu0 %v2340
        %3196 = vmatpush.msra.mxu0 %v2336
        %3197 = vmatpush.msra.mxu0 %v2332
        %3198 = vmatpush.msra.mxu0 %v2328
        %3199 = vmatpush.msra.mxu0 %v2324
        %3200 = vmatpush.msra.mxu0 %v2320
        %3201 = vmatmul.f32.gmra.mxu0 %v3157
        %v3202 = vpop.f32.mrf.mxu0
        %v3203 = vadd.f32 0.0, %v3202
        %3204 = vdwg.mxu0
        %3205 = vmatpush.msra.mxu0 %v2381
        %3206 = vmatpush.msra.mxu0 %v2377
        %3207 = vmatpush.msra.mxu0 %v2373
        %3208 = vmatpush.msra.mxu0 %v2369
        %3209 = vmatpush.msra.mxu0 %v2365
        %3210 = vmatpush.msra.mxu0 %v2361
        %3211 = vmatpush.msra.mxu0 %v2357
        %3212 = vmatpush.msra.mxu0 %v2353
        %3213 = vmatpush.msra.mxu0 %v2349
        %3214 = vmatpush.msra.mxu0 %v2345
        %3215 = vmatpush.msra.mxu0 %v2341
        %3216 = vmatpush.msra.mxu0 %v2337
        %3217 = vmatpush.msra.mxu0 %v2333
        %3218 = vmatpush.msra.mxu0 %v2329
        %3219 = vmatpush.msra.mxu0 %v2325
        %3220 = vmatpush.msra.mxu0 %v2321
        %3221 = vmatmul.f32.gmra.mxu0 %v3157
        %v3222 = vpop.f32.mrf.mxu0
        %v3223 = vadd.f32 0.0, %v3222
        %3224 = vdwg.mxu0
        %3225 = vmatpush.msra.mxu0 %v2382
        %3226 = vmatpush.msra.mxu0 %v2378
        %3227 = vmatpush.msra.mxu0 %v2374
        %3228 = vmatpush.msra.mxu0 %v2370
        %3229 = vmatpush.msra.mxu0 %v2366
        %3230 = vmatpush.msra.mxu0 %v2362
        %3231 = vmatpush.msra.mxu0 %v2358
        %3232 = vmatpush.msra.mxu0 %v2354
        %3233 = vmatpush.msra.mxu0 %v2350
        %3234 = vmatpush.msra.mxu0 %v2346
        %3235 = vmatpush.msra.mxu0 %v2342
        %3236 = vmatpush.msra.mxu0 %v2338
        %3237 = vmatpush.msra.mxu0 %v2334
        %3238 = vmatpush.msra.mxu0 %v2330
        %3239 = vmatpush.msra.mxu0 %v2326
        %3240 = vmatpush.msra.mxu0 %v2322
        %3241 = vmatmul.f32.gmra.mxu0 %v3157
        %v3242 = vpop.f32.mrf.mxu0
        %v3243 = vadd.f32 0.0, %v3242
        %3244 = vdwg.mxu0
        %v3245 = vadd.f32 %v3161, %v3183
        %v3246 = vadd.f32 %v3162, %v3203
        %v3247 = vadd.f32 %v3163, %v3223
        %v3248 = vadd.f32 %v3164, %v3243
        %v3249 = vxor.u32 %v3245, 2147483648
        %v3250 = vmul.f32 %v3249, 1.442695
        %v3251 = vpow.pop %v3250
        %v3252 = vadd.f32 %v3251, 1.0
        %v3253 = vrcp.pop %v3252
        %v3254 = vmul.f32 %v3252, %v3253
        %v3255 = vsub.f32 1.0, %v3254
        %v3256 = vmul.f32 %v3253, %v3255
        %v3257 = vadd.f32 %v3253, %v3256
        %vm3258 = vweird.f32 %v3252
        %vm3259 = vweird.f32 %v3253
        %vm3260 = vmor %vm3258, %vm3259
        %v3261 = vsel %vm3260, %v3253, %v3257
        %v3262 = vand.u32 2147483647, %v3252
        %vm3263 = vcmp.eq.f32.partialorder %v3262, 8.507059e+37
        %v3264 = vand.u32 %v3252, 2147483648
        %v3265 = vor.u32 1.1754944e-38, %v3264
        %v3266 = vsel %vm3263, %v3265, %v3261
        %v3267 = vmul.f32 1.0, %v3266
        %v3268 = vxor.u32 %v3246, 2147483648
        %v3269 = vmul.f32 %v3268, 1.442695
        %v3270 = vpow.pop %v3269
        %v3271 = vadd.f32 %v3270, 1.0
        %v3272 = vrcp.pop %v3271
        %v3273 = vmul.f32 %v3271, %v3272
        %v3274 = vsub.f32 1.0, %v3273
        %v3275 = vmul.f32 %v3272, %v3274
        %v3276 = vadd.f32 %v3272, %v3275
        %vm3277 = vweird.f32 %v3271
        %vm3278 = vweird.f32 %v3272
        %vm3279 = vmor %vm3277, %vm3278
        %v3280 = vsel %vm3279, %v3272, %v3276
        %v3281 = vand.u32 2147483647, %v3271
        %vm3282 = vcmp.eq.f32.partialorder %v3281, 8.507059e+37
        %v3283 = vand.u32 %v3271, 2147483648
        %v3284 = vor.u32 1.1754944e-38, %v3283
        %v3285 = vsel %vm3282, %v3284, %v3280
        %v3286 = vmul.f32 1.0, %v3285
        %v3287 = vtanh.pop %v3247
        %v3288 = vxor.u32 %v3248, 2147483648
        %v3289 = vmul.f32 %v3288, 1.442695
        %v3290 = vpow.pop %v3289
        %v3291 = vadd.f32 %v3290, 1.0
        %v3292 = vrcp.pop %v3291
        %v3293 = vmul.f32 %v3291, %v3292
        %v3294 = vsub.f32 1.0, %v3293
        %v3295 = vmul.f32 %v3292, %v3294
        %v3296 = vadd.f32 %v3292, %v3295
        %vm3297 = vweird.f32 %v3291
        %vm3298 = vweird.f32 %v3292
        %vm3299 = vmor %vm3297, %vm3298
        %v3300 = vsel %vm3299, %v3292, %v3296
        %v3301 = vand.u32 2147483647, %v3291
        %vm3302 = vcmp.eq.f32.partialorder %v3301, 8.507059e+37
        %v3303 = vand.u32 %v3291, 2147483648
        %v3304 = vor.u32 1.1754944e-38, %v3303
        %v3305 = vsel %vm3302, %v3304, %v3300
        %v3306 = vmul.f32 1.0, %v3305
        %v3307 = vmul.f32 %v3286, %v3158
        %v3308 = vmul.f32 %v3267, %v3287
        %v3309 = vadd.f32 %v3307, %v3308
        %v3310 = vtanh.pop %v3309
        %v3311 = vmul.f32 %v3306, %v3310
        %v3312 = vsel %vm1706, %v3311, %v3157
        %v3313 = vsel %vm1706, %v3309, %v3158
        %s3314 = scalar_lea.vmem [#allocation3], 40
        %3315 = vst [vmem:[%s3314] sm:$0xff] %v3312
        %v3316 = vld [vmem:[%s1713] sm:$0xff]
        %v3317 = vld [vmem:[%s1713 + $0x8] sm:$0xff]
        %v3318 = vld [vmem:[%s1713 + $0x10] sm:$0xff]
        %v3319 = vld [vmem:[%s1713 + $0x18] sm:$0xff]
        %3320 = vmatpush.msra.mxu0 %v2379
        %3321 = vmatpush.msra.mxu0 %v2375
        %3322 = vmatpush.msra.mxu0 %v2371
        %3323 = vmatpush.msra.mxu0 %v2367
        %3324 = vmatpush.msra.mxu0 %v2363
        %3325 = vmatpush.msra.mxu0 %v2359
        %3326 = vmatpush.msra.mxu0 %v2355
        %3327 = vmatpush.msra.mxu0 %v2351
        %3328 = vmatpush.msra.mxu0 %v2347
        %3329 = vmatpush.msra.mxu0 %v2343
        %3330 = vmatpush.msra.mxu0 %v2339
        %3331 = vmatpush.msra.mxu0 %v2335
        %3332 = vmatpush.msra.mxu0 %v2331
        %3333 = vmatpush.msra.mxu0 %v2327
        %3334 = vmatpush.msra.mxu0 %v2323
        %3335 = vmatpush.msra.mxu0 %v2319
        %3336 = vmatmul.f32.gmra.mxu0 %v3312
        %v3337 = vpop.f32.mrf.mxu0
        %v3338 = vadd.f32 0.0, %v3337
        %3339 = vdwg.mxu0
        %3340 = vmatpush.msra.mxu0 %v2380
        %3341 = vmatpush.msra.mxu0 %v2376
        %3342 = vmatpush.msra.mxu0 %v2372
        %3343 = vmatpush.msra.mxu0 %v2368
        %3344 = vmatpush.msra.mxu0 %v2364
        %3345 = vmatpush.msra.mxu0 %v2360
        %3346 = vmatpush.msra.mxu0 %v2356
        %3347 = vmatpush.msra.mxu0 %v2352
        %3348 = vmatpush.msra.mxu0 %v2348
        %3349 = vmatpush.msra.mxu0 %v2344
        %3350 = vmatpush.msra.mxu0 %v2340
        %3351 = vmatpush.msra.mxu0 %v2336
        %3352 = vmatpush.msra.mxu0 %v2332
        %3353 = vmatpush.msra.mxu0 %v2328
        %3354 = vmatpush.msra.mxu0 %v2324
        %3355 = vmatpush.msra.mxu0 %v2320
        %3356 = vmatmul.f32.gmra.mxu0 %v3312
        %v3357 = vpop.f32.mrf.mxu0
        %v3358 = vadd.f32 0.0, %v3357
        %3359 = vdwg.mxu0
        %3360 = vmatpush.msra.mxu0 %v2381
        %3361 = vmatpush.msra.mxu0 %v2377
        %3362 = vmatpush.msra.mxu0 %v2373
        %3363 = vmatpush.msra.mxu0 %v2369
        %3364 = vmatpush.msra.mxu0 %v2365
        %3365 = vmatpush.msra.mxu0 %v2361
        %3366 = vmatpush.msra.mxu0 %v2357
        %3367 = vmatpush.msra.mxu0 %v2353
        %3368 = vmatpush.msra.mxu0 %v2349
        %3369 = vmatpush.msra.mxu0 %v2345
        %3370 = vmatpush.msra.mxu0 %v2341
        %3371 = vmatpush.msra.mxu0 %v2337
        %3372 = vmatpush.msra.mxu0 %v2333
        %3373 = vmatpush.msra.mxu0 %v2329
        %3374 = vmatpush.msra.mxu0 %v2325
        %3375 = vmatpush.msra.mxu0 %v2321
        %3376 = vmatmul.f32.gmra.mxu0 %v3312
        %v3377 = vpop.f32.mrf.mxu0
        %v3378 = vadd.f32 0.0, %v3377
        %3379 = vdwg.mxu0
        %3380 = vmatpush.msra.mxu0 %v2382
        %3381 = vmatpush.msra.mxu0 %v2378
        %3382 = vmatpush.msra.mxu0 %v2374
        %3383 = vmatpush.msra.mxu0 %v2370
        %3384 = vmatpush.msra.mxu0 %v2366
        %3385 = vmatpush.msra.mxu0 %v2362
        %3386 = vmatpush.msra.mxu0 %v2358
        %3387 = vmatpush.msra.mxu0 %v2354
        %3388 = vmatpush.msra.mxu0 %v2350
        %3389 = vmatpush.msra.mxu0 %v2346
        %3390 = vmatpush.msra.mxu0 %v2342
        %3391 = vmatpush.msra.mxu0 %v2338
        %3392 = vmatpush.msra.mxu0 %v2334
        %3393 = vmatpush.msra.mxu0 %v2330
        %3394 = vmatpush.msra.mxu0 %v2326
        %3395 = vmatpush.msra.mxu0 %v2322
        %3396 = vmatmul.f32.gmra.mxu0 %v3312
        %v3397 = vpop.f32.mrf.mxu0
        %v3398 = vadd.f32 0.0, %v3397
        %3399 = vdwg.mxu0
        %v3400 = vadd.f32 %v3316, %v3338
        %v3401 = vadd.f32 %v3317, %v3358
        %v3402 = vadd.f32 %v3318, %v3378
        %v3403 = vadd.f32 %v3319, %v3398
        %v3404 = vxor.u32 %v3400, 2147483648
        %v3405 = vmul.f32 %v3404, 1.442695
        %v3406 = vpow.pop %v3405
        %v3407 = vadd.f32 %v3406, 1.0
        %v3408 = vrcp.pop %v3407
        %v3409 = vmul.f32 %v3407, %v3408
        %v3410 = vsub.f32 1.0, %v3409
        %v3411 = vmul.f32 %v3408, %v3410
        %v3412 = vadd.f32 %v3408, %v3411
        %vm3413 = vweird.f32 %v3407
        %vm3414 = vweird.f32 %v3408
        %vm3415 = vmor %vm3413, %vm3414
        %v3416 = vsel %vm3415, %v3408, %v3412
        %v3417 = vand.u32 2147483647, %v3407
        %vm3418 = vcmp.eq.f32.partialorder %v3417, 8.507059e+37
        %v3419 = vand.u32 %v3407, 2147483648
        %v3420 = vor.u32 1.1754944e-38, %v3419
        %v3421 = vsel %vm3418, %v3420, %v3416
        %v3422 = vmul.f32 1.0, %v3421
        %v3423 = vxor.u32 %v3401, 2147483648
        %v3424 = vmul.f32 %v3423, 1.442695
        %v3425 = vpow.pop %v3424
        %v3426 = vadd.f32 %v3425, 1.0
        %v3427 = vrcp.pop %v3426
        %v3428 = vmul.f32 %v3426, %v3427
        %v3429 = vsub.f32 1.0, %v3428
        %v3430 = vmul.f32 %v3427, %v3429
        %v3431 = vadd.f32 %v3427, %v3430
        %vm3432 = vweird.f32 %v3426
        %vm3433 = vweird.f32 %v3427
        %vm3434 = vmor %vm3432, %vm3433
        %v3435 = vsel %vm3434, %v3427, %v3431
        %v3436 = vand.u32 2147483647, %v3426
        %vm3437 = vcmp.eq.f32.partialorder %v3436, 8.507059e+37
        %v3438 = vand.u32 %v3426, 2147483648
        %v3439 = vor.u32 1.1754944e-38, %v3438
        %v3440 = vsel %vm3437, %v3439, %v3435
        %v3441 = vmul.f32 1.0, %v3440
        %v3442 = vtanh.pop %v3402
        %v3443 = vxor.u32 %v3403, 2147483648
        %v3444 = vmul.f32 %v3443, 1.442695
        %v3445 = vpow.pop %v3444
        %v3446 = vadd.f32 %v3445, 1.0
        %v3447 = vrcp.pop %v3446
        %v3448 = vmul.f32 %v3446, %v3447
        %v3449 = vsub.f32 1.0, %v3448
        %v3450 = vmul.f32 %v3447, %v3449
        %v3451 = vadd.f32 %v3447, %v3450
        %vm3452 = vweird.f32 %v3446
        %vm3453 = vweird.f32 %v3447
        %vm3454 = vmor %vm3452, %vm3453
        %v3455 = vsel %vm3454, %v3447, %v3451
        %v3456 = vand.u32 2147483647, %v3446
        %vm3457 = vcmp.eq.f32.partialorder %v3456, 8.507059e+37
        %v3458 = vand.u32 %v3446, 2147483648
        %v3459 = vor.u32 1.1754944e-38, %v3458
        %v3460 = vsel %vm3457, %v3459, %v3455
        %v3461 = vmul.f32 1.0, %v3460
        %v3462 = vmul.f32 %v3441, %v3313
        %v3463 = vmul.f32 %v3422, %v3442
        %v3464 = vadd.f32 %v3462, %v3463
        %v3465 = vtanh.pop %v3464
        %v3466 = vmul.f32 %v3461, %v3465
        %v3467 = vsel %vm1869, %v3466, %v3312
        %v3468 = vsel %vm1869, %v3464, %v3313
        %s3469 = scalar_lea.vmem [#allocation3], 48
        %3470 = vst [vmem:[%s3469] sm:$0xff] %v3467
        %v3471 = vld [vmem:[%s1876] sm:$0xff]
        %v3472 = vld [vmem:[%s1876 + $0x8] sm:$0xff]
        %v3473 = vld [vmem:[%s1876 + $0x10] sm:$0xff]
        %v3474 = vld [vmem:[%s1876 + $0x18] sm:$0xff]
        %3475 = vmatpush.msra.mxu0 %v2379
        %3476 = vmatpush.msra.mxu0 %v2375
        %3477 = vmatpush.msra.mxu0 %v2371
        %3478 = vmatpush.msra.mxu0 %v2367
        %3479 = vmatpush.msra.mxu0 %v2363
        %3480 = vmatpush.msra.mxu0 %v2359
        %3481 = vmatpush.msra.mxu0 %v2355
        %3482 = vmatpush.msra.mxu0 %v2351
        %3483 = vmatpush.msra.mxu0 %v2347
        %3484 = vmatpush.msra.mxu0 %v2343
        %3485 = vmatpush.msra.mxu0 %v2339
        %3486 = vmatpush.msra.mxu0 %v2335
        %3487 = vmatpush.msra.mxu0 %v2331
        %3488 = vmatpush.msra.mxu0 %v2327
        %3489 = vmatpush.msra.mxu0 %v2323
        %3490 = vmatpush.msra.mxu0 %v2319
        %3491 = vmatmul.f32.gmra.mxu0 %v3467
        %v3492 = vpop.f32.mrf.mxu0
        %v3493 = vadd.f32 0.0, %v3492
        %3494 = vdwg.mxu0
        %3495 = vmatpush.msra.mxu0 %v2380
        %3496 = vmatpush.msra.mxu0 %v2376
        %3497 = vmatpush.msra.mxu0 %v2372
        %3498 = vmatpush.msra.mxu0 %v2368
        %3499 = vmatpush.msra.mxu0 %v2364
        %3500 = vmatpush.msra.mxu0 %v2360
        %3501 = vmatpush.msra.mxu0 %v2356
        %3502 = vmatpush.msra.mxu0 %v2352
        %3503 = vmatpush.msra.mxu0 %v2348
        %3504 = vmatpush.msra.mxu0 %v2344
        %3505 = vmatpush.msra.mxu0 %v2340
        %3506 = vmatpush.msra.mxu0 %v2336
        %3507 = vmatpush.msra.mxu0 %v2332
        %3508 = vmatpush.msra.mxu0 %v2328
        %3509 = vmatpush.msra.mxu0 %v2324
        %3510 = vmatpush.msra.mxu0 %v2320
        %3511 = vmatmul.f32.gmra.mxu0 %v3467
        %v3512 = vpop.f32.mrf.mxu0
        %v3513 = vadd.f32 0.0, %v3512
        %3514 = vdwg.mxu0
        %3515 = vmatpush.msra.mxu0 %v2381
        %3516 = vmatpush.msra.mxu0 %v2377
        %3517 = vmatpush.msra.mxu0 %v2373
        %3518 = vmatpush.msra.mxu0 %v2369
        %3519 = vmatpush.msra.mxu0 %v2365
        %3520 = vmatpush.msra.mxu0 %v2361
        %3521 = vmatpush.msra.mxu0 %v2357
        %3522 = vmatpush.msra.mxu0 %v2353
        %3523 = vmatpush.msra.mxu0 %v2349
        %3524 = vmatpush.msra.mxu0 %v2345
        %3525 = vmatpush.msra.mxu0 %v2341
        %3526 = vmatpush.msra.mxu0 %v2337
        %3527 = vmatpush.msra.mxu0 %v2333
        %3528 = vmatpush.msra.mxu0 %v2329
        %3529 = vmatpush.msra.mxu0 %v2325
        %3530 = vmatpush.msra.mxu0 %v2321
        %3531 = vmatmul.f32.gmra.mxu0 %v3467
        %v3532 = vpop.f32.mrf.mxu0
        %v3533 = vadd.f32 0.0, %v3532
        %3534 = vdwg.mxu0
        %3535 = vmatpush.msra.mxu0 %v2382
        %3536 = vmatpush.msra.mxu0 %v2378
        %3537 = vmatpush.msra.mxu0 %v2374
        %3538 = vmatpush.msra.mxu0 %v2370
        %3539 = vmatpush.msra.mxu0 %v2366
        %3540 = vmatpush.msra.mxu0 %v2362
        %3541 = vmatpush.msra.mxu0 %v2358
        %3542 = vmatpush.msra.mxu0 %v2354
        %3543 = vmatpush.msra.mxu0 %v2350
        %3544 = vmatpush.msra.mxu0 %v2346
        %3545 = vmatpush.msra.mxu0 %v2342
        %3546 = vmatpush.msra.mxu0 %v2338
        %3547 = vmatpush.msra.mxu0 %v2334
        %3548 = vmatpush.msra.mxu0 %v2330
        %3549 = vmatpush.msra.mxu0 %v2326
        %3550 = vmatpush.msra.mxu0 %v2322
        %3551 = vmatmul.f32.gmra.mxu0 %v3467
        %v3552 = vpop.f32.mrf.mxu0
        %v3553 = vadd.f32 0.0, %v3552
        %3554 = vdwg.mxu0
        %v3555 = vadd.f32 %v3471, %v3493
        %v3556 = vadd.f32 %v3472, %v3513
        %v3557 = vadd.f32 %v3473, %v3533
        %v3558 = vadd.f32 %v3474, %v3553
        %v3559 = vxor.u32 %v3555, 2147483648
        %v3560 = vmul.f32 %v3559, 1.442695
        %v3561 = vpow.pop %v3560
        %v3562 = vadd.f32 %v3561, 1.0
        %v3563 = vrcp.pop %v3562
        %v3564 = vmul.f32 %v3562, %v3563
        %v3565 = vsub.f32 1.0, %v3564
        %v3566 = vmul.f32 %v3563, %v3565
        %v3567 = vadd.f32 %v3563, %v3566
        %vm3568 = vweird.f32 %v3562
        %vm3569 = vweird.f32 %v3563
        %vm3570 = vmor %vm3568, %vm3569
        %v3571 = vsel %vm3570, %v3563, %v3567
        %v3572 = vand.u32 2147483647, %v3562
        %vm3573 = vcmp.eq.f32.partialorder %v3572, 8.507059e+37
        %v3574 = vand.u32 %v3562, 2147483648
        %v3575 = vor.u32 1.1754944e-38, %v3574
        %v3576 = vsel %vm3573, %v3575, %v3571
        %v3577 = vmul.f32 1.0, %v3576
        %v3578 = vxor.u32 %v3556, 2147483648
        %v3579 = vmul.f32 %v3578, 1.442695
        %v3580 = vpow.pop %v3579
        %v3581 = vadd.f32 %v3580, 1.0
        %v3582 = vrcp.pop %v3581
        %v3583 = vmul.f32 %v3581, %v3582
        %v3584 = vsub.f32 1.0, %v3583
        %v3585 = vmul.f32 %v3582, %v3584
        %v3586 = vadd.f32 %v3582, %v3585
        %vm3587 = vweird.f32 %v3581
        %vm3588 = vweird.f32 %v3582
        %vm3589 = vmor %vm3587, %vm3588
        %v3590 = vsel %vm3589, %v3582, %v3586
        %v3591 = vand.u32 2147483647, %v3581
        %vm3592 = vcmp.eq.f32.partialorder %v3591, 8.507059e+37
        %v3593 = vand.u32 %v3581, 2147483648
        %v3594 = vor.u32 1.1754944e-38, %v3593
        %v3595 = vsel %vm3592, %v3594, %v3590
        %v3596 = vmul.f32 1.0, %v3595
        %v3597 = vtanh.pop %v3557
        %v3598 = vxor.u32 %v3558, 2147483648
        %v3599 = vmul.f32 %v3598, 1.442695
        %v3600 = vpow.pop %v3599
        %v3601 = vadd.f32 %v3600, 1.0
        %v3602 = vrcp.pop %v3601
        %v3603 = vmul.f32 %v3601, %v3602
        %v3604 = vsub.f32 1.0, %v3603
        %v3605 = vmul.f32 %v3602, %v3604
        %v3606 = vadd.f32 %v3602, %v3605
        %vm3607 = vweird.f32 %v3601
        %vm3608 = vweird.f32 %v3602
        %vm3609 = vmor %vm3607, %vm3608
        %v3610 = vsel %vm3609, %v3602, %v3606
        %v3611 = vand.u32 2147483647, %v3601
        %vm3612 = vcmp.eq.f32.partialorder %v3611, 8.507059e+37
        %v3613 = vand.u32 %v3601, 2147483648
        %v3614 = vor.u32 1.1754944e-38, %v3613
        %v3615 = vsel %vm3612, %v3614, %v3610
        %v3616 = vmul.f32 1.0, %v3615
        %v3617 = vmul.f32 %v3596, %v3468
        %v3618 = vmul.f32 %v3577, %v3597
        %v3619 = vadd.f32 %v3617, %v3618
        %v3620 = vtanh.pop %v3619
        %v3621 = vmul.f32 %v3616, %v3620
        %v3622 = vsel %vm2032, %v3621, %v3467
        %v3623 = vsel %vm2032, %v3619, %v3468
        %s3624 = scalar_lea.vmem [#allocation3], 56
        %3625 = vst [vmem:[%s3624] sm:$0xff] %v3622
        %3626 = vst [vmem:[%s2383] sm:$0xff] %v3622
        %3627 = vst [vmem:[%s2385] sm:$0xff] %v3623
        %v3628 = vld [vmem:[#allocation3] sm:$0xff]
        %v3629 = vld [vmem:[#allocation3 + $0x8] sm:$0xff]
        %v3630 = vld [vmem:[#allocation3 + $0x10] sm:$0xff]
        %v3631 = vld [vmem:[#allocation3 + $0x18] sm:$0xff]
        %v3632 = vld [vmem:[#allocation3 + $0x20] sm:$0xff]
        %v3633 = vld [vmem:[#allocation3 + $0x28] sm:$0xff]
        %v3634 = vld [vmem:[#allocation3 + $0x30] sm:$0xff]
        %v3635 = vld [vmem:[#allocation3 + $0x38] sm:$0xff]
        %v3636 = vld [vmem:[%s7] sm:$0xff]
        %v3637 = vld [vmem:[%s7 + $0x8] sm:$0xff]
        %v3638 = vld [vmem:[%s7 + $0x10] sm:$0xff]
        %v3639 = vld [vmem:[%s7 + $0x18] sm:$0xff]
        %v3640 = vld [vmem:[%s7 + $0x20] sm:$0xff]
        %v3641 = vld [vmem:[%s7 + $0x28] sm:$0xff]
        %v3642 = vld [vmem:[%s7 + $0x30] sm:$0xff]
        %v3643 = vld [vmem:[%s7 + $0x38] sm:$0xff]
        %v3644 = vld [vmem:[%s7 + $0x40] sm:$0xff]
        %v3645 = vld [vmem:[%s7 + $0x48] sm:$0xff]
        %v3646 = vld [vmem:[%s7 + $0x50] sm:$0xff]
        %v3647 = vld [vmem:[%s7 + $0x58] sm:$0xff]
        %v3648 = vld [vmem:[%s7 + $0x60] sm:$0xff]
        %v3649 = vld [vmem:[%s7 + $0x68] sm:$0xff]
        %v3650 = vld [vmem:[%s7 + $0x70] sm:$0xff]
        %v3651 = vld [vmem:[%s7 + $0x78] sm:$0xff]
        %v3652 = vld [vmem:[%s8] sm:$0x1]
        %v3654 = vperm.slane %v3652, 0
        %3656 = vmatpush.msra.mxu0 %v3651
        %3657 = vmatpush.msra.mxu0 %v3650
        %3658 = vmatpush.msra.mxu0 %v3649
        %3659 = vmatpush.msra.mxu0 %v3648
        %3660 = vmatpush.msra.mxu0 %v3647
        %3661 = vmatpush.msra.mxu0 %v3646
        %3662 = vmatpush.msra.mxu0 %v3645
        %3663 = vmatpush.msra.mxu0 %v3644
        %3664 = vmatpush.msra.mxu0 %v3643
        %3665 = vmatpush.msra.mxu0 %v3642
        %3666 = vmatpush.msra.mxu0 %v3641
        %3667 = vmatpush.msra.mxu0 %v3640
        %3668 = vmatpush.msra.mxu0 %v3639
        %3669 = vmatpush.msra.mxu0 %v3638
        %3670 = vmatpush.msra.mxu0 %v3637
        %3671 = vmatpush.msra.mxu0 %v3636
        %3672 = vmatmul.f32.gmra.mxu0 %v3628
        %v3673 = vpop.f32.mrf.mxu0
        %v3674 = vadd.f32 %v3654, %v3673
        %3675 = vmatmul.f32.gmra.mxu0 %v3629
        %v3676 = vpop.f32.mrf.mxu0
        %v3677 = vadd.f32 %v3654, %v3676
        %3678 = vmatmul.f32.gmra.mxu0 %v3630
        %v3679 = vpop.f32.mrf.mxu0
        %v3680 = vadd.f32 %v3654, %v3679
        %3681 = vmatmul.f32.gmra.mxu0 %v3631
        %v3682 = vpop.f32.mrf.mxu0
        %v3683 = vadd.f32 %v3654, %v3682
        %3684 = vmatmul.f32.gmra.mxu0 %v3632
        %v3685 = vpop.f32.mrf.mxu0
        %v3686 = vadd.f32 %v3654, %v3685
        %3687 = vmatmul.f32.gmra.mxu0 %v3633
        %v3688 = vpop.f32.mrf.mxu0
        %v3689 = vadd.f32 %v3654, %v3688
        %3690 = vmatmul.f32.gmra.mxu0 %v3634
        %v3691 = vpop.f32.mrf.mxu0
        %v3692 = vadd.f32 %v3654, %v3691
        %3693 = vmatmul.f32.gmra.mxu0 %v3635
        %v3694 = vpop.f32.mrf.mxu0
        %v3695 = vadd.f32 %v3654, %v3694
        %3696 = vdwg.mxu0
        %v3697 = vrot.slane %v3680, 4
        %vm3698 = vcmask 1047556
        %v3699 = vsel %vm3698, %v3697, %v3674
        %v3700 = vrot.slane %v3674, 4
        %v3701 = vsel %vm3698, %v3680, %v3700
        %v3703 = vunpack.c.l.s4 1983009808
        %v3704 = vunpack.c.0.s8 %v3703
        %v3705 = vperm.slane %v3699, %v3704
        %v3707 = vunpack.c.l.s4 1983009808
        %v3708 = vunpack.c.0.s8 %v3707
        %v3709 = vperm.slane %v3701, %v3708
        %v3710 = vrot.slane %v3683, 4
        %v3711 = vsel %vm3698, %v3710, %v3677
        %v3712 = vrot.slane %v3677, 4
        %v3713 = vsel %vm3698, %v3683, %v3712
        %v3715 = vunpack.c.l.s4 1983009808
        %v3716 = vunpack.c.0.s8 %v3715
        %v3717 = vperm.slane %v3711, %v3716
        %v3719 = vunpack.c.l.s4 1983009808
        %v3720 = vunpack.c.0.s8 %v3719
        %v3721 = vperm.slane %v3713, %v3720
        %v3722 = vrot.slane %v3692, 4
        %v3723 = vsel %vm3698, %v3722, %v3686
        %v3724 = vrot.slane %v3686, 4
        %v3725 = vsel %vm3698, %v3692, %v3724
        %v3727 = vunpack.c.l.s4 1983009808
        %v3728 = vunpack.c.0.s8 %v3727
        %v3729 = vperm.slane %v3723, %v3728
        %v3731 = vunpack.c.l.s4 1983009808
        %v3732 = vunpack.c.0.s8 %v3731
        %v3733 = vperm.slane %v3725, %v3732
        %v3734 = vrot.slane %v3695, 4
        %v3735 = vsel %vm3698, %v3734, %v3689
        %v3736 = vrot.slane %v3689, 4
        %v3737 = vsel %vm3698, %v3695, %v3736
        %v3739 = vunpack.c.l.s4 1983009808
        %v3740 = vunpack.c.0.s8 %v3739
        %v3741 = vperm.slane %v3735, %v3740
        %v3743 = vunpack.c.l.s4 1983009808
        %v3744 = vunpack.c.0.s8 %v3743
        %v3745 = vperm.slane %v3737, %v3744
        %v3746 = vrot.slane %v3717, 4
        %v3747 = vsel %vm3698, %v3746, %v3705
        %v3748 = vrot.slane %v3705, 4
        %v3749 = vsel %vm3698, %v3717, %v3748
        %v3751 = vunpack.c.l.s4 1934713408
        %v3752 = vunpack.c.0.s8 %v3751
        %v3753 = vperm.slane %v3747, %v3752
        %v3755 = vunpack.c.l.s4 1934713408
        %v3756 = vunpack.c.0.s8 %v3755
        %v3757 = vperm.slane %v3749, %v3756
        %v3758 = vrot.slane %v3721, 4
        %v3759 = vsel %vm3698, %v3758, %v3709
        %v3760 = vrot.slane %v3709, 4
        %v3761 = vsel %vm3698, %v3721, %v3760
        %v3763 = vunpack.c.l.s4 1934713408
        %v3764 = vunpack.c.0.s8 %v3763
        %v3765 = vperm.slane %v3759, %v3764
        %v3767 = vunpack.c.l.s4 1934713408
        %v3768 = vunpack.c.0.s8 %v3767
        %v3769 = vperm.slane %v3761, %v3768
        %v3770 = vrot.slane %v3741, 4
        %v3771 = vsel %vm3698, %v3770, %v3729
        %v3772 = vrot.slane %v3729, 4
        %v3773 = vsel %vm3698, %v3741, %v3772
        %v3775 = vunpack.c.l.s4 1934713408
        %v3776 = vunpack.c.0.s8 %v3775
        %v3777 = vperm.slane %v3771, %v3776
        %v3779 = vunpack.c.l.s4 1934713408
        %v3780 = vunpack.c.0.s8 %v3779
        %v3781 = vperm.slane %v3773, %v3780
        %v3782 = vrot.slane %v3745, 4
        %v3783 = vsel %vm3698, %v3782, %v3733
        %v3784 = vrot.slane %v3733, 4
        %v3785 = vsel %vm3698, %v3745, %v3784
        %v3787 = vunpack.c.l.s4 1934713408
        %v3788 = vunpack.c.0.s8 %v3787
        %v3789 = vperm.slane %v3783, %v3788
        %v3791 = vunpack.c.l.s4 1934713408
        %v3792 = vunpack.c.0.s8 %v3791
        %v3793 = vperm.slane %v3785, %v3792
        %v3794 = vrot.slane %v3777, 4
        %v3795 = vsel %vm3698, %v3794, %v3753
        %v3796 = vrot.slane %v3753, 4
        %v3797 = vsel %vm3698, %v3777, %v3796
        %v3798 = vrot.slane %v3781, 4
        %v3799 = vsel %vm3698, %v3798, %v3757
        %v3800 = vrot.slane %v3757, 4
        %v3801 = vsel %vm3698, %v3781, %v3800
        %v3802 = vrot.slane %v3789, 4
        %v3803 = vsel %vm3698, %v3802, %v3765
        %v3804 = vrot.slane %v3765, 4
        %v3805 = vsel %vm3698, %v3789, %v3804
        %v3806 = vrot.slane %v3793, 4
        %v3807 = vsel %vm3698, %v3806, %v3769
        %v3808 = vrot.slane %v3769, 4
        %v3809 = vsel %vm3698, %v3793, %v3808
        %3810 = vst [vmem:[%s367] sm:$0xff] %v3795
        %3811 = vst [vmem:[%s367 + $0x8] sm:$0xff] %v3797
        %3812 = vst [vmem:[%s367 + $0x10] sm:$0xff] %v3799
        %3813 = vst [vmem:[%s367 + $0x18] sm:$0xff] %v3801
        %3814 = vst [vmem:[%s367 + $0x20] sm:$0xff] %v3803
        %3815 = vst [vmem:[%s367 + $0x28] sm:$0xff] %v3805
        %3816 = vst [vmem:[%s367 + $0x30] sm:$0xff] %v3807
        %3817 = vst [vmem:[%s367 + $0x38] sm:$0xff] %v3809
        %v3818 = vld [vmem:[#allocation5] sm:$0xff]
        %v3819 = vld [vmem:[#allocation5 + $0x8] sm:$0xff]
        %3820 = vst [vmem:[%s10] sm:$0xff] %v3818
        %3821 = vst [vmem:[%s10 + $0x8] sm:$0xff] %v3819
        %v3822 = vld [vmem:[#allocation6] sm:$0xff]
        %v3823 = vld [vmem:[#allocation6 + $0x8] sm:$0xff]
        %3824 = vst [vmem:[%s11] sm:$0xff] %v3822
        %3825 = vst [vmem:[%s11 + $0x8] sm:$0xff] %v3823
        %s3826 = sand.u32 %s225, 1
        %s3827 = sand.u32 %s225, 1
        %s3828 = smul.addr %s3827, 64
        %s3829 = scalar_lea.vmem [#allocation7], %s3828
        // Predicated region
        $region61: #{rnn_forward.1} parent=55 // pred_check
          %p3830 = pneg %p235
        $region62: #{rnn_forward.1} parent=55 // pred_check_branch
          %3832 = sbr.rel (%p3830) target = $region64
        $region63: #{rnn_forward.1} parent=55 // pred_region
          %s3833 = smul.addr %s23, 8
          %s3834 = scalar_lea.vmem %s9, %s3833
          // Predicated region
          $region65: #{rnn_forward.1} parent=63 // pred_check
            _
          $region66: #{rnn_forward.1} parent=63 // pred_check_branch
            %3836 = sbr.rel (0) target = $region68
          $region67: #{rnn_forward.1} parent=63 // pred_region
            // Predicated region
            $region69: #{rnn_forward.1} parent=67 // pred_check
              _
            $region70: #{rnn_forward.1} parent=67 // pred_check_branch
              %3838 = sbr.rel (0) target = $region72
            $region71: #{rnn_forward.1} parent=67 // pred_region
              // Predicated region
              $region84: #{rnn_forward.1} parent=71 // pred_check
                _
              $region85: #{rnn_forward.1} parent=71 // pred_check_branch
                %3868 = sbr.rel (0) target = $region87
              $region86: #{rnn_forward.1} parent=71 // pred_region
                loop: start=0, step=1, limit=1
                $region88: #{rnn_forward.1} parent=86 // loop_pre_header
                  _
                $region89: #{rnn_forward.1} parent=86 // loop_header
                  %s3870 = sphi 0, %s3874
                  %p3871 = scmp.ge.s32.totalorder %s3870, 1
                  %s3875 = sphi %s3829, %s3829
                  %s3876 = sphi %s3834, %s3834
                $region90: #{rnn_forward.1} parent=86 // loop_header_branch
                  %3873 = sbr.rel (%p3871) target = $region94
                $region91: #{rnn_forward.1} parent=86 // loop_body
                  %v3877 = vld [vmem:[%s3875] sm:$0xff]
                  %3878 = vst [vmem:[%s3876] sm:$0xff] %v3877
                  %v3879 = vld [vmem:[%s3875 + $0x8] sm:$0xff]
                  %3880 = vst [vmem:[%s3876 + $0x10] sm:$0xff] %v3879
                  %v3881 = vld [vmem:[%s3875 + $0x10] sm:$0xff]
                  %3882 = vst [vmem:[%s3876 + $0x20] sm:$0xff] %v3881
                  %v3883 = vld [vmem:[%s3875 + $0x18] sm:$0xff]
                  %3884 = vst [vmem:[%s3876 + $0x30] sm:$0xff] %v3883
                  %v3885 = vld [vmem:[%s3875 + $0x20] sm:$0xff]
                  %3886 = vst [vmem:[%s3876 + $0x40] sm:$0xff] %v3885
                  %v3887 = vld [vmem:[%s3875 + $0x28] sm:$0xff]
                  %3888 = vst [vmem:[%s3876 + $0x50] sm:$0xff] %v3887
                  %v3889 = vld [vmem:[%s3875 + $0x30] sm:$0xff]
                  %3890 = vst [vmem:[%s3876 + $0x60] sm:$0xff] %v3889
                  %v3891 = vld [vmem:[%s3875 + $0x38] sm:$0xff]
                  %3892 = vst [vmem:[%s3876 + $0x70] sm:$0xff] %v3891
                $region92: #{rnn_forward.1} parent=86 // loop_footer
                  %s3874 = sadd.s32 1, %s3870
                $region93: #{rnn_forward.1} parent=86 // loop_footer_branch
                  %3869 = sbr.rel target = $region89
                $region94: #{rnn_forward.1} parent=86 // loop_exit
                  _
              $region87: #{rnn_forward.1} parent=71 // pred_fallthru
                _
              // Predicated region
              $region95: #{rnn_forward.1} parent=71 // pred_check
                _
              $region96: #{rnn_forward.1} parent=71 // pred_check_branch
                %3894 = sbr.rel target = $region98
              $region97: #{rnn_forward.1} parent=71 // pred_region
                _
              $region98: #{rnn_forward.1} parent=71 // pred_fallthru
                _
            $region72: #{rnn_forward.1} parent=67 // pred_fallthru
              _
            // Predicated region
            $region73: #{rnn_forward.1} parent=67 // pred_check
              _
            $region74: #{rnn_forward.1} parent=67 // pred_check_branch
              %3840 = sbr.rel target = $region76
            $region75: #{rnn_forward.1} parent=67 // pred_region
              %s3842 = ssub.s32 256, 1
              loop: start=0, step=1, limit=1
              $region77: #{rnn_forward.1} parent=75 // loop_pre_header
                _
              $region78: #{rnn_forward.1} parent=75 // loop_header
                %s3844 = sphi 0, %s3848
                %p3845 = scmp.ge.s32.totalorder %s3844, 1
                %s3849 = sphi %s3829, %s3829
                %s3850 = sphi %s3834, %s3834
              $region79: #{rnn_forward.1} parent=75 // loop_header_branch
                %3847 = sbr.rel (%p3845) target = $region83
              $region80: #{rnn_forward.1} parent=75 // loop_body
                %v3851 = vld [vmem:[%s3849] sm:%s3842]
                %3852 = vst [vmem:[%s3850] sm:%s3842] %v3851
                %v3853 = vld [vmem:[%s3849 + $0x8] sm:%s3842]
                %3854 = vst [vmem:[%s3850 + $0x10] sm:%s3842] %v3853
                %v3855 = vld [vmem:[%s3849 + $0x10] sm:%s3842]
                %3856 = vst [vmem:[%s3850 + $0x20] sm:%s3842] %v3855
                %v3857 = vld [vmem:[%s3849 + $0x18] sm:%s3842]
                %3858 = vst [vmem:[%s3850 + $0x30] sm:%s3842] %v3857
                %v3859 = vld [vmem:[%s3849 + $0x20] sm:%s3842]
                %3860 = vst [vmem:[%s3850 + $0x40] sm:%s3842] %v3859
                %v3861 = vld [vmem:[%s3849 + $0x28] sm:%s3842]
                %3862 = vst [vmem:[%s3850 + $0x50] sm:%s3842] %v3861
                %v3863 = vld [vmem:[%s3849 + $0x30] sm:%s3842]
                %3864 = vst [vmem:[%s3850 + $0x60] sm:%s3842] %v3863
                %v3865 = vld [vmem:[%s3849 + $0x38] sm:%s3842]
                %3866 = vst [vmem:[%s3850 + $0x70] sm:%s3842] %v3865
              $region81: #{rnn_forward.1} parent=75 // loop_footer
                %s3848 = sadd.s32 1, %s3844
              $region82: #{rnn_forward.1} parent=75 // loop_footer_branch
                %3843 = sbr.rel target = $region78
              $region83: #{rnn_forward.1} parent=75 // loop_exit
                _
            $region76: #{rnn_forward.1} parent=67 // pred_fallthru
              _
          $region68: #{rnn_forward.1} parent=63 // pred_fallthru
            _
          %3895 = vnop
        $region64: #{rnn_forward.1} parent=55 // pred_fallthru
          _
        // Predicated region
        $region99: #{rnn_forward.1} parent=55 // pred_check
          %p3896 = pneg %p256
        $region100: #{rnn_forward.1} parent=55 // pred_check_branch
          %3898 = sbr.rel (%p3896) target = $region102
        $region101: #{rnn_forward.1} parent=55 // pred_region
          _
        $region102: #{rnn_forward.1} parent=55 // pred_fallthru
          _
        // Predicated region
        $region103: #{rnn_forward.1} parent=55 // pred_check
          %p3899 = pneg %p277
        $region104: #{rnn_forward.1} parent=55 // pred_check_branch
          %3901 = sbr.rel (%p3899) target = $region106
        $region105: #{rnn_forward.1} parent=55 // pred_region
          _
        $region106: #{rnn_forward.1} parent=55 // pred_fallthru
          _
        // Predicated region
        $region107: #{rnn_forward.1} parent=55 // pred_check
          %p3902 = pneg %p256
        $region108: #{rnn_forward.1} parent=55 // pred_check_branch
          %3904 = sbr.rel (%p3902) target = $region110
        $region109: #{rnn_forward.1} parent=55 // pred_region
          _
        $region110: #{rnn_forward.1} parent=55 // pred_fallthru
          _
        // Predicated region
        $region111: #{rnn_forward.1} parent=55 // pred_check
          %p3905 = pneg %p277
        $region112: #{rnn_forward.1} parent=55 // pred_check_branch
          %3907 = sbr.rel (%p3905) target = $region114
        $region113: #{rnn_forward.1} parent=55 // pred_region
          _
        $region114: #{rnn_forward.1} parent=55 // pred_fallthru
          _
      $region56: #{rnn_forward.1} parent=5 // pred_fallthru
        _
      %p3908 = scmp.le.s32.totalorder 2, %s18
      // Predicated region
      $region115: #{rnn_forward.1} parent=5 // pred_check
        %p3909 = pneg %p3908
      $region116: #{rnn_forward.1} parent=5 // pred_check_branch
        %3911 = sbr.rel (%p3909) target = $region118
      $region117: #{rnn_forward.1} parent=5 // pred_region
        %s3912 = ssub.s32 %s18, 2
        // Predicated region
        $region119: #{rnn_forward.1} parent=117 // pred_check
          %p3913 = pneg %p241
        $region120: #{rnn_forward.1} parent=117 // pred_check_branch
          %3915 = sbr.rel (%p3913) target = $region122
        $region121: #{rnn_forward.1} parent=117 // pred_region
          %s3916 = sand.u32 %s226, 1
          %s3917 = sand.u32 %s226, 1
          %s3918 = smul.addr %s3917, 64
          %s3919 = scalar_lea.vmem [#allocation7], %s3918
        $region122: #{rnn_forward.1} parent=117 // pred_fallthru
          _
      $region118: #{rnn_forward.1} parent=5 // pred_fallthru
        _
    $region6: #{rnn_forward.1} parent=1 // loop_footer
      %s22 = sadd.s32 1, %s18
    $region7: #{rnn_forward.1} parent=1 // loop_footer_branch
      %17 = sbr.rel target = $region3
    $region8: #{rnn_forward.1} parent=1 // loop_exit
      _

// kernel: rnn_forward.1
$region0: #{rnn_forward.1}
  #allocation0 [shape = 'u32[]', space=smem, size = 0x4, offset = 0x4, fixed_abs, tag = 'smem constant byte address 0x4 - core index']
  #allocation1 [shape = 'u32[72,128]{1,0:T(1,128)}', space=vmem, size = 0x9000, scoped, tag = 'internal scratch']
  #allocation2 [shape = 'f32[64,128]{1,0:T(8,128)}', space=vmem, size = 0x8000, scoped, tag = 'scratch operand']
  #allocation3 [shape = 'f32[64,128]{1,0:T(8,128)}', space=vmem, size = 0x8000, scoped, tag = 'scratch operand']
  #allocation4 [shape = 'f32[64,512]{1,0:T(8,128)}', space=vmem, size = 0x20000, scoped, tag = 'scratch operand']
  #allocation5 [shape = 'f32[2,8,128]{2,1,0:T(8,128)}', space=vmem, size = 0x2000, scoped, tag = 'scratch operand']
  #allocation6 [shape = 'f32[2,8,128]{2,1,0:T(8,128)}', space=vmem, size = 0x2000, scoped, tag = 'scratch operand']
  %s0 = inlined_call_operand.vmem [shape: f32[128,128], index: 0, kind: input, shape index: {}]
  %s1 = inlined_call_operand.vmem [shape: f32[128,512], index: 1, kind: input, shape index: {}]
  %s2 = inlined_call_operand.vmem [shape: f32[1,128,512], index: 2, kind: input, shape index: {}]
  %s3 = inlined_call_operand.vmem [shape: f32[2,128,512], index: 3, kind: input, shape index: {}]
  %s4 = inlined_call_operand.vmem [shape: f32[2,1,512], index: 4, kind: input, shape index: {}]
  %s5 = inlined_call_operand.vmem [shape: f32[2,8,128], index: 5, kind: input, shape index: {}]
  %s6 = inlined_call_operand.vmem [shape: f32[2,8,128], index: 6, kind: input, shape index: {}]
  %s7 = inlined_call_operand.vmem [shape: f32[128,128], index: 7, kind: input, shape index: {}]
  %s8 = inlined_call_operand.vmem [shape: f32[1,128], index: 8, kind: input, shape index: {}]
  %s9 = inlined_call_operand.vmem [shape: f32[128,128], index: 9, kind: output, shape index: {0}]
  %s10 = inlined_call_operand.vmem [shape: f32[2,8,128], index: 10, kind: output, shape index: {1}]
  %s11 = inlined_call_operand.vmem [shape: f32[2,8,128], index: 11, kind: output, shape index: {2}]
  %12 = xla_tuple %s9, %s10, %s11
  %s13 = sld [smem:[#allocation0]]
  $region89: #{rnn_forward.1} parent=0
    _
  %s15 = ssub.s32 1, %s13
  %s16 = scalar_select 0, %s15, %s13
  loop: start=0, step=1, limit=4
  $region2: #{rnn_forward.1} parent=0 // loop_pre_header
    _
  $region3: #{rnn_forward.1} parent=0 // loop_header
    %s18 = sphi 0, %s22
    %p19 = scmp.ge.s32.totalorder %s18, 4
    %s28 = sphi 0, %s30
    %s31 = sphi 0, %s28
    %s32 = sphi 0, %s31
    %s48 = sphi 0, %s32
    %s52 = sphi 0, %s52
    %s54 = sphi 0, %s52
    %s55 = sphi 0, %s54
    %s69 = sphi 0, %s55
    %s73 = sphi 0, %s73
    %s75 = sphi 0, %s73
    %s76 = sphi 0, %s75
    %s90 = sphi 0, %s76
    %s94 = sphi 0, %s94
    %s96 = sphi 0, %s94
    %s97 = sphi 0, %s96
    %s111 = sphi 0, %s97
    %s115 = sphi 0, %s115
    %s117 = sphi 0, %s115
    %s118 = sphi 0, %s117
    %s132 = sphi 0, %s118
    %s136 = sphi 0, %s136
    %s138 = sphi 0, %s136
    %s139 = sphi 0, %s138
    %s153 = sphi 0, %s139
    %s157 = sphi 0, %s157
    %s159 = sphi 0, %s157
    %s160 = sphi 0, %s159
    %s174 = sphi 0, %s160
    %s178 = sphi 0, %s178
    %s180 = sphi 0, %s178
    %s181 = sphi 0, %s180
    %s195 = sphi 0, %s181
    %s199 = sphi 0, %s199
    %s201 = sphi 0, %s199
    %s202 = sphi 0, %s201
    %s216 = sphi 0, %s202
    %s222 = sphi 0, %s224
    %s225 = sphi 0, %s222
    %s226 = sphi 0, %s225
    %s242 = sphi 0, %s226
    %s246 = sphi 0, %s246
    %s248 = sphi 0, %s246
    %s249 = sphi 0, %s248
    %s263 = sphi 0, %s249
    %s267 = sphi 0, %s267
    %s269 = sphi 0, %s267
    %s270 = sphi 0, %s269
    %s284 = sphi 0, %s270
  $region4: #{rnn_forward.1} parent=0 // loop_header_branch
    %21 = sbr.rel (%p19) target = $region8
  $region5: #{rnn_forward.1} parent=0 // loop_body
    %s23 = ssub.s32 %s18, 1
    %s24 = ssub.s32 %s18, 2
    %s25 = sadd.s32 %s18, 1
    %s26 = ssub.s32 %s18, %s25
    %p27 = scmp.eq.s32.totalorder %s26, 0
    %s29 = sadd.s32 %s28, 1
    %s30 = scalar_select %p27, %s28, %s29
    %p33 = pneg %p27
    %p34 = scmp.eq.s32.totalorder %s18, 1
    %p35 = por %p33, %p34
    %p36 = scmp.ne.s32.totalorder %s28, %s31
    %p37 = scmp.eq.s32.totalorder %s18, 0
    %p38 = por %p36, %p37
    %p39 = scmp.ne.s32.totalorder %s28, %s31
    %p40 = scmp.eq.s32.totalorder %s23, 1
    %p41 = por %p39, %p40
    %p42 = scmp.ne.s32.totalorder %s31, %s32
    %p43 = scmp.eq.s32.totalorder %s23, 0
    %p44 = por %p42, %p43
    %p45 = scmp.ne.s32.totalorder %s31, %s32
    %p46 = scmp.eq.s32.totalorder %s24, 1
    %p47 = por %p45, %p46
    %p49 = scmp.ne.s32.totalorder %s32, %s48
    %p50 = scmp.eq.s32.totalorder %s24, 0
    %p51 = por %p49, %p50
    %s53 = sadd.s32 %s52, 1
    %p56 = scmp.eq.s32.totalorder %s18, 1
    %p57 = scmp.ne.s32.totalorder %s52, %s54
    %p58 = scmp.eq.s32.totalorder %s18, 0
    %p59 = por %p57, %p58
    %p60 = scmp.ne.s32.totalorder %s52, %s54
    %p61 = scmp.eq.s32.totalorder %s23, 1
    %p62 = por %p60, %p61
    %p63 = scmp.ne.s32.totalorder %s54, %s55
    %p64 = scmp.eq.s32.totalorder %s23, 0
    %p65 = por %p63, %p64
    %p66 = scmp.ne.s32.totalorder %s54, %s55
    %p67 = scmp.eq.s32.totalorder %s24, 1
    %p68 = por %p66, %p67
    %p70 = scmp.ne.s32.totalorder %s55, %s69
    %p71 = scmp.eq.s32.totalorder %s24, 0
    %p72 = por %p70, %p71
    %s74 = sadd.s32 %s73, 1
    %p77 = scmp.eq.s32.totalorder %s18, 1
    %p78 = scmp.ne.s32.totalorder %s73, %s75
    %p79 = scmp.eq.s32.totalorder %s18, 0
    %p80 = por %p78, %p79
    %p81 = scmp.ne.s32.totalorder %s73, %s75
    %p82 = scmp.eq.s32.totalorder %s23, 1
    %p83 = por %p81, %p82
    %p84 = scmp.ne.s32.totalorder %s75, %s76
    %p85 = scmp.eq.s32.totalorder %s23, 0
    %p86 = por %p84, %p85
    %p87 = scmp.ne.s32.totalorder %s75, %s76
    %p88 = scmp.eq.s32.totalorder %s24, 1
    %p89 = por %p87, %p88
    %p91 = scmp.ne.s32.totalorder %s76, %s90
    %p92 = scmp.eq.s32.totalorder %s24, 0
    %p93 = por %p91, %p92
    %s95 = sadd.s32 %s94, 1
    %p98 = scmp.eq.s32.totalorder %s18, 1
    %p99 = scmp.ne.s32.totalorder %s94, %s96
    %p100 = scmp.eq.s32.totalorder %s18, 0
    %p101 = por %p99, %p100
    %p102 = scmp.ne.s32.totalorder %s94, %s96
    %p103 = scmp.eq.s32.totalorder %s23, 1
    %p104 = por %p102, %p103
    %p105 = scmp.ne.s32.totalorder %s96, %s97
    %p106 = scmp.eq.s32.totalorder %s23, 0
    %p107 = por %p105, %p106
    %p108 = scmp.ne.s32.totalorder %s96, %s97
    %p109 = scmp.eq.s32.totalorder %s24, 1
    %p110 = por %p108, %p109
    %p112 = scmp.ne.s32.totalorder %s97, %s111
    %p113 = scmp.eq.s32.totalorder %s24, 0
    %p114 = por %p112, %p113
    %s116 = sadd.s32 %s115, 1
    %p119 = scmp.eq.s32.totalorder %s18, 1
    %p120 = scmp.ne.s32.totalorder %s115, %s117
    %p121 = scmp.eq.s32.totalorder %s18, 0
    %p122 = por %p120, %p121
    %p123 = scmp.ne.s32.totalorder %s115, %s117
    %p124 = scmp.eq.s32.totalorder %s23, 1
    %p125 = por %p123, %p124
    %p126 = scmp.ne.s32.totalorder %s117, %s118
    %p127 = scmp.eq.s32.totalorder %s23, 0
    %p128 = por %p126, %p127
    %p129 = scmp.ne.s32.totalorder %s117, %s118
    %p130 = scmp.eq.s32.totalorder %s24, 1
    %p131 = por %p129, %p130
    %p133 = scmp.ne.s32.totalorder %s118, %s132
    %p134 = scmp.eq.s32.totalorder %s24, 0
    %p135 = por %p133, %p134
    %s137 = sadd.s32 %s136, 1
    %p140 = scmp.eq.s32.totalorder %s18, 1
    %p141 = scmp.ne.s32.totalorder %s136, %s138
    %p142 = scmp.eq.s32.totalorder %s18, 0
    %p143 = por %p141, %p142
    %p144 = scmp.ne.s32.totalorder %s136, %s138
    %p145 = scmp.eq.s32.totalorder %s23, 1
    %p146 = por %p144, %p145
    %p147 = scmp.ne.s32.totalorder %s138, %s139
    %p148 = scmp.eq.s32.totalorder %s23, 0
    %p149 = por %p147, %p148
    %p150 = scmp.ne.s32.totalorder %s138, %s139
    %p151 = scmp.eq.s32.totalorder %s24, 1
    %p152 = por %p150, %p151
    %p154 = scmp.ne.s32.totalorder %s139, %s153
    %p155 = scmp.eq.s32.totalorder %s24, 0
    %p156 = por %p154, %p155
    %s158 = sadd.s32 %s157, 1
    %p161 = scmp.eq.s32.totalorder %s18, 1
    %p162 = scmp.ne.s32.totalorder %s157, %s159
    %p163 = scmp.eq.s32.totalorder %s18, 0
    %p164 = por %p162, %p163
    %p165 = scmp.ne.s32.totalorder %s157, %s159
    %p166 = scmp.eq.s32.totalorder %s23, 1
    %p167 = por %p165, %p166
    %p168 = scmp.ne.s32.totalorder %s159, %s160
    %p169 = scmp.eq.s32.totalorder %s23, 0
    %p170 = por %p168, %p169
    %p171 = scmp.ne.s32.totalorder %s159, %s160
    %p172 = scmp.eq.s32.totalorder %s24, 1
    %p173 = por %p171, %p172
    %p175 = scmp.ne.s32.totalorder %s160, %s174
    %p176 = scmp.eq.s32.totalorder %s24, 0
    %p177 = por %p175, %p176
    %s179 = sadd.s32 %s178, 1
    %p182 = scmp.eq.s32.totalorder %s18, 1
    %p183 = scmp.ne.s32.totalorder %s178, %s180
    %p184 = scmp.eq.s32.totalorder %s18, 0
    %p185 = por %p183, %p184
    %p186 = scmp.ne.s32.totalorder %s178, %s180
    %p187 = scmp.eq.s32.totalorder %s23, 1
    %p188 = por %p186, %p187
    %p189 = scmp.ne.s32.totalorder %s180, %s181
    %p190 = scmp.eq.s32.totalorder %s23, 0
    %p191 = por %p189, %p190
    %p192 = scmp.ne.s32.totalorder %s180, %s181
    %p193 = scmp.eq.s32.totalorder %s24, 1
    %p194 = por %p192, %p193
    %p196 = scmp.ne.s32.totalorder %s181, %s195
    %p197 = scmp.eq.s32.totalorder %s24, 0
    %p198 = por %p196, %p197
    %s200 = sadd.s32 %s199, 1
    %p203 = scmp.eq.s32.totalorder %s18, 1
    %p204 = scmp.ne.s32.totalorder %s199, %s201
    %p205 = scmp.eq.s32.totalorder %s18, 0
    %p206 = por %p204, %p205
    %p207 = scmp.ne.s32.totalorder %s199, %s201
    %p208 = scmp.eq.s32.totalorder %s23, 1
    %p209 = por %p207, %p208
    %p210 = scmp.ne.s32.totalorder %s201, %s202
    %p211 = scmp.eq.s32.totalorder %s23, 0
    %p212 = por %p210, %p211
    %p213 = scmp.ne.s32.totalorder %s201, %s202
    %p214 = scmp.eq.s32.totalorder %s24, 1
    %p215 = por %p213, %p214
    %p217 = scmp.ne.s32.totalorder %s202, %s216
    %p218 = scmp.eq.s32.totalorder %s24, 0
    %p219 = por %p217, %p218
    %s220 = ssub.s32 %s18, %s25
    %p221 = scmp.eq.s32.totalorder %s220, 0
    %s223 = sadd.s32 %s222, 1
    %s224 = scalar_select %p221, %s222, %s223
    %p227 = pneg %p221
    %p228 = scmp.eq.s32.totalorder %s18, 1
    %p229 = por %p227, %p228
    %p230 = scmp.ne.s32.totalorder %s222, %s225
    %p231 = scmp.eq.s32.totalorder %s18, 0
    %p232 = por %p230, %p231
    %p233 = scmp.ne.s32.totalorder %s222, %s225
    %p234 = scmp.eq.s32.totalorder %s23, 1
    %p235 = por %p233, %p234
    %p236 = scmp.ne.s32.totalorder %s225, %s226
    %p237 = scmp.eq.s32.totalorder %s23, 0
    %p238 = por %p236, %p237
    %p239 = scmp.ne.s32.totalorder %s225, %s226
    %p240 = scmp.eq.s32.totalorder %s24, 1
    %p241 = por %p239, %p240
    %p243 = scmp.ne.s32.totalorder %s226, %s242
    %p244 = scmp.eq.s32.totalorder %s24, 0
    %p245 = por %p243, %p244
    %s247 = sadd.s32 %s246, 1
    %p250 = scmp.eq.s32.totalorder %s18, 1
    %p251 = scmp.ne.s32.totalorder %s246, %s248
    %p252 = scmp.eq.s32.totalorder %s18, 0
    %p253 = por %p251, %p252
    %p254 = scmp.ne.s32.totalorder %s246, %s248
    %p255 = scmp.eq.s32.totalorder %s23, 1
    %p256 = por %p254, %p255
    %p257 = scmp.ne.s32.totalorder %s248, %s249
    %p258 = scmp.eq.s32.totalorder %s23, 0
    %p259 = por %p257, %p258
    %p260 = scmp.ne.s32.totalorder %s248, %s249
    %p261 = scmp.eq.s32.totalorder %s24, 1
    %p262 = por %p260, %p261
    %p264 = scmp.ne.s32.totalorder %s249, %s263
    %p265 = scmp.eq.s32.totalorder %s24, 0
    %p266 = por %p264, %p265
    %s268 = sadd.s32 %s267, 1
    %p271 = scmp.eq.s32.totalorder %s18, 1
    %p272 = scmp.ne.s32.totalorder %s267, %s269
    %p273 = scmp.eq.s32.totalorder %s18, 0
    %p274 = por %p272, %p273
    %p275 = scmp.ne.s32.totalorder %s267, %s269
    %p276 = scmp.eq.s32.totalorder %s23, 1
    %p277 = por %p275, %p276
    %p278 = scmp.ne.s32.totalorder %s269, %s270
    %p279 = scmp.eq.s32.totalorder %s23, 0
    %p280 = por %p278, %p279
    %p281 = scmp.ne.s32.totalorder %s269, %s270
    %p282 = scmp.eq.s32.totalorder %s24, 1
    %p283 = por %p281, %p282
    %p285 = scmp.ne.s32.totalorder %s270, %s284
    %p286 = scmp.eq.s32.totalorder %s24, 0
    %p287 = por %p285, %p286
    %p288 = scmp.le.s32.totalorder 1, %s18
    %p289 = scmp.lt.s32.totalorder %s18, 3
    %p290 = pnand %p288, %p289
    %p291 = pneg %p290
    // Predicated region
    $region9: #{rnn_forward.1} parent=5 // pred_check
      _
    $region10: #{rnn_forward.1} parent=5 // pred_check_branch
      %293 = sbr.rel (%p290) target = $region12
    $region11: #{rnn_forward.1} parent=5 // pred_region
      %s294 = ssub.s32 %s18, 1
      // Predicated region
      $region13: #{rnn_forward.1} parent=11 // pred_check
        %p295 = pneg %p65
      $region14: #{rnn_forward.1} parent=11 // pred_check_branch
        %297 = sbr.rel (%p295) target = $region16
      $region15: #{rnn_forward.1} parent=11 // pred_region
        _
      $region16: #{rnn_forward.1} parent=11 // pred_fallthru
        _
      // Predicated region
      $region17: #{rnn_forward.1} parent=11 // pred_check
        %p298 = pneg %p86
      $region18: #{rnn_forward.1} parent=11 // pred_check_branch
        %300 = sbr.rel (%p298) target = $region20
      $region19: #{rnn_forward.1} parent=11 // pred_region
        _
      $region20: #{rnn_forward.1} parent=11 // pred_fallthru
        _
      // Predicated region
      $region21: #{rnn_forward.1} parent=11 // pred_check
        %p301 = pneg %p107
      $region22: #{rnn_forward.1} parent=11 // pred_check_branch
        %303 = sbr.rel (%p301) target = $region24
      $region23: #{rnn_forward.1} parent=11 // pred_region
        _
      $region24: #{rnn_forward.1} parent=11 // pred_fallthru
        _
      // Predicated region
      $region25: #{rnn_forward.1} parent=11 // pred_check
        %p304 = pneg %p128
      $region26: #{rnn_forward.1} parent=11 // pred_check_branch
        %306 = sbr.rel (%p304) target = $region28
      $region27: #{rnn_forward.1} parent=11 // pred_region
        _
      $region28: #{rnn_forward.1} parent=11 // pred_fallthru
        _
      // Predicated region
      $region29: #{rnn_forward.1} parent=11 // pred_check
        %p307 = pneg %p149
      $region30: #{rnn_forward.1} parent=11 // pred_check_branch
        %309 = sbr.rel (%p307) target = $region32
      $region31: #{rnn_forward.1} parent=11 // pred_region
        _
      $region32: #{rnn_forward.1} parent=11 // pred_fallthru
        _
      // Predicated region
      $region33: #{rnn_forward.1} parent=11 // pred_check
        %p310 = pneg %p170
      $region34: #{rnn_forward.1} parent=11 // pred_check_branch
        %312 = sbr.rel (%p310) target = $region36
      $region35: #{rnn_forward.1} parent=11 // pred_region
        _
      $region36: #{rnn_forward.1} parent=11 // pred_fallthru
        _
      // Predicated region
      $region37: #{rnn_forward.1} parent=11 // pred_check
        %p313 = pneg %p191
      $region38: #{rnn_forward.1} parent=11 // pred_check_branch
        %315 = sbr.rel (%p313) target = $region40
      $region39: #{rnn_forward.1} parent=11 // pred_region
        _
      $region40: #{rnn_forward.1} parent=11 // pred_fallthru
        _
      // Predicated region
      $region41: #{rnn_forward.1} parent=11 // pred_check
        %p316 = pneg %p212
      $region42: #{rnn_forward.1} parent=11 // pred_check_branch
        %318 = sbr.rel (%p316) target = $region44
      $region43: #{rnn_forward.1} parent=11 // pred_region
        _
      $region44: #{rnn_forward.1} parent=11 // pred_fallthru
        _
    $region12: #{rnn_forward.1} parent=5 // pred_fallthru
      _
    %p319 = scmp.lt.s32.totalorder %s18, 2
    // Predicated region
    $region45: #{rnn_forward.1} parent=5 // pred_check
      %p320 = pneg %p319
    $region46: #{rnn_forward.1} parent=5 // pred_check_branch
      %322 = sbr.rel (%p320) target = $region48
    $region47: #{rnn_forward.1} parent=5 // pred_region
      // Predicated region
      $region49: #{rnn_forward.1} parent=47 // pred_check
        %p323 = pneg %p38
      $region50: #{rnn_forward.1} parent=47 // pred_check_branch
        %325 = sbr.rel (%p323) target = $region52
      $region51: #{rnn_forward.1} parent=47 // pred_region
        %s326 = smul.u32 8, %s18
        %p327 = scmp.lt.s32.totalorder %s326, 15
        %s328 = scalar_select %p327, %s326, 15
        %s329 = smul.addr %s328, 8
        %s330 = scalar_lea.vmem %s0, %s329
        %s331 = smul.u32 8, %s18
      $region52: #{rnn_forward.1} parent=47 // pred_fallthru
        _
    $region48: #{rnn_forward.1} parent=5 // pred_fallthru
      _
    %p332 = scmp.le.s32.totalorder 1, %s18
    %p333 = scmp.lt.s32.totalorder %s18, 3
    %p334 = pnand %p332, %p333
    %p335 = pneg %p334
    // Predicated region
    $region53: #{rnn_forward.1} parent=5 // pred_check
      _
    $region54: #{rnn_forward.1} parent=5 // pred_check_branch
      %337 = sbr.rel (%p334) target = $region56
    $region55: #{rnn_forward.1} parent=5 // pred_region
      %s338 = ssub.s32 %s18, 1
      %s339 = smul.u32 8, %s23
      %p340 = scmp.lt.s32.totalorder %s339, 15
      %s341 = scalar_select %p340, %s339, 15
      %s342 = smul.addr %s341, 8
      %s343 = scalar_lea.vmem %s0, %s342
      %p344 = pneg %p44
      %p345 = pneg %p41
      %p346 = pneg %p65
      %p347 = pneg %p62
      %p348 = pneg %p86
      %p349 = pneg %p83
      %p350 = pneg %p107
      %p351 = pneg %p104
      %p352 = pneg %p128
      %p353 = pneg %p125
      %p354 = pneg %p149
      %p355 = pneg %p146
      %p356 = pneg %p170
      %p357 = pneg %p167
      %p358 = pneg %p191
      %p359 = pneg %p188
      %p360 = pneg %p212
      %p361 = pneg %p209
      %p362 = pneg %p238
      %p363 = pneg %p235
      %s364 = smul.u32 8, %s23
      %p365 = scmp.lt.s32.totalorder %s364, 15
      %s366 = scalar_select %p365, %s364, 15
      %s367 = smul.addr %s366, 8
      %s368 = scalar_lea.vmem %s9, %s367
      %p369 = pneg %p259
      %p370 = pneg %p256
      %p371 = pneg %p280
      %p372 = pneg %p277
      %s373 = smul.u32 8, %s23
      %p374 = scmp.lt.s32.totalorder %s373, 15
      %s375 = scalar_select %p374, %s373, 15
      %s376 = smul.addr %s375, 8
      %s377 = scalar_lea.vmem %s0, %s376
      %s378 = smul.u32 8, %s23
      %s379 = smul.u32 8, %s23
      %p380 = scmp.lt.s32.totalorder %s379, 15
      %s381 = scalar_select %p380, %s379, 15
      %s382 = smul.addr %s381, 8
      %s383 = scalar_lea.vmem %s9, %s382
      %s384 = smul.u32 8, %s23
      %s385 = smul.u32 %s23, 8
      %p386 = scmp.eq.s32.totalorder %s23, 0
      // Predicated region
      $region57: #{rnn_forward.1} parent=55 // pred_check
        %p387 = pneg %p386
      $region58: #{rnn_forward.1} parent=55 // pred_check_branch
        %389 = sbr.rel (%p387) target = $region60
      $region59: #{rnn_forward.1} parent=55 // pred_region
        %v390 = vld [vmem:[%s5] sm:$0xff]
        %v391 = vld [vmem:[%s5 + $0x8] sm:$0xff]
        %392 = vst [vmem:[#allocation5] sm:$0xff] %v390
        %393 = vst [vmem:[#allocation5 + $0x8] sm:$0xff] %v391
        %v394 = vld [vmem:[%s6] sm:$0xff]
        %v395 = vld [vmem:[%s6 + $0x8] sm:$0xff]
        %396 = vst [vmem:[#allocation6] sm:$0xff] %v394
        %397 = vst [vmem:[#allocation6 + $0x8] sm:$0xff] %v395
      $region60: #{rnn_forward.1} parent=55 // pred_fallthru
        _
      %v398 = vld [vmem:[%s377] sm:$0xff]
      %v399 = vld [vmem:[%s377 + $0x8] sm:$0xff]
      %v400 = vld [vmem:[%s377 + $0x10] sm:$0xff]
      %v401 = vld [vmem:[%s377 + $0x18] sm:$0xff]
      %v402 = vld [vmem:[%s377 + $0x20] sm:$0xff]
      %v403 = vld [vmem:[%s377 + $0x28] sm:$0xff]
      %v404 = vld [vmem:[%s377 + $0x30] sm:$0xff]
      %v405 = vld [vmem:[%s377 + $0x38] sm:$0xff]
      %v406 = vld [vmem:[%s1] sm:$0xff]
      %v407 = vld [vmem:[%s1 + $0x8] sm:$0xff]
      %v408 = vld [vmem:[%s1 + $0x10] sm:$0xff]
      %v409 = vld [vmem:[%s1 + $0x18] sm:$0xff]
      %v410 = vld [vmem:[%s1 + $0x20] sm:$0xff]
      %v411 = vld [vmem:[%s1 + $0x28] sm:$0xff]
      %v412 = vld [vmem:[%s1 + $0x30] sm:$0xff]
      %v413 = vld [vmem:[%s1 + $0x38] sm:$0xff]
      %v414 = vld [vmem:[%s1 + $0x40] sm:$0xff]
      %v415 = vld [vmem:[%s1 + $0x48] sm:$0xff]
      %v416 = vld [vmem:[%s1 + $0x50] sm:$0xff]
      %v417 = vld [vmem:[%s1 + $0x58] sm:$0xff]
      %v418 = vld [vmem:[%s1 + $0x60] sm:$0xff]
      %v419 = vld [vmem:[%s1 + $0x68] sm:$0xff]
      %v420 = vld [vmem:[%s1 + $0x70] sm:$0xff]
      %v421 = vld [vmem:[%s1 + $0x78] sm:$0xff]
      %v422 = vld [vmem:[%s1 + $0x80] sm:$0xff]
      %v423 = vld [vmem:[%s1 + $0x88] sm:$0xff]
      %v424 = vld [vmem:[%s1 + $0x90] sm:$0xff]
      %v425 = vld [vmem:[%s1 + $0x98] sm:$0xff]
      %v426 = vld [vmem:[%s1 + $0xa0] sm:$0xff]
      %v427 = vld [vmem:[%s1 + $0xa8] sm:$0xff]
      %v428 = vld [vmem:[%s1 + $0xb0] sm:$0xff]
      %v429 = vld [vmem:[%s1 + $0xb8] sm:$0xff]
      %v430 = vld [vmem:[%s1 + $0xc0] sm:$0xff]
      %v431 = vld [vmem:[%s1 + $0xc8] sm:$0xff]
      %v432 = vld [vmem:[%s1 + $0xd0] sm:$0xff]
      %v433 = vld [vmem:[%s1 + $0xd8] sm:$0xff]
      %v434 = vld [vmem:[%s1 + $0xe0] sm:$0xff]
      %v435 = vld [vmem:[%s1 + $0xe8] sm:$0xff]
      %v436 = vld [vmem:[%s1 + $0xf0] sm:$0xff]
      %v437 = vld [vmem:[%s1 + $0xf8] sm:$0xff]
      %v438 = vld [vmem:[%s1 + $0x100] sm:$0xff]
      %v439 = vld [vmem:[%s1 + $0x108] sm:$0xff]
      %v440 = vld [vmem:[%s1 + $0x110] sm:$0xff]
      %v441 = vld [vmem:[%s1 + $0x118] sm:$0xff]
      %v442 = vld [vmem:[%s1 + $0x120] sm:$0xff]
      %v443 = vld [vmem:[%s1 + $0x128] sm:$0xff]
      %v444 = vld [vmem:[%s1 + $0x130] sm:$0xff]
      %v445 = vld [vmem:[%s1 + $0x138] sm:$0xff]
      %v446 = vld [vmem:[%s1 + $0x140] sm:$0xff]
      %v447 = vld [vmem:[%s1 + $0x148] sm:$0xff]
      %v448 = vld [vmem:[%s1 + $0x150] sm:$0xff]
      %v449 = vld [vmem:[%s1 + $0x158] sm:$0xff]
      %v450 = vld [vmem:[%s1 + $0x160] sm:$0xff]
      %v451 = vld [vmem:[%s1 + $0x168] sm:$0xff]
      %v452 = vld [vmem:[%s1 + $0x170] sm:$0xff]
      %v453 = vld [vmem:[%s1 + $0x178] sm:$0xff]
      %v454 = vld [vmem:[%s1 + $0x180] sm:$0xff]
      %v455 = vld [vmem:[%s1 + $0x188] sm:$0xff]
      %v456 = vld [vmem:[%s1 + $0x190] sm:$0xff]
      %v457 = vld [vmem:[%s1 + $0x198] sm:$0xff]
      %v458 = vld [vmem:[%s1 + $0x1a0] sm:$0xff]
      %v459 = vld [vmem:[%s1 + $0x1a8] sm:$0xff]
      %v460 = vld [vmem:[%s1 + $0x1b0] sm:$0xff]
      %v461 = vld [vmem:[%s1 + $0x1b8] sm:$0xff]
      %v462 = vld [vmem:[%s1 + $0x1c0] sm:$0xff]
      %v463 = vld [vmem:[%s1 + $0x1c8] sm:$0xff]
      %v464 = vld [vmem:[%s1 + $0x1d0] sm:$0xff]
      %v465 = vld [vmem:[%s1 + $0x1d8] sm:$0xff]
      %v466 = vld [vmem:[%s1 + $0x1e0] sm:$0xff]
      %v467 = vld [vmem:[%s1 + $0x1e8] sm:$0xff]
      %v468 = vld [vmem:[%s1 + $0x1f0] sm:$0xff]
      %v469 = vld [vmem:[%s1 + $0x1f8] sm:$0xff]
      %v470 = vld [vmem:[%s4] sm:$0xf]
      %v472 = vperm.slane %v470, 0
      %v473 = vperm.slane %v470, 1
      %v474 = vperm.slane %v470, 2
      %v475 = vperm.slane %v470, 3
      %480 = vmatpush.msra.mxu0 %v466
      %481 = vmatpush.msra.mxu0 %v462
      %482 = vmatpush.msra.mxu0 %v458
      %483 = vmatpush.msra.mxu0 %v454
      %484 = vmatpush.msra.mxu0 %v450
      %485 = vmatpush.msra.mxu0 %v446
      %486 = vmatpush.msra.mxu0 %v442
      %487 = vmatpush.msra.mxu0 %v438
      %488 = vmatpush.msra.mxu0 %v434
      %489 = vmatpush.msra.mxu0 %v430
      %490 = vmatpush.msra.mxu0 %v426
      %491 = vmatpush.msra.mxu0 %v422
      %492 = vmatpush.msra.mxu0 %v418
      %493 = vmatpush.msra.mxu0 %v414
      %494 = vmatpush.msra.mxu0 %v410
      %495 = vmatpush.msra.mxu0 %v406
      %496 = vmatmul.f32.gmra.mxu0 %v398
      %v497 = vpop.f32.mrf.mxu0
      %v498 = vadd.f32 %v472, %v497
      %499 = vmatmul.f32.gmra.mxu0 %v399
      %v500 = vpop.f32.mrf.mxu0
      %v501 = vadd.f32 %v472, %v500
      %502 = vmatmul.f32.gmra.mxu0 %v400
      %v503 = vpop.f32.mrf.mxu0
      %v504 = vadd.f32 %v472, %v503
      %505 = vmatmul.f32.gmra.mxu0 %v401
      %v506 = vpop.f32.mrf.mxu0
      %v507 = vadd.f32 %v472, %v506
      %508 = vmatmul.f32.gmra.mxu0 %v402
      %v509 = vpop.f32.mrf.mxu0
      %v510 = vadd.f32 %v472, %v509
      %511 = vmatmul.f32.gmra.mxu0 %v403
      %v512 = vpop.f32.mrf.mxu0
      %v513 = vadd.f32 %v472, %v512
      %514 = vmatmul.f32.gmra.mxu0 %v404
      %v515 = vpop.f32.mrf.mxu0
      %v516 = vadd.f32 %v472, %v515
      %517 = vmatmul.f32.gmra.mxu0 %v405
      %v518 = vpop.f32.mrf.mxu0
      %v519 = vadd.f32 %v472, %v518
      %520 = vdwg.mxu0
      %521 = vmatpush.msra.mxu0 %v467
      %522 = vmatpush.msra.mxu0 %v463
      %523 = vmatpush.msra.mxu0 %v459
      %524 = vmatpush.msra.mxu0 %v455
      %525 = vmatpush.msra.mxu0 %v451
      %526 = vmatpush.msra.mxu0 %v447
      %527 = vmatpush.msra.mxu0 %v443
      %528 = vmatpush.msra.mxu0 %v439
      %529 = vmatpush.msra.mxu0 %v435
      %530 = vmatpush.msra.mxu0 %v431
      %531 = vmatpush.msra.mxu0 %v427
      %532 = vmatpush.msra.mxu0 %v423
      %533 = vmatpush.msra.mxu0 %v419
      %534 = vmatpush.msra.mxu0 %v415
      %535 = vmatpush.msra.mxu0 %v411
      %536 = vmatpush.msra.mxu0 %v407
      %537 = vmatmul.f32.gmra.mxu0 %v398
      %v538 = vpop.f32.mrf.mxu0
      %v539 = vadd.f32 %v473, %v538
      %540 = vmatmul.f32.gmra.mxu0 %v399
      %v541 = vpop.f32.mrf.mxu0
      %v542 = vadd.f32 %v473, %v541
      %543 = vmatmul.f32.gmra.mxu0 %v400
      %v544 = vpop.f32.mrf.mxu0
      %v545 = vadd.f32 %v473, %v544
      %546 = vmatmul.f32.gmra.mxu0 %v401
      %v547 = vpop.f32.mrf.mxu0
      %v548 = vadd.f32 %v473, %v547
      %549 = vmatmul.f32.gmra.mxu0 %v402
      %v550 = vpop.f32.mrf.mxu0
      %v551 = vadd.f32 %v473, %v550
      %552 = vmatmul.f32.gmra.mxu0 %v403
      %v553 = vpop.f32.mrf.mxu0
      %v554 = vadd.f32 %v473, %v553
      %555 = vmatmul.f32.gmra.mxu0 %v404
      %v556 = vpop.f32.mrf.mxu0
      %v557 = vadd.f32 %v473, %v556
      %558 = vmatmul.f32.gmra.mxu0 %v405
      %v559 = vpop.f32.mrf.mxu0
      %v560 = vadd.f32 %v473, %v559
      %561 = vdwg.mxu0
      %562 = vmatpush.msra.mxu0 %v468
      %563 = vmatpush.msra.mxu0 %v464
      %564 = vmatpush.msra.mxu0 %v460
      %565 = vmatpush.msra.mxu0 %v456
      %566 = vmatpush.msra.mxu0 %v452
      %567 = vmatpush.msra.mxu0 %v448
      %568 = vmatpush.msra.mxu0 %v444
      %569 = vmatpush.msra.mxu0 %v440
      %570 = vmatpush.msra.mxu0 %v436
      %571 = vmatpush.msra.mxu0 %v432
      %572 = vmatpush.msra.mxu0 %v428
      %573 = vmatpush.msra.mxu0 %v424
      %574 = vmatpush.msra.mxu0 %v420
      %575 = vmatpush.msra.mxu0 %v416
      %576 = vmatpush.msra.mxu0 %v412
      %577 = vmatpush.msra.mxu0 %v408
      %578 = vmatmul.f32.gmra.mxu0 %v398
      %v579 = vpop.f32.mrf.mxu0
      %v580 = vadd.f32 %v474, %v579
      %581 = vmatmul.f32.gmra.mxu0 %v399
      %v582 = vpop.f32.mrf.mxu0
      %v583 = vadd.f32 %v474, %v582
      %584 = vmatmul.f32.gmra.mxu0 %v400
      %v585 = vpop.f32.mrf.mxu0
      %v586 = vadd.f32 %v474, %v585
      %587 = vmatmul.f32.gmra.mxu0 %v401
      %v588 = vpop.f32.mrf.mxu0
      %v589 = vadd.f32 %v474, %v588
      %590 = vmatmul.f32.gmra.mxu0 %v402
      %v591 = vpop.f32.mrf.mxu0
      %v592 = vadd.f32 %v474, %v591
      %593 = vmatmul.f32.gmra.mxu0 %v403
      %v594 = vpop.f32.mrf.mxu0
      %v595 = vadd.f32 %v474, %v594
      %596 = vmatmul.f32.gmra.mxu0 %v404
      %v597 = vpop.f32.mrf.mxu0
      %v598 = vadd.f32 %v474, %v597
      %599 = vmatmul.f32.gmra.mxu0 %v405
      %v600 = vpop.f32.mrf.mxu0
      %v601 = vadd.f32 %v474, %v600
      %602 = vdwg.mxu0
      %603 = vmatpush.msra.mxu0 %v469
      %604 = vmatpush.msra.mxu0 %v465
      %605 = vmatpush.msra.mxu0 %v461
      %606 = vmatpush.msra.mxu0 %v457
      %607 = vmatpush.msra.mxu0 %v453
      %608 = vmatpush.msra.mxu0 %v449
      %609 = vmatpush.msra.mxu0 %v445
      %610 = vmatpush.msra.mxu0 %v441
      %611 = vmatpush.msra.mxu0 %v437
      %612 = vmatpush.msra.mxu0 %v433
      %613 = vmatpush.msra.mxu0 %v429
      %614 = vmatpush.msra.mxu0 %v425
      %615 = vmatpush.msra.mxu0 %v421
      %616 = vmatpush.msra.mxu0 %v417
      %617 = vmatpush.msra.mxu0 %v413
      %618 = vmatpush.msra.mxu0 %v409
      %619 = vmatmul.f32.gmra.mxu0 %v398
      %v620 = vpop.f32.mrf.mxu0
      %v621 = vadd.f32 %v475, %v620
      %622 = vmatmul.f32.gmra.mxu0 %v399
      %v623 = vpop.f32.mrf.mxu0
      %v624 = vadd.f32 %v475, %v623
      %625 = vmatmul.f32.gmra.mxu0 %v400
      %v626 = vpop.f32.mrf.mxu0
      %v627 = vadd.f32 %v475, %v626
      %628 = vmatmul.f32.gmra.mxu0 %v401
      %v629 = vpop.f32.mrf.mxu0
      %v630 = vadd.f32 %v475, %v629
      %631 = vmatmul.f32.gmra.mxu0 %v402
      %v632 = vpop.f32.mrf.mxu0
      %v633 = vadd.f32 %v475, %v632
      %634 = vmatmul.f32.gmra.mxu0 %v403
      %v635 = vpop.f32.mrf.mxu0
      %v636 = vadd.f32 %v475, %v635
      %637 = vmatmul.f32.gmra.mxu0 %v404
      %v638 = vpop.f32.mrf.mxu0
      %v639 = vadd.f32 %v475, %v638
      %640 = vmatmul.f32.gmra.mxu0 %v405
      %v641 = vpop.f32.mrf.mxu0
      %v642 = vadd.f32 %v475, %v641
      %643 = vdwg.mxu0
      %644 = vst [vmem:[#allocation4] sm:$0xff] %v498
      %645 = vst [vmem:[#allocation4 + $0x8] sm:$0xff] %v539
      %646 = vst [vmem:[#allocation4 + $0x10] sm:$0xff] %v580
      %647 = vst [vmem:[#allocation4 + $0x18] sm:$0xff] %v621
      %648 = vst [vmem:[#allocation4 + $0x20] sm:$0xff] %v501
      %649 = vst [vmem:[#allocation4 + $0x28] sm:$0xff] %v542
      %650 = vst [vmem:[#allocation4 + $0x30] sm:$0xff] %v583
      %651 = vst [vmem:[#allocation4 + $0x38] sm:$0xff] %v624
      %652 = vst [vmem:[#allocation4 + $0x40] sm:$0xff] %v504
      %653 = vst [vmem:[#allocation4 + $0x48] sm:$0xff] %v545
      %654 = vst [vmem:[#allocation4 + $0x50] sm:$0xff] %v586
      %655 = vst [vmem:[#allocation4 + $0x58] sm:$0xff] %v627
      %656 = vst [vmem:[#allocation4 + $0x60] sm:$0xff] %v507
      %657 = vst [vmem:[#allocation4 + $0x68] sm:$0xff] %v548
      %658 = vst [vmem:[#allocation4 + $0x70] sm:$0xff] %v589
      %659 = vst [vmem:[#allocation4 + $0x78] sm:$0xff] %v630
      %660 = vst [vmem:[#allocation4 + $0x80] sm:$0xff] %v510
      %661 = vst [vmem:[#allocation4 + $0x88] sm:$0xff] %v551
      %662 = vst [vmem:[#allocation4 + $0x90] sm:$0xff] %v592
      %663 = vst [vmem:[#allocation4 + $0x98] sm:$0xff] %v633
      %664 = vst [vmem:[#allocation4 + $0xa0] sm:$0xff] %v513
      %665 = vst [vmem:[#allocation4 + $0xa8] sm:$0xff] %v554
      %666 = vst [vmem:[#allocation4 + $0xb0] sm:$0xff] %v595
      %667 = vst [vmem:[#allocation4 + $0xb8] sm:$0xff] %v636
      %668 = vst [vmem:[#allocation4 + $0xc0] sm:$0xff] %v516
      %669 = vst [vmem:[#allocation4 + $0xc8] sm:$0xff] %v557
      %670 = vst [vmem:[#allocation4 + $0xd0] sm:$0xff] %v598
      %671 = vst [vmem:[#allocation4 + $0xd8] sm:$0xff] %v639
      %672 = vst [vmem:[#allocation4 + $0xe0] sm:$0xff] %v519
      %673 = vst [vmem:[#allocation4 + $0xe8] sm:$0xff] %v560
      %674 = vst [vmem:[#allocation4 + $0xf0] sm:$0xff] %v601
      %675 = vst [vmem:[#allocation4 + $0xf8] sm:$0xff] %v642
      %v676 = vld [vmem:[%s3] sm:$0xff]
      %v677 = vld [vmem:[%s3 + $0x8] sm:$0xff]
      %v678 = vld [vmem:[%s3 + $0x10] sm:$0xff]
      %v679 = vld [vmem:[%s3 + $0x18] sm:$0xff]
      %v680 = vld [vmem:[%s3 + $0x20] sm:$0xff]
      %v681 = vld [vmem:[%s3 + $0x28] sm:$0xff]
      %v682 = vld [vmem:[%s3 + $0x30] sm:$0xff]
      %v683 = vld [vmem:[%s3 + $0x38] sm:$0xff]
      %v684 = vld [vmem:[%s3 + $0x40] sm:$0xff]
      %v685 = vld [vmem:[%s3 + $0x48] sm:$0xff]
      %v686 = vld [vmem:[%s3 + $0x50] sm:$0xff]
      %v687 = vld [vmem:[%s3 + $0x58] sm:$0xff]
      %v688 = vld [vmem:[%s3 + $0x60] sm:$0xff]
      %v689 = vld [vmem:[%s3 + $0x68] sm:$0xff]
      %v690 = vld [vmem:[%s3 + $0x70] sm:$0xff]
      %v691 = vld [vmem:[%s3 + $0x78] sm:$0xff]
      %v692 = vld [vmem:[%s3 + $0x80] sm:$0xff]
      %v693 = vld [vmem:[%s3 + $0x88] sm:$0xff]
      %v694 = vld [vmem:[%s3 + $0x90] sm:$0xff]
      %v695 = vld [vmem:[%s3 + $0x98] sm:$0xff]
      %v696 = vld [vmem:[%s3 + $0xa0] sm:$0xff]
      %v697 = vld [vmem:[%s3 + $0xa8] sm:$0xff]
      %v698 = vld [vmem:[%s3 + $0xb0] sm:$0xff]
      %v699 = vld [vmem:[%s3 + $0xb8] sm:$0xff]
      %v700 = vld [vmem:[%s3 + $0xc0] sm:$0xff]
      %v701 = vld [vmem:[%s3 + $0xc8] sm:$0xff]
      %v702 = vld [vmem:[%s3 + $0xd0] sm:$0xff]
      %v703 = vld [vmem:[%s3 + $0xd8] sm:$0xff]
      %v704 = vld [vmem:[%s3 + $0xe0] sm:$0xff]
      %v705 = vld [vmem:[%s3 + $0xe8] sm:$0xff]
      %v706 = vld [vmem:[%s3 + $0xf0] sm:$0xff]
      %v707 = vld [vmem:[%s3 + $0xf8] sm:$0xff]
      %v708 = vld [vmem:[%s3 + $0x100] sm:$0xff]
      %v709 = vld [vmem:[%s3 + $0x108] sm:$0xff]
      %v710 = vld [vmem:[%s3 + $0x110] sm:$0xff]
      %v711 = vld [vmem:[%s3 + $0x118] sm:$0xff]
      %v712 = vld [vmem:[%s3 + $0x120] sm:$0xff]
      %v713 = vld [vmem:[%s3 + $0x128] sm:$0xff]
      %v714 = vld [vmem:[%s3 + $0x130] sm:$0xff]
      %v715 = vld [vmem:[%s3 + $0x138] sm:$0xff]
      %v716 = vld [vmem:[%s3 + $0x140] sm:$0xff]
      %v717 = vld [vmem:[%s3 + $0x148] sm:$0xff]
      %v718 = vld [vmem:[%s3 + $0x150] sm:$0xff]
      %v719 = vld [vmem:[%s3 + $0x158] sm:$0xff]
      %v720 = vld [vmem:[%s3 + $0x160] sm:$0xff]
      %v721 = vld [vmem:[%s3 + $0x168] sm:$0xff]
      %v722 = vld [vmem:[%s3 + $0x170] sm:$0xff]
      %v723 = vld [vmem:[%s3 + $0x178] sm:$0xff]
      %v724 = vld [vmem:[%s3 + $0x180] sm:$0xff]
      %v725 = vld [vmem:[%s3 + $0x188] sm:$0xff]
      %v726 = vld [vmem:[%s3 + $0x190] sm:$0xff]
      %v727 = vld [vmem:[%s3 + $0x198] sm:$0xff]
      %v728 = vld [vmem:[%s3 + $0x1a0] sm:$0xff]
      %v729 = vld [vmem:[%s3 + $0x1a8] sm:$0xff]
      %v730 = vld [vmem:[%s3 + $0x1b0] sm:$0xff]
      %v731 = vld [vmem:[%s3 + $0x1b8] sm:$0xff]
      %v732 = vld [vmem:[%s3 + $0x1c0] sm:$0xff]
      %v733 = vld [vmem:[%s3 + $0x1c8] sm:$0xff]
      %v734 = vld [vmem:[%s3 + $0x1d0] sm:$0xff]
      %v735 = vld [vmem:[%s3 + $0x1d8] sm:$0xff]
      %v736 = vld [vmem:[%s3 + $0x1e0] sm:$0xff]
      %v737 = vld [vmem:[%s3 + $0x1e8] sm:$0xff]
      %v738 = vld [vmem:[%s3 + $0x1f0] sm:$0xff]
      %v739 = vld [vmem:[%s3 + $0x1f8] sm:$0xff]
      %v740 = vld [vmem:[#allocation5] sm:$0xff]
      %v741 = vld [vmem:[#allocation6] sm:$0xff]
      %s742 = smul.u32 0, 4
      %s743 = smul.addr %s742, 8
      %s744 = scalar_lea.vmem [#allocation4], %s743
      %v745 = vld [vmem:[%s744] sm:$0xff]
      %v746 = vld [vmem:[%s744 + $0x8] sm:$0xff]
      %v747 = vld [vmem:[%s744 + $0x10] sm:$0xff]
      %v748 = vld [vmem:[%s744 + $0x18] sm:$0xff]
      %749 = vmatpush.msra.mxu0 %v736
      %750 = vmatpush.msra.mxu0 %v732
      %751 = vmatpush.msra.mxu0 %v728
      %752 = vmatpush.msra.mxu0 %v724
      %753 = vmatpush.msra.mxu0 %v720
      %754 = vmatpush.msra.mxu0 %v716
      %755 = vmatpush.msra.mxu0 %v712
      %756 = vmatpush.msra.mxu0 %v708
      %757 = vmatpush.msra.mxu0 %v704
      %758 = vmatpush.msra.mxu0 %v700
      %759 = vmatpush.msra.mxu0 %v696
      %760 = vmatpush.msra.mxu0 %v692
      %761 = vmatpush.msra.mxu0 %v688
      %762 = vmatpush.msra.mxu0 %v684
      %763 = vmatpush.msra.mxu0 %v680
      %764 = vmatpush.msra.mxu0 %v676
      %765 = vmatmul.f32.gmra.mxu0 %v740
      %v766 = vpop.f32.mrf.mxu0
      %v767 = vadd.f32 0.0, %v766
      %768 = vdwg.mxu0
      %769 = vmatpush.msra.mxu0 %v737
      %770 = vmatpush.msra.mxu0 %v733
      %771 = vmatpush.msra.mxu0 %v729
      %772 = vmatpush.msra.mxu0 %v725
      %773 = vmatpush.msra.mxu0 %v721
      %774 = vmatpush.msra.mxu0 %v717
      %775 = vmatpush.msra.mxu0 %v713
      %776 = vmatpush.msra.mxu0 %v709
      %777 = vmatpush.msra.mxu0 %v705
      %778 = vmatpush.msra.mxu0 %v701
      %779 = vmatpush.msra.mxu0 %v697
      %780 = vmatpush.msra.mxu0 %v693
      %781 = vmatpush.msra.mxu0 %v689
      %782 = vmatpush.msra.mxu0 %v685
      %783 = vmatpush.msra.mxu0 %v681
      %784 = vmatpush.msra.mxu0 %v677
      %785 = vmatmul.f32.gmra.mxu0 %v740
      %v786 = vpop.f32.mrf.mxu0
      %v787 = vadd.f32 0.0, %v786
      %788 = vdwg.mxu0
      %789 = vmatpush.msra.mxu0 %v738
      %790 = vmatpush.msra.mxu0 %v734
      %791 = vmatpush.msra.mxu0 %v730
      %792 = vmatpush.msra.mxu0 %v726
      %793 = vmatpush.msra.mxu0 %v722
      %794 = vmatpush.msra.mxu0 %v718
      %795 = vmatpush.msra.mxu0 %v714
      %796 = vmatpush.msra.mxu0 %v710
      %797 = vmatpush.msra.mxu0 %v706
      %798 = vmatpush.msra.mxu0 %v702
      %799 = vmatpush.msra.mxu0 %v698
      %800 = vmatpush.msra.mxu0 %v694
      %801 = vmatpush.msra.mxu0 %v690
      %802 = vmatpush.msra.mxu0 %v686
      %803 = vmatpush.msra.mxu0 %v682
      %804 = vmatpush.msra.mxu0 %v678
      %805 = vmatmul.f32.gmra.mxu0 %v740
      %v806 = vpop.f32.mrf.mxu0
      %v807 = vadd.f32 0.0, %v806
      %808 = vdwg.mxu0
      %809 = vmatpush.msra.mxu0 %v739
      %810 = vmatpush.msra.mxu0 %v735
      %811 = vmatpush.msra.mxu0 %v731
      %812 = vmatpush.msra.mxu0 %v727
      %813 = vmatpush.msra.mxu0 %v723
      %814 = vmatpush.msra.mxu0 %v719
      %815 = vmatpush.msra.mxu0 %v715
      %816 = vmatpush.msra.mxu0 %v711
      %817 = vmatpush.msra.mxu0 %v707
      %818 = vmatpush.msra.mxu0 %v703
      %819 = vmatpush.msra.mxu0 %v699
      %820 = vmatpush.msra.mxu0 %v695
      %821 = vmatpush.msra.mxu0 %v691
      %822 = vmatpush.msra.mxu0 %v687
      %823 = vmatpush.msra.mxu0 %v683
      %824 = vmatpush.msra.mxu0 %v679
      %825 = vmatmul.f32.gmra.mxu0 %v740
      %v826 = vpop.f32.mrf.mxu0
      %v827 = vadd.f32 0.0, %v826
      %828 = vdwg.mxu0
      %v829 = vadd.f32 %v745, %v767
      %v830 = vadd.f32 %v746, %v787
      %v831 = vadd.f32 %v747, %v807
      %v832 = vadd.f32 %v748, %v827
      %v833 = vxor.u32 %v829, 2147483648
      %v834 = vmul.f32 %v833, 1.442695
      %v835 = vpow.pop %v834
      %v836 = vadd.f32 %v835, 1.0
      %v837 = vrcp.pop %v836
      %v838 = vmul.f32 %v836, %v837
      %v839 = vsub.f32 1.0, %v838
      %v840 = vmul.f32 %v837, %v839
      %v841 = vadd.f32 %v837, %v840
      %vm842 = vweird.f32 %v836
      %vm843 = vweird.f32 %v837
      %vm844 = vmor %vm842, %vm843
      %v845 = vsel %vm844, %v837, %v841
      %v846 = vand.u32 2147483647, %v836
      %vm847 = vcmp.eq.f32.partialorder %v846, 8.507059e+37
      %v848 = vand.u32 %v836, 2147483648
      %v849 = vor.u32 1.1754944e-38, %v848
      %v850 = vsel %vm847, %v849, %v845
      %v851 = vmul.f32 1.0, %v850
      %v852 = vxor.u32 %v830, 2147483648
      %v853 = vmul.f32 %v852, 1.442695
      %v854 = vpow.pop %v853
      %v855 = vadd.f32 %v854, 1.0
      %v856 = vrcp.pop %v855
      %v857 = vmul.f32 %v855, %v856
      %v858 = vsub.f32 1.0, %v857
      %v859 = vmul.f32 %v856, %v858
      %v860 = vadd.f32 %v856, %v859
      %vm861 = vweird.f32 %v855
      %vm862 = vweird.f32 %v856
      %vm863 = vmor %vm861, %vm862
      %v864 = vsel %vm863, %v856, %v860
      %v865 = vand.u32 2147483647, %v855
      %vm866 = vcmp.eq.f32.partialorder %v865, 8.507059e+37
      %v867 = vand.u32 %v855, 2147483648
      %v868 = vor.u32 1.1754944e-38, %v867
      %v869 = vsel %vm866, %v868, %v864
      %v870 = vmul.f32 1.0, %v869
      %v871 = vtanh.pop %v831
      %v872 = vxor.u32 %v832, 2147483648
      %v873 = vmul.f32 %v872, 1.442695
      %v874 = vpow.pop %v873
      %v875 = vadd.f32 %v874, 1.0
      %v876 = vrcp.pop %v875
      %v877 = vmul.f32 %v875, %v876
      %v878 = vsub.f32 1.0, %v877
      %v879 = vmul.f32 %v876, %v878
      %v880 = vadd.f32 %v876, %v879
      %vm881 = vweird.f32 %v875
      %vm882 = vweird.f32 %v876
      %vm883 = vmor %vm881, %vm882
      %v884 = vsel %vm883, %v876, %v880
      %v885 = vand.u32 2147483647, %v875
      %vm886 = vcmp.eq.f32.partialorder %v885, 8.507059e+37
      %v887 = vand.u32 %v875, 2147483648
      %v888 = vor.u32 1.1754944e-38, %v887
      %v889 = vsel %vm886, %v888, %v884
      %v890 = vmul.f32 1.0, %v889
      %v891 = vmul.f32 %v870, %v741
      %v892 = vmul.f32 %v851, %v871
      %v893 = vadd.f32 %v891, %v892
      %v894 = vtanh.pop %v893
      %v895 = vmul.f32 %v890, %v894
      %p896 = scmp.lt.s32.totalorder %s385, 12
      %s897 = scalar_select %p896, 1, 0
      %v898 = vstv %s897
      %vm899 = vcmp.eq.s32.totalorder %v898, 1
      %v900 = vsel %vm899, %v895, %v740
      %v901 = vsel %vm899, %v893, %v741
      %902 = vst [vmem:[#allocation2] sm:$0xff] %v900
      %s903 = smul.u32 1, 4
      %s904 = smul.addr %s903, 8
      %s905 = scalar_lea.vmem [#allocation4], %s904
      %v906 = vld [vmem:[%s905] sm:$0xff]
      %v907 = vld [vmem:[%s905 + $0x8] sm:$0xff]
      %v908 = vld [vmem:[%s905 + $0x10] sm:$0xff]
      %v909 = vld [vmem:[%s905 + $0x18] sm:$0xff]
      %910 = vmatpush.msra.mxu0 %v736
      %911 = vmatpush.msra.mxu0 %v732
      %912 = vmatpush.msra.mxu0 %v728
      %913 = vmatpush.msra.mxu0 %v724
      %914 = vmatpush.msra.mxu0 %v720
      %915 = vmatpush.msra.mxu0 %v716
      %916 = vmatpush.msra.mxu0 %v712
      %917 = vmatpush.msra.mxu0 %v708
      %918 = vmatpush.msra.mxu0 %v704
      %919 = vmatpush.msra.mxu0 %v700
      %920 = vmatpush.msra.mxu0 %v696
      %921 = vmatpush.msra.mxu0 %v692
      %922 = vmatpush.msra.mxu0 %v688
      %923 = vmatpush.msra.mxu0 %v684
      %924 = vmatpush.msra.mxu0 %v680
      %925 = vmatpush.msra.mxu0 %v676
      %926 = vmatmul.f32.gmra.mxu0 %v900
      %v927 = vpop.f32.mrf.mxu0
      %v928 = vadd.f32 0.0, %v927
      %929 = vdwg.mxu0
      %930 = vmatpush.msra.mxu0 %v737
      %931 = vmatpush.msra.mxu0 %v733
      %932 = vmatpush.msra.mxu0 %v729
      %933 = vmatpush.msra.mxu0 %v725
      %934 = vmatpush.msra.mxu0 %v721
      %935 = vmatpush.msra.mxu0 %v717
      %936 = vmatpush.msra.mxu0 %v713
      %937 = vmatpush.msra.mxu0 %v709
      %938 = vmatpush.msra.mxu0 %v705
      %939 = vmatpush.msra.mxu0 %v701
      %940 = vmatpush.msra.mxu0 %v697
      %941 = vmatpush.msra.mxu0 %v693
      %942 = vmatpush.msra.mxu0 %v689
      %943 = vmatpush.msra.mxu0 %v685
      %944 = vmatpush.msra.mxu0 %v681
      %945 = vmatpush.msra.mxu0 %v677
      %946 = vmatmul.f32.gmra.mxu0 %v900
      %v947 = vpop.f32.mrf.mxu0
      %v948 = vadd.f32 0.0, %v947
      %949 = vdwg.mxu0
      %950 = vmatpush.msra.mxu0 %v738
      %951 = vmatpush.msra.mxu0 %v734
      %952 = vmatpush.msra.mxu0 %v730
      %953 = vmatpush.msra.mxu0 %v726
      %954 = vmatpush.msra.mxu0 %v722
      %955 = vmatpush.msra.mxu0 %v718
      %956 = vmatpush.msra.mxu0 %v714
      %957 = vmatpush.msra.mxu0 %v710
      %958 = vmatpush.msra.mxu0 %v706
      %959 = vmatpush.msra.mxu0 %v702
      %960 = vmatpush.msra.mxu0 %v698
      %961 = vmatpush.msra.mxu0 %v694
      %962 = vmatpush.msra.mxu0 %v690
      %963 = vmatpush.msra.mxu0 %v686
      %964 = vmatpush.msra.mxu0 %v682
      %965 = vmatpush.msra.mxu0 %v678
      %966 = vmatmul.f32.gmra.mxu0 %v900
      %v967 = vpop.f32.mrf.mxu0
      %v968 = vadd.f32 0.0, %v967
      %969 = vdwg.mxu0
      %970 = vmatpush.msra.mxu0 %v739
      %971 = vmatpush.msra.mxu0 %v735
      %972 = vmatpush.msra.mxu0 %v731
      %973 = vmatpush.msra.mxu0 %v727
      %974 = vmatpush.msra.mxu0 %v723
      %975 = vmatpush.msra.mxu0 %v719
      %976 = vmatpush.msra.mxu0 %v715
      %977 = vmatpush.msra.mxu0 %v711
      %978 = vmatpush.msra.mxu0 %v707
      %979 = vmatpush.msra.mxu0 %v703
      %980 = vmatpush.msra.mxu0 %v699
      %981 = vmatpush.msra.mxu0 %v695
      %982 = vmatpush.msra.mxu0 %v691
      %983 = vmatpush.msra.mxu0 %v687
      %984 = vmatpush.msra.mxu0 %v683
      %985 = vmatpush.msra.mxu0 %v679
      %986 = vmatmul.f32.gmra.mxu0 %v900
      %v987 = vpop.f32.mrf.mxu0
      %v988 = vadd.f32 0.0, %v987
      %989 = vdwg.mxu0
      %v990 = vadd.f32 %v906, %v928
      %v991 = vadd.f32 %v907, %v948
      %v992 = vadd.f32 %v908, %v968
      %v993 = vadd.f32 %v909, %v988
      %v994 = vxor.u32 %v990, 2147483648
      %v995 = vmul.f32 %v994, 1.442695
      %v996 = vpow.pop %v995
      %v997 = vadd.f32 %v996, 1.0
      %v998 = vrcp.pop %v997
      %v999 = vmul.f32 %v997, %v998
      %v1000 = vsub.f32 1.0, %v999
      %v1001 = vmul.f32 %v998, %v1000
      %v1002 = vadd.f32 %v998, %v1001
      %vm1003 = vweird.f32 %v997
      %vm1004 = vweird.f32 %v998
      %vm1005 = vmor %vm1003, %vm1004
      %v1006 = vsel %vm1005, %v998, %v1002
      %v1007 = vand.u32 2147483647, %v997
      %vm1008 = vcmp.eq.f32.partialorder %v1007, 8.507059e+37
      %v1009 = vand.u32 %v997, 2147483648
      %v1010 = vor.u32 1.1754944e-38, %v1009
      %v1011 = vsel %vm1008, %v1010, %v1006
      %v1012 = vmul.f32 1.0, %v1011
      %v1013 = vxor.u32 %v991, 2147483648
      %v1014 = vmul.f32 %v1013, 1.442695
      %v1015 = vpow.pop %v1014
      %v1016 = vadd.f32 %v1015, 1.0
      %v1017 = vrcp.pop %v1016
      %v1018 = vmul.f32 %v1016, %v1017
      %v1019 = vsub.f32 1.0, %v1018
      %v1020 = vmul.f32 %v1017, %v1019
      %v1021 = vadd.f32 %v1017, %v1020
      %vm1022 = vweird.f32 %v1016
      %vm1023 = vweird.f32 %v1017
      %vm1024 = vmor %vm1022, %vm1023
      %v1025 = vsel %vm1024, %v1017, %v1021
      %v1026 = vand.u32 2147483647, %v1016
      %vm1027 = vcmp.eq.f32.partialorder %v1026, 8.507059e+37
      %v1028 = vand.u32 %v1016, 2147483648
      %v1029 = vor.u32 1.1754944e-38, %v1028
      %v1030 = vsel %vm1027, %v1029, %v1025
      %v1031 = vmul.f32 1.0, %v1030
      %v1032 = vtanh.pop %v992
      %v1033 = vxor.u32 %v993, 2147483648
      %v1034 = vmul.f32 %v1033, 1.442695
      %v1035 = vpow.pop %v1034
      %v1036 = vadd.f32 %v1035, 1.0
      %v1037 = vrcp.pop %v1036
      %v1038 = vmul.f32 %v1036, %v1037
      %v1039 = vsub.f32 1.0, %v1038
      %v1040 = vmul.f32 %v1037, %v1039
      %v1041 = vadd.f32 %v1037, %v1040
      %vm1042 = vweird.f32 %v1036
      %vm1043 = vweird.f32 %v1037
      %vm1044 = vmor %vm1042, %vm1043
      %v1045 = vsel %vm1044, %v1037, %v1041
      %v1046 = vand.u32 2147483647, %v1036
      %vm1047 = vcmp.eq.f32.partialorder %v1046, 8.507059e+37
      %v1048 = vand.u32 %v1036, 2147483648
      %v1049 = vor.u32 1.1754944e-38, %v1048
      %v1050 = vsel %vm1047, %v1049, %v1045
      %v1051 = vmul.f32 1.0, %v1050
      %v1052 = vmul.f32 %v1031, %v901
      %v1053 = vmul.f32 %v1012, %v1032
      %v1054 = vadd.f32 %v1052, %v1053
      %v1055 = vtanh.pop %v1054
      %v1056 = vmul.f32 %v1051, %v1055
      %s1057 = sadd.s32 %s385, 1
      %p1058 = scmp.lt.s32.totalorder %s1057, 12
      %s1059 = scalar_select %p1058, 1, 0
      %v1060 = vstv %s1059
      %vm1061 = vcmp.eq.s32.totalorder %v1060, 1
      %v1062 = vsel %vm1061, %v1056, %v900
      %v1063 = vsel %vm1061, %v1054, %v901
      %s1064 = scalar_lea.vmem [#allocation2], 8
      %1065 = vst [vmem:[%s1064] sm:$0xff] %v1062
      %s1066 = smul.u32 2, 4
      %s1067 = smul.addr %s1066, 8
      %s1068 = scalar_lea.vmem [#allocation4], %s1067
      %v1069 = vld [vmem:[%s1068] sm:$0xff]
      %v1070 = vld [vmem:[%s1068 + $0x8] sm:$0xff]
      %v1071 = vld [vmem:[%s1068 + $0x10] sm:$0xff]
      %v1072 = vld [vmem:[%s1068 + $0x18] sm:$0xff]
      %1073 = vmatpush.msra.mxu0 %v736
      %1074 = vmatpush.msra.mxu0 %v732
      %1075 = vmatpush.msra.mxu0 %v728
      %1076 = vmatpush.msra.mxu0 %v724
      %1077 = vmatpush.msra.mxu0 %v720
      %1078 = vmatpush.msra.mxu0 %v716
      %1079 = vmatpush.msra.mxu0 %v712
      %1080 = vmatpush.msra.mxu0 %v708
      %1081 = vmatpush.msra.mxu0 %v704
      %1082 = vmatpush.msra.mxu0 %v700
      %1083 = vmatpush.msra.mxu0 %v696
      %1084 = vmatpush.msra.mxu0 %v692
      %1085 = vmatpush.msra.mxu0 %v688
      %1086 = vmatpush.msra.mxu0 %v684
      %1087 = vmatpush.msra.mxu0 %v680
      %1088 = vmatpush.msra.mxu0 %v676
      %1089 = vmatmul.f32.gmra.mxu0 %v1062
      %v1090 = vpop.f32.mrf.mxu0
      %v1091 = vadd.f32 0.0, %v1090
      %1092 = vdwg.mxu0
      %1093 = vmatpush.msra.mxu0 %v737
      %1094 = vmatpush.msra.mxu0 %v733
      %1095 = vmatpush.msra.mxu0 %v729
      %1096 = vmatpush.msra.mxu0 %v725
      %1097 = vmatpush.msra.mxu0 %v721
      %1098 = vmatpush.msra.mxu0 %v717
      %1099 = vmatpush.msra.mxu0 %v713
      %1100 = vmatpush.msra.mxu0 %v709
      %1101 = vmatpush.msra.mxu0 %v705
      %1102 = vmatpush.msra.mxu0 %v701
      %1103 = vmatpush.msra.mxu0 %v697
      %1104 = vmatpush.msra.mxu0 %v693
      %1105 = vmatpush.msra.mxu0 %v689
      %1106 = vmatpush.msra.mxu0 %v685
      %1107 = vmatpush.msra.mxu0 %v681
      %1108 = vmatpush.msra.mxu0 %v677
      %1109 = vmatmul.f32.gmra.mxu0 %v1062
      %v1110 = vpop.f32.mrf.mxu0
      %v1111 = vadd.f32 0.0, %v1110
      %1112 = vdwg.mxu0
      %1113 = vmatpush.msra.mxu0 %v738
      %1114 = vmatpush.msra.mxu0 %v734
      %1115 = vmatpush.msra.mxu0 %v730
      %1116 = vmatpush.msra.mxu0 %v726
      %1117 = vmatpush.msra.mxu0 %v722
      %1118 = vmatpush.msra.mxu0 %v718
      %1119 = vmatpush.msra.mxu0 %v714
      %1120 = vmatpush.msra.mxu0 %v710
      %1121 = vmatpush.msra.mxu0 %v706
      %1122 = vmatpush.msra.mxu0 %v702
      %1123 = vmatpush.msra.mxu0 %v698
      %1124 = vmatpush.msra.mxu0 %v694
      %1125 = vmatpush.msra.mxu0 %v690
      %1126 = vmatpush.msra.mxu0 %v686
      %1127 = vmatpush.msra.mxu0 %v682
      %1128 = vmatpush.msra.mxu0 %v678
      %1129 = vmatmul.f32.gmra.mxu0 %v1062
      %v1130 = vpop.f32.mrf.mxu0
      %v1131 = vadd.f32 0.0, %v1130
      %1132 = vdwg.mxu0
      %1133 = vmatpush.msra.mxu0 %v739
      %1134 = vmatpush.msra.mxu0 %v735
      %1135 = vmatpush.msra.mxu0 %v731
      %1136 = vmatpush.msra.mxu0 %v727
      %1137 = vmatpush.msra.mxu0 %v723
      %1138 = vmatpush.msra.mxu0 %v719
      %1139 = vmatpush.msra.mxu0 %v715
      %1140 = vmatpush.msra.mxu0 %v711
      %1141 = vmatpush.msra.mxu0 %v707
      %1142 = vmatpush.msra.mxu0 %v703
      %1143 = vmatpush.msra.mxu0 %v699
      %1144 = vmatpush.msra.mxu0 %v695
      %1145 = vmatpush.msra.mxu0 %v691
      %1146 = vmatpush.msra.mxu0 %v687
      %1147 = vmatpush.msra.mxu0 %v683
      %1148 = vmatpush.msra.mxu0 %v679
      %1149 = vmatmul.f32.gmra.mxu0 %v1062
      %v1150 = vpop.f32.mrf.mxu0
      %v1151 = vadd.f32 0.0, %v1150
      %1152 = vdwg.mxu0
      %v1153 = vadd.f32 %v1069, %v1091
      %v1154 = vadd.f32 %v1070, %v1111
      %v1155 = vadd.f32 %v1071, %v1131
      %v1156 = vadd.f32 %v1072, %v1151
      %v1157 = vxor.u32 %v1153, 2147483648
      %v1158 = vmul.f32 %v1157, 1.442695
      %v1159 = vpow.pop %v1158
      %v1160 = vadd.f32 %v1159, 1.0
      %v1161 = vrcp.pop %v1160
      %v1162 = vmul.f32 %v1160, %v1161
      %v1163 = vsub.f32 1.0, %v1162
      %v1164 = vmul.f32 %v1161, %v1163
      %v1165 = vadd.f32 %v1161, %v1164
      %vm1166 = vweird.f32 %v1160
      %vm1167 = vweird.f32 %v1161
      %vm1168 = vmor %vm1166, %vm1167
      %v1169 = vsel %vm1168, %v1161, %v1165
      %v1170 = vand.u32 2147483647, %v1160
      %vm1171 = vcmp.eq.f32.partialorder %v1170, 8.507059e+37
      %v1172 = vand.u32 %v1160, 2147483648
      %v1173 = vor.u32 1.1754944e-38, %v1172
      %v1174 = vsel %vm1171, %v1173, %v1169
      %v1175 = vmul.f32 1.0, %v1174
      %v1176 = vxor.u32 %v1154, 2147483648
      %v1177 = vmul.f32 %v1176, 1.442695
      %v1178 = vpow.pop %v1177
      %v1179 = vadd.f32 %v1178, 1.0
      %v1180 = vrcp.pop %v1179
      %v1181 = vmul.f32 %v1179, %v1180
      %v1182 = vsub.f32 1.0, %v1181
      %v1183 = vmul.f32 %v1180, %v1182
      %v1184 = vadd.f32 %v1180, %v1183
      %vm1185 = vweird.f32 %v1179
      %vm1186 = vweird.f32 %v1180
      %vm1187 = vmor %vm1185, %vm1186
      %v1188 = vsel %vm1187, %v1180, %v1184
      %v1189 = vand.u32 2147483647, %v1179
      %vm1190 = vcmp.eq.f32.partialorder %v1189, 8.507059e+37
      %v1191 = vand.u32 %v1179, 2147483648
      %v1192 = vor.u32 1.1754944e-38, %v1191
      %v1193 = vsel %vm1190, %v1192, %v1188
      %v1194 = vmul.f32 1.0, %v1193
      %v1195 = vtanh.pop %v1155
      %v1196 = vxor.u32 %v1156, 2147483648
      %v1197 = vmul.f32 %v1196, 1.442695
      %v1198 = vpow.pop %v1197
      %v1199 = vadd.f32 %v1198, 1.0
      %v1200 = vrcp.pop %v1199
      %v1201 = vmul.f32 %v1199, %v1200
      %v1202 = vsub.f32 1.0, %v1201
      %v1203 = vmul.f32 %v1200, %v1202
      %v1204 = vadd.f32 %v1200, %v1203
      %vm1205 = vweird.f32 %v1199
      %vm1206 = vweird.f32 %v1200
      %vm1207 = vmor %vm1205, %vm1206
      %v1208 = vsel %vm1207, %v1200, %v1204
      %v1209 = vand.u32 2147483647, %v1199
      %vm1210 = vcmp.eq.f32.partialorder %v1209, 8.507059e+37
      %v1211 = vand.u32 %v1199, 2147483648
      %v1212 = vor.u32 1.1754944e-38, %v1211
      %v1213 = vsel %vm1210, %v1212, %v1208
      %v1214 = vmul.f32 1.0, %v1213
      %v1215 = vmul.f32 %v1194, %v1063
      %v1216 = vmul.f32 %v1175, %v1195
      %v1217 = vadd.f32 %v1215, %v1216
      %v1218 = vtanh.pop %v1217
      %v1219 = vmul.f32 %v1214, %v1218
      %s1220 = sadd.s32 %s385, 2
      %p1221 = scmp.lt.s32.totalorder %s1220, 12
      %s1222 = scalar_select %p1221, 1, 0
      %v1223 = vstv %s1222
      %vm1224 = vcmp.eq.s32.totalorder %v1223, 1
      %v1225 = vsel %vm1224, %v1219, %v1062
      %v1226 = vsel %vm1224, %v1217, %v1063
      %s1227 = scalar_lea.vmem [#allocation2], 16
      %1228 = vst [vmem:[%s1227] sm:$0xff] %v1225
      %s1229 = smul.u32 3, 4
      %s1230 = smul.addr %s1229, 8
      %s1231 = scalar_lea.vmem [#allocation4], %s1230
      %v1232 = vld [vmem:[%s1231] sm:$0xff]
      %v1233 = vld [vmem:[%s1231 + $0x8] sm:$0xff]
      %v1234 = vld [vmem:[%s1231 + $0x10] sm:$0xff]
      %v1235 = vld [vmem:[%s1231 + $0x18] sm:$0xff]
      %1236 = vmatpush.msra.mxu0 %v736
      %1237 = vmatpush.msra.mxu0 %v732
      %1238 = vmatpush.msra.mxu0 %v728
      %1239 = vmatpush.msra.mxu0 %v724
      %1240 = vmatpush.msra.mxu0 %v720
      %1241 = vmatpush.msra.mxu0 %v716
      %1242 = vmatpush.msra.mxu0 %v712
      %1243 = vmatpush.msra.mxu0 %v708
      %1244 = vmatpush.msra.mxu0 %v704
      %1245 = vmatpush.msra.mxu0 %v700
      %1246 = vmatpush.msra.mxu0 %v696
      %1247 = vmatpush.msra.mxu0 %v692
      %1248 = vmatpush.msra.mxu0 %v688
      %1249 = vmatpush.msra.mxu0 %v684
      %1250 = vmatpush.msra.mxu0 %v680
      %1251 = vmatpush.msra.mxu0 %v676
      %1252 = vmatmul.f32.gmra.mxu0 %v1225
      %v1253 = vpop.f32.mrf.mxu0
      %v1254 = vadd.f32 0.0, %v1253
      %1255 = vdwg.mxu0
      %1256 = vmatpush.msra.mxu0 %v737
      %1257 = vmatpush.msra.mxu0 %v733
      %1258 = vmatpush.msra.mxu0 %v729
      %1259 = vmatpush.msra.mxu0 %v725
      %1260 = vmatpush.msra.mxu0 %v721
      %1261 = vmatpush.msra.mxu0 %v717
      %1262 = vmatpush.msra.mxu0 %v713
      %1263 = vmatpush.msra.mxu0 %v709
      %1264 = vmatpush.msra.mxu0 %v705
      %1265 = vmatpush.msra.mxu0 %v701
      %1266 = vmatpush.msra.mxu0 %v697
      %1267 = vmatpush.msra.mxu0 %v693
      %1268 = vmatpush.msra.mxu0 %v689
      %1269 = vmatpush.msra.mxu0 %v685
      %1270 = vmatpush.msra.mxu0 %v681
      %1271 = vmatpush.msra.mxu0 %v677
      %1272 = vmatmul.f32.gmra.mxu0 %v1225
      %v1273 = vpop.f32.mrf.mxu0
      %v1274 = vadd.f32 0.0, %v1273
      %1275 = vdwg.mxu0
      %1276 = vmatpush.msra.mxu0 %v738
      %1277 = vmatpush.msra.mxu0 %v734
      %1278 = vmatpush.msra.mxu0 %v730
      %1279 = vmatpush.msra.mxu0 %v726
      %1280 = vmatpush.msra.mxu0 %v722
      %1281 = vmatpush.msra.mxu0 %v718
      %1282 = vmatpush.msra.mxu0 %v714
      %1283 = vmatpush.msra.mxu0 %v710
      %1284 = vmatpush.msra.mxu0 %v706
      %1285 = vmatpush.msra.mxu0 %v702
      %1286 = vmatpush.msra.mxu0 %v698
      %1287 = vmatpush.msra.mxu0 %v694
      %1288 = vmatpush.msra.mxu0 %v690
      %1289 = vmatpush.msra.mxu0 %v686
      %1290 = vmatpush.msra.mxu0 %v682
      %1291 = vmatpush.msra.mxu0 %v678
      %1292 = vmatmul.f32.gmra.mxu0 %v1225
      %v1293 = vpop.f32.mrf.mxu0
      %v1294 = vadd.f32 0.0, %v1293
      %1295 = vdwg.mxu0
      %1296 = vmatpush.msra.mxu0 %v739
      %1297 = vmatpush.msra.mxu0 %v735
      %1298 = vmatpush.msra.mxu0 %v731
      %1299 = vmatpush.msra.mxu0 %v727
      %1300 = vmatpush.msra.mxu0 %v723
      %1301 = vmatpush.msra.mxu0 %v719
      %1302 = vmatpush.msra.mxu0 %v715
      %1303 = vmatpush.msra.mxu0 %v711
      %1304 = vmatpush.msra.mxu0 %v707
      %1305 = vmatpush.msra.mxu0 %v703
      %1306 = vmatpush.msra.mxu0 %v699
      %1307 = vmatpush.msra.mxu0 %v695
      %1308 = vmatpush.msra.mxu0 %v691
      %1309 = vmatpush.msra.mxu0 %v687
      %1310 = vmatpush.msra.mxu0 %v683
      %1311 = vmatpush.msra.mxu0 %v679
      %1312 = vmatmul.f32.gmra.mxu0 %v1225
      %v1313 = vpop.f32.mrf.mxu0
      %v1314 = vadd.f32 0.0, %v1313
      %1315 = vdwg.mxu0
      %v1316 = vadd.f32 %v1232, %v1254
      %v1317 = vadd.f32 %v1233, %v1274
      %v1318 = vadd.f32 %v1234, %v1294
      %v1319 = vadd.f32 %v1235, %v1314
      %v1320 = vxor.u32 %v1316, 2147483648
      %v1321 = vmul.f32 %v1320, 1.442695
      %v1322 = vpow.pop %v1321
      %v1323 = vadd.f32 %v1322, 1.0
      %v1324 = vrcp.pop %v1323
      %v1325 = vmul.f32 %v1323, %v1324
      %v1326 = vsub.f32 1.0, %v1325
      %v1327 = vmul.f32 %v1324, %v1326
      %v1328 = vadd.f32 %v1324, %v1327
      %vm1329 = vweird.f32 %v1323
      %vm1330 = vweird.f32 %v1324
      %vm1331 = vmor %vm1329, %vm1330
      %v1332 = vsel %vm1331, %v1324, %v1328
      %v1333 = vand.u32 2147483647, %v1323
      %vm1334 = vcmp.eq.f32.partialorder %v1333, 8.507059e+37
      %v1335 = vand.u32 %v1323, 2147483648
      %v1336 = vor.u32 1.1754944e-38, %v1335
      %v1337 = vsel %vm1334, %v1336, %v1332
      %v1338 = vmul.f32 1.0, %v1337
      %v1339 = vxor.u32 %v1317, 2147483648
      %v1340 = vmul.f32 %v1339, 1.442695
      %v1341 = vpow.pop %v1340
      %v1342 = vadd.f32 %v1341, 1.0
      %v1343 = vrcp.pop %v1342
      %v1344 = vmul.f32 %v1342, %v1343
      %v1345 = vsub.f32 1.0, %v1344
      %v1346 = vmul.f32 %v1343, %v1345
      %v1347 = vadd.f32 %v1343, %v1346
      %vm1348 = vweird.f32 %v1342
      %vm1349 = vweird.f32 %v1343
      %vm1350 = vmor %vm1348, %vm1349
      %v1351 = vsel %vm1350, %v1343, %v1347
      %v1352 = vand.u32 2147483647, %v1342
      %vm1353 = vcmp.eq.f32.partialorder %v1352, 8.507059e+37
      %v1354 = vand.u32 %v1342, 2147483648
      %v1355 = vor.u32 1.1754944e-38, %v1354
      %v1356 = vsel %vm1353, %v1355, %v1351
      %v1357 = vmul.f32 1.0, %v1356
      %v1358 = vtanh.pop %v1318
      %v1359 = vxor.u32 %v1319, 2147483648
      %v1360 = vmul.f32 %v1359, 1.442695
      %v1361 = vpow.pop %v1360
      %v1362 = vadd.f32 %v1361, 1.0
      %v1363 = vrcp.pop %v1362
      %v1364 = vmul.f32 %v1362, %v1363
      %v1365 = vsub.f32 1.0, %v1364
      %v1366 = vmul.f32 %v1363, %v1365
      %v1367 = vadd.f32 %v1363, %v1366
      %vm1368 = vweird.f32 %v1362
      %vm1369 = vweird.f32 %v1363
      %vm1370 = vmor %vm1368, %vm1369
      %v1371 = vsel %vm1370, %v1363, %v1367
      %v1372 = vand.u32 2147483647, %v1362
      %vm1373 = vcmp.eq.f32.partialorder %v1372, 8.507059e+37
      %v1374 = vand.u32 %v1362, 2147483648
      %v1375 = vor.u32 1.1754944e-38, %v1374
      %v1376 = vsel %vm1373, %v1375, %v1371
      %v1377 = vmul.f32 1.0, %v1376
      %v1378 = vmul.f32 %v1357, %v1226
      %v1379 = vmul.f32 %v1338, %v1358
      %v1380 = vadd.f32 %v1378, %v1379
      %v1381 = vtanh.pop %v1380
      %v1382 = vmul.f32 %v1377, %v1381
      %s1383 = sadd.s32 %s385, 3
      %p1384 = scmp.lt.s32.totalorder %s1383, 12
      %s1385 = scalar_select %p1384, 1, 0
      %v1386 = vstv %s1385
      %vm1387 = vcmp.eq.s32.totalorder %v1386, 1
      %v1388 = vsel %vm1387, %v1382, %v1225
      %v1389 = vsel %vm1387, %v1380, %v1226
      %s1390 = scalar_lea.vmem [#allocation2], 24
      %1391 = vst [vmem:[%s1390] sm:$0xff] %v1388
      %s1392 = smul.u32 4, 4
      %s1393 = smul.addr %s1392, 8
      %s1394 = scalar_lea.vmem [#allocation4], %s1393
      %v1395 = vld [vmem:[%s1394] sm:$0xff]
      %v1396 = vld [vmem:[%s1394 + $0x8] sm:$0xff]
      %v1397 = vld [vmem:[%s1394 + $0x10] sm:$0xff]
      %v1398 = vld [vmem:[%s1394 + $0x18] sm:$0xff]
      %1399 = vmatpush.msra.mxu0 %v736
      %1400 = vmatpush.msra.mxu0 %v732
      %1401 = vmatpush.msra.mxu0 %v728
      %1402 = vmatpush.msra.mxu0 %v724
      %1403 = vmatpush.msra.mxu0 %v720
      %1404 = vmatpush.msra.mxu0 %v716
      %1405 = vmatpush.msra.mxu0 %v712
      %1406 = vmatpush.msra.mxu0 %v708
      %1407 = vmatpush.msra.mxu0 %v704
      %1408 = vmatpush.msra.mxu0 %v700
      %1409 = vmatpush.msra.mxu0 %v696
      %1410 = vmatpush.msra.mxu0 %v692
      %1411 = vmatpush.msra.mxu0 %v688
      %1412 = vmatpush.msra.mxu0 %v684
      %1413 = vmatpush.msra.mxu0 %v680
      %1414 = vmatpush.msra.mxu0 %v676
      %1415 = vmatmul.f32.gmra.mxu0 %v1388
      %v1416 = vpop.f32.mrf.mxu0
      %v1417 = vadd.f32 0.0, %v1416
      %1418 = vdwg.mxu0
      %1419 = vmatpush.msra.mxu0 %v737
      %1420 = vmatpush.msra.mxu0 %v733
      %1421 = vmatpush.msra.mxu0 %v729
      %1422 = vmatpush.msra.mxu0 %v725
      %1423 = vmatpush.msra.mxu0 %v721
      %1424 = vmatpush.msra.mxu0 %v717
      %1425 = vmatpush.msra.mxu0 %v713
      %1426 = vmatpush.msra.mxu0 %v709
      %1427 = vmatpush.msra.mxu0 %v705
      %1428 = vmatpush.msra.mxu0 %v701
      %1429 = vmatpush.msra.mxu0 %v697
      %1430 = vmatpush.msra.mxu0 %v693
      %1431 = vmatpush.msra.mxu0 %v689
      %1432 = vmatpush.msra.mxu0 %v685
      %1433 = vmatpush.msra.mxu0 %v681
      %1434 = vmatpush.msra.mxu0 %v677
      %1435 = vmatmul.f32.gmra.mxu0 %v1388
      %v1436 = vpop.f32.mrf.mxu0
      %v1437 = vadd.f32 0.0, %v1436
      %1438 = vdwg.mxu0
      %1439 = vmatpush.msra.mxu0 %v738
      %1440 = vmatpush.msra.mxu0 %v734
      %1441 = vmatpush.msra.mxu0 %v730
      %1442 = vmatpush.msra.mxu0 %v726
      %1443 = vmatpush.msra.mxu0 %v722
      %1444 = vmatpush.msra.mxu0 %v718
      %1445 = vmatpush.msra.mxu0 %v714
      %1446 = vmatpush.msra.mxu0 %v710
      %1447 = vmatpush.msra.mxu0 %v706
      %1448 = vmatpush.msra.mxu0 %v702
      %1449 = vmatpush.msra.mxu0 %v698
      %1450 = vmatpush.msra.mxu0 %v694
      %1451 = vmatpush.msra.mxu0 %v690
      %1452 = vmatpush.msra.mxu0 %v686
      %1453 = vmatpush.msra.mxu0 %v682
      %1454 = vmatpush.msra.mxu0 %v678
      %1455 = vmatmul.f32.gmra.mxu0 %v1388
      %v1456 = vpop.f32.mrf.mxu0
      %v1457 = vadd.f32 0.0, %v1456
      %1458 = vdwg.mxu0
      %1459 = vmatpush.msra.mxu0 %v739
      %1460 = vmatpush.msra.mxu0 %v735
      %1461 = vmatpush.msra.mxu0 %v731
      %1462 = vmatpush.msra.mxu0 %v727
      %1463 = vmatpush.msra.mxu0 %v723
      %1464 = vmatpush.msra.mxu0 %v719
      %1465 = vmatpush.msra.mxu0 %v715
      %1466 = vmatpush.msra.mxu0 %v711
      %1467 = vmatpush.msra.mxu0 %v707
      %1468 = vmatpush.msra.mxu0 %v703
      %1469 = vmatpush.msra.mxu0 %v699
      %1470 = vmatpush.msra.mxu0 %v695
      %1471 = vmatpush.msra.mxu0 %v691
      %1472 = vmatpush.msra.mxu0 %v687
      %1473 = vmatpush.msra.mxu0 %v683
      %1474 = vmatpush.msra.mxu0 %v679
      %1475 = vmatmul.f32.gmra.mxu0 %v1388
      %v1476 = vpop.f32.mrf.mxu0
      %v1477 = vadd.f32 0.0, %v1476
      %1478 = vdwg.mxu0
      %v1479 = vadd.f32 %v1395, %v1417
      %v1480 = vadd.f32 %v1396, %v1437
      %v1481 = vadd.f32 %v1397, %v1457
      %v1482 = vadd.f32 %v1398, %v1477
      %v1483 = vxor.u32 %v1479, 2147483648
      %v1484 = vmul.f32 %v1483, 1.442695
      %v1485 = vpow.pop %v1484
      %v1486 = vadd.f32 %v1485, 1.0
      %v1487 = vrcp.pop %v1486
      %v1488 = vmul.f32 %v1486, %v1487
      %v1489 = vsub.f32 1.0, %v1488
      %v1490 = vmul.f32 %v1487, %v1489
      %v1491 = vadd.f32 %v1487, %v1490
      %vm1492 = vweird.f32 %v1486
      %vm1493 = vweird.f32 %v1487
      %vm1494 = vmor %vm1492, %vm1493
      %v1495 = vsel %vm1494, %v1487, %v1491
      %v1496 = vand.u32 2147483647, %v1486
      %vm1497 = vcmp.eq.f32.partialorder %v1496, 8.507059e+37
      %v1498 = vand.u32 %v1486, 2147483648
      %v1499 = vor.u32 1.1754944e-38, %v1498
      %v1500 = vsel %vm1497, %v1499, %v1495
      %v1501 = vmul.f32 1.0, %v1500
      %v1502 = vxor.u32 %v1480, 2147483648
      %v1503 = vmul.f32 %v1502, 1.442695
      %v1504 = vpow.pop %v1503
      %v1505 = vadd.f32 %v1504, 1.0
      %v1506 = vrcp.pop %v1505
      %v1507 = vmul.f32 %v1505, %v1506
      %v1508 = vsub.f32 1.0, %v1507
      %v1509 = vmul.f32 %v1506, %v1508
      %v1510 = vadd.f32 %v1506, %v1509
      %vm1511 = vweird.f32 %v1505
      %vm1512 = vweird.f32 %v1506
      %vm1513 = vmor %vm1511, %vm1512
      %v1514 = vsel %vm1513, %v1506, %v1510
      %v1515 = vand.u32 2147483647, %v1505
      %vm1516 = vcmp.eq.f32.partialorder %v1515, 8.507059e+37
      %v1517 = vand.u32 %v1505, 2147483648
      %v1518 = vor.u32 1.1754944e-38, %v1517
      %v1519 = vsel %vm1516, %v1518, %v1514
      %v1520 = vmul.f32 1.0, %v1519
      %v1521 = vtanh.pop %v1481
      %v1522 = vxor.u32 %v1482, 2147483648
      %v1523 = vmul.f32 %v1522, 1.442695
      %v1524 = vpow.pop %v1523
      %v1525 = vadd.f32 %v1524, 1.0
      %v1526 = vrcp.pop %v1525
      %v1527 = vmul.f32 %v1525, %v1526
      %v1528 = vsub.f32 1.0, %v1527
      %v1529 = vmul.f32 %v1526, %v1528
      %v1530 = vadd.f32 %v1526, %v1529
      %vm1531 = vweird.f32 %v1525
      %vm1532 = vweird.f32 %v1526
      %vm1533 = vmor %vm1531, %vm1532
      %v1534 = vsel %vm1533, %v1526, %v1530
      %v1535 = vand.u32 2147483647, %v1525
      %vm1536 = vcmp.eq.f32.partialorder %v1535, 8.507059e+37
      %v1537 = vand.u32 %v1525, 2147483648
      %v1538 = vor.u32 1.1754944e-38, %v1537
      %v1539 = vsel %vm1536, %v1538, %v1534
      %v1540 = vmul.f32 1.0, %v1539
      %v1541 = vmul.f32 %v1520, %v1389
      %v1542 = vmul.f32 %v1501, %v1521
      %v1543 = vadd.f32 %v1541, %v1542
      %v1544 = vtanh.pop %v1543
      %v1545 = vmul.f32 %v1540, %v1544
      %s1546 = sadd.s32 %s385, 4
      %p1547 = scmp.lt.s32.totalorder %s1546, 12
      %s1548 = scalar_select %p1547, 1, 0
      %v1549 = vstv %s1548
      %vm1550 = vcmp.eq.s32.totalorder %v1549, 1
      %v1551 = vsel %vm1550, %v1545, %v1388
      %v1552 = vsel %vm1550, %v1543, %v1389
      %s1553 = scalar_lea.vmem [#allocation2], 32
      %1554 = vst [vmem:[%s1553] sm:$0xff] %v1551
      %s1555 = smul.u32 5, 4
      %s1556 = smul.addr %s1555, 8
      %s1557 = scalar_lea.vmem [#allocation4], %s1556
      %v1558 = vld [vmem:[%s1557] sm:$0xff]
      %v1559 = vld [vmem:[%s1557 + $0x8] sm:$0xff]
      %v1560 = vld [vmem:[%s1557 + $0x10] sm:$0xff]
      %v1561 = vld [vmem:[%s1557 + $0x18] sm:$0xff]
      %1562 = vmatpush.msra.mxu0 %v736
      %1563 = vmatpush.msra.mxu0 %v732
      %1564 = vmatpush.msra.mxu0 %v728
      %1565 = vmatpush.msra.mxu0 %v724
      %1566 = vmatpush.msra.mxu0 %v720
      %1567 = vmatpush.msra.mxu0 %v716
      %1568 = vmatpush.msra.mxu0 %v712
      %1569 = vmatpush.msra.mxu0 %v708
      %1570 = vmatpush.msra.mxu0 %v704
      %1571 = vmatpush.msra.mxu0 %v700
      %1572 = vmatpush.msra.mxu0 %v696
      %1573 = vmatpush.msra.mxu0 %v692
      %1574 = vmatpush.msra.mxu0 %v688
      %1575 = vmatpush.msra.mxu0 %v684
      %1576 = vmatpush.msra.mxu0 %v680
      %1577 = vmatpush.msra.mxu0 %v676
      %1578 = vmatmul.f32.gmra.mxu0 %v1551
      %v1579 = vpop.f32.mrf.mxu0
      %v1580 = vadd.f32 0.0, %v1579
      %1581 = vdwg.mxu0
      %1582 = vmatpush.msra.mxu0 %v737
      %1583 = vmatpush.msra.mxu0 %v733
      %1584 = vmatpush.msra.mxu0 %v729
      %1585 = vmatpush.msra.mxu0 %v725
      %1586 = vmatpush.msra.mxu0 %v721
      %1587 = vmatpush.msra.mxu0 %v717
      %1588 = vmatpush.msra.mxu0 %v713
      %1589 = vmatpush.msra.mxu0 %v709
      %1590 = vmatpush.msra.mxu0 %v705
      %1591 = vmatpush.msra.mxu0 %v701
      %1592 = vmatpush.msra.mxu0 %v697
      %1593 = vmatpush.msra.mxu0 %v693
      %1594 = vmatpush.msra.mxu0 %v689
      %1595 = vmatpush.msra.mxu0 %v685
      %1596 = vmatpush.msra.mxu0 %v681
      %1597 = vmatpush.msra.mxu0 %v677
      %1598 = vmatmul.f32.gmra.mxu0 %v1551
      %v1599 = vpop.f32.mrf.mxu0
      %v1600 = vadd.f32 0.0, %v1599
      %1601 = vdwg.mxu0
      %1602 = vmatpush.msra.mxu0 %v738
      %1603 = vmatpush.msra.mxu0 %v734
      %1604 = vmatpush.msra.mxu0 %v730
      %1605 = vmatpush.msra.mxu0 %v726
      %1606 = vmatpush.msra.mxu0 %v722
      %1607 = vmatpush.msra.mxu0 %v718
      %1608 = vmatpush.msra.mxu0 %v714
      %1609 = vmatpush.msra.mxu0 %v710
      %1610 = vmatpush.msra.mxu0 %v706
      %1611 = vmatpush.msra.mxu0 %v702
      %1612 = vmatpush.msra.mxu0 %v698
      %1613 = vmatpush.msra.mxu0 %v694
      %1614 = vmatpush.msra.mxu0 %v690
      %1615 = vmatpush.msra.mxu0 %v686
      %1616 = vmatpush.msra.mxu0 %v682
      %1617 = vmatpush.msra.mxu0 %v678
      %1618 = vmatmul.f32.gmra.mxu0 %v1551
      %v1619 = vpop.f32.mrf.mxu0
      %v1620 = vadd.f32 0.0, %v1619
      %1621 = vdwg.mxu0
      %1622 = vmatpush.msra.mxu0 %v739
      %1623 = vmatpush.msra.mxu0 %v735
      %1624 = vmatpush.msra.mxu0 %v731
      %1625 = vmatpush.msra.mxu0 %v727
      %1626 = vmatpush.msra.mxu0 %v723
      %1627 = vmatpush.msra.mxu0 %v719
      %1628 = vmatpush.msra.mxu0 %v715
      %1629 = vmatpush.msra.mxu0 %v711
      %1630 = vmatpush.msra.mxu0 %v707
      %1631 = vmatpush.msra.mxu0 %v703
      %1632 = vmatpush.msra.mxu0 %v699
      %1633 = vmatpush.msra.mxu0 %v695
      %1634 = vmatpush.msra.mxu0 %v691
      %1635 = vmatpush.msra.mxu0 %v687
      %1636 = vmatpush.msra.mxu0 %v683
      %1637 = vmatpush.msra.mxu0 %v679
      %1638 = vmatmul.f32.gmra.mxu0 %v1551
      %v1639 = vpop.f32.mrf.mxu0
      %v1640 = vadd.f32 0.0, %v1639
      %1641 = vdwg.mxu0
      %v1642 = vadd.f32 %v1558, %v1580
      %v1643 = vadd.f32 %v1559, %v1600
      %v1644 = vadd.f32 %v1560, %v1620
      %v1645 = vadd.f32 %v1561, %v1640
      %v1646 = vxor.u32 %v1642, 2147483648
      %v1647 = vmul.f32 %v1646, 1.442695
      %v1648 = vpow.pop %v1647
      %v1649 = vadd.f32 %v1648, 1.0
      %v1650 = vrcp.pop %v1649
      %v1651 = vmul.f32 %v1649, %v1650
      %v1652 = vsub.f32 1.0, %v1651
      %v1653 = vmul.f32 %v1650, %v1652
      %v1654 = vadd.f32 %v1650, %v1653
      %vm1655 = vweird.f32 %v1649
      %vm1656 = vweird.f32 %v1650
      %vm1657 = vmor %vm1655, %vm1656
      %v1658 = vsel %vm1657, %v1650, %v1654
      %v1659 = vand.u32 2147483647, %v1649
      %vm1660 = vcmp.eq.f32.partialorder %v1659, 8.507059e+37
      %v1661 = vand.u32 %v1649, 2147483648
      %v1662 = vor.u32 1.1754944e-38, %v1661
      %v1663 = vsel %vm1660, %v1662, %v1658
      %v1664 = vmul.f32 1.0, %v1663
      %v1665 = vxor.u32 %v1643, 2147483648
      %v1666 = vmul.f32 %v1665, 1.442695
      %v1667 = vpow.pop %v1666
      %v1668 = vadd.f32 %v1667, 1.0
      %v1669 = vrcp.pop %v1668
      %v1670 = vmul.f32 %v1668, %v1669
      %v1671 = vsub.f32 1.0, %v1670
      %v1672 = vmul.f32 %v1669, %v1671
      %v1673 = vadd.f32 %v1669, %v1672
      %vm1674 = vweird.f32 %v1668
      %vm1675 = vweird.f32 %v1669
      %vm1676 = vmor %vm1674, %vm1675
      %v1677 = vsel %vm1676, %v1669, %v1673
      %v1678 = vand.u32 2147483647, %v1668
      %vm1679 = vcmp.eq.f32.partialorder %v1678, 8.507059e+37
      %v1680 = vand.u32 %v1668, 2147483648
      %v1681 = vor.u32 1.1754944e-38, %v1680
      %v1682 = vsel %vm1679, %v1681, %v1677
      %v1683 = vmul.f32 1.0, %v1682
      %v1684 = vtanh.pop %v1644
      %v1685 = vxor.u32 %v1645, 2147483648
      %v1686 = vmul.f32 %v1685, 1.442695
      %v1687 = vpow.pop %v1686
      %v1688 = vadd.f32 %v1687, 1.0
      %v1689 = vrcp.pop %v1688
      %v1690 = vmul.f32 %v1688, %v1689
      %v1691 = vsub.f32 1.0, %v1690
      %v1692 = vmul.f32 %v1689, %v1691
      %v1693 = vadd.f32 %v1689, %v1692
      %vm1694 = vweird.f32 %v1688
      %vm1695 = vweird.f32 %v1689
      %vm1696 = vmor %vm1694, %vm1695
      %v1697 = vsel %vm1696, %v1689, %v1693
      %v1698 = vand.u32 2147483647, %v1688
      %vm1699 = vcmp.eq.f32.partialorder %v1698, 8.507059e+37
      %v1700 = vand.u32 %v1688, 2147483648
      %v1701 = vor.u32 1.1754944e-38, %v1700
      %v1702 = vsel %vm1699, %v1701, %v1697
      %v1703 = vmul.f32 1.0, %v1702
      %v1704 = vmul.f32 %v1683, %v1552
      %v1705 = vmul.f32 %v1664, %v1684
      %v1706 = vadd.f32 %v1704, %v1705
      %v1707 = vtanh.pop %v1706
      %v1708 = vmul.f32 %v1703, %v1707
      %s1709 = sadd.s32 %s385, 5
      %p1710 = scmp.lt.s32.totalorder %s1709, 12
      %s1711 = scalar_select %p1710, 1, 0
      %v1712 = vstv %s1711
      %vm1713 = vcmp.eq.s32.totalorder %v1712, 1
      %v1714 = vsel %vm1713, %v1708, %v1551
      %v1715 = vsel %vm1713, %v1706, %v1552
      %s1716 = scalar_lea.vmem [#allocation2], 40
      %1717 = vst [vmem:[%s1716] sm:$0xff] %v1714
      %s1718 = smul.u32 6, 4
      %s1719 = smul.addr %s1718, 8
      %s1720 = scalar_lea.vmem [#allocation4], %s1719
      %v1721 = vld [vmem:[%s1720] sm:$0xff]
      %v1722 = vld [vmem:[%s1720 + $0x8] sm:$0xff]
      %v1723 = vld [vmem:[%s1720 + $0x10] sm:$0xff]
      %v1724 = vld [vmem:[%s1720 + $0x18] sm:$0xff]
      %1725 = vmatpush.msra.mxu0 %v736
      %1726 = vmatpush.msra.mxu0 %v732
      %1727 = vmatpush.msra.mxu0 %v728
      %1728 = vmatpush.msra.mxu0 %v724
      %1729 = vmatpush.msra.mxu0 %v720
      %1730 = vmatpush.msra.mxu0 %v716
      %1731 = vmatpush.msra.mxu0 %v712
      %1732 = vmatpush.msra.mxu0 %v708
      %1733 = vmatpush.msra.mxu0 %v704
      %1734 = vmatpush.msra.mxu0 %v700
      %1735 = vmatpush.msra.mxu0 %v696
      %1736 = vmatpush.msra.mxu0 %v692
      %1737 = vmatpush.msra.mxu0 %v688
      %1738 = vmatpush.msra.mxu0 %v684
      %1739 = vmatpush.msra.mxu0 %v680
      %1740 = vmatpush.msra.mxu0 %v676
      %1741 = vmatmul.f32.gmra.mxu0 %v1714
      %v1742 = vpop.f32.mrf.mxu0
      %v1743 = vadd.f32 0.0, %v1742
      %1744 = vdwg.mxu0
      %1745 = vmatpush.msra.mxu0 %v737
      %1746 = vmatpush.msra.mxu0 %v733
      %1747 = vmatpush.msra.mxu0 %v729
      %1748 = vmatpush.msra.mxu0 %v725
      %1749 = vmatpush.msra.mxu0 %v721
      %1750 = vmatpush.msra.mxu0 %v717
      %1751 = vmatpush.msra.mxu0 %v713
      %1752 = vmatpush.msra.mxu0 %v709
      %1753 = vmatpush.msra.mxu0 %v705
      %1754 = vmatpush.msra.mxu0 %v701
      %1755 = vmatpush.msra.mxu0 %v697
      %1756 = vmatpush.msra.mxu0 %v693
      %1757 = vmatpush.msra.mxu0 %v689
      %1758 = vmatpush.msra.mxu0 %v685
      %1759 = vmatpush.msra.mxu0 %v681
      %1760 = vmatpush.msra.mxu0 %v677
      %1761 = vmatmul.f32.gmra.mxu0 %v1714
      %v1762 = vpop.f32.mrf.mxu0
      %v1763 = vadd.f32 0.0, %v1762
      %1764 = vdwg.mxu0
      %1765 = vmatpush.msra.mxu0 %v738
      %1766 = vmatpush.msra.mxu0 %v734
      %1767 = vmatpush.msra.mxu0 %v730
      %1768 = vmatpush.msra.mxu0 %v726
      %1769 = vmatpush.msra.mxu0 %v722
      %1770 = vmatpush.msra.mxu0 %v718
      %1771 = vmatpush.msra.mxu0 %v714
      %1772 = vmatpush.msra.mxu0 %v710
      %1773 = vmatpush.msra.mxu0 %v706
      %1774 = vmatpush.msra.mxu0 %v702
      %1775 = vmatpush.msra.mxu0 %v698
      %1776 = vmatpush.msra.mxu0 %v694
      %1777 = vmatpush.msra.mxu0 %v690
      %1778 = vmatpush.msra.mxu0 %v686
      %1779 = vmatpush.msra.mxu0 %v682
      %1780 = vmatpush.msra.mxu0 %v678
      %1781 = vmatmul.f32.gmra.mxu0 %v1714
      %v1782 = vpop.f32.mrf.mxu0
      %v1783 = vadd.f32 0.0, %v1782
      %1784 = vdwg.mxu0
      %1785 = vmatpush.msra.mxu0 %v739
      %1786 = vmatpush.msra.mxu0 %v735
      %1787 = vmatpush.msra.mxu0 %v731
      %1788 = vmatpush.msra.mxu0 %v727
      %1789 = vmatpush.msra.mxu0 %v723
      %1790 = vmatpush.msra.mxu0 %v719
      %1791 = vmatpush.msra.mxu0 %v715
      %1792 = vmatpush.msra.mxu0 %v711
      %1793 = vmatpush.msra.mxu0 %v707
      %1794 = vmatpush.msra.mxu0 %v703
      %1795 = vmatpush.msra.mxu0 %v699
      %1796 = vmatpush.msra.mxu0 %v695
      %1797 = vmatpush.msra.mxu0 %v691
      %1798 = vmatpush.msra.mxu0 %v687
      %1799 = vmatpush.msra.mxu0 %v683
      %1800 = vmatpush.msra.mxu0 %v679
      %1801 = vmatmul.f32.gmra.mxu0 %v1714
      %v1802 = vpop.f32.mrf.mxu0
      %v1803 = vadd.f32 0.0, %v1802
      %1804 = vdwg.mxu0
      %v1805 = vadd.f32 %v1721, %v1743
      %v1806 = vadd.f32 %v1722, %v1763
      %v1807 = vadd.f32 %v1723, %v1783
      %v1808 = vadd.f32 %v1724, %v1803
      %v1809 = vxor.u32 %v1805, 2147483648
      %v1810 = vmul.f32 %v1809, 1.442695
      %v1811 = vpow.pop %v1810
      %v1812 = vadd.f32 %v1811, 1.0
      %v1813 = vrcp.pop %v1812
      %v1814 = vmul.f32 %v1812, %v1813
      %v1815 = vsub.f32 1.0, %v1814
      %v1816 = vmul.f32 %v1813, %v1815
      %v1817 = vadd.f32 %v1813, %v1816
      %vm1818 = vweird.f32 %v1812
      %vm1819 = vweird.f32 %v1813
      %vm1820 = vmor %vm1818, %vm1819
      %v1821 = vsel %vm1820, %v1813, %v1817
      %v1822 = vand.u32 2147483647, %v1812
      %vm1823 = vcmp.eq.f32.partialorder %v1822, 8.507059e+37
      %v1824 = vand.u32 %v1812, 2147483648
      %v1825 = vor.u32 1.1754944e-38, %v1824
      %v1826 = vsel %vm1823, %v1825, %v1821
      %v1827 = vmul.f32 1.0, %v1826
      %v1828 = vxor.u32 %v1806, 2147483648
      %v1829 = vmul.f32 %v1828, 1.442695
      %v1830 = vpow.pop %v1829
      %v1831 = vadd.f32 %v1830, 1.0
      %v1832 = vrcp.pop %v1831
      %v1833 = vmul.f32 %v1831, %v1832
      %v1834 = vsub.f32 1.0, %v1833
      %v1835 = vmul.f32 %v1832, %v1834
      %v1836 = vadd.f32 %v1832, %v1835
      %vm1837 = vweird.f32 %v1831
      %vm1838 = vweird.f32 %v1832
      %vm1839 = vmor %vm1837, %vm1838
      %v1840 = vsel %vm1839, %v1832, %v1836
      %v1841 = vand.u32 2147483647, %v1831
      %vm1842 = vcmp.eq.f32.partialorder %v1841, 8.507059e+37
      %v1843 = vand.u32 %v1831, 2147483648
      %v1844 = vor.u32 1.1754944e-38, %v1843
      %v1845 = vsel %vm1842, %v1844, %v1840
      %v1846 = vmul.f32 1.0, %v1845
      %v1847 = vtanh.pop %v1807
      %v1848 = vxor.u32 %v1808, 2147483648
      %v1849 = vmul.f32 %v1848, 1.442695
      %v1850 = vpow.pop %v1849
      %v1851 = vadd.f32 %v1850, 1.0
      %v1852 = vrcp.pop %v1851
      %v1853 = vmul.f32 %v1851, %v1852
      %v1854 = vsub.f32 1.0, %v1853
      %v1855 = vmul.f32 %v1852, %v1854
      %v1856 = vadd.f32 %v1852, %v1855
      %vm1857 = vweird.f32 %v1851
      %vm1858 = vweird.f32 %v1852
      %vm1859 = vmor %vm1857, %vm1858
      %v1860 = vsel %vm1859, %v1852, %v1856
      %v1861 = vand.u32 2147483647, %v1851
      %vm1862 = vcmp.eq.f32.partialorder %v1861, 8.507059e+37
      %v1863 = vand.u32 %v1851, 2147483648
      %v1864 = vor.u32 1.1754944e-38, %v1863
      %v1865 = vsel %vm1862, %v1864, %v1860
      %v1866 = vmul.f32 1.0, %v1865
      %v1867 = vmul.f32 %v1846, %v1715
      %v1868 = vmul.f32 %v1827, %v1847
      %v1869 = vadd.f32 %v1867, %v1868
      %v1870 = vtanh.pop %v1869
      %v1871 = vmul.f32 %v1866, %v1870
      %s1872 = sadd.s32 %s385, 6
      %p1873 = scmp.lt.s32.totalorder %s1872, 12
      %s1874 = scalar_select %p1873, 1, 0
      %v1875 = vstv %s1874
      %vm1876 = vcmp.eq.s32.totalorder %v1875, 1
      %v1877 = vsel %vm1876, %v1871, %v1714
      %v1878 = vsel %vm1876, %v1869, %v1715
      %s1879 = scalar_lea.vmem [#allocation2], 48
      %1880 = vst [vmem:[%s1879] sm:$0xff] %v1877
      %s1881 = smul.u32 7, 4
      %s1882 = smul.addr %s1881, 8
      %s1883 = scalar_lea.vmem [#allocation4], %s1882
      %v1884 = vld [vmem:[%s1883] sm:$0xff]
      %v1885 = vld [vmem:[%s1883 + $0x8] sm:$0xff]
      %v1886 = vld [vmem:[%s1883 + $0x10] sm:$0xff]
      %v1887 = vld [vmem:[%s1883 + $0x18] sm:$0xff]
      %1888 = vmatpush.msra.mxu0 %v736
      %1889 = vmatpush.msra.mxu0 %v732
      %1890 = vmatpush.msra.mxu0 %v728
      %1891 = vmatpush.msra.mxu0 %v724
      %1892 = vmatpush.msra.mxu0 %v720
      %1893 = vmatpush.msra.mxu0 %v716
      %1894 = vmatpush.msra.mxu0 %v712
      %1895 = vmatpush.msra.mxu0 %v708
      %1896 = vmatpush.msra.mxu0 %v704
      %1897 = vmatpush.msra.mxu0 %v700
      %1898 = vmatpush.msra.mxu0 %v696
      %1899 = vmatpush.msra.mxu0 %v692
      %1900 = vmatpush.msra.mxu0 %v688
      %1901 = vmatpush.msra.mxu0 %v684
      %1902 = vmatpush.msra.mxu0 %v680
      %1903 = vmatpush.msra.mxu0 %v676
      %1904 = vmatmul.f32.gmra.mxu0 %v1877
      %v1905 = vpop.f32.mrf.mxu0
      %v1906 = vadd.f32 0.0, %v1905
      %1907 = vdwg.mxu0
      %1908 = vmatpush.msra.mxu0 %v737
      %1909 = vmatpush.msra.mxu0 %v733
      %1910 = vmatpush.msra.mxu0 %v729
      %1911 = vmatpush.msra.mxu0 %v725
      %1912 = vmatpush.msra.mxu0 %v721
      %1913 = vmatpush.msra.mxu0 %v717
      %1914 = vmatpush.msra.mxu0 %v713
      %1915 = vmatpush.msra.mxu0 %v709
      %1916 = vmatpush.msra.mxu0 %v705
      %1917 = vmatpush.msra.mxu0 %v701
      %1918 = vmatpush.msra.mxu0 %v697
      %1919 = vmatpush.msra.mxu0 %v693
      %1920 = vmatpush.msra.mxu0 %v689
      %1921 = vmatpush.msra.mxu0 %v685
      %1922 = vmatpush.msra.mxu0 %v681
      %1923 = vmatpush.msra.mxu0 %v677
      %1924 = vmatmul.f32.gmra.mxu0 %v1877
      %v1925 = vpop.f32.mrf.mxu0
      %v1926 = vadd.f32 0.0, %v1925
      %1927 = vdwg.mxu0
      %1928 = vmatpush.msra.mxu0 %v738
      %1929 = vmatpush.msra.mxu0 %v734
      %1930 = vmatpush.msra.mxu0 %v730
      %1931 = vmatpush.msra.mxu0 %v726
      %1932 = vmatpush.msra.mxu0 %v722
      %1933 = vmatpush.msra.mxu0 %v718
      %1934 = vmatpush.msra.mxu0 %v714
      %1935 = vmatpush.msra.mxu0 %v710
      %1936 = vmatpush.msra.mxu0 %v706
      %1937 = vmatpush.msra.mxu0 %v702
      %1938 = vmatpush.msra.mxu0 %v698
      %1939 = vmatpush.msra.mxu0 %v694
      %1940 = vmatpush.msra.mxu0 %v690
      %1941 = vmatpush.msra.mxu0 %v686
      %1942 = vmatpush.msra.mxu0 %v682
      %1943 = vmatpush.msra.mxu0 %v678
      %1944 = vmatmul.f32.gmra.mxu0 %v1877
      %v1945 = vpop.f32.mrf.mxu0
      %v1946 = vadd.f32 0.0, %v1945
      %1947 = vdwg.mxu0
      %1948 = vmatpush.msra.mxu0 %v739
      %1949 = vmatpush.msra.mxu0 %v735
      %1950 = vmatpush.msra.mxu0 %v731
      %1951 = vmatpush.msra.mxu0 %v727
      %1952 = vmatpush.msra.mxu0 %v723
      %1953 = vmatpush.msra.mxu0 %v719
      %1954 = vmatpush.msra.mxu0 %v715
      %1955 = vmatpush.msra.mxu0 %v711
      %1956 = vmatpush.msra.mxu0 %v707
      %1957 = vmatpush.msra.mxu0 %v703
      %1958 = vmatpush.msra.mxu0 %v699
      %1959 = vmatpush.msra.mxu0 %v695
      %1960 = vmatpush.msra.mxu0 %v691
      %1961 = vmatpush.msra.mxu0 %v687
      %1962 = vmatpush.msra.mxu0 %v683
      %1963 = vmatpush.msra.mxu0 %v679
      %1964 = vmatmul.f32.gmra.mxu0 %v1877
      %v1965 = vpop.f32.mrf.mxu0
      %v1966 = vadd.f32 0.0, %v1965
      %1967 = vdwg.mxu0
      %v1968 = vadd.f32 %v1884, %v1906
      %v1969 = vadd.f32 %v1885, %v1926
      %v1970 = vadd.f32 %v1886, %v1946
      %v1971 = vadd.f32 %v1887, %v1966
      %v1972 = vxor.u32 %v1968, 2147483648
      %v1973 = vmul.f32 %v1972, 1.442695
      %v1974 = vpow.pop %v1973
      %v1975 = vadd.f32 %v1974, 1.0
      %v1976 = vrcp.pop %v1975
      %v1977 = vmul.f32 %v1975, %v1976
      %v1978 = vsub.f32 1.0, %v1977
      %v1979 = vmul.f32 %v1976, %v1978
      %v1980 = vadd.f32 %v1976, %v1979
      %vm1981 = vweird.f32 %v1975
      %vm1982 = vweird.f32 %v1976
      %vm1983 = vmor %vm1981, %vm1982
      %v1984 = vsel %vm1983, %v1976, %v1980
      %v1985 = vand.u32 2147483647, %v1975
      %vm1986 = vcmp.eq.f32.partialorder %v1985, 8.507059e+37
      %v1987 = vand.u32 %v1975, 2147483648
      %v1988 = vor.u32 1.1754944e-38, %v1987
      %v1989 = vsel %vm1986, %v1988, %v1984
      %v1990 = vmul.f32 1.0, %v1989
      %v1991 = vxor.u32 %v1969, 2147483648
      %v1992 = vmul.f32 %v1991, 1.442695
      %v1993 = vpow.pop %v1992
      %v1994 = vadd.f32 %v1993, 1.0
      %v1995 = vrcp.pop %v1994
      %v1996 = vmul.f32 %v1994, %v1995
      %v1997 = vsub.f32 1.0, %v1996
      %v1998 = vmul.f32 %v1995, %v1997
      %v1999 = vadd.f32 %v1995, %v1998
      %vm2000 = vweird.f32 %v1994
      %vm2001 = vweird.f32 %v1995
      %vm2002 = vmor %vm2000, %vm2001
      %v2003 = vsel %vm2002, %v1995, %v1999
      %v2004 = vand.u32 2147483647, %v1994
      %vm2005 = vcmp.eq.f32.partialorder %v2004, 8.507059e+37
      %v2006 = vand.u32 %v1994, 2147483648
      %v2007 = vor.u32 1.1754944e-38, %v2006
      %v2008 = vsel %vm2005, %v2007, %v2003
      %v2009 = vmul.f32 1.0, %v2008
      %v2010 = vtanh.pop %v1970
      %v2011 = vxor.u32 %v1971, 2147483648
      %v2012 = vmul.f32 %v2011, 1.442695
      %v2013 = vpow.pop %v2012
      %v2014 = vadd.f32 %v2013, 1.0
      %v2015 = vrcp.pop %v2014
      %v2016 = vmul.f32 %v2014, %v2015
      %v2017 = vsub.f32 1.0, %v2016
      %v2018 = vmul.f32 %v2015, %v2017
      %v2019 = vadd.f32 %v2015, %v2018
      %vm2020 = vweird.f32 %v2014
      %vm2021 = vweird.f32 %v2015
      %vm2022 = vmor %vm2020, %vm2021
      %v2023 = vsel %vm2022, %v2015, %v2019
      %v2024 = vand.u32 2147483647, %v2014
      %vm2025 = vcmp.eq.f32.partialorder %v2024, 8.507059e+37
      %v2026 = vand.u32 %v2014, 2147483648
      %v2027 = vor.u32 1.1754944e-38, %v2026
      %v2028 = vsel %vm2025, %v2027, %v2023
      %v2029 = vmul.f32 1.0, %v2028
      %v2030 = vmul.f32 %v2009, %v1878
      %v2031 = vmul.f32 %v1990, %v2010
      %v2032 = vadd.f32 %v2030, %v2031
      %v2033 = vtanh.pop %v2032
      %v2034 = vmul.f32 %v2029, %v2033
      %s2035 = sadd.s32 %s385, 7
      %p2036 = scmp.lt.s32.totalorder %s2035, 12
      %s2037 = scalar_select %p2036, 1, 0
      %v2038 = vstv %s2037
      %vm2039 = vcmp.eq.s32.totalorder %v2038, 1
      %v2040 = vsel %vm2039, %v2034, %v1877
      %v2041 = vsel %vm2039, %v2032, %v1878
      %s2042 = scalar_lea.vmem [#allocation2], 56
      %2043 = vst [vmem:[%s2042] sm:$0xff] %v2040
      %2044 = vst [vmem:[#allocation5] sm:$0xff] %v2040
      %2045 = vst [vmem:[#allocation6] sm:$0xff] %v2041
      %v2046 = vld [vmem:[#allocation2] sm:$0xff]
      %v2047 = vld [vmem:[#allocation2 + $0x8] sm:$0xff]
      %v2048 = vld [vmem:[#allocation2 + $0x10] sm:$0xff]
      %v2049 = vld [vmem:[#allocation2 + $0x18] sm:$0xff]
      %v2050 = vld [vmem:[#allocation2 + $0x20] sm:$0xff]
      %v2051 = vld [vmem:[#allocation2 + $0x28] sm:$0xff]
      %v2052 = vld [vmem:[#allocation2 + $0x30] sm:$0xff]
      %v2053 = vld [vmem:[#allocation2 + $0x38] sm:$0xff]
      %v2054 = vld [vmem:[%s2] sm:$0xff]
      %v2055 = vld [vmem:[%s2 + $0x8] sm:$0xff]
      %v2056 = vld [vmem:[%s2 + $0x10] sm:$0xff]
      %v2057 = vld [vmem:[%s2 + $0x18] sm:$0xff]
      %v2058 = vld [vmem:[%s2 + $0x20] sm:$0xff]
      %v2059 = vld [vmem:[%s2 + $0x28] sm:$0xff]
      %v2060 = vld [vmem:[%s2 + $0x30] sm:$0xff]
      %v2061 = vld [vmem:[%s2 + $0x38] sm:$0xff]
      %v2062 = vld [vmem:[%s2 + $0x40] sm:$0xff]
      %v2063 = vld [vmem:[%s2 + $0x48] sm:$0xff]
      %v2064 = vld [vmem:[%s2 + $0x50] sm:$0xff]
      %v2065 = vld [vmem:[%s2 + $0x58] sm:$0xff]
      %v2066 = vld [vmem:[%s2 + $0x60] sm:$0xff]
      %v2067 = vld [vmem:[%s2 + $0x68] sm:$0xff]
      %v2068 = vld [vmem:[%s2 + $0x70] sm:$0xff]
      %v2069 = vld [vmem:[%s2 + $0x78] sm:$0xff]
      %v2070 = vld [vmem:[%s2 + $0x80] sm:$0xff]
      %v2071 = vld [vmem:[%s2 + $0x88] sm:$0xff]
      %v2072 = vld [vmem:[%s2 + $0x90] sm:$0xff]
      %v2073 = vld [vmem:[%s2 + $0x98] sm:$0xff]
      %v2074 = vld [vmem:[%s2 + $0xa0] sm:$0xff]
      %v2075 = vld [vmem:[%s2 + $0xa8] sm:$0xff]
      %v2076 = vld [vmem:[%s2 + $0xb0] sm:$0xff]
      %v2077 = vld [vmem:[%s2 + $0xb8] sm:$0xff]
      %v2078 = vld [vmem:[%s2 + $0xc0] sm:$0xff]
      %v2079 = vld [vmem:[%s2 + $0xc8] sm:$0xff]
      %v2080 = vld [vmem:[%s2 + $0xd0] sm:$0xff]
      %v2081 = vld [vmem:[%s2 + $0xd8] sm:$0xff]
      %v2082 = vld [vmem:[%s2 + $0xe0] sm:$0xff]
      %v2083 = vld [vmem:[%s2 + $0xe8] sm:$0xff]
      %v2084 = vld [vmem:[%s2 + $0xf0] sm:$0xff]
      %v2085 = vld [vmem:[%s2 + $0xf8] sm:$0xff]
      %v2086 = vld [vmem:[%s2 + $0x100] sm:$0xff]
      %v2087 = vld [vmem:[%s2 + $0x108] sm:$0xff]
      %v2088 = vld [vmem:[%s2 + $0x110] sm:$0xff]
      %v2089 = vld [vmem:[%s2 + $0x118] sm:$0xff]
      %v2090 = vld [vmem:[%s2 + $0x120] sm:$0xff]
      %v2091 = vld [vmem:[%s2 + $0x128] sm:$0xff]
      %v2092 = vld [vmem:[%s2 + $0x130] sm:$0xff]
      %v2093 = vld [vmem:[%s2 + $0x138] sm:$0xff]
      %v2094 = vld [vmem:[%s2 + $0x140] sm:$0xff]
      %v2095 = vld [vmem:[%s2 + $0x148] sm:$0xff]
      %v2096 = vld [vmem:[%s2 + $0x150] sm:$0xff]
      %v2097 = vld [vmem:[%s2 + $0x158] sm:$0xff]
      %v2098 = vld [vmem:[%s2 + $0x160] sm:$0xff]
      %v2099 = vld [vmem:[%s2 + $0x168] sm:$0xff]
      %v2100 = vld [vmem:[%s2 + $0x170] sm:$0xff]
      %v2101 = vld [vmem:[%s2 + $0x178] sm:$0xff]
      %v2102 = vld [vmem:[%s2 + $0x180] sm:$0xff]
      %v2103 = vld [vmem:[%s2 + $0x188] sm:$0xff]
      %v2104 = vld [vmem:[%s2 + $0x190] sm:$0xff]
      %v2105 = vld [vmem:[%s2 + $0x198] sm:$0xff]
      %v2106 = vld [vmem:[%s2 + $0x1a0] sm:$0xff]
      %v2107 = vld [vmem:[%s2 + $0x1a8] sm:$0xff]
      %v2108 = vld [vmem:[%s2 + $0x1b0] sm:$0xff]
      %v2109 = vld [vmem:[%s2 + $0x1b8] sm:$0xff]
      %v2110 = vld [vmem:[%s2 + $0x1c0] sm:$0xff]
      %v2111 = vld [vmem:[%s2 + $0x1c8] sm:$0xff]
      %v2112 = vld [vmem:[%s2 + $0x1d0] sm:$0xff]
      %v2113 = vld [vmem:[%s2 + $0x1d8] sm:$0xff]
      %v2114 = vld [vmem:[%s2 + $0x1e0] sm:$0xff]
      %v2115 = vld [vmem:[%s2 + $0x1e8] sm:$0xff]
      %v2116 = vld [vmem:[%s2 + $0x1f0] sm:$0xff]
      %v2117 = vld [vmem:[%s2 + $0x1f8] sm:$0xff]
      %s2118 = scalar_lea.vmem %s4, 4
      %v2119 = vld [vmem:[%s2118] sm:$0xf]
      %v2121 = vperm.slane %v2119, 0
      %v2122 = vperm.slane %v2119, 1
      %v2123 = vperm.slane %v2119, 2
      %v2124 = vperm.slane %v2119, 3
      %2129 = vmatpush.msra.mxu0 %v2114
      %2130 = vmatpush.msra.mxu0 %v2110
      %2131 = vmatpush.msra.mxu0 %v2106
      %2132 = vmatpush.msra.mxu0 %v2102
      %2133 = vmatpush.msra.mxu0 %v2098
      %2134 = vmatpush.msra.mxu0 %v2094
      %2135 = vmatpush.msra.mxu0 %v2090
      %2136 = vmatpush.msra.mxu0 %v2086
      %2137 = vmatpush.msra.mxu0 %v2082
      %2138 = vmatpush.msra.mxu0 %v2078
      %2139 = vmatpush.msra.mxu0 %v2074
      %2140 = vmatpush.msra.mxu0 %v2070
      %2141 = vmatpush.msra.mxu0 %v2066
      %2142 = vmatpush.msra.mxu0 %v2062
      %2143 = vmatpush.msra.mxu0 %v2058
      %2144 = vmatpush.msra.mxu0 %v2054
      %2145 = vmatmul.f32.gmra.mxu0 %v2046
      %v2146 = vpop.f32.mrf.mxu0
      %v2147 = vadd.f32 %v2121, %v2146
      %2148 = vmatmul.f32.gmra.mxu0 %v2047
      %v2149 = vpop.f32.mrf.mxu0
      %v2150 = vadd.f32 %v2121, %v2149
      %2151 = vmatmul.f32.gmra.mxu0 %v2048
      %v2152 = vpop.f32.mrf.mxu0
      %v2153 = vadd.f32 %v2121, %v2152
      %2154 = vmatmul.f32.gmra.mxu0 %v2049
      %v2155 = vpop.f32.mrf.mxu0
      %v2156 = vadd.f32 %v2121, %v2155
      %2157 = vmatmul.f32.gmra.mxu0 %v2050
      %v2158 = vpop.f32.mrf.mxu0
      %v2159 = vadd.f32 %v2121, %v2158
      %2160 = vmatmul.f32.gmra.mxu0 %v2051
      %v2161 = vpop.f32.mrf.mxu0
      %v2162 = vadd.f32 %v2121, %v2161
      %2163 = vmatmul.f32.gmra.mxu0 %v2052
      %v2164 = vpop.f32.mrf.mxu0
      %v2165 = vadd.f32 %v2121, %v2164
      %2166 = vmatmul.f32.gmra.mxu0 %v2053
      %v2167 = vpop.f32.mrf.mxu0
      %v2168 = vadd.f32 %v2121, %v2167
      %2169 = vdwg.mxu0
      %2170 = vmatpush.msra.mxu0 %v2115
      %2171 = vmatpush.msra.mxu0 %v2111
      %2172 = vmatpush.msra.mxu0 %v2107
      %2173 = vmatpush.msra.mxu0 %v2103
      %2174 = vmatpush.msra.mxu0 %v2099
      %2175 = vmatpush.msra.mxu0 %v2095
      %2176 = vmatpush.msra.mxu0 %v2091
      %2177 = vmatpush.msra.mxu0 %v2087
      %2178 = vmatpush.msra.mxu0 %v2083
      %2179 = vmatpush.msra.mxu0 %v2079
      %2180 = vmatpush.msra.mxu0 %v2075
      %2181 = vmatpush.msra.mxu0 %v2071
      %2182 = vmatpush.msra.mxu0 %v2067
      %2183 = vmatpush.msra.mxu0 %v2063
      %2184 = vmatpush.msra.mxu0 %v2059
      %2185 = vmatpush.msra.mxu0 %v2055
      %2186 = vmatmul.f32.gmra.mxu0 %v2046
      %v2187 = vpop.f32.mrf.mxu0
      %v2188 = vadd.f32 %v2122, %v2187
      %2189 = vmatmul.f32.gmra.mxu0 %v2047
      %v2190 = vpop.f32.mrf.mxu0
      %v2191 = vadd.f32 %v2122, %v2190
      %2192 = vmatmul.f32.gmra.mxu0 %v2048
      %v2193 = vpop.f32.mrf.mxu0
      %v2194 = vadd.f32 %v2122, %v2193
      %2195 = vmatmul.f32.gmra.mxu0 %v2049
      %v2196 = vpop.f32.mrf.mxu0
      %v2197 = vadd.f32 %v2122, %v2196
      %2198 = vmatmul.f32.gmra.mxu0 %v2050
      %v2199 = vpop.f32.mrf.mxu0
      %v2200 = vadd.f32 %v2122, %v2199
      %2201 = vmatmul.f32.gmra.mxu0 %v2051
      %v2202 = vpop.f32.mrf.mxu0
      %v2203 = vadd.f32 %v2122, %v2202
      %2204 = vmatmul.f32.gmra.mxu0 %v2052
      %v2205 = vpop.f32.mrf.mxu0
      %v2206 = vadd.f32 %v2122, %v2205
      %2207 = vmatmul.f32.gmra.mxu0 %v2053
      %v2208 = vpop.f32.mrf.mxu0
      %v2209 = vadd.f32 %v2122, %v2208
      %2210 = vdwg.mxu0
      %2211 = vmatpush.msra.mxu0 %v2116
      %2212 = vmatpush.msra.mxu0 %v2112
      %2213 = vmatpush.msra.mxu0 %v2108
      %2214 = vmatpush.msra.mxu0 %v2104
      %2215 = vmatpush.msra.mxu0 %v2100
      %2216 = vmatpush.msra.mxu0 %v2096
      %2217 = vmatpush.msra.mxu0 %v2092
      %2218 = vmatpush.msra.mxu0 %v2088
      %2219 = vmatpush.msra.mxu0 %v2084
      %2220 = vmatpush.msra.mxu0 %v2080
      %2221 = vmatpush.msra.mxu0 %v2076
      %2222 = vmatpush.msra.mxu0 %v2072
      %2223 = vmatpush.msra.mxu0 %v2068
      %2224 = vmatpush.msra.mxu0 %v2064
      %2225 = vmatpush.msra.mxu0 %v2060
      %2226 = vmatpush.msra.mxu0 %v2056
      %2227 = vmatmul.f32.gmra.mxu0 %v2046
      %v2228 = vpop.f32.mrf.mxu0
      %v2229 = vadd.f32 %v2123, %v2228
      %2230 = vmatmul.f32.gmra.mxu0 %v2047
      %v2231 = vpop.f32.mrf.mxu0
      %v2232 = vadd.f32 %v2123, %v2231
      %2233 = vmatmul.f32.gmra.mxu0 %v2048
      %v2234 = vpop.f32.mrf.mxu0
      %v2235 = vadd.f32 %v2123, %v2234
      %2236 = vmatmul.f32.gmra.mxu0 %v2049
      %v2237 = vpop.f32.mrf.mxu0
      %v2238 = vadd.f32 %v2123, %v2237
      %2239 = vmatmul.f32.gmra.mxu0 %v2050
      %v2240 = vpop.f32.mrf.mxu0
      %v2241 = vadd.f32 %v2123, %v2240
      %2242 = vmatmul.f32.gmra.mxu0 %v2051
      %v2243 = vpop.f32.mrf.mxu0
      %v2244 = vadd.f32 %v2123, %v2243
      %2245 = vmatmul.f32.gmra.mxu0 %v2052
      %v2246 = vpop.f32.mrf.mxu0
      %v2247 = vadd.f32 %v2123, %v2246
      %2248 = vmatmul.f32.gmra.mxu0 %v2053
      %v2249 = vpop.f32.mrf.mxu0
      %v2250 = vadd.f32 %v2123, %v2249
      %2251 = vdwg.mxu0
      %2252 = vmatpush.msra.mxu0 %v2117
      %2253 = vmatpush.msra.mxu0 %v2113
      %2254 = vmatpush.msra.mxu0 %v2109
      %2255 = vmatpush.msra.mxu0 %v2105
      %2256 = vmatpush.msra.mxu0 %v2101
      %2257 = vmatpush.msra.mxu0 %v2097
      %2258 = vmatpush.msra.mxu0 %v2093
      %2259 = vmatpush.msra.mxu0 %v2089
      %2260 = vmatpush.msra.mxu0 %v2085
      %2261 = vmatpush.msra.mxu0 %v2081
      %2262 = vmatpush.msra.mxu0 %v2077
      %2263 = vmatpush.msra.mxu0 %v2073
      %2264 = vmatpush.msra.mxu0 %v2069
      %2265 = vmatpush.msra.mxu0 %v2065
      %2266 = vmatpush.msra.mxu0 %v2061
      %2267 = vmatpush.msra.mxu0 %v2057
      %2268 = vmatmul.f32.gmra.mxu0 %v2046
      %v2269 = vpop.f32.mrf.mxu0
      %v2270 = vadd.f32 %v2124, %v2269
      %2271 = vmatmul.f32.gmra.mxu0 %v2047
      %v2272 = vpop.f32.mrf.mxu0
      %v2273 = vadd.f32 %v2124, %v2272
      %2274 = vmatmul.f32.gmra.mxu0 %v2048
      %v2275 = vpop.f32.mrf.mxu0
      %v2276 = vadd.f32 %v2124, %v2275
      %2277 = vmatmul.f32.gmra.mxu0 %v2049
      %v2278 = vpop.f32.mrf.mxu0
      %v2279 = vadd.f32 %v2124, %v2278
      %2280 = vmatmul.f32.gmra.mxu0 %v2050
      %v2281 = vpop.f32.mrf.mxu0
      %v2282 = vadd.f32 %v2124, %v2281
      %2283 = vmatmul.f32.gmra.mxu0 %v2051
      %v2284 = vpop.f32.mrf.mxu0
      %v2285 = vadd.f32 %v2124, %v2284
      %2286 = vmatmul.f32.gmra.mxu0 %v2052
      %v2287 = vpop.f32.mrf.mxu0
      %v2288 = vadd.f32 %v2124, %v2287
      %2289 = vmatmul.f32.gmra.mxu0 %v2053
      %v2290 = vpop.f32.mrf.mxu0
      %v2291 = vadd.f32 %v2124, %v2290
      %2292 = vdwg.mxu0
      %2293 = vst [vmem:[#allocation4] sm:$0xff] %v2147
      %2294 = vst [vmem:[#allocation4 + $0x8] sm:$0xff] %v2188
      %2295 = vst [vmem:[#allocation4 + $0x10] sm:$0xff] %v2229
      %2296 = vst [vmem:[#allocation4 + $0x18] sm:$0xff] %v2270
      %2297 = vst [vmem:[#allocation4 + $0x20] sm:$0xff] %v2150
      %2298 = vst [vmem:[#allocation4 + $0x28] sm:$0xff] %v2191
      %2299 = vst [vmem:[#allocation4 + $0x30] sm:$0xff] %v2232
      %2300 = vst [vmem:[#allocation4 + $0x38] sm:$0xff] %v2273
      %2301 = vst [vmem:[#allocation4 + $0x40] sm:$0xff] %v2153
      %2302 = vst [vmem:[#allocation4 + $0x48] sm:$0xff] %v2194
      %2303 = vst [vmem:[#allocation4 + $0x50] sm:$0xff] %v2235
      %2304 = vst [vmem:[#allocation4 + $0x58] sm:$0xff] %v2276
      %2305 = vst [vmem:[#allocation4 + $0x60] sm:$0xff] %v2156
      %2306 = vst [vmem:[#allocation4 + $0x68] sm:$0xff] %v2197
      %2307 = vst [vmem:[#allocation4 + $0x70] sm:$0xff] %v2238
      %2308 = vst [vmem:[#allocation4 + $0x78] sm:$0xff] %v2279
      %2309 = vst [vmem:[#allocation4 + $0x80] sm:$0xff] %v2159
      %2310 = vst [vmem:[#allocation4 + $0x88] sm:$0xff] %v2200
      %2311 = vst [vmem:[#allocation4 + $0x90] sm:$0xff] %v2241
      %2312 = vst [vmem:[#allocation4 + $0x98] sm:$0xff] %v2282
      %2313 = vst [vmem:[#allocation4 + $0xa0] sm:$0xff] %v2162
      %2314 = vst [vmem:[#allocation4 + $0xa8] sm:$0xff] %v2203
      %2315 = vst [vmem:[#allocation4 + $0xb0] sm:$0xff] %v2244
      %2316 = vst [vmem:[#allocation4 + $0xb8] sm:$0xff] %v2285
      %2317 = vst [vmem:[#allocation4 + $0xc0] sm:$0xff] %v2165
      %2318 = vst [vmem:[#allocation4 + $0xc8] sm:$0xff] %v2206
      %2319 = vst [vmem:[#allocation4 + $0xd0] sm:$0xff] %v2247
      %2320 = vst [vmem:[#allocation4 + $0xd8] sm:$0xff] %v2288
      %2321 = vst [vmem:[#allocation4 + $0xe0] sm:$0xff] %v2168
      %2322 = vst [vmem:[#allocation4 + $0xe8] sm:$0xff] %v2209
      %2323 = vst [vmem:[#allocation4 + $0xf0] sm:$0xff] %v2250
      %2324 = vst [vmem:[#allocation4 + $0xf8] sm:$0xff] %v2291
      %s2325 = scalar_lea.vmem %s3, 512
      %v2326 = vld [vmem:[%s2325] sm:$0xff]
      %v2327 = vld [vmem:[%s2325 + $0x8] sm:$0xff]
      %v2328 = vld [vmem:[%s2325 + $0x10] sm:$0xff]
      %v2329 = vld [vmem:[%s2325 + $0x18] sm:$0xff]
      %v2330 = vld [vmem:[%s2325 + $0x20] sm:$0xff]
      %v2331 = vld [vmem:[%s2325 + $0x28] sm:$0xff]
      %v2332 = vld [vmem:[%s2325 + $0x30] sm:$0xff]
      %v2333 = vld [vmem:[%s2325 + $0x38] sm:$0xff]
      %v2334 = vld [vmem:[%s2325 + $0x40] sm:$0xff]
      %v2335 = vld [vmem:[%s2325 + $0x48] sm:$0xff]
      %v2336 = vld [vmem:[%s2325 + $0x50] sm:$0xff]
      %v2337 = vld [vmem:[%s2325 + $0x58] sm:$0xff]
      %v2338 = vld [vmem:[%s2325 + $0x60] sm:$0xff]
      %v2339 = vld [vmem:[%s2325 + $0x68] sm:$0xff]
      %v2340 = vld [vmem:[%s2325 + $0x70] sm:$0xff]
      %v2341 = vld [vmem:[%s2325 + $0x78] sm:$0xff]
      %v2342 = vld [vmem:[%s2325 + $0x80] sm:$0xff]
      %v2343 = vld [vmem:[%s2325 + $0x88] sm:$0xff]
      %v2344 = vld [vmem:[%s2325 + $0x90] sm:$0xff]
      %v2345 = vld [vmem:[%s2325 + $0x98] sm:$0xff]
      %v2346 = vld [vmem:[%s2325 + $0xa0] sm:$0xff]
      %v2347 = vld [vmem:[%s2325 + $0xa8] sm:$0xff]
      %v2348 = vld [vmem:[%s2325 + $0xb0] sm:$0xff]
      %v2349 = vld [vmem:[%s2325 + $0xb8] sm:$0xff]
      %v2350 = vld [vmem:[%s2325 + $0xc0] sm:$0xff]
      %v2351 = vld [vmem:[%s2325 + $0xc8] sm:$0xff]
      %v2352 = vld [vmem:[%s2325 + $0xd0] sm:$0xff]
      %v2353 = vld [vmem:[%s2325 + $0xd8] sm:$0xff]
      %v2354 = vld [vmem:[%s2325 + $0xe0] sm:$0xff]
      %v2355 = vld [vmem:[%s2325 + $0xe8] sm:$0xff]
      %v2356 = vld [vmem:[%s2325 + $0xf0] sm:$0xff]
      %v2357 = vld [vmem:[%s2325 + $0xf8] sm:$0xff]
      %v2358 = vld [vmem:[%s2325 + $0x100] sm:$0xff]
      %v2359 = vld [vmem:[%s2325 + $0x108] sm:$0xff]
      %v2360 = vld [vmem:[%s2325 + $0x110] sm:$0xff]
      %v2361 = vld [vmem:[%s2325 + $0x118] sm:$0xff]
      %v2362 = vld [vmem:[%s2325 + $0x120] sm:$0xff]
      %v2363 = vld [vmem:[%s2325 + $0x128] sm:$0xff]
      %v2364 = vld [vmem:[%s2325 + $0x130] sm:$0xff]
      %v2365 = vld [vmem:[%s2325 + $0x138] sm:$0xff]
      %v2366 = vld [vmem:[%s2325 + $0x140] sm:$0xff]
      %v2367 = vld [vmem:[%s2325 + $0x148] sm:$0xff]
      %v2368 = vld [vmem:[%s2325 + $0x150] sm:$0xff]
      %v2369 = vld [vmem:[%s2325 + $0x158] sm:$0xff]
      %v2370 = vld [vmem:[%s2325 + $0x160] sm:$0xff]
      %v2371 = vld [vmem:[%s2325 + $0x168] sm:$0xff]
      %v2372 = vld [vmem:[%s2325 + $0x170] sm:$0xff]
      %v2373 = vld [vmem:[%s2325 + $0x178] sm:$0xff]
      %v2374 = vld [vmem:[%s2325 + $0x180] sm:$0xff]
      %v2375 = vld [vmem:[%s2325 + $0x188] sm:$0xff]
      %v2376 = vld [vmem:[%s2325 + $0x190] sm:$0xff]
      %v2377 = vld [vmem:[%s2325 + $0x198] sm:$0xff]
      %v2378 = vld [vmem:[%s2325 + $0x1a0] sm:$0xff]
      %v2379 = vld [vmem:[%s2325 + $0x1a8] sm:$0xff]
      %v2380 = vld [vmem:[%s2325 + $0x1b0] sm:$0xff]
      %v2381 = vld [vmem:[%s2325 + $0x1b8] sm:$0xff]
      %v2382 = vld [vmem:[%s2325 + $0x1c0] sm:$0xff]
      %v2383 = vld [vmem:[%s2325 + $0x1c8] sm:$0xff]
      %v2384 = vld [vmem:[%s2325 + $0x1d0] sm:$0xff]
      %v2385 = vld [vmem:[%s2325 + $0x1d8] sm:$0xff]
      %v2386 = vld [vmem:[%s2325 + $0x1e0] sm:$0xff]
      %v2387 = vld [vmem:[%s2325 + $0x1e8] sm:$0xff]
      %v2388 = vld [vmem:[%s2325 + $0x1f0] sm:$0xff]
      %v2389 = vld [vmem:[%s2325 + $0x1f8] sm:$0xff]
      %s2390 = scalar_lea.vmem [#allocation5], 8
      %v2391 = vld [vmem:[%s2390] sm:$0xff]
      %s2392 = scalar_lea.vmem [#allocation6], 8
      %v2393 = vld [vmem:[%s2392] sm:$0xff]
      %v2394 = vld [vmem:[%s744] sm:$0xff]
      %v2395 = vld [vmem:[%s744 + $0x8] sm:$0xff]
      %v2396 = vld [vmem:[%s744 + $0x10] sm:$0xff]
      %v2397 = vld [vmem:[%s744 + $0x18] sm:$0xff]
      %2398 = vmatpush.msra.mxu0 %v2386
      %2399 = vmatpush.msra.mxu0 %v2382
      %2400 = vmatpush.msra.mxu0 %v2378
      %2401 = vmatpush.msra.mxu0 %v2374
      %2402 = vmatpush.msra.mxu0 %v2370
      %2403 = vmatpush.msra.mxu0 %v2366
      %2404 = vmatpush.msra.mxu0 %v2362
      %2405 = vmatpush.msra.mxu0 %v2358
      %2406 = vmatpush.msra.mxu0 %v2354
      %2407 = vmatpush.msra.mxu0 %v2350
      %2408 = vmatpush.msra.mxu0 %v2346
      %2409 = vmatpush.msra.mxu0 %v2342
      %2410 = vmatpush.msra.mxu0 %v2338
      %2411 = vmatpush.msra.mxu0 %v2334
      %2412 = vmatpush.msra.mxu0 %v2330
      %2413 = vmatpush.msra.mxu0 %v2326
      %2414 = vmatmul.f32.gmra.mxu0 %v2391
      %v2415 = vpop.f32.mrf.mxu0
      %v2416 = vadd.f32 0.0, %v2415
      %2417 = vdwg.mxu0
      %2418 = vmatpush.msra.mxu0 %v2387
      %2419 = vmatpush.msra.mxu0 %v2383
      %2420 = vmatpush.msra.mxu0 %v2379
      %2421 = vmatpush.msra.mxu0 %v2375
      %2422 = vmatpush.msra.mxu0 %v2371
      %2423 = vmatpush.msra.mxu0 %v2367
      %2424 = vmatpush.msra.mxu0 %v2363
      %2425 = vmatpush.msra.mxu0 %v2359
      %2426 = vmatpush.msra.mxu0 %v2355
      %2427 = vmatpush.msra.mxu0 %v2351
      %2428 = vmatpush.msra.mxu0 %v2347
      %2429 = vmatpush.msra.mxu0 %v2343
      %2430 = vmatpush.msra.mxu0 %v2339
      %2431 = vmatpush.msra.mxu0 %v2335
      %2432 = vmatpush.msra.mxu0 %v2331
      %2433 = vmatpush.msra.mxu0 %v2327
      %2434 = vmatmul.f32.gmra.mxu0 %v2391
      %v2435 = vpop.f32.mrf.mxu0
      %v2436 = vadd.f32 0.0, %v2435
      %2437 = vdwg.mxu0
      %2438 = vmatpush.msra.mxu0 %v2388
      %2439 = vmatpush.msra.mxu0 %v2384
      %2440 = vmatpush.msra.mxu0 %v2380
      %2441 = vmatpush.msra.mxu0 %v2376
      %2442 = vmatpush.msra.mxu0 %v2372
      %2443 = vmatpush.msra.mxu0 %v2368
      %2444 = vmatpush.msra.mxu0 %v2364
      %2445 = vmatpush.msra.mxu0 %v2360
      %2446 = vmatpush.msra.mxu0 %v2356
      %2447 = vmatpush.msra.mxu0 %v2352
      %2448 = vmatpush.msra.mxu0 %v2348
      %2449 = vmatpush.msra.mxu0 %v2344
      %2450 = vmatpush.msra.mxu0 %v2340
      %2451 = vmatpush.msra.mxu0 %v2336
      %2452 = vmatpush.msra.mxu0 %v2332
      %2453 = vmatpush.msra.mxu0 %v2328
      %2454 = vmatmul.f32.gmra.mxu0 %v2391
      %v2455 = vpop.f32.mrf.mxu0
      %v2456 = vadd.f32 0.0, %v2455
      %2457 = vdwg.mxu0
      %2458 = vmatpush.msra.mxu0 %v2389
      %2459 = vmatpush.msra.mxu0 %v2385
      %2460 = vmatpush.msra.mxu0 %v2381
      %2461 = vmatpush.msra.mxu0 %v2377
      %2462 = vmatpush.msra.mxu0 %v2373
      %2463 = vmatpush.msra.mxu0 %v2369
      %2464 = vmatpush.msra.mxu0 %v2365
      %2465 = vmatpush.msra.mxu0 %v2361
      %2466 = vmatpush.msra.mxu0 %v2357
      %2467 = vmatpush.msra.mxu0 %v2353
      %2468 = vmatpush.msra.mxu0 %v2349
      %2469 = vmatpush.msra.mxu0 %v2345
      %2470 = vmatpush.msra.mxu0 %v2341
      %2471 = vmatpush.msra.mxu0 %v2337
      %2472 = vmatpush.msra.mxu0 %v2333
      %2473 = vmatpush.msra.mxu0 %v2329
      %2474 = vmatmul.f32.gmra.mxu0 %v2391
      %v2475 = vpop.f32.mrf.mxu0
      %v2476 = vadd.f32 0.0, %v2475
      %2477 = vdwg.mxu0
      %v2478 = vadd.f32 %v2394, %v2416
      %v2479 = vadd.f32 %v2395, %v2436
      %v2480 = vadd.f32 %v2396, %v2456
      %v2481 = vadd.f32 %v2397, %v2476
      %v2482 = vxor.u32 %v2478, 2147483648
      %v2483 = vmul.f32 %v2482, 1.442695
      %v2484 = vpow.pop %v2483
      %v2485 = vadd.f32 %v2484, 1.0
      %v2486 = vrcp.pop %v2485
      %v2487 = vmul.f32 %v2485, %v2486
      %v2488 = vsub.f32 1.0, %v2487
      %v2489 = vmul.f32 %v2486, %v2488
      %v2490 = vadd.f32 %v2486, %v2489
      %vm2491 = vweird.f32 %v2485
      %vm2492 = vweird.f32 %v2486
      %vm2493 = vmor %vm2491, %vm2492
      %v2494 = vsel %vm2493, %v2486, %v2490
      %v2495 = vand.u32 2147483647, %v2485
      %vm2496 = vcmp.eq.f32.partialorder %v2495, 8.507059e+37
      %v2497 = vand.u32 %v2485, 2147483648
      %v2498 = vor.u32 1.1754944e-38, %v2497
      %v2499 = vsel %vm2496, %v2498, %v2494
      %v2500 = vmul.f32 1.0, %v2499
      %v2501 = vxor.u32 %v2479, 2147483648
      %v2502 = vmul.f32 %v2501, 1.442695
      %v2503 = vpow.pop %v2502
      %v2504 = vadd.f32 %v2503, 1.0
      %v2505 = vrcp.pop %v2504
      %v2506 = vmul.f32 %v2504, %v2505
      %v2507 = vsub.f32 1.0, %v2506
      %v2508 = vmul.f32 %v2505, %v2507
      %v2509 = vadd.f32 %v2505, %v2508
      %vm2510 = vweird.f32 %v2504
      %vm2511 = vweird.f32 %v2505
      %vm2512 = vmor %vm2510, %vm2511
      %v2513 = vsel %vm2512, %v2505, %v2509
      %v2514 = vand.u32 2147483647, %v2504
      %vm2515 = vcmp.eq.f32.partialorder %v2514, 8.507059e+37
      %v2516 = vand.u32 %v2504, 2147483648
      %v2517 = vor.u32 1.1754944e-38, %v2516
      %v2518 = vsel %vm2515, %v2517, %v2513
      %v2519 = vmul.f32 1.0, %v2518
      %v2520 = vtanh.pop %v2480
      %v2521 = vxor.u32 %v2481, 2147483648
      %v2522 = vmul.f32 %v2521, 1.442695
      %v2523 = vpow.pop %v2522
      %v2524 = vadd.f32 %v2523, 1.0
      %v2525 = vrcp.pop %v2524
      %v2526 = vmul.f32 %v2524, %v2525
      %v2527 = vsub.f32 1.0, %v2526
      %v2528 = vmul.f32 %v2525, %v2527
      %v2529 = vadd.f32 %v2525, %v2528
      %vm2530 = vweird.f32 %v2524
      %vm2531 = vweird.f32 %v2525
      %vm2532 = vmor %vm2530, %vm2531
      %v2533 = vsel %vm2532, %v2525, %v2529
      %v2534 = vand.u32 2147483647, %v2524
      %vm2535 = vcmp.eq.f32.partialorder %v2534, 8.507059e+37
      %v2536 = vand.u32 %v2524, 2147483648
      %v2537 = vor.u32 1.1754944e-38, %v2536
      %v2538 = vsel %vm2535, %v2537, %v2533
      %v2539 = vmul.f32 1.0, %v2538
      %v2540 = vmul.f32 %v2519, %v2393
      %v2541 = vmul.f32 %v2500, %v2520
      %v2542 = vadd.f32 %v2540, %v2541
      %v2543 = vtanh.pop %v2542
      %v2544 = vmul.f32 %v2539, %v2543
      %v2545 = vsel %vm899, %v2544, %v2391
      %v2546 = vsel %vm899, %v2542, %v2393
      %2547 = vst [vmem:[#allocation3] sm:$0xff] %v2545
      %v2548 = vld [vmem:[%s905] sm:$0xff]
      %v2549 = vld [vmem:[%s905 + $0x8] sm:$0xff]
      %v2550 = vld [vmem:[%s905 + $0x10] sm:$0xff]
      %v2551 = vld [vmem:[%s905 + $0x18] sm:$0xff]
      %2552 = vmatpush.msra.mxu0 %v2386
      %2553 = vmatpush.msra.mxu0 %v2382
      %2554 = vmatpush.msra.mxu0 %v2378
      %2555 = vmatpush.msra.mxu0 %v2374
      %2556 = vmatpush.msra.mxu0 %v2370
      %2557 = vmatpush.msra.mxu0 %v2366
      %2558 = vmatpush.msra.mxu0 %v2362
      %2559 = vmatpush.msra.mxu0 %v2358
      %2560 = vmatpush.msra.mxu0 %v2354
      %2561 = vmatpush.msra.mxu0 %v2350
      %2562 = vmatpush.msra.mxu0 %v2346
      %2563 = vmatpush.msra.mxu0 %v2342
      %2564 = vmatpush.msra.mxu0 %v2338
      %2565 = vmatpush.msra.mxu0 %v2334
      %2566 = vmatpush.msra.mxu0 %v2330
      %2567 = vmatpush.msra.mxu0 %v2326
      %2568 = vmatmul.f32.gmra.mxu0 %v2545
      %v2569 = vpop.f32.mrf.mxu0
      %v2570 = vadd.f32 0.0, %v2569
      %2571 = vdwg.mxu0
      %2572 = vmatpush.msra.mxu0 %v2387
      %2573 = vmatpush.msra.mxu0 %v2383
      %2574 = vmatpush.msra.mxu0 %v2379
      %2575 = vmatpush.msra.mxu0 %v2375
      %2576 = vmatpush.msra.mxu0 %v2371
      %2577 = vmatpush.msra.mxu0 %v2367
      %2578 = vmatpush.msra.mxu0 %v2363
      %2579 = vmatpush.msra.mxu0 %v2359
      %2580 = vmatpush.msra.mxu0 %v2355
      %2581 = vmatpush.msra.mxu0 %v2351
      %2582 = vmatpush.msra.mxu0 %v2347
      %2583 = vmatpush.msra.mxu0 %v2343
      %2584 = vmatpush.msra.mxu0 %v2339
      %2585 = vmatpush.msra.mxu0 %v2335
      %2586 = vmatpush.msra.mxu0 %v2331
      %2587 = vmatpush.msra.mxu0 %v2327
      %2588 = vmatmul.f32.gmra.mxu0 %v2545
      %v2589 = vpop.f32.mrf.mxu0
      %v2590 = vadd.f32 0.0, %v2589
      %2591 = vdwg.mxu0
      %2592 = vmatpush.msra.mxu0 %v2388
      %2593 = vmatpush.msra.mxu0 %v2384
      %2594 = vmatpush.msra.mxu0 %v2380
      %2595 = vmatpush.msra.mxu0 %v2376
      %2596 = vmatpush.msra.mxu0 %v2372
      %2597 = vmatpush.msra.mxu0 %v2368
      %2598 = vmatpush.msra.mxu0 %v2364
      %2599 = vmatpush.msra.mxu0 %v2360
      %2600 = vmatpush.msra.mxu0 %v2356
      %2601 = vmatpush.msra.mxu0 %v2352
      %2602 = vmatpush.msra.mxu0 %v2348
      %2603 = vmatpush.msra.mxu0 %v2344
      %2604 = vmatpush.msra.mxu0 %v2340
      %2605 = vmatpush.msra.mxu0 %v2336
      %2606 = vmatpush.msra.mxu0 %v2332
      %2607 = vmatpush.msra.mxu0 %v2328
      %2608 = vmatmul.f32.gmra.mxu0 %v2545
      %v2609 = vpop.f32.mrf.mxu0
      %v2610 = vadd.f32 0.0, %v2609
      %2611 = vdwg.mxu0
      %2612 = vmatpush.msra.mxu0 %v2389
      %2613 = vmatpush.msra.mxu0 %v2385
      %2614 = vmatpush.msra.mxu0 %v2381
      %2615 = vmatpush.msra.mxu0 %v2377
      %2616 = vmatpush.msra.mxu0 %v2373
      %2617 = vmatpush.msra.mxu0 %v2369
      %2618 = vmatpush.msra.mxu0 %v2365
      %2619 = vmatpush.msra.mxu0 %v2361
      %2620 = vmatpush.msra.mxu0 %v2357
      %2621 = vmatpush.msra.mxu0 %v2353
      %2622 = vmatpush.msra.mxu0 %v2349
      %2623 = vmatpush.msra.mxu0 %v2345
      %2624 = vmatpush.msra.mxu0 %v2341
      %2625 = vmatpush.msra.mxu0 %v2337
      %2626 = vmatpush.msra.mxu0 %v2333
      %2627 = vmatpush.msra.mxu0 %v2329
      %2628 = vmatmul.f32.gmra.mxu0 %v2545
      %v2629 = vpop.f32.mrf.mxu0
      %v2630 = vadd.f32 0.0, %v2629
      %2631 = vdwg.mxu0
      %v2632 = vadd.f32 %v2548, %v2570
      %v2633 = vadd.f32 %v2549, %v2590
      %v2634 = vadd.f32 %v2550, %v2610
      %v2635 = vadd.f32 %v2551, %v2630
      %v2636 = vxor.u32 %v2632, 2147483648
      %v2637 = vmul.f32 %v2636, 1.442695
      %v2638 = vpow.pop %v2637
      %v2639 = vadd.f32 %v2638, 1.0
      %v2640 = vrcp.pop %v2639
      %v2641 = vmul.f32 %v2639, %v2640
      %v2642 = vsub.f32 1.0, %v2641
      %v2643 = vmul.f32 %v2640, %v2642
      %v2644 = vadd.f32 %v2640, %v2643
      %vm2645 = vweird.f32 %v2639
      %vm2646 = vweird.f32 %v2640
      %vm2647 = vmor %vm2645, %vm2646
      %v2648 = vsel %vm2647, %v2640, %v2644
      %v2649 = vand.u32 2147483647, %v2639
      %vm2650 = vcmp.eq.f32.partialorder %v2649, 8.507059e+37
      %v2651 = vand.u32 %v2639, 2147483648
      %v2652 = vor.u32 1.1754944e-38, %v2651
      %v2653 = vsel %vm2650, %v2652, %v2648
      %v2654 = vmul.f32 1.0, %v2653
      %v2655 = vxor.u32 %v2633, 2147483648
      %v2656 = vmul.f32 %v2655, 1.442695
      %v2657 = vpow.pop %v2656
      %v2658 = vadd.f32 %v2657, 1.0
      %v2659 = vrcp.pop %v2658
      %v2660 = vmul.f32 %v2658, %v2659
      %v2661 = vsub.f32 1.0, %v2660
      %v2662 = vmul.f32 %v2659, %v2661
      %v2663 = vadd.f32 %v2659, %v2662
      %vm2664 = vweird.f32 %v2658
      %vm2665 = vweird.f32 %v2659
      %vm2666 = vmor %vm2664, %vm2665
      %v2667 = vsel %vm2666, %v2659, %v2663
      %v2668 = vand.u32 2147483647, %v2658
      %vm2669 = vcmp.eq.f32.partialorder %v2668, 8.507059e+37
      %v2670 = vand.u32 %v2658, 2147483648
      %v2671 = vor.u32 1.1754944e-38, %v2670
      %v2672 = vsel %vm2669, %v2671, %v2667
      %v2673 = vmul.f32 1.0, %v2672
      %v2674 = vtanh.pop %v2634
      %v2675 = vxor.u32 %v2635, 2147483648
      %v2676 = vmul.f32 %v2675, 1.442695
      %v2677 = vpow.pop %v2676
      %v2678 = vadd.f32 %v2677, 1.0
      %v2679 = vrcp.pop %v2678
      %v2680 = vmul.f32 %v2678, %v2679
      %v2681 = vsub.f32 1.0, %v2680
      %v2682 = vmul.f32 %v2679, %v2681
      %v2683 = vadd.f32 %v2679, %v2682
      %vm2684 = vweird.f32 %v2678
      %vm2685 = vweird.f32 %v2679
      %vm2686 = vmor %vm2684, %vm2685
      %v2687 = vsel %vm2686, %v2679, %v2683
      %v2688 = vand.u32 2147483647, %v2678
      %vm2689 = vcmp.eq.f32.partialorder %v2688, 8.507059e+37
      %v2690 = vand.u32 %v2678, 2147483648
      %v2691 = vor.u32 1.1754944e-38, %v2690
      %v2692 = vsel %vm2689, %v2691, %v2687
      %v2693 = vmul.f32 1.0, %v2692
      %v2694 = vmul.f32 %v2673, %v2546
      %v2695 = vmul.f32 %v2654, %v2674
      %v2696 = vadd.f32 %v2694, %v2695
      %v2697 = vtanh.pop %v2696
      %v2698 = vmul.f32 %v2693, %v2697
      %v2699 = vsel %vm1061, %v2698, %v2545
      %v2700 = vsel %vm1061, %v2696, %v2546
      %s2701 = scalar_lea.vmem [#allocation3], 8
      %2702 = vst [vmem:[%s2701] sm:$0xff] %v2699
      %v2703 = vld [vmem:[%s1068] sm:$0xff]
      %v2704 = vld [vmem:[%s1068 + $0x8] sm:$0xff]
      %v2705 = vld [vmem:[%s1068 + $0x10] sm:$0xff]
      %v2706 = vld [vmem:[%s1068 + $0x18] sm:$0xff]
      %2707 = vmatpush.msra.mxu0 %v2386
      %2708 = vmatpush.msra.mxu0 %v2382
      %2709 = vmatpush.msra.mxu0 %v2378
      %2710 = vmatpush.msra.mxu0 %v2374
      %2711 = vmatpush.msra.mxu0 %v2370
      %2712 = vmatpush.msra.mxu0 %v2366
      %2713 = vmatpush.msra.mxu0 %v2362
      %2714 = vmatpush.msra.mxu0 %v2358
      %2715 = vmatpush.msra.mxu0 %v2354
      %2716 = vmatpush.msra.mxu0 %v2350
      %2717 = vmatpush.msra.mxu0 %v2346
      %2718 = vmatpush.msra.mxu0 %v2342
      %2719 = vmatpush.msra.mxu0 %v2338
      %2720 = vmatpush.msra.mxu0 %v2334
      %2721 = vmatpush.msra.mxu0 %v2330
      %2722 = vmatpush.msra.mxu0 %v2326
      %2723 = vmatmul.f32.gmra.mxu0 %v2699
      %v2724 = vpop.f32.mrf.mxu0
      %v2725 = vadd.f32 0.0, %v2724
      %2726 = vdwg.mxu0
      %2727 = vmatpush.msra.mxu0 %v2387
      %2728 = vmatpush.msra.mxu0 %v2383
      %2729 = vmatpush.msra.mxu0 %v2379
      %2730 = vmatpush.msra.mxu0 %v2375
      %2731 = vmatpush.msra.mxu0 %v2371
      %2732 = vmatpush.msra.mxu0 %v2367
      %2733 = vmatpush.msra.mxu0 %v2363
      %2734 = vmatpush.msra.mxu0 %v2359
      %2735 = vmatpush.msra.mxu0 %v2355
      %2736 = vmatpush.msra.mxu0 %v2351
      %2737 = vmatpush.msra.mxu0 %v2347
      %2738 = vmatpush.msra.mxu0 %v2343
      %2739 = vmatpush.msra.mxu0 %v2339
      %2740 = vmatpush.msra.mxu0 %v2335
      %2741 = vmatpush.msra.mxu0 %v2331
      %2742 = vmatpush.msra.mxu0 %v2327
      %2743 = vmatmul.f32.gmra.mxu0 %v2699
      %v2744 = vpop.f32.mrf.mxu0
      %v2745 = vadd.f32 0.0, %v2744
      %2746 = vdwg.mxu0
      %2747 = vmatpush.msra.mxu0 %v2388
      %2748 = vmatpush.msra.mxu0 %v2384
      %2749 = vmatpush.msra.mxu0 %v2380
      %2750 = vmatpush.msra.mxu0 %v2376
      %2751 = vmatpush.msra.mxu0 %v2372
      %2752 = vmatpush.msra.mxu0 %v2368
      %2753 = vmatpush.msra.mxu0 %v2364
      %2754 = vmatpush.msra.mxu0 %v2360
      %2755 = vmatpush.msra.mxu0 %v2356
      %2756 = vmatpush.msra.mxu0 %v2352
      %2757 = vmatpush.msra.mxu0 %v2348
      %2758 = vmatpush.msra.mxu0 %v2344
      %2759 = vmatpush.msra.mxu0 %v2340
      %2760 = vmatpush.msra.mxu0 %v2336
      %2761 = vmatpush.msra.mxu0 %v2332
      %2762 = vmatpush.msra.mxu0 %v2328
      %2763 = vmatmul.f32.gmra.mxu0 %v2699
      %v2764 = vpop.f32.mrf.mxu0
      %v2765 = vadd.f32 0.0, %v2764
      %2766 = vdwg.mxu0
      %2767 = vmatpush.msra.mxu0 %v2389
      %2768 = vmatpush.msra.mxu0 %v2385
      %2769 = vmatpush.msra.mxu0 %v2381
      %2770 = vmatpush.msra.mxu0 %v2377
      %2771 = vmatpush.msra.mxu0 %v2373
      %2772 = vmatpush.msra.mxu0 %v2369
      %2773 = vmatpush.msra.mxu0 %v2365
      %2774 = vmatpush.msra.mxu0 %v2361
      %2775 = vmatpush.msra.mxu0 %v2357
      %2776 = vmatpush.msra.mxu0 %v2353
      %2777 = vmatpush.msra.mxu0 %v2349
      %2778 = vmatpush.msra.mxu0 %v2345
      %2779 = vmatpush.msra.mxu0 %v2341
      %2780 = vmatpush.msra.mxu0 %v2337
      %2781 = vmatpush.msra.mxu0 %v2333
      %2782 = vmatpush.msra.mxu0 %v2329
      %2783 = vmatmul.f32.gmra.mxu0 %v2699
      %v2784 = vpop.f32.mrf.mxu0
      %v2785 = vadd.f32 0.0, %v2784
      %2786 = vdwg.mxu0
      %v2787 = vadd.f32 %v2703, %v2725
      %v2788 = vadd.f32 %v2704, %v2745
      %v2789 = vadd.f32 %v2705, %v2765
      %v2790 = vadd.f32 %v2706, %v2785
      %v2791 = vxor.u32 %v2787, 2147483648
      %v2792 = vmul.f32 %v2791, 1.442695
      %v2793 = vpow.pop %v2792
      %v2794 = vadd.f32 %v2793, 1.0
      %v2795 = vrcp.pop %v2794
      %v2796 = vmul.f32 %v2794, %v2795
      %v2797 = vsub.f32 1.0, %v2796
      %v2798 = vmul.f32 %v2795, %v2797
      %v2799 = vadd.f32 %v2795, %v2798
      %vm2800 = vweird.f32 %v2794
      %vm2801 = vweird.f32 %v2795
      %vm2802 = vmor %vm2800, %vm2801
      %v2803 = vsel %vm2802, %v2795, %v2799
      %v2804 = vand.u32 2147483647, %v2794
      %vm2805 = vcmp.eq.f32.partialorder %v2804, 8.507059e+37
      %v2806 = vand.u32 %v2794, 2147483648
      %v2807 = vor.u32 1.1754944e-38, %v2806
      %v2808 = vsel %vm2805, %v2807, %v2803
      %v2809 = vmul.f32 1.0, %v2808
      %v2810 = vxor.u32 %v2788, 2147483648
      %v2811 = vmul.f32 %v2810, 1.442695
      %v2812 = vpow.pop %v2811
      %v2813 = vadd.f32 %v2812, 1.0
      %v2814 = vrcp.pop %v2813
      %v2815 = vmul.f32 %v2813, %v2814
      %v2816 = vsub.f32 1.0, %v2815
      %v2817 = vmul.f32 %v2814, %v2816
      %v2818 = vadd.f32 %v2814, %v2817
      %vm2819 = vweird.f32 %v2813
      %vm2820 = vweird.f32 %v2814
      %vm2821 = vmor %vm2819, %vm2820
      %v2822 = vsel %vm2821, %v2814, %v2818
      %v2823 = vand.u32 2147483647, %v2813
      %vm2824 = vcmp.eq.f32.partialorder %v2823, 8.507059e+37
      %v2825 = vand.u32 %v2813, 2147483648
      %v2826 = vor.u32 1.1754944e-38, %v2825
      %v2827 = vsel %vm2824, %v2826, %v2822
      %v2828 = vmul.f32 1.0, %v2827
      %v2829 = vtanh.pop %v2789
      %v2830 = vxor.u32 %v2790, 2147483648
      %v2831 = vmul.f32 %v2830, 1.442695
      %v2832 = vpow.pop %v2831
      %v2833 = vadd.f32 %v2832, 1.0
      %v2834 = vrcp.pop %v2833
      %v2835 = vmul.f32 %v2833, %v2834
      %v2836 = vsub.f32 1.0, %v2835
      %v2837 = vmul.f32 %v2834, %v2836
      %v2838 = vadd.f32 %v2834, %v2837
      %vm2839 = vweird.f32 %v2833
      %vm2840 = vweird.f32 %v2834
      %vm2841 = vmor %vm2839, %vm2840
      %v2842 = vsel %vm2841, %v2834, %v2838
      %v2843 = vand.u32 2147483647, %v2833
      %vm2844 = vcmp.eq.f32.partialorder %v2843, 8.507059e+37
      %v2845 = vand.u32 %v2833, 2147483648
      %v2846 = vor.u32 1.1754944e-38, %v2845
      %v2847 = vsel %vm2844, %v2846, %v2842
      %v2848 = vmul.f32 1.0, %v2847
      %v2849 = vmul.f32 %v2828, %v2700
      %v2850 = vmul.f32 %v2809, %v2829
      %v2851 = vadd.f32 %v2849, %v2850
      %v2852 = vtanh.pop %v2851
      %v2853 = vmul.f32 %v2848, %v2852
      %v2854 = vsel %vm1224, %v2853, %v2699
      %v2855 = vsel %vm1224, %v2851, %v2700
      %s2856 = scalar_lea.vmem [#allocation3], 16
      %2857 = vst [vmem:[%s2856] sm:$0xff] %v2854
      %v2858 = vld [vmem:[%s1231] sm:$0xff]
      %v2859 = vld [vmem:[%s1231 + $0x8] sm:$0xff]
      %v2860 = vld [vmem:[%s1231 + $0x10] sm:$0xff]
      %v2861 = vld [vmem:[%s1231 + $0x18] sm:$0xff]
      %2862 = vmatpush.msra.mxu0 %v2386
      %2863 = vmatpush.msra.mxu0 %v2382
      %2864 = vmatpush.msra.mxu0 %v2378
      %2865 = vmatpush.msra.mxu0 %v2374
      %2866 = vmatpush.msra.mxu0 %v2370
      %2867 = vmatpush.msra.mxu0 %v2366
      %2868 = vmatpush.msra.mxu0 %v2362
      %2869 = vmatpush.msra.mxu0 %v2358
      %2870 = vmatpush.msra.mxu0 %v2354
      %2871 = vmatpush.msra.mxu0 %v2350
      %2872 = vmatpush.msra.mxu0 %v2346
      %2873 = vmatpush.msra.mxu0 %v2342
      %2874 = vmatpush.msra.mxu0 %v2338
      %2875 = vmatpush.msra.mxu0 %v2334
      %2876 = vmatpush.msra.mxu0 %v2330
      %2877 = vmatpush.msra.mxu0 %v2326
      %2878 = vmatmul.f32.gmra.mxu0 %v2854
      %v2879 = vpop.f32.mrf.mxu0
      %v2880 = vadd.f32 0.0, %v2879
      %2881 = vdwg.mxu0
      %2882 = vmatpush.msra.mxu0 %v2387
      %2883 = vmatpush.msra.mxu0 %v2383
      %2884 = vmatpush.msra.mxu0 %v2379
      %2885 = vmatpush.msra.mxu0 %v2375
      %2886 = vmatpush.msra.mxu0 %v2371
      %2887 = vmatpush.msra.mxu0 %v2367
      %2888 = vmatpush.msra.mxu0 %v2363
      %2889 = vmatpush.msra.mxu0 %v2359
      %2890 = vmatpush.msra.mxu0 %v2355
      %2891 = vmatpush.msra.mxu0 %v2351
      %2892 = vmatpush.msra.mxu0 %v2347
      %2893 = vmatpush.msra.mxu0 %v2343
      %2894 = vmatpush.msra.mxu0 %v2339
      %2895 = vmatpush.msra.mxu0 %v2335
      %2896 = vmatpush.msra.mxu0 %v2331
      %2897 = vmatpush.msra.mxu0 %v2327
      %2898 = vmatmul.f32.gmra.mxu0 %v2854
      %v2899 = vpop.f32.mrf.mxu0
      %v2900 = vadd.f32 0.0, %v2899
      %2901 = vdwg.mxu0
      %2902 = vmatpush.msra.mxu0 %v2388
      %2903 = vmatpush.msra.mxu0 %v2384
      %2904 = vmatpush.msra.mxu0 %v2380
      %2905 = vmatpush.msra.mxu0 %v2376
      %2906 = vmatpush.msra.mxu0 %v2372
      %2907 = vmatpush.msra.mxu0 %v2368
      %2908 = vmatpush.msra.mxu0 %v2364
      %2909 = vmatpush.msra.mxu0 %v2360
      %2910 = vmatpush.msra.mxu0 %v2356
      %2911 = vmatpush.msra.mxu0 %v2352
      %2912 = vmatpush.msra.mxu0 %v2348
      %2913 = vmatpush.msra.mxu0 %v2344
      %2914 = vmatpush.msra.mxu0 %v2340
      %2915 = vmatpush.msra.mxu0 %v2336
      %2916 = vmatpush.msra.mxu0 %v2332
      %2917 = vmatpush.msra.mxu0 %v2328
      %2918 = vmatmul.f32.gmra.mxu0 %v2854
      %v2919 = vpop.f32.mrf.mxu0
      %v2920 = vadd.f32 0.0, %v2919
      %2921 = vdwg.mxu0
      %2922 = vmatpush.msra.mxu0 %v2389
      %2923 = vmatpush.msra.mxu0 %v2385
      %2924 = vmatpush.msra.mxu0 %v2381
      %2925 = vmatpush.msra.mxu0 %v2377
      %2926 = vmatpush.msra.mxu0 %v2373
      %2927 = vmatpush.msra.mxu0 %v2369
      %2928 = vmatpush.msra.mxu0 %v2365
      %2929 = vmatpush.msra.mxu0 %v2361
      %2930 = vmatpush.msra.mxu0 %v2357
      %2931 = vmatpush.msra.mxu0 %v2353
      %2932 = vmatpush.msra.mxu0 %v2349
      %2933 = vmatpush.msra.mxu0 %v2345
      %2934 = vmatpush.msra.mxu0 %v2341
      %2935 = vmatpush.msra.mxu0 %v2337
      %2936 = vmatpush.msra.mxu0 %v2333
      %2937 = vmatpush.msra.mxu0 %v2329
      %2938 = vmatmul.f32.gmra.mxu0 %v2854
      %v2939 = vpop.f32.mrf.mxu0
      %v2940 = vadd.f32 0.0, %v2939
      %2941 = vdwg.mxu0
      %v2942 = vadd.f32 %v2858, %v2880
      %v2943 = vadd.f32 %v2859, %v2900
      %v2944 = vadd.f32 %v2860, %v2920
      %v2945 = vadd.f32 %v2861, %v2940
      %v2946 = vxor.u32 %v2942, 2147483648
      %v2947 = vmul.f32 %v2946, 1.442695
      %v2948 = vpow.pop %v2947
      %v2949 = vadd.f32 %v2948, 1.0
      %v2950 = vrcp.pop %v2949
      %v2951 = vmul.f32 %v2949, %v2950
      %v2952 = vsub.f32 1.0, %v2951
      %v2953 = vmul.f32 %v2950, %v2952
      %v2954 = vadd.f32 %v2950, %v2953
      %vm2955 = vweird.f32 %v2949
      %vm2956 = vweird.f32 %v2950
      %vm2957 = vmor %vm2955, %vm2956
      %v2958 = vsel %vm2957, %v2950, %v2954
      %v2959 = vand.u32 2147483647, %v2949
      %vm2960 = vcmp.eq.f32.partialorder %v2959, 8.507059e+37
      %v2961 = vand.u32 %v2949, 2147483648
      %v2962 = vor.u32 1.1754944e-38, %v2961
      %v2963 = vsel %vm2960, %v2962, %v2958
      %v2964 = vmul.f32 1.0, %v2963
      %v2965 = vxor.u32 %v2943, 2147483648
      %v2966 = vmul.f32 %v2965, 1.442695
      %v2967 = vpow.pop %v2966
      %v2968 = vadd.f32 %v2967, 1.0
      %v2969 = vrcp.pop %v2968
      %v2970 = vmul.f32 %v2968, %v2969
      %v2971 = vsub.f32 1.0, %v2970
      %v2972 = vmul.f32 %v2969, %v2971
      %v2973 = vadd.f32 %v2969, %v2972
      %vm2974 = vweird.f32 %v2968
      %vm2975 = vweird.f32 %v2969
      %vm2976 = vmor %vm2974, %vm2975
      %v2977 = vsel %vm2976, %v2969, %v2973
      %v2978 = vand.u32 2147483647, %v2968
      %vm2979 = vcmp.eq.f32.partialorder %v2978, 8.507059e+37
      %v2980 = vand.u32 %v2968, 2147483648
      %v2981 = vor.u32 1.1754944e-38, %v2980
      %v2982 = vsel %vm2979, %v2981, %v2977
      %v2983 = vmul.f32 1.0, %v2982
      %v2984 = vtanh.pop %v2944
      %v2985 = vxor.u32 %v2945, 2147483648
      %v2986 = vmul.f32 %v2985, 1.442695
      %v2987 = vpow.pop %v2986
      %v2988 = vadd.f32 %v2987, 1.0
      %v2989 = vrcp.pop %v2988
      %v2990 = vmul.f32 %v2988, %v2989
      %v2991 = vsub.f32 1.0, %v2990
      %v2992 = vmul.f32 %v2989, %v2991
      %v2993 = vadd.f32 %v2989, %v2992
      %vm2994 = vweird.f32 %v2988
      %vm2995 = vweird.f32 %v2989
      %vm2996 = vmor %vm2994, %vm2995
      %v2997 = vsel %vm2996, %v2989, %v2993
      %v2998 = vand.u32 2147483647, %v2988
      %vm2999 = vcmp.eq.f32.partialorder %v2998, 8.507059e+37
      %v3000 = vand.u32 %v2988, 2147483648
      %v3001 = vor.u32 1.1754944e-38, %v3000
      %v3002 = vsel %vm2999, %v3001, %v2997
      %v3003 = vmul.f32 1.0, %v3002
      %v3004 = vmul.f32 %v2983, %v2855
      %v3005 = vmul.f32 %v2964, %v2984
      %v3006 = vadd.f32 %v3004, %v3005
      %v3007 = vtanh.pop %v3006
      %v3008 = vmul.f32 %v3003, %v3007
      %v3009 = vsel %vm1387, %v3008, %v2854
      %v3010 = vsel %vm1387, %v3006, %v2855
      %s3011 = scalar_lea.vmem [#allocation3], 24
      %3012 = vst [vmem:[%s3011] sm:$0xff] %v3009
      %v3013 = vld [vmem:[%s1394] sm:$0xff]
      %v3014 = vld [vmem:[%s1394 + $0x8] sm:$0xff]
      %v3015 = vld [vmem:[%s1394 + $0x10] sm:$0xff]
      %v3016 = vld [vmem:[%s1394 + $0x18] sm:$0xff]
      %3017 = vmatpush.msra.mxu0 %v2386
      %3018 = vmatpush.msra.mxu0 %v2382
      %3019 = vmatpush.msra.mxu0 %v2378
      %3020 = vmatpush.msra.mxu0 %v2374
      %3021 = vmatpush.msra.mxu0 %v2370
      %3022 = vmatpush.msra.mxu0 %v2366
      %3023 = vmatpush.msra.mxu0 %v2362
      %3024 = vmatpush.msra.mxu0 %v2358
      %3025 = vmatpush.msra.mxu0 %v2354
      %3026 = vmatpush.msra.mxu0 %v2350
      %3027 = vmatpush.msra.mxu0 %v2346
      %3028 = vmatpush.msra.mxu0 %v2342
      %3029 = vmatpush.msra.mxu0 %v2338
      %3030 = vmatpush.msra.mxu0 %v2334
      %3031 = vmatpush.msra.mxu0 %v2330
      %3032 = vmatpush.msra.mxu0 %v2326
      %3033 = vmatmul.f32.gmra.mxu0 %v3009
      %v3034 = vpop.f32.mrf.mxu0
      %v3035 = vadd.f32 0.0, %v3034
      %3036 = vdwg.mxu0
      %3037 = vmatpush.msra.mxu0 %v2387
      %3038 = vmatpush.msra.mxu0 %v2383
      %3039 = vmatpush.msra.mxu0 %v2379
      %3040 = vmatpush.msra.mxu0 %v2375
      %3041 = vmatpush.msra.mxu0 %v2371
      %3042 = vmatpush.msra.mxu0 %v2367
      %3043 = vmatpush.msra.mxu0 %v2363
      %3044 = vmatpush.msra.mxu0 %v2359
      %3045 = vmatpush.msra.mxu0 %v2355
      %3046 = vmatpush.msra.mxu0 %v2351
      %3047 = vmatpush.msra.mxu0 %v2347
      %3048 = vmatpush.msra.mxu0 %v2343
      %3049 = vmatpush.msra.mxu0 %v2339
      %3050 = vmatpush.msra.mxu0 %v2335
      %3051 = vmatpush.msra.mxu0 %v2331
      %3052 = vmatpush.msra.mxu0 %v2327
      %3053 = vmatmul.f32.gmra.mxu0 %v3009
      %v3054 = vpop.f32.mrf.mxu0
      %v3055 = vadd.f32 0.0, %v3054
      %3056 = vdwg.mxu0
      %3057 = vmatpush.msra.mxu0 %v2388
      %3058 = vmatpush.msra.mxu0 %v2384
      %3059 = vmatpush.msra.mxu0 %v2380
      %3060 = vmatpush.msra.mxu0 %v2376
      %3061 = vmatpush.msra.mxu0 %v2372
      %3062 = vmatpush.msra.mxu0 %v2368
      %3063 = vmatpush.msra.mxu0 %v2364
      %3064 = vmatpush.msra.mxu0 %v2360
      %3065 = vmatpush.msra.mxu0 %v2356
      %3066 = vmatpush.msra.mxu0 %v2352
      %3067 = vmatpush.msra.mxu0 %v2348
      %3068 = vmatpush.msra.mxu0 %v2344
      %3069 = vmatpush.msra.mxu0 %v2340
      %3070 = vmatpush.msra.mxu0 %v2336
      %3071 = vmatpush.msra.mxu0 %v2332
      %3072 = vmatpush.msra.mxu0 %v2328
      %3073 = vmatmul.f32.gmra.mxu0 %v3009
      %v3074 = vpop.f32.mrf.mxu0
      %v3075 = vadd.f32 0.0, %v3074
      %3076 = vdwg.mxu0
      %3077 = vmatpush.msra.mxu0 %v2389
      %3078 = vmatpush.msra.mxu0 %v2385
      %3079 = vmatpush.msra.mxu0 %v2381
      %3080 = vmatpush.msra.mxu0 %v2377
      %3081 = vmatpush.msra.mxu0 %v2373
      %3082 = vmatpush.msra.mxu0 %v2369
      %3083 = vmatpush.msra.mxu0 %v2365
      %3084 = vmatpush.msra.mxu0 %v2361
      %3085 = vmatpush.msra.mxu0 %v2357
      %3086 = vmatpush.msra.mxu0 %v2353
      %3087 = vmatpush.msra.mxu0 %v2349
      %3088 = vmatpush.msra.mxu0 %v2345
      %3089 = vmatpush.msra.mxu0 %v2341
      %3090 = vmatpush.msra.mxu0 %v2337
      %3091 = vmatpush.msra.mxu0 %v2333
      %3092 = vmatpush.msra.mxu0 %v2329
      %3093 = vmatmul.f32.gmra.mxu0 %v3009
      %v3094 = vpop.f32.mrf.mxu0
      %v3095 = vadd.f32 0.0, %v3094
      %3096 = vdwg.mxu0
      %v3097 = vadd.f32 %v3013, %v3035
      %v3098 = vadd.f32 %v3014, %v3055
      %v3099 = vadd.f32 %v3015, %v3075
      %v3100 = vadd.f32 %v3016, %v3095
      %v3101 = vxor.u32 %v3097, 2147483648
      %v3102 = vmul.f32 %v3101, 1.442695
      %v3103 = vpow.pop %v3102
      %v3104 = vadd.f32 %v3103, 1.0
      %v3105 = vrcp.pop %v3104
      %v3106 = vmul.f32 %v3104, %v3105
      %v3107 = vsub.f32 1.0, %v3106
      %v3108 = vmul.f32 %v3105, %v3107
      %v3109 = vadd.f32 %v3105, %v3108
      %vm3110 = vweird.f32 %v3104
      %vm3111 = vweird.f32 %v3105
      %vm3112 = vmor %vm3110, %vm3111
      %v3113 = vsel %vm3112, %v3105, %v3109
      %v3114 = vand.u32 2147483647, %v3104
      %vm3115 = vcmp.eq.f32.partialorder %v3114, 8.507059e+37
      %v3116 = vand.u32 %v3104, 2147483648
      %v3117 = vor.u32 1.1754944e-38, %v3116
      %v3118 = vsel %vm3115, %v3117, %v3113
      %v3119 = vmul.f32 1.0, %v3118
      %v3120 = vxor.u32 %v3098, 2147483648
      %v3121 = vmul.f32 %v3120, 1.442695
      %v3122 = vpow.pop %v3121
      %v3123 = vadd.f32 %v3122, 1.0
      %v3124 = vrcp.pop %v3123
      %v3125 = vmul.f32 %v3123, %v3124
      %v3126 = vsub.f32 1.0, %v3125
      %v3127 = vmul.f32 %v3124, %v3126
      %v3128 = vadd.f32 %v3124, %v3127
      %vm3129 = vweird.f32 %v3123
      %vm3130 = vweird.f32 %v3124
      %vm3131 = vmor %vm3129, %vm3130
      %v3132 = vsel %vm3131, %v3124, %v3128
      %v3133 = vand.u32 2147483647, %v3123
      %vm3134 = vcmp.eq.f32.partialorder %v3133, 8.507059e+37
      %v3135 = vand.u32 %v3123, 2147483648
      %v3136 = vor.u32 1.1754944e-38, %v3135
      %v3137 = vsel %vm3134, %v3136, %v3132
      %v3138 = vmul.f32 1.0, %v3137
      %v3139 = vtanh.pop %v3099
      %v3140 = vxor.u32 %v3100, 2147483648
      %v3141 = vmul.f32 %v3140, 1.442695
      %v3142 = vpow.pop %v3141
      %v3143 = vadd.f32 %v3142, 1.0
      %v3144 = vrcp.pop %v3143
      %v3145 = vmul.f32 %v3143, %v3144
      %v3146 = vsub.f32 1.0, %v3145
      %v3147 = vmul.f32 %v3144, %v3146
      %v3148 = vadd.f32 %v3144, %v3147
      %vm3149 = vweird.f32 %v3143
      %vm3150 = vweird.f32 %v3144
      %vm3151 = vmor %vm3149, %vm3150
      %v3152 = vsel %vm3151, %v3144, %v3148
      %v3153 = vand.u32 2147483647, %v3143
      %vm3154 = vcmp.eq.f32.partialorder %v3153, 8.507059e+37
      %v3155 = vand.u32 %v3143, 2147483648
      %v3156 = vor.u32 1.1754944e-38, %v3155
      %v3157 = vsel %vm3154, %v3156, %v3152
      %v3158 = vmul.f32 1.0, %v3157
      %v3159 = vmul.f32 %v3138, %v3010
      %v3160 = vmul.f32 %v3119, %v3139
      %v3161 = vadd.f32 %v3159, %v3160
      %v3162 = vtanh.pop %v3161
      %v3163 = vmul.f32 %v3158, %v3162
      %v3164 = vsel %vm1550, %v3163, %v3009
      %v3165 = vsel %vm1550, %v3161, %v3010
      %s3166 = scalar_lea.vmem [#allocation3], 32
      %3167 = vst [vmem:[%s3166] sm:$0xff] %v3164
      %v3168 = vld [vmem:[%s1557] sm:$0xff]
      %v3169 = vld [vmem:[%s1557 + $0x8] sm:$0xff]
      %v3170 = vld [vmem:[%s1557 + $0x10] sm:$0xff]
      %v3171 = vld [vmem:[%s1557 + $0x18] sm:$0xff]
      %3172 = vmatpush.msra.mxu0 %v2386
      %3173 = vmatpush.msra.mxu0 %v2382
      %3174 = vmatpush.msra.mxu0 %v2378
      %3175 = vmatpush.msra.mxu0 %v2374
      %3176 = vmatpush.msra.mxu0 %v2370
      %3177 = vmatpush.msra.mxu0 %v2366
      %3178 = vmatpush.msra.mxu0 %v2362
      %3179 = vmatpush.msra.mxu0 %v2358
      %3180 = vmatpush.msra.mxu0 %v2354
      %3181 = vmatpush.msra.mxu0 %v2350
      %3182 = vmatpush.msra.mxu0 %v2346
      %3183 = vmatpush.msra.mxu0 %v2342
      %3184 = vmatpush.msra.mxu0 %v2338
      %3185 = vmatpush.msra.mxu0 %v2334
      %3186 = vmatpush.msra.mxu0 %v2330
      %3187 = vmatpush.msra.mxu0 %v2326
      %3188 = vmatmul.f32.gmra.mxu0 %v3164
      %v3189 = vpop.f32.mrf.mxu0
      %v3190 = vadd.f32 0.0, %v3189
      %3191 = vdwg.mxu0
      %3192 = vmatpush.msra.mxu0 %v2387
      %3193 = vmatpush.msra.mxu0 %v2383
      %3194 = vmatpush.msra.mxu0 %v2379
      %3195 = vmatpush.msra.mxu0 %v2375
      %3196 = vmatpush.msra.mxu0 %v2371
      %3197 = vmatpush.msra.mxu0 %v2367
      %3198 = vmatpush.msra.mxu0 %v2363
      %3199 = vmatpush.msra.mxu0 %v2359
      %3200 = vmatpush.msra.mxu0 %v2355
      %3201 = vmatpush.msra.mxu0 %v2351
      %3202 = vmatpush.msra.mxu0 %v2347
      %3203 = vmatpush.msra.mxu0 %v2343
      %3204 = vmatpush.msra.mxu0 %v2339
      %3205 = vmatpush.msra.mxu0 %v2335
      %3206 = vmatpush.msra.mxu0 %v2331
      %3207 = vmatpush.msra.mxu0 %v2327
      %3208 = vmatmul.f32.gmra.mxu0 %v3164
      %v3209 = vpop.f32.mrf.mxu0
      %v3210 = vadd.f32 0.0, %v3209
      %3211 = vdwg.mxu0
      %3212 = vmatpush.msra.mxu0 %v2388
      %3213 = vmatpush.msra.mxu0 %v2384
      %3214 = vmatpush.msra.mxu0 %v2380
      %3215 = vmatpush.msra.mxu0 %v2376
      %3216 = vmatpush.msra.mxu0 %v2372
      %3217 = vmatpush.msra.mxu0 %v2368
      %3218 = vmatpush.msra.mxu0 %v2364
      %3219 = vmatpush.msra.mxu0 %v2360
      %3220 = vmatpush.msra.mxu0 %v2356
      %3221 = vmatpush.msra.mxu0 %v2352
      %3222 = vmatpush.msra.mxu0 %v2348
      %3223 = vmatpush.msra.mxu0 %v2344
      %3224 = vmatpush.msra.mxu0 %v2340
      %3225 = vmatpush.msra.mxu0 %v2336
      %3226 = vmatpush.msra.mxu0 %v2332
      %3227 = vmatpush.msra.mxu0 %v2328
      %3228 = vmatmul.f32.gmra.mxu0 %v3164
      %v3229 = vpop.f32.mrf.mxu0
      %v3230 = vadd.f32 0.0, %v3229
      %3231 = vdwg.mxu0
      %3232 = vmatpush.msra.mxu0 %v2389
      %3233 = vmatpush.msra.mxu0 %v2385
      %3234 = vmatpush.msra.mxu0 %v2381
      %3235 = vmatpush.msra.mxu0 %v2377
      %3236 = vmatpush.msra.mxu0 %v2373
      %3237 = vmatpush.msra.mxu0 %v2369
      %3238 = vmatpush.msra.mxu0 %v2365
      %3239 = vmatpush.msra.mxu0 %v2361
      %3240 = vmatpush.msra.mxu0 %v2357
      %3241 = vmatpush.msra.mxu0 %v2353
      %3242 = vmatpush.msra.mxu0 %v2349
      %3243 = vmatpush.msra.mxu0 %v2345
      %3244 = vmatpush.msra.mxu0 %v2341
      %3245 = vmatpush.msra.mxu0 %v2337
      %3246 = vmatpush.msra.mxu0 %v2333
      %3247 = vmatpush.msra.mxu0 %v2329
      %3248 = vmatmul.f32.gmra.mxu0 %v3164
      %v3249 = vpop.f32.mrf.mxu0
      %v3250 = vadd.f32 0.0, %v3249
      %3251 = vdwg.mxu0
      %v3252 = vadd.f32 %v3168, %v3190
      %v3253 = vadd.f32 %v3169, %v3210
      %v3254 = vadd.f32 %v3170, %v3230
      %v3255 = vadd.f32 %v3171, %v3250
      %v3256 = vxor.u32 %v3252, 2147483648
      %v3257 = vmul.f32 %v3256, 1.442695
      %v3258 = vpow.pop %v3257
      %v3259 = vadd.f32 %v3258, 1.0
      %v3260 = vrcp.pop %v3259
      %v3261 = vmul.f32 %v3259, %v3260
      %v3262 = vsub.f32 1.0, %v3261
      %v3263 = vmul.f32 %v3260, %v3262
      %v3264 = vadd.f32 %v3260, %v3263
      %vm3265 = vweird.f32 %v3259
      %vm3266 = vweird.f32 %v3260
      %vm3267 = vmor %vm3265, %vm3266
      %v3268 = vsel %vm3267, %v3260, %v3264
      %v3269 = vand.u32 2147483647, %v3259
      %vm3270 = vcmp.eq.f32.partialorder %v3269, 8.507059e+37
      %v3271 = vand.u32 %v3259, 2147483648
      %v3272 = vor.u32 1.1754944e-38, %v3271
      %v3273 = vsel %vm3270, %v3272, %v3268
      %v3274 = vmul.f32 1.0, %v3273
      %v3275 = vxor.u32 %v3253, 2147483648
      %v3276 = vmul.f32 %v3275, 1.442695
      %v3277 = vpow.pop %v3276
      %v3278 = vadd.f32 %v3277, 1.0
      %v3279 = vrcp.pop %v3278
      %v3280 = vmul.f32 %v3278, %v3279
      %v3281 = vsub.f32 1.0, %v3280
      %v3282 = vmul.f32 %v3279, %v3281
      %v3283 = vadd.f32 %v3279, %v3282
      %vm3284 = vweird.f32 %v3278
      %vm3285 = vweird.f32 %v3279
      %vm3286 = vmor %vm3284, %vm3285
      %v3287 = vsel %vm3286, %v3279, %v3283
      %v3288 = vand.u32 2147483647, %v3278
      %vm3289 = vcmp.eq.f32.partialorder %v3288, 8.507059e+37
      %v3290 = vand.u32 %v3278, 2147483648
      %v3291 = vor.u32 1.1754944e-38, %v3290
      %v3292 = vsel %vm3289, %v3291, %v3287
      %v3293 = vmul.f32 1.0, %v3292
      %v3294 = vtanh.pop %v3254
      %v3295 = vxor.u32 %v3255, 2147483648
      %v3296 = vmul.f32 %v3295, 1.442695
      %v3297 = vpow.pop %v3296
      %v3298 = vadd.f32 %v3297, 1.0
      %v3299 = vrcp.pop %v3298
      %v3300 = vmul.f32 %v3298, %v3299
      %v3301 = vsub.f32 1.0, %v3300
      %v3302 = vmul.f32 %v3299, %v3301
      %v3303 = vadd.f32 %v3299, %v3302
      %vm3304 = vweird.f32 %v3298
      %vm3305 = vweird.f32 %v3299
      %vm3306 = vmor %vm3304, %vm3305
      %v3307 = vsel %vm3306, %v3299, %v3303
      %v3308 = vand.u32 2147483647, %v3298
      %vm3309 = vcmp.eq.f32.partialorder %v3308, 8.507059e+37
      %v3310 = vand.u32 %v3298, 2147483648
      %v3311 = vor.u32 1.1754944e-38, %v3310
      %v3312 = vsel %vm3309, %v3311, %v3307
      %v3313 = vmul.f32 1.0, %v3312
      %v3314 = vmul.f32 %v3293, %v3165
      %v3315 = vmul.f32 %v3274, %v3294
      %v3316 = vadd.f32 %v3314, %v3315
      %v3317 = vtanh.pop %v3316
      %v3318 = vmul.f32 %v3313, %v3317
      %v3319 = vsel %vm1713, %v3318, %v3164
      %v3320 = vsel %vm1713, %v3316, %v3165
      %s3321 = scalar_lea.vmem [#allocation3], 40
      %3322 = vst [vmem:[%s3321] sm:$0xff] %v3319
      %v3323 = vld [vmem:[%s1720] sm:$0xff]
      %v3324 = vld [vmem:[%s1720 + $0x8] sm:$0xff]
      %v3325 = vld [vmem:[%s1720 + $0x10] sm:$0xff]
      %v3326 = vld [vmem:[%s1720 + $0x18] sm:$0xff]
      %3327 = vmatpush.msra.mxu0 %v2386
      %3328 = vmatpush.msra.mxu0 %v2382
      %3329 = vmatpush.msra.mxu0 %v2378
      %3330 = vmatpush.msra.mxu0 %v2374
      %3331 = vmatpush.msra.mxu0 %v2370
      %3332 = vmatpush.msra.mxu0 %v2366
      %3333 = vmatpush.msra.mxu0 %v2362
      %3334 = vmatpush.msra.mxu0 %v2358
      %3335 = vmatpush.msra.mxu0 %v2354
      %3336 = vmatpush.msra.mxu0 %v2350
      %3337 = vmatpush.msra.mxu0 %v2346
      %3338 = vmatpush.msra.mxu0 %v2342
      %3339 = vmatpush.msra.mxu0 %v2338
      %3340 = vmatpush.msra.mxu0 %v2334
      %3341 = vmatpush.msra.mxu0 %v2330
      %3342 = vmatpush.msra.mxu0 %v2326
      %3343 = vmatmul.f32.gmra.mxu0 %v3319
      %v3344 = vpop.f32.mrf.mxu0
      %v3345 = vadd.f32 0.0, %v3344
      %3346 = vdwg.mxu0
      %3347 = vmatpush.msra.mxu0 %v2387
      %3348 = vmatpush.msra.mxu0 %v2383
      %3349 = vmatpush.msra.mxu0 %v2379
      %3350 = vmatpush.msra.mxu0 %v2375
      %3351 = vmatpush.msra.mxu0 %v2371
      %3352 = vmatpush.msra.mxu0 %v2367
      %3353 = vmatpush.msra.mxu0 %v2363
      %3354 = vmatpush.msra.mxu0 %v2359
      %3355 = vmatpush.msra.mxu0 %v2355
      %3356 = vmatpush.msra.mxu0 %v2351
      %3357 = vmatpush.msra.mxu0 %v2347
      %3358 = vmatpush.msra.mxu0 %v2343
      %3359 = vmatpush.msra.mxu0 %v2339
      %3360 = vmatpush.msra.mxu0 %v2335
      %3361 = vmatpush.msra.mxu0 %v2331
      %3362 = vmatpush.msra.mxu0 %v2327
      %3363 = vmatmul.f32.gmra.mxu0 %v3319
      %v3364 = vpop.f32.mrf.mxu0
      %v3365 = vadd.f32 0.0, %v3364
      %3366 = vdwg.mxu0
      %3367 = vmatpush.msra.mxu0 %v2388
      %3368 = vmatpush.msra.mxu0 %v2384
      %3369 = vmatpush.msra.mxu0 %v2380
      %3370 = vmatpush.msra.mxu0 %v2376
      %3371 = vmatpush.msra.mxu0 %v2372
      %3372 = vmatpush.msra.mxu0 %v2368
      %3373 = vmatpush.msra.mxu0 %v2364
      %3374 = vmatpush.msra.mxu0 %v2360
      %3375 = vmatpush.msra.mxu0 %v2356
      %3376 = vmatpush.msra.mxu0 %v2352
      %3377 = vmatpush.msra.mxu0 %v2348
      %3378 = vmatpush.msra.mxu0 %v2344
      %3379 = vmatpush.msra.mxu0 %v2340
      %3380 = vmatpush.msra.mxu0 %v2336
      %3381 = vmatpush.msra.mxu0 %v2332
      %3382 = vmatpush.msra.mxu0 %v2328
      %3383 = vmatmul.f32.gmra.mxu0 %v3319
      %v3384 = vpop.f32.mrf.mxu0
      %v3385 = vadd.f32 0.0, %v3384
      %3386 = vdwg.mxu0
      %3387 = vmatpush.msra.mxu0 %v2389
      %3388 = vmatpush.msra.mxu0 %v2385
      %3389 = vmatpush.msra.mxu0 %v2381
      %3390 = vmatpush.msra.mxu0 %v2377
      %3391 = vmatpush.msra.mxu0 %v2373
      %3392 = vmatpush.msra.mxu0 %v2369
      %3393 = vmatpush.msra.mxu0 %v2365
      %3394 = vmatpush.msra.mxu0 %v2361
      %3395 = vmatpush.msra.mxu0 %v2357
      %3396 = vmatpush.msra.mxu0 %v2353
      %3397 = vmatpush.msra.mxu0 %v2349
      %3398 = vmatpush.msra.mxu0 %v2345
      %3399 = vmatpush.msra.mxu0 %v2341
      %3400 = vmatpush.msra.mxu0 %v2337
      %3401 = vmatpush.msra.mxu0 %v2333
      %3402 = vmatpush.msra.mxu0 %v2329
      %3403 = vmatmul.f32.gmra.mxu0 %v3319
      %v3404 = vpop.f32.mrf.mxu0
      %v3405 = vadd.f32 0.0, %v3404
      %3406 = vdwg.mxu0
      %v3407 = vadd.f32 %v3323, %v3345
      %v3408 = vadd.f32 %v3324, %v3365
      %v3409 = vadd.f32 %v3325, %v3385
      %v3410 = vadd.f32 %v3326, %v3405
      %v3411 = vxor.u32 %v3407, 2147483648
      %v3412 = vmul.f32 %v3411, 1.442695
      %v3413 = vpow.pop %v3412
      %v3414 = vadd.f32 %v3413, 1.0
      %v3415 = vrcp.pop %v3414
      %v3416 = vmul.f32 %v3414, %v3415
      %v3417 = vsub.f32 1.0, %v3416
      %v3418 = vmul.f32 %v3415, %v3417
      %v3419 = vadd.f32 %v3415, %v3418
      %vm3420 = vweird.f32 %v3414
      %vm3421 = vweird.f32 %v3415
      %vm3422 = vmor %vm3420, %vm3421
      %v3423 = vsel %vm3422, %v3415, %v3419
      %v3424 = vand.u32 2147483647, %v3414
      %vm3425 = vcmp.eq.f32.partialorder %v3424, 8.507059e+37
      %v3426 = vand.u32 %v3414, 2147483648
      %v3427 = vor.u32 1.1754944e-38, %v3426
      %v3428 = vsel %vm3425, %v3427, %v3423
      %v3429 = vmul.f32 1.0, %v3428
      %v3430 = vxor.u32 %v3408, 2147483648
      %v3431 = vmul.f32 %v3430, 1.442695
      %v3432 = vpow.pop %v3431
      %v3433 = vadd.f32 %v3432, 1.0
      %v3434 = vrcp.pop %v3433
      %v3435 = vmul.f32 %v3433, %v3434
      %v3436 = vsub.f32 1.0, %v3435
      %v3437 = vmul.f32 %v3434, %v3436
      %v3438 = vadd.f32 %v3434, %v3437
      %vm3439 = vweird.f32 %v3433
      %vm3440 = vweird.f32 %v3434
      %vm3441 = vmor %vm3439, %vm3440
      %v3442 = vsel %vm3441, %v3434, %v3438
      %v3443 = vand.u32 2147483647, %v3433
      %vm3444 = vcmp.eq.f32.partialorder %v3443, 8.507059e+37
      %v3445 = vand.u32 %v3433, 2147483648
      %v3446 = vor.u32 1.1754944e-38, %v3445
      %v3447 = vsel %vm3444, %v3446, %v3442
      %v3448 = vmul.f32 1.0, %v3447
      %v3449 = vtanh.pop %v3409
      %v3450 = vxor.u32 %v3410, 2147483648
      %v3451 = vmul.f32 %v3450, 1.442695
      %v3452 = vpow.pop %v3451
      %v3453 = vadd.f32 %v3452, 1.0
      %v3454 = vrcp.pop %v3453
      %v3455 = vmul.f32 %v3453, %v3454
      %v3456 = vsub.f32 1.0, %v3455
      %v3457 = vmul.f32 %v3454, %v3456
      %v3458 = vadd.f32 %v3454, %v3457
      %vm3459 = vweird.f32 %v3453
      %vm3460 = vweird.f32 %v3454
      %vm3461 = vmor %vm3459, %vm3460
      %v3462 = vsel %vm3461, %v3454, %v3458
      %v3463 = vand.u32 2147483647, %v3453
      %vm3464 = vcmp.eq.f32.partialorder %v3463, 8.507059e+37
      %v3465 = vand.u32 %v3453, 2147483648
      %v3466 = vor.u32 1.1754944e-38, %v3465
      %v3467 = vsel %vm3464, %v3466, %v3462
      %v3468 = vmul.f32 1.0, %v3467
      %v3469 = vmul.f32 %v3448, %v3320
      %v3470 = vmul.f32 %v3429, %v3449
      %v3471 = vadd.f32 %v3469, %v3470
      %v3472 = vtanh.pop %v3471
      %v3473 = vmul.f32 %v3468, %v3472
      %v3474 = vsel %vm1876, %v3473, %v3319
      %v3475 = vsel %vm1876, %v3471, %v3320
      %s3476 = scalar_lea.vmem [#allocation3], 48
      %3477 = vst [vmem:[%s3476] sm:$0xff] %v3474
      %v3478 = vld [vmem:[%s1883] sm:$0xff]
      %v3479 = vld [vmem:[%s1883 + $0x8] sm:$0xff]
      %v3480 = vld [vmem:[%s1883 + $0x10] sm:$0xff]
      %v3481 = vld [vmem:[%s1883 + $0x18] sm:$0xff]
      %3482 = vmatpush.msra.mxu0 %v2386
      %3483 = vmatpush.msra.mxu0 %v2382
      %3484 = vmatpush.msra.mxu0 %v2378
      %3485 = vmatpush.msra.mxu0 %v2374
      %3486 = vmatpush.msra.mxu0 %v2370
      %3487 = vmatpush.msra.mxu0 %v2366
      %3488 = vmatpush.msra.mxu0 %v2362
      %3489 = vmatpush.msra.mxu0 %v2358
      %3490 = vmatpush.msra.mxu0 %v2354
      %3491 = vmatpush.msra.mxu0 %v2350
      %3492 = vmatpush.msra.mxu0 %v2346
      %3493 = vmatpush.msra.mxu0 %v2342
      %3494 = vmatpush.msra.mxu0 %v2338
      %3495 = vmatpush.msra.mxu0 %v2334
      %3496 = vmatpush.msra.mxu0 %v2330
      %3497 = vmatpush.msra.mxu0 %v2326
      %3498 = vmatmul.f32.gmra.mxu0 %v3474
      %v3499 = vpop.f32.mrf.mxu0
      %v3500 = vadd.f32 0.0, %v3499
      %3501 = vdwg.mxu0
      %3502 = vmatpush.msra.mxu0 %v2387
      %3503 = vmatpush.msra.mxu0 %v2383
      %3504 = vmatpush.msra.mxu0 %v2379
      %3505 = vmatpush.msra.mxu0 %v2375
      %3506 = vmatpush.msra.mxu0 %v2371
      %3507 = vmatpush.msra.mxu0 %v2367
      %3508 = vmatpush.msra.mxu0 %v2363
      %3509 = vmatpush.msra.mxu0 %v2359
      %3510 = vmatpush.msra.mxu0 %v2355
      %3511 = vmatpush.msra.mxu0 %v2351
      %3512 = vmatpush.msra.mxu0 %v2347
      %3513 = vmatpush.msra.mxu0 %v2343
      %3514 = vmatpush.msra.mxu0 %v2339
      %3515 = vmatpush.msra.mxu0 %v2335
      %3516 = vmatpush.msra.mxu0 %v2331
      %3517 = vmatpush.msra.mxu0 %v2327
      %3518 = vmatmul.f32.gmra.mxu0 %v3474
      %v3519 = vpop.f32.mrf.mxu0
      %v3520 = vadd.f32 0.0, %v3519
      %3521 = vdwg.mxu0
      %3522 = vmatpush.msra.mxu0 %v2388
      %3523 = vmatpush.msra.mxu0 %v2384
      %3524 = vmatpush.msra.mxu0 %v2380
      %3525 = vmatpush.msra.mxu0 %v2376
      %3526 = vmatpush.msra.mxu0 %v2372
      %3527 = vmatpush.msra.mxu0 %v2368
      %3528 = vmatpush.msra.mxu0 %v2364
      %3529 = vmatpush.msra.mxu0 %v2360
      %3530 = vmatpush.msra.mxu0 %v2356
      %3531 = vmatpush.msra.mxu0 %v2352
      %3532 = vmatpush.msra.mxu0 %v2348
      %3533 = vmatpush.msra.mxu0 %v2344
      %3534 = vmatpush.msra.mxu0 %v2340
      %3535 = vmatpush.msra.mxu0 %v2336
      %3536 = vmatpush.msra.mxu0 %v2332
      %3537 = vmatpush.msra.mxu0 %v2328
      %3538 = vmatmul.f32.gmra.mxu0 %v3474
      %v3539 = vpop.f32.mrf.mxu0
      %v3540 = vadd.f32 0.0, %v3539
      %3541 = vdwg.mxu0
      %3542 = vmatpush.msra.mxu0 %v2389
      %3543 = vmatpush.msra.mxu0 %v2385
      %3544 = vmatpush.msra.mxu0 %v2381
      %3545 = vmatpush.msra.mxu0 %v2377
      %3546 = vmatpush.msra.mxu0 %v2373
      %3547 = vmatpush.msra.mxu0 %v2369
      %3548 = vmatpush.msra.mxu0 %v2365
      %3549 = vmatpush.msra.mxu0 %v2361
      %3550 = vmatpush.msra.mxu0 %v2357
      %3551 = vmatpush.msra.mxu0 %v2353
      %3552 = vmatpush.msra.mxu0 %v2349
      %3553 = vmatpush.msra.mxu0 %v2345
      %3554 = vmatpush.msra.mxu0 %v2341
      %3555 = vmatpush.msra.mxu0 %v2337
      %3556 = vmatpush.msra.mxu0 %v2333
      %3557 = vmatpush.msra.mxu0 %v2329
      %3558 = vmatmul.f32.gmra.mxu0 %v3474
      %v3559 = vpop.f32.mrf.mxu0
      %v3560 = vadd.f32 0.0, %v3559
      %3561 = vdwg.mxu0
      %v3562 = vadd.f32 %v3478, %v3500
      %v3563 = vadd.f32 %v3479, %v3520
      %v3564 = vadd.f32 %v3480, %v3540
      %v3565 = vadd.f32 %v3481, %v3560
      %v3566 = vxor.u32 %v3562, 2147483648
      %v3567 = vmul.f32 %v3566, 1.442695
      %v3568 = vpow.pop %v3567
      %v3569 = vadd.f32 %v3568, 1.0
      %v3570 = vrcp.pop %v3569
      %v3571 = vmul.f32 %v3569, %v3570
      %v3572 = vsub.f32 1.0, %v3571
      %v3573 = vmul.f32 %v3570, %v3572
      %v3574 = vadd.f32 %v3570, %v3573
      %vm3575 = vweird.f32 %v3569
      %vm3576 = vweird.f32 %v3570
      %vm3577 = vmor %vm3575, %vm3576
      %v3578 = vsel %vm3577, %v3570, %v3574
      %v3579 = vand.u32 2147483647, %v3569
      %vm3580 = vcmp.eq.f32.partialorder %v3579, 8.507059e+37
      %v3581 = vand.u32 %v3569, 2147483648
      %v3582 = vor.u32 1.1754944e-38, %v3581
      %v3583 = vsel %vm3580, %v3582, %v3578
      %v3584 = vmul.f32 1.0, %v3583
      %v3585 = vxor.u32 %v3563, 2147483648
      %v3586 = vmul.f32 %v3585, 1.442695
      %v3587 = vpow.pop %v3586
      %v3588 = vadd.f32 %v3587, 1.0
      %v3589 = vrcp.pop %v3588
      %v3590 = vmul.f32 %v3588, %v3589
      %v3591 = vsub.f32 1.0, %v3590
      %v3592 = vmul.f32 %v3589, %v3591
      %v3593 = vadd.f32 %v3589, %v3592
      %vm3594 = vweird.f32 %v3588
      %vm3595 = vweird.f32 %v3589
      %vm3596 = vmor %vm3594, %vm3595
      %v3597 = vsel %vm3596, %v3589, %v3593
      %v3598 = vand.u32 2147483647, %v3588
      %vm3599 = vcmp.eq.f32.partialorder %v3598, 8.507059e+37
      %v3600 = vand.u32 %v3588, 2147483648
      %v3601 = vor.u32 1.1754944e-38, %v3600
      %v3602 = vsel %vm3599, %v3601, %v3597
      %v3603 = vmul.f32 1.0, %v3602
      %v3604 = vtanh.pop %v3564
      %v3605 = vxor.u32 %v3565, 2147483648
      %v3606 = vmul.f32 %v3605, 1.442695
      %v3607 = vpow.pop %v3606
      %v3608 = vadd.f32 %v3607, 1.0
      %v3609 = vrcp.pop %v3608
      %v3610 = vmul.f32 %v3608, %v3609
      %v3611 = vsub.f32 1.0, %v3610
      %v3612 = vmul.f32 %v3609, %v3611
      %v3613 = vadd.f32 %v3609, %v3612
      %vm3614 = vweird.f32 %v3608
      %vm3615 = vweird.f32 %v3609
      %vm3616 = vmor %vm3614, %vm3615
      %v3617 = vsel %vm3616, %v3609, %v3613
      %v3618 = vand.u32 2147483647, %v3608
      %vm3619 = vcmp.eq.f32.partialorder %v3618, 8.507059e+37
      %v3620 = vand.u32 %v3608, 2147483648
      %v3621 = vor.u32 1.1754944e-38, %v3620
      %v3622 = vsel %vm3619, %v3621, %v3617
      %v3623 = vmul.f32 1.0, %v3622
      %v3624 = vmul.f32 %v3603, %v3475
      %v3625 = vmul.f32 %v3584, %v3604
      %v3626 = vadd.f32 %v3624, %v3625
      %v3627 = vtanh.pop %v3626
      %v3628 = vmul.f32 %v3623, %v3627
      %v3629 = vsel %vm2039, %v3628, %v3474
      %v3630 = vsel %vm2039, %v3626, %v3475
      %s3631 = scalar_lea.vmem [#allocation3], 56
      %3632 = vst [vmem:[%s3631] sm:$0xff] %v3629
      %3633 = vst [vmem:[%s2390] sm:$0xff] %v3629
      %3634 = vst [vmem:[%s2392] sm:$0xff] %v3630
      %v3635 = vld [vmem:[#allocation3] sm:$0xff]
      %v3636 = vld [vmem:[#allocation3 + $0x8] sm:$0xff]
      %v3637 = vld [vmem:[#allocation3 + $0x10] sm:$0xff]
      %v3638 = vld [vmem:[#allocation3 + $0x18] sm:$0xff]
      %v3639 = vld [vmem:[#allocation3 + $0x20] sm:$0xff]
      %v3640 = vld [vmem:[#allocation3 + $0x28] sm:$0xff]
      %v3641 = vld [vmem:[#allocation3 + $0x30] sm:$0xff]
      %v3642 = vld [vmem:[#allocation3 + $0x38] sm:$0xff]
      %v3643 = vld [vmem:[%s7] sm:$0xff]
      %v3644 = vld [vmem:[%s7 + $0x8] sm:$0xff]
      %v3645 = vld [vmem:[%s7 + $0x10] sm:$0xff]
      %v3646 = vld [vmem:[%s7 + $0x18] sm:$0xff]
      %v3647 = vld [vmem:[%s7 + $0x20] sm:$0xff]
      %v3648 = vld [vmem:[%s7 + $0x28] sm:$0xff]
      %v3649 = vld [vmem:[%s7 + $0x30] sm:$0xff]
      %v3650 = vld [vmem:[%s7 + $0x38] sm:$0xff]
      %v3651 = vld [vmem:[%s7 + $0x40] sm:$0xff]
      %v3652 = vld [vmem:[%s7 + $0x48] sm:$0xff]
      %v3653 = vld [vmem:[%s7 + $0x50] sm:$0xff]
      %v3654 = vld [vmem:[%s7 + $0x58] sm:$0xff]
      %v3655 = vld [vmem:[%s7 + $0x60] sm:$0xff]
      %v3656 = vld [vmem:[%s7 + $0x68] sm:$0xff]
      %v3657 = vld [vmem:[%s7 + $0x70] sm:$0xff]
      %v3658 = vld [vmem:[%s7 + $0x78] sm:$0xff]
      %v3659 = vld [vmem:[%s8] sm:$0x1]
      %v3661 = vperm.slane %v3659, 0
      %3663 = vmatpush.msra.mxu0 %v3658
      %3664 = vmatpush.msra.mxu0 %v3657
      %3665 = vmatpush.msra.mxu0 %v3656
      %3666 = vmatpush.msra.mxu0 %v3655
      %3667 = vmatpush.msra.mxu0 %v3654
      %3668 = vmatpush.msra.mxu0 %v3653
      %3669 = vmatpush.msra.mxu0 %v3652
      %3670 = vmatpush.msra.mxu0 %v3651
      %3671 = vmatpush.msra.mxu0 %v3650
      %3672 = vmatpush.msra.mxu0 %v3649
      %3673 = vmatpush.msra.mxu0 %v3648
      %3674 = vmatpush.msra.mxu0 %v3647
      %3675 = vmatpush.msra.mxu0 %v3646
      %3676 = vmatpush.msra.mxu0 %v3645
      %3677 = vmatpush.msra.mxu0 %v3644
      %3678 = vmatpush.msra.mxu0 %v3643
      %3679 = vmatmul.f32.gmra.mxu0 %v3635
      %v3680 = vpop.f32.mrf.mxu0
      %v3681 = vadd.f32 %v3661, %v3680
      %3682 = vmatmul.f32.gmra.mxu0 %v3636
      %v3683 = vpop.f32.mrf.mxu0
      %v3684 = vadd.f32 %v3661, %v3683
      %3685 = vmatmul.f32.gmra.mxu0 %v3637
      %v3686 = vpop.f32.mrf.mxu0
      %v3687 = vadd.f32 %v3661, %v3686
      %3688 = vmatmul.f32.gmra.mxu0 %v3638
      %v3689 = vpop.f32.mrf.mxu0
      %v3690 = vadd.f32 %v3661, %v3689
      %3691 = vmatmul.f32.gmra.mxu0 %v3639
      %v3692 = vpop.f32.mrf.mxu0
      %v3693 = vadd.f32 %v3661, %v3692
      %3694 = vmatmul.f32.gmra.mxu0 %v3640
      %v3695 = vpop.f32.mrf.mxu0
      %v3696 = vadd.f32 %v3661, %v3695
      %3697 = vmatmul.f32.gmra.mxu0 %v3641
      %v3698 = vpop.f32.mrf.mxu0
      %v3699 = vadd.f32 %v3661, %v3698
      %3700 = vmatmul.f32.gmra.mxu0 %v3642
      %v3701 = vpop.f32.mrf.mxu0
      %v3702 = vadd.f32 %v3661, %v3701
      %3703 = vdwg.mxu0
      %3704 = vst [vmem:[%s383] sm:$0xff] %v3681
      %3705 = vst [vmem:[%s383 + $0x8] sm:$0xff] %v3684
      %3706 = vst [vmem:[%s383 + $0x10] sm:$0xff] %v3687
      %3707 = vst [vmem:[%s383 + $0x18] sm:$0xff] %v3690
      %3708 = vst [vmem:[%s383 + $0x20] sm:$0xff] %v3693
      %3709 = vst [vmem:[%s383 + $0x28] sm:$0xff] %v3696
      %3710 = vst [vmem:[%s383 + $0x30] sm:$0xff] %v3699
      %3711 = vst [vmem:[%s383 + $0x38] sm:$0xff] %v3702
      %v3712 = vld [vmem:[#allocation5] sm:$0xff]
      %v3713 = vld [vmem:[#allocation5 + $0x8] sm:$0xff]
      %3714 = vst [vmem:[%s10] sm:$0xff] %v3712
      %3715 = vst [vmem:[%s10 + $0x8] sm:$0xff] %v3713
      %v3716 = vld [vmem:[#allocation6] sm:$0xff]
      %v3717 = vld [vmem:[#allocation6 + $0x8] sm:$0xff]
      %3718 = vst [vmem:[%s11] sm:$0xff] %v3716
      %3719 = vst [vmem:[%s11 + $0x8] sm:$0xff] %v3717
      %s3720 = smul.u32 8, %s23
      %p3721 = scmp.lt.s32.totalorder %s3720, 15
      %s3722 = scalar_select %p3721, %s3720, 15
      %s3723 = smul.addr %s3722, 8
      %s3724 = scalar_lea.vmem %s9, %s3723
      // Predicated region
      $region61: #{rnn_forward.1} parent=55 // pred_check
        %p3725 = pneg %p235
      $region62: #{rnn_forward.1} parent=55 // pred_check_branch
        %3727 = sbr.rel (%p3725) target = $region64
      $region63: #{rnn_forward.1} parent=55 // pred_region
        %s3728 = smul.u32 8, %s23
      $region64: #{rnn_forward.1} parent=55 // pred_fallthru
        _
      // Predicated region
      $region65: #{rnn_forward.1} parent=55 // pred_check
        %p3729 = pneg %p256
      $region66: #{rnn_forward.1} parent=55 // pred_check_branch
        %3731 = sbr.rel (%p3729) target = $region68
      $region67: #{rnn_forward.1} parent=55 // pred_region
        _
      $region68: #{rnn_forward.1} parent=55 // pred_fallthru
        _
      // Predicated region
      $region69: #{rnn_forward.1} parent=55 // pred_check
        %p3732 = pneg %p277
      $region70: #{rnn_forward.1} parent=55 // pred_check_branch
        %3734 = sbr.rel (%p3732) target = $region72
      $region71: #{rnn_forward.1} parent=55 // pred_region
        _
      $region72: #{rnn_forward.1} parent=55 // pred_fallthru
        _
      // Predicated region
      $region73: #{rnn_forward.1} parent=55 // pred_check
        %p3735 = pneg %p256
      $region74: #{rnn_forward.1} parent=55 // pred_check_branch
        %3737 = sbr.rel (%p3735) target = $region76
      $region75: #{rnn_forward.1} parent=55 // pred_region
        _
      $region76: #{rnn_forward.1} parent=55 // pred_fallthru
        _
      // Predicated region
      $region77: #{rnn_forward.1} parent=55 // pred_check
        %p3738 = pneg %p277
      $region78: #{rnn_forward.1} parent=55 // pred_check_branch
        %3740 = sbr.rel (%p3738) target = $region80
      $region79: #{rnn_forward.1} parent=55 // pred_region
        _
      $region80: #{rnn_forward.1} parent=55 // pred_fallthru
        _
    $region56: #{rnn_forward.1} parent=5 // pred_fallthru
      _
    %p3741 = scmp.le.s32.totalorder 2, %s18
    // Predicated region
    $region81: #{rnn_forward.1} parent=5 // pred_check
      %p3742 = pneg %p3741
    $region82: #{rnn_forward.1} parent=5 // pred_check_branch
      %3744 = sbr.rel (%p3742) target = $region84
    $region83: #{rnn_forward.1} parent=5 // pred_region
      %s3745 = ssub.s32 %s18, 2
      // Predicated region
      $region85: #{rnn_forward.1} parent=83 // pred_check
        %p3746 = pneg %p241
      $region86: #{rnn_forward.1} parent=83 // pred_check_branch
        %3748 = sbr.rel (%p3746) target = $region88
      $region87: #{rnn_forward.1} parent=83 // pred_region
        %s3749 = smul.u32 8, %s24
        %p3750 = scmp.lt.s32.totalorder %s3749, 15
        %s3751 = scalar_select %p3750, %s3749, 15
        %s3752 = smul.addr %s3751, 8
        %s3753 = scalar_lea.vmem %s9, %s3752
      $region88: #{rnn_forward.1} parent=83 // pred_fallthru
        _
    $region84: #{rnn_forward.1} parent=5 // pred_fallthru
      _
  $region6: #{rnn_forward.1} parent=0 // loop_footer
    %s22 = sadd.s32 1, %s18
  $region7: #{rnn_forward.1} parent=0 // loop_footer_branch
    %17 = sbr.rel target = $region3
  $region8: #{rnn_forward.1} parent=0 // loop_exit
    _

</llo_original>
